<compile_context>
chip_gen: v6e
topology: v6e:2x2x1
jax: 0.10.0
libtpu: 0.0.40
codegen_flags: <defaults>
</compile_context>

<pallas_src>
import functools
import math

import jax
import jax.numpy as jnp
from jax.experimental import pallas as pl
from jax.experimental.pallas import tpu as pltpu


_BUFFERED = getattr(pl, "Buffered", None)


def _transformer_block_kernel(
    x_ref,                     # (1, S, F_in)  f32 / bf16
    we_ref, be_ref,            # (F_in, F) bf16, (1, F) f32
    wq_ref, bq_ref,            # (F, F)    bf16, (1, F) f32   (1/sqrt(D) pre-folded)
    wk_ref, bk_ref,            # (F, F)    bf16, (1, F) f32
    wv_ref, bv_ref,            # (F, F)    bf16, (1, F) f32
    w0_ref, b0_ref,            # (F, F)    bf16, (1, F) f32
    w1_ref, b1_ref,            # (F, F)    bf16, (1, F) f32
    w2_ref, b2_ref,            # (F, F)    bf16, (1, F) f32
    o_ref,                     # (1, TQ, F)
    e_sc,                      # (S, F)    f32  scratch: embeddings (residual stream)
    k_sc, v_sc,                # (H, S, D) bf16 scratch: per-head keys / values
):
    f32, bf16 = jnp.float32, jnp.bfloat16
    H, S, D = k_sc.shape
    F = e_sc.shape[1]
    TQ = o_ref.shape[1]
    qt = pl.program_id(1)

    # ---- once per batch element: embedding + K / V (full-width matmuls) into scratch ----
    @pl.when(qt == 0)
    def _():
        x = x_ref[0].astype(bf16)                                            # (S, F_in)
        e = jnp.dot(x, we_ref[...], preferred_element_type=f32) + be_ref[...]
        e_sc[...] = e                                                        # (S, F) f32
        e_b = e.astype(bf16)
        k = jnp.dot(e_b, wk_ref[...], preferred_element_type=f32) + bk_ref[...]
        v = jnp.dot(e_b, wv_ref[...], preferred_element_type=f32) + bv_ref[...]
        # split heads once per batch element (cheap relayout vs. per-tile work)
        k_sc[...] = jnp.swapaxes(k.astype(bf16).reshape(S, H, D), 0, 1)      # (H, S, D)
        v_sc[...] = jnp.swapaxes(v.astype(bf16).reshape(S, H, D), 0, 1)

    # ---- per query tile ----
    q_start = pl.multiple_of(qt * TQ, TQ)
    e_t = e_sc[pl.ds(q_start, TQ), :]                                        # (TQ, F) f32

    # Q projection: one (TQ, F) x (F, F) matmul; scale already folded into wq/bq.
    q = jnp.dot(e_t.astype(bf16), wq_ref[...], preferred_element_type=f32) + bq_ref[...]
    qh = jnp.swapaxes(q.astype(bf16).reshape(TQ, H, D), 0, 1)                # (H, TQ, D)

    scores = jnp.einsum("hqd,hkd->hqk", qh, k_sc[...],
                        preferred_element_type=f32)                          # (H, TQ, S)
    scores = scores - jnp.max(scores, axis=-1, keepdims=True)
    p = jnp.exp(scores)
    p = p * pl.reciprocal(jnp.sum(p, axis=-1, keepdims=True), approx=True)

    head_out = jnp.einsum("hqk,hkd->hqd", p.astype(bf16), v_sc[...],
                          preferred_element_type=f32)                        # (H, TQ, D)
    # merge heads -> (TQ, F), then a single full-width output projection
    head_flat = jnp.swapaxes(head_out.astype(bf16), 0, 1).reshape(TQ, F)
    attn = jnp.dot(head_flat, w0_ref[...], preferred_element_type=f32) + b0_ref[...]

    mha = e_t + attn
    h1 = jnp.maximum(
        jnp.dot(mha.astype(bf16), w1_ref[...], preferred_element_type=f32) + b1_ref[...],
        0.0)
    ffn = jnp.dot(h1.astype(bf16), w2_ref[...], preferred_element_type=f32) + b2_ref[...]

    o_ref[0] = (mha + ffn).astype(o_ref.dtype)


def _const_spec(arr):
    """BlockSpec for a weight that is identical for every grid step (single-buffered)."""
    nd = arr.ndim
    index_map = lambda b, qt: (0,) * nd
    if _BUFFERED is not None:
        try:
            # Constant index map -> never re-fetched; one VMEM buffer suffices (halves
            # weight VMEM vs. the default double-buffering).
            return pl.BlockSpec(arr.shape, index_map, pipeline_mode=_BUFFERED(1))
        except TypeError:
            pass
    return pl.BlockSpec(arr.shape, index_map)


def _pick_q_block(S):
    # Prefer MXU/lane-friendly 256 / 128 query tiles; fall back for small sequences.
    for t in (256, 128):
        if S % t == 0 and S >= 2 * t:
            return t
    if S % 128 == 0:
        return 128
    start = min(S, 256) - (min(S, 256) % 16)
    for t in range(start, 15, -16):
        if S % t == 0:
            return t
    return S


def _vmem_limit_bytes(need_bytes):
    try:
        cap = int(pltpu.get_tpu_info().vmem_capacity_bytes)
    except Exception:
        cap = 64 * 2**20
    # headroom for Mosaic-internal scratch: <=56 MiB on 64 MiB parts (v7x),
    # up to 100 MiB on 128 MiB parts (v5e / v6e).
    head_cap = max(32 * 2**20, min(100 * 2**20, cap - 8 * 2**20))
    return int(min(head_cap, max(32 * 2**20, need_bytes)))


def transformer_block(x, prepared, *, num_heads, q_block=None, out_dtype=jnp.float32):
    """One TransformerBlock. x: (B, S, F_in); prepared: output of prepare_block_params."""
    B, S, F_in = x.shape
    F = prepared["we"].shape[1]
    assert F % num_heads == 0, "out_features must be a multiple of num_heads"
    H, D = num_heads, F // num_heads

    TQ = _pick_q_block(S) if q_block is None else q_block
    assert TQ == S or (TQ % 16 == 0 and S % TQ == 0), \
        "q_block must divide S and be a multiple of 16 (or equal S)"
    n_qt = S // TQ

    f32, bf16 = jnp.float32, jnp.bfloat16
    names = ("we", "be", "wq", "bq", "wk", "bk", "wv", "bv",
             "w0", "b0", "w1", "b1", "w2", "b2")
    weights = [prepared[n] for n in names]

    in_specs = [pl.BlockSpec((1, S, F_in), lambda b, qt: (b, 0, 0))]
    in_specs += [_const_spec(w) for w in weights]
    out_spec = pl.BlockSpec((1, TQ, F), lambda b, qt: (b, qt, 0))

    scratch_shapes = [
        pltpu.VMEM((S, F), f32),        # embeddings (residual stream)
        pltpu.VMEM((H, S, D), bf16),    # per-head keys
        pltpu.VMEM((H, S, D), bf16),    # per-head values
    ]

    # Exact working-set budget (the limit is a cap, not a reservation).
    weight_bytes = sum(w.size * w.dtype.itemsize for w in weights)
    w_mult = 1 if _BUFFERED is not None else 2
    x_block_bytes = S * F_in * x.dtype.itemsize
    out_block_bytes = TQ * F * jnp.dtype(out_dtype).itemsize
    scratch_bytes = S * F * 4 + 2 * H * S * D * 2
    interm_bytes = (2 * H * TQ * S * 4        # scores + softmax probs (f32)
                    + 8 * TQ * F * 4          # q / attn / mha / h1 / ffn temporaries
                    + 2 * S * F * 4)          # k / v f32 temporaries at qt == 0
    need = (2 * x_block_bytes + 2 * out_block_bytes + w_mult * weight_bytes
            + scratch_bytes + interm_bytes + 4 * 2**20)

    return pl.pallas_call(
        _transformer_block_kernel,
        out_shape=jax.ShapeDtypeStruct((B, S, F), out_dtype),
        grid_spec=pltpu.PrefetchScalarGridSpec(
            num_scalar_prefetch=0,
            grid=(B, n_qt),
            in_specs=in_specs,
            out_specs=out_spec,
            scratch_shapes=scratch_shapes,
        ),
        compiler_params=pltpu.CompilerParams(
            # qt stays "arbitrary": the qt==0 precompute writes scratch reused by
            # later query tiles of the same batch element (see TODO at top).
            dimension_semantics=("parallel", "arbitrary"),
            vmem_limit_bytes=_vmem_limit_bytes(need),
        ),
    )(x, *weights)


# ----------------------------- parameter preparation ----------------------------
def prepare_block_params(p, num_heads):
    """Cast weights to bf16 / biases to f32 and fold 1/sqrt(head_dim) into wq, bq.
    Runs once at init (outside the jitted forward)."""
    f32, bf16 = jnp.float32, jnp.bfloat16
    F = p["we"].shape[1]
    D = F // num_heads
    inv_scale = 1.0 / math.sqrt(D)
    out = {
        "we": p["we"].astype(bf16), "be": p["be"].astype(f32),
        "wq": (p["wq"] * inv_scale).astype(bf16), "bq": (p["bq"] * inv_scale).astype(f32),
        "wk": p["wk"].astype(bf16), "bk": p["bk"].astype(f32),
        "wv": p["wv"].astype(bf16), "bv": p["bv"].astype(f32),
        "w0": p["w0"].astype(bf16), "b0": p["b0"].astype(f32),
        "w1": p["w1"].astype(bf16), "b1": p["b1"].astype(f32),
        "w2": p["w2"].astype(bf16), "b2": p["b2"].astype(f32),
    }
    return out


def prepare_encoder_params(layer_params, num_heads):
    return [prepare_block_params(p, num_heads) for p in layer_params]


@functools.partial(jax.jit, static_argnames=("num_heads", "q_block"))
def transformer_encoder(x, prepared_layers, *, num_heads, q_block=None):
    n = len(prepared_layers)
    for i, p in enumerate(prepared_layers):
        # intermediate layers emit bf16 (consumed as bf16 by the next embedding matmul);
        # the final layer emits f32.
        out_dtype = jnp.float32 if i == n - 1 else jnp.bfloat16
        x = transformer_block(x, p, num_heads=num_heads, q_block=q_block,
                              out_dtype=out_dtype)
    return x


# ----------------------------- parameter init -----------------------------
def _init_linear(key, din, dout):
    k1, k2 = jax.random.split(key)
    bound = 1.0 / math.sqrt(din)
    w = jax.random.uniform(k1, (din, dout), jnp.float32, -bound, bound)
    b = jax.random.uniform(k2, (1, dout), jnp.float32, -bound, bound)
    return w, b


def init_block_params(key, in_features, out_features):
    names = ["we", "wq", "wk", "wv", "w0", "w1", "w2"]
    dins = [in_features] + [out_features] * 6
    params = {}
    for name, din in zip(names, dins):
        key, sub = jax.random.split(key)
        w, b = _init_linear(sub, din, out_features)
        params[name] = w
        params["b" + name[1:]] = b
    return params


def init_encoder_params(key, in_features, out_features, num_layers):
    layers = []
    din = in_features
    for _ in range(num_layers):
        key, sub = jax.random.split(key)
        layers.append(init_block_params(sub, din, out_features))
        din = out_features
    return layers


# ----------------------------- pure-JAX reference -----------------------------
def _reference_block(x, p, num_heads):
    f32, bf16 = jnp.float32, jnp.bfloat16

    def mm(a, w):  # mirror the kernel's bf16-operand / f32-accumulate matmuls
        return jnp.dot(a.astype(bf16), w.astype(bf16), preferred_element_type=f32)

    B, S, _ = x.shape
    F = p["we"].shape[1]
    D = F // num_heads
    e = mm(x, p["we"]) + p["be"]
    q = mm(e, p["wq"]) + p["bq"]
    k = mm(e, p["wk"]) + p["bk"]
    v = mm(e, p["wv"]) + p["bv"]

    def split(t):  # (B, S, F) -> (B, H, S, D)
        return t.reshape(B, S, num_heads, D).transpose(0, 2, 1, 3)

    qh, kh, vh = split(q), split(k), split(v)
    scores = jnp.einsum("bhqd,bhkd->bhqk", qh.astype(bf16), kh.astype(bf16),
                        preferred_element_type=f32) / math.sqrt(D)
    attw = jax.nn.softmax(scores, axis=-1)
    attn = jnp.einsum("bhqk,bhkd->bhqd", attw.astype(bf16), vh.astype(bf16),
                      preferred_element_type=f32)
    attn = attn.transpose(0, 2, 1, 3).reshape(B, S, F)
    attn = mm(attn, p["w0"]) + p["b0"]
    mha = e + attn
    h1 = jax.nn.relu(mm(mha, p["w1"]) + p["b1"])
    return mha + mm(h1, p["w2"]) + p["b2"]


def reference_encoder(x, layer_params, *, num_heads):
    for p in layer_params:
        x = _reference_block(x, p, num_heads)
    return x


if __name__ == "__main__":
    B, S = 2, 32
    in_features, out_features, num_heads, num_layers = 16, 32, 4, 2

    key = jax.random.PRNGKey(0)
    key, kx = jax.random.split(key)
    x = jax.random.normal(kx, (B, S, in_features), jnp.float32)
    layers = init_encoder_params(key, in_features, out_features, num_layers)
    prepared = prepare_encoder_params(layers, num_heads)

    # q_block=16 tiles the 32-token sequence into two query blocks, exercising the
    # (batch, query-tile) grid and the per-batch K/V scratch reuse.
    out = transformer_encoder(x, prepared, num_heads=num_heads, q_block=16)
    out = jax.block_until_ready(out)

    ref = reference_encoder(x, layers, num_heads=num_heads)
    assert out.shape == (B, S, out_features)
    assert out.dtype == jnp.float32
    assert jnp.allclose(out, ref, atol=3e-2, rtol=3e-2), (
        "mismatch vs reference: max abs err = %f" % float(jnp.max(jnp.abs(out - ref))))

    print("KERNEL_OK")
</pallas_src>

<mosaic_0001>
module attributes {stable_mosaic.version = 11 : i64} {
  func.func @_transformer_block_kernel(%arg0: i32, %arg1: i32, %arg2: memref<1x32x32xbf16, #tpu.memory_space<vmem>>, %arg3: memref<32x32xbf16, #tpu.memory_space<vmem>>, %arg4: memref<1x32xf32, #tpu.memory_space<vmem>>, %arg5: memref<32x32xbf16, #tpu.memory_space<vmem>>, %arg6: memref<1x32xf32, #tpu.memory_space<vmem>>, %arg7: memref<32x32xbf16, #tpu.memory_space<vmem>>, %arg8: memref<1x32xf32, #tpu.memory_space<vmem>>, %arg9: memref<32x32xbf16, #tpu.memory_space<vmem>>, %arg10: memref<1x32xf32, #tpu.memory_space<vmem>>, %arg11: memref<32x32xbf16, #tpu.memory_space<vmem>>, %arg12: memref<1x32xf32, #tpu.memory_space<vmem>>, %arg13: memref<32x32xbf16, #tpu.memory_space<vmem>>, %arg14: memref<1x32xf32, #tpu.memory_space<vmem>>, %arg15: memref<32x32xbf16, #tpu.memory_space<vmem>>, %arg16: memref<1x32xf32, #tpu.memory_space<vmem>>, %arg17: memref<1x16x32xf32, #tpu.memory_space<vmem>>, %arg18: memref<32x32xf32, #tpu.memory_space<vmem>>, %arg19: memref<4x32x8xbf16, #tpu.memory_space<vmem>>, %arg20: memref<4x32x8xbf16, #tpu.memory_space<vmem>>) attributes {dimension_semantics = [#tpu.dimension_semantics<parallel>, #tpu.dimension_semantics<arbitrary>], iteration_bounds = array<i64: 2, 2>, scalar_prefetch = 0 : i64, scratch_operands = 3 : i64, tpu.core_type = #tpu.core_type<tc>, window_params = [{transform_indices = @transform_0, window_bounds = array<i64: 1, 32, 32>}, {pipeline_mode = #tpu.pipeline_mode<synchronous>, transform_indices = @transform_1, window_bounds = array<i64: 32, 32>}, {pipeline_mode = #tpu.pipeline_mode<synchronous>, transform_indices = @transform_2, window_bounds = array<i64: 1, 32>}, {pipeline_mode = #tpu.pipeline_mode<synchronous>, transform_indices = @transform_3, window_bounds = array<i64: 32, 32>}, {pipeline_mode = #tpu.pipeline_mode<synchronous>, transform_indices = @transform_4, window_bounds = array<i64: 1, 32>}, {pipeline_mode = #tpu.pipeline_mode<synchronous>, transform_indices = @transform_5, window_bounds = array<i64: 32, 32>}, {pipeline_mode = #tpu.pipeline_mode<synchronous>, transform_indices = @transform_6, window_bounds = array<i64: 1, 32>}, {pipeline_mode = #tpu.pipeline_mode<synchronous>, transform_indices = @transform_7, window_bounds = array<i64: 32, 32>}, {pipeline_mode = #tpu.pipeline_mode<synchronous>, transform_indices = @transform_8, window_bounds = array<i64: 1, 32>}, {pipeline_mode = #tpu.pipeline_mode<synchronous>, transform_indices = @transform_9, window_bounds = array<i64: 32, 32>}, {pipeline_mode = #tpu.pipeline_mode<synchronous>, transform_indices = @transform_10, window_bounds = array<i64: 1, 32>}, {pipeline_mode = #tpu.pipeline_mode<synchronous>, transform_indices = @transform_11, window_bounds = array<i64: 32, 32>}, {pipeline_mode = #tpu.pipeline_mode<synchronous>, transform_indices = @transform_12, window_bounds = array<i64: 1, 32>}, {pipeline_mode = #tpu.pipeline_mode<synchronous>, transform_indices = @transform_13, window_bounds = array<i64: 32, 32>}, {pipeline_mode = #tpu.pipeline_mode<synchronous>, transform_indices = @transform_14, window_bounds = array<i64: 1, 32>}, {transform_indices = @transform_15, window_bounds = array<i64: 1, 16, 32>}]} {
    %c0_i32 = arith.constant 0 : i32
    %0 = arith.cmpi eq, %arg1, %c0_i32 : i32
    %1 = arith.extui %0 : i1 to i32
    %c0_i32_0 = arith.constant 0 : i32
    %2 = arith.cmpi ne, %1, %c0_i32_0 : i32
    scf.if %2 {
      %c0_34 = arith.constant 0 : index
      %c0_35 = arith.constant 0 : index
      %c0_36 = arith.constant 0 : index
      %58 = vector.load %arg2[%c0_34, %c0_35, %c0_36] : memref<1x32x32xbf16, #tpu.memory_space<vmem>>, vector<1x32x32xbf16>
      %59 = vector.shape_cast %58 : vector<1x32x32xbf16> to vector<32x32xbf16>
      %c0_37 = arith.constant 0 : index
      %c0_38 = arith.constant 0 : index
      %60 = vector.load %arg3[%c0_37, %c0_38] : memref<32x32xbf16, #tpu.memory_space<vmem>>, vector<32x32xbf16>
      %cst_39 = arith.constant dense<0.000000e+00> : vector<32x32xf32>
      %61 = tpu.matmul %59, %60, %cst_39 {dimension_numbers = #tpu.dot_dimension_numbers<[1], [0], [0], [1], [0, 0, 1, 1], [], []>} : vector<32x32xbf16>, vector<32x32xbf16>, vector<32x32xf32> -> vector<32x32xf32>
      %c0_40 = arith.constant 0 : index
      %c0_41 = arith.constant 0 : index
      %62 = vector.load %arg4[%c0_40, %c0_41] : memref<1x32xf32, #tpu.memory_space<vmem>>, vector<1x32xf32>
      %63 = vector.broadcast %62 : vector<1x32xf32> to vector<32x32xf32>
      %64 = arith.addf %61, %63 : vector<32x32xf32>
      %c0_42 = arith.constant 0 : index
      %c0_43 = arith.constant 0 : index
      %65 = vector.load %arg18[%c0_42, %c0_43] : memref<32x32xf32, #tpu.memory_space<vmem>>, vector<32x32xf32>
      tpu.vector_store %arg18[%c0_42, %c0_43], %64 {strides = array<i32>} : memref<32x32xf32, #tpu.memory_space<vmem>>, vector<32x32xf32>,
      %66 = arith.truncf %64 : vector<32x32xf32> to vector<32x32xbf16>
      %c0_44 = arith.constant 0 : index
      %c0_45 = arith.constant 0 : index
      %67 = vector.load %arg7[%c0_44, %c0_45] : memref<32x32xbf16, #tpu.memory_space<vmem>>, vector<32x32xbf16>
      %cst_46 = arith.constant dense<0.000000e+00> : vector<32x32xf32>
      %68 = tpu.matmul %66, %67, %cst_46 {dimension_numbers = #tpu.dot_dimension_numbers<[1], [0], [0], [1], [0, 0, 1, 1], [], []>} : vector<32x32xbf16>, vector<32x32xbf16>, vector<32x32xf32> -> vector<32x32xf32>
      %c0_47 = arith.constant 0 : index
      %c0_48 = arith.constant 0 : index
      %69 = vector.load %arg8[%c0_47, %c0_48] : memref<1x32xf32, #tpu.memory_space<vmem>>, vector<1x32xf32>
      %70 = vector.broadcast %69 : vector<1x32xf32> to vector<32x32xf32>
      %71 = arith.addf %68, %70 : vector<32x32xf32>
      %c0_49 = arith.constant 0 : index
      %c0_50 = arith.constant 0 : index
      %72 = vector.load %arg9[%c0_49, %c0_50] : memref<32x32xbf16, #tpu.memory_space<vmem>>, vector<32x32xbf16>
      %cst_51 = arith.constant dense<0.000000e+00> : vector<32x32xf32>
      %73 = tpu.matmul %66, %72, %cst_51 {dimension_numbers = #tpu.dot_dimension_numbers<[1], [0], [0], [1], [0, 0, 1, 1], [], []>} : vector<32x32xbf16>, vector<32x32xbf16>, vector<32x32xf32> -> vector<32x32xf32>
      %c0_52 = arith.constant 0 : index
      %c0_53 = arith.constant 0 : index
      %74 = vector.load %arg10[%c0_52, %c0_53] : memref<1x32xf32, #tpu.memory_space<vmem>>, vector<1x32xf32>
      %75 = vector.broadcast %74 : vector<1x32xf32> to vector<32x32xf32>
      %76 = arith.addf %73, %75 : vector<32x32xf32>
      %77 = arith.truncf %71 : vector<32x32xf32> to vector<32x32xbf16>
      %78 = vector.shape_cast %77 : vector<32x32xbf16> to vector<32x4x8xbf16>
      %79 = tpu.transpose %78, [1, 0, 2] : vector<32x4x8xbf16> -> vector<4x32x8xbf16>
      %c0_54 = arith.constant 0 : index
      %c0_55 = arith.constant 0 : index
      %c0_56 = arith.constant 0 : index
      %80 = vector.load %arg19[%c0_54, %c0_55, %c0_56] : memref<4x32x8xbf16, #tpu.memory_space<vmem>>, vector<4x32x8xbf16>
      tpu.vector_store %arg19[%c0_54, %c0_55, %c0_56], %79 {strides = array<i32>} : memref<4x32x8xbf16, #tpu.memory_space<vmem>>, vector<4x32x8xbf16>,
      %81 = arith.truncf %76 : vector<32x32xf32> to vector<32x32xbf16>
      %82 = vector.shape_cast %81 : vector<32x32xbf16> to vector<32x4x8xbf16>
      %83 = tpu.transpose %82, [1, 0, 2] : vector<32x4x8xbf16> -> vector<4x32x8xbf16>
      %c0_57 = arith.constant 0 : index
      %c0_58 = arith.constant 0 : index
      %c0_59 = arith.constant 0 : index
      %84 = vector.load %arg20[%c0_57, %c0_58, %c0_59] : memref<4x32x8xbf16, #tpu.memory_space<vmem>>, vector<4x32x8xbf16>
      tpu.vector_store %arg20[%c0_57, %c0_58, %c0_59], %83 {strides = array<i32>} : memref<4x32x8xbf16, #tpu.memory_space<vmem>>, vector<4x32x8xbf16>,
    } else {
    }
    %c16_i32 = arith.constant 16 : i32
    %3 = arith.muli %arg1, %c16_i32 : i32
    %4 = tpu.assume_multiple %3, 16 : i32
    %5 = arith.index_cast %4 : i32 to index
    %c0 = arith.constant 0 : index
    %6 = vector.load %arg18[%5, %c0] : memref<32x32xf32, #tpu.memory_space<vmem>>, vector<16x32xf32>
    %7 = arith.truncf %6 : vector<16x32xf32> to vector<16x32xbf16>
    %c0_1 = arith.constant 0 : index
    %c0_2 = arith.constant 0 : index
    %8 = vector.load %arg5[%c0_1, %c0_2] : memref<32x32xbf16, #tpu.memory_space<vmem>>, vector<32x32xbf16>
    %cst = arith.constant dense<0.000000e+00> : vector<16x32xf32>
    %9 = tpu.matmul %7, %8, %cst {dimension_numbers = #tpu.dot_dimension_numbers<[1], [0], [0], [1], [0, 0, 1, 1], [], []>} : vector<16x32xbf16>, vector<32x32xbf16>, vector<16x32xf32> -> vector<16x32xf32>
    %c0_3 = arith.constant 0 : index
    %c0_4 = arith.constant 0 : index
    %10 = vector.load %arg6[%c0_3, %c0_4] : memref<1x32xf32, #tpu.memory_space<vmem>>, vector<1x32xf32>
    %11 = vector.broadcast %10 : vector<1x32xf32> to vector<16x32xf32>
    %12 = arith.addf %9, %11 : vector<16x32xf32>
    %13 = arith.truncf %12 : vector<16x32xf32> to vector<16x32xbf16>
    %14 = vector.shape_cast %13 : vector<16x32xbf16> to vector<16x4x8xbf16>
    %15 = tpu.transpose %14, [1, 0, 2] : vector<16x4x8xbf16> -> vector<4x16x8xbf16>
    %c0_5 = arith.constant 0 : index
    %c0_6 = arith.constant 0 : index
    %c0_7 = arith.constant 0 : index
    %16 = vector.load %arg19[%c0_5, %c0_6, %c0_7] : memref<4x32x8xbf16, #tpu.memory_space<vmem>>, vector<4x32x8xbf16>
    "tpu.trace_start"() <{level = 10 : i32, message = "hqd,hkd->hqk"}> : () -> ()
    %cst_8 = arith.constant dense<0.000000e+00> : vector<4x16x32xf32>
    %17 = tpu.matmul %15, %16, %cst_8 {dimension_numbers = #tpu.dot_dimension_numbers<[2], [2], [1], [1], [0, 0, 0, 1, 1, 1], [0], [0]>} : vector<4x16x8xbf16>, vector<4x32x8xbf16>, vector<4x16x32xf32> -> vector<4x16x32xf32>
    "tpu.trace_stop"() : () -> ()
    %cst_9 = arith.constant dense<0xFF800000> : vector<4x16xf32>
    %18 = vector.multi_reduction <maximumf>, %17, %cst_9 [2] : vector<4x16x32xf32> to vector<4x16xf32>
    %19 = vector.shape_cast %18 : vector<4x16xf32> to vector<4x16x1xf32>
    %20 = vector.broadcast %19 : vector<4x16x1xf32> to vector<4x16x32xf32>
    %21 = arith.subf %17, %20 : vector<4x16x32xf32>
    %22 = math.exp %21 : vector<4x16x32xf32>
    %cst_10 = arith.constant dense<0.000000e+00> : vector<4x16xf32>
    %23 = vector.multi_reduction <add>, %22, %cst_10 [2] : vector<4x16x32xf32> to vector<4x16xf32>
    %24 = vector.shape_cast %23 : vector<4x16xf32> to vector<4x16x1xf32>
    %25 = tpu.reciprocal %24 {approx = true} : vector<4x16x1xf32> -> vector<4x16x1xf32>
    %26 = vector.broadcast %25 : vector<4x16x1xf32> to vector<4x16x32xf32>
    %27 = arith.mulf %22, %26 : vector<4x16x32xf32>
    %28 = arith.truncf %27 : vector<4x16x32xf32> to vector<4x16x32xbf16>
    %c0_11 = arith.constant 0 : index
    %c0_12 = arith.constant 0 : index
    %c0_13 = arith.constant 0 : index
    %29 = vector.load %arg20[%c0_11, %c0_12, %c0_13] : memref<4x32x8xbf16, #tpu.memory_space<vmem>>, vector<4x32x8xbf16>
    "tpu.trace_start"() <{level = 10 : i32, message = "hqk,hkd->hqd"}> : () -> ()
    %cst_14 = arith.constant dense<0.000000e+00> : vector<4x16x8xf32>
    %30 = tpu.matmul %28, %29, %cst_14 {dimension_numbers = #tpu.dot_dimension_numbers<[2], [1], [1], [2], [0, 0, 0, 1, 1, 2], [0], [0]>} : vector<4x16x32xbf16>, vector<4x32x8xbf16>, vector<4x16x8xf32> -> vector<4x16x8xf32>
    "tpu.trace_stop"() : () -> ()
    %31 = arith.truncf %30 : vector<4x16x8xf32> to vector<4x16x8xbf16>
    %32 = tpu.transpose %31, [1, 0, 2] : vector<4x16x8xbf16> -> vector<16x4x8xbf16>
    %33 = vector.shape_cast %32 : vector<16x4x8xbf16> to vector<16x32xbf16>
    %c0_15 = arith.constant 0 : index
    %c0_16 = arith.constant 0 : index
    %34 = vector.load %arg11[%c0_15, %c0_16] : memref<32x32xbf16, #tpu.memory_space<vmem>>, vector<32x32xbf16>
    %cst_17 = arith.constant dense<0.000000e+00> : vector<16x32xf32>
    %35 = tpu.matmul %33, %34, %cst_17 {dimension_numbers = #tpu.dot_dimension_numbers<[1], [0], [0], [1], [0, 0, 1, 1], [], []>} : vector<16x32xbf16>, vector<32x32xbf16>, vector<16x32xf32> -> vector<16x32xf32>
    %c0_18 = arith.constant 0 : index
    %c0_19 = arith.constant 0 : index
    %36 = vector.load %arg12[%c0_18, %c0_19] : memref<1x32xf32, #tpu.memory_space<vmem>>, vector<1x32xf32>
    %37 = vector.broadcast %36 : vector<1x32xf32> to vector<16x32xf32>
    %38 = arith.addf %35, %37 : vector<16x32xf32>
    %39 = arith.addf %6, %38 : vector<16x32xf32>
    %40 = arith.truncf %39 : vector<16x32xf32> to vector<16x32xbf16>
    %c0_20 = arith.constant 0 : index
    %c0_21 = arith.constant 0 : index
    %41 = vector.load %arg13[%c0_20, %c0_21] : memref<32x32xbf16, #tpu.memory_space<vmem>>, vector<32x32xbf16>
    %cst_22 = arith.constant dense<0.000000e+00> : vector<16x32xf32>
    %42 = tpu.matmul %40, %41, %cst_22 {dimension_numbers = #tpu.dot_dimension_numbers<[1], [0], [0], [1], [0, 0, 1, 1], [], []>} : vector<16x32xbf16>, vector<32x32xbf16>, vector<16x32xf32> -> vector<16x32xf32>
    %c0_23 = arith.constant 0 : index
    %c0_24 = arith.constant 0 : index
    %43 = vector.load %arg14[%c0_23, %c0_24] : memref<1x32xf32, #tpu.memory_space<vmem>>, vector<1x32xf32>
    %44 = vector.broadcast %43 : vector<1x32xf32> to vector<16x32xf32>
    %45 = arith.addf %42, %44 : vector<16x32xf32>
    %cst_25 = arith.constant 0.000000e+00 : f32
    %46 = vector.broadcast %cst_25 : f32 to vector<16x32xf32>
    %47 = arith.maximumf %45, %46 : vector<16x32xf32>
    %48 = arith.truncf %47 : vector<16x32xf32> to vector<16x32xbf16>
    %c0_26 = arith.constant 0 : index
    %c0_27 = arith.constant 0 : index
    %49 = vector.load %arg15[%c0_26, %c0_27] : memref<32x32xbf16, #tpu.memory_space<vmem>>, vector<32x32xbf16>
    %cst_28 = arith.constant dense<0.000000e+00> : vector<16x32xf32>
    %50 = tpu.matmul %48, %49, %cst_28 {dimension_numbers = #tpu.dot_dimension_numbers<[1], [0], [0], [1], [0, 0, 1, 1], [], []>} : vector<16x32xbf16>, vector<32x32xbf16>, vector<16x32xf32> -> vector<16x32xf32>
    %c0_29 = arith.constant 0 : index
    %c0_30 = arith.constant 0 : index
    %51 = vector.load %arg16[%c0_29, %c0_30] : memref<1x32xf32, #tpu.memory_space<vmem>>, vector<1x32xf32>
    %52 = vector.broadcast %51 : vector<1x32xf32> to vector<16x32xf32>
    %53 = arith.addf %50, %52 : vector<16x32xf32>
    %54 = arith.addf %39, %53 : vector<16x32xf32>
    %c0_31 = arith.constant 0 : index
    %c0_32 = arith.constant 0 : index
    %c0_33 = arith.constant 0 : index
    %55 = vector.load %arg17[%c0_31, %c0_32, %c0_33] : memref<1x16x32xf32, #tpu.memory_space<vmem>>, vector<1x16x32xf32>
    %56 = vector.shape_cast %55 : vector<1x16x32xf32> to vector<16x32xf32>
    %57 = vector.shape_cast %54 : vector<16x32xf32> to vector<1x16x32xf32>
    tpu.vector_store %arg17[%c0_31, %c0_32, %c0_33], %57 {strides = array<i32>} : memref<1x16x32xf32, #tpu.memory_space<vmem>>, vector<1x16x32xf32>,
    return
  }
  func.func @transform_0(%arg0: i32, %arg1: i32) -> (i32, i32, i32) {
    %c0_i32 = arith.constant 0 : i32
    %c0_i32_0 = arith.constant 0 : i32
    %c0_i32_1 = arith.constant 0 : i32
    return %arg0, %c0_i32, %c0_i32_0 : i32, i32, i32
  }
  func.func @transform_1(%arg0: i32, %arg1: i32) -> (i32, i32) {
    %c0_i32 = arith.constant 0 : i32
    %c0_i32_0 = arith.constant 0 : i32
    %c0_i32_1 = arith.constant 0 : i32
    return %c0_i32, %c0_i32_0 : i32, i32
  }
  func.func @transform_2(%arg0: i32, %arg1: i32) -> (i32, i32) {
    %c0_i32 = arith.constant 0 : i32
    %c0_i32_0 = arith.constant 0 : i32
    %c0_i32_1 = arith.constant 0 : i32
    return %c0_i32, %c0_i32_0 : i32, i32
  }
  func.func @transform_3(%arg0: i32, %arg1: i32) -> (i32, i32) {
    %c0_i32 = arith.constant 0 : i32
    %c0_i32_0 = arith.constant 0 : i32
    %c0_i32_1 = arith.constant 0 : i32
    return %c0_i32, %c0_i32_0 : i32, i32
  }
  func.func @transform_4(%arg0: i32, %arg1: i32) -> (i32, i32) {
    %c0_i32 = arith.constant 0 : i32
    %c0_i32_0 = arith.constant 0 : i32
    %c0_i32_1 = arith.constant 0 : i32
    return %c0_i32, %c0_i32_0 : i32, i32
  }
  func.func @transform_5(%arg0: i32, %arg1: i32) -> (i32, i32) {
    %c0_i32 = arith.constant 0 : i32
    %c0_i32_0 = arith.constant 0 : i32
    %c0_i32_1 = arith.constant 0 : i32
    return %c0_i32, %c0_i32_0 : i32, i32
  }
  func.func @transform_6(%arg0: i32, %arg1: i32) -> (i32, i32) {
    %c0_i32 = arith.constant 0 : i32
    %c0_i32_0 = arith.constant 0 : i32
    %c0_i32_1 = arith.constant 0 : i32
    return %c0_i32, %c0_i32_0 : i32, i32
  }
  func.func @transform_7(%arg0: i32, %arg1: i32) -> (i32, i32) {
    %c0_i32 = arith.constant 0 : i32
    %c0_i32_0 = arith.constant 0 : i32
    %c0_i32_1 = arith.constant 0 : i32
    return %c0_i32, %c0_i32_0 : i32, i32
  }
  func.func @transform_8(%arg0: i32, %arg1: i32) -> (i32, i32) {
    %c0_i32 = arith.constant 0 : i32
    %c0_i32_0 = arith.constant 0 : i32
    %c0_i32_1 = arith.constant 0 : i32
    return %c0_i32, %c0_i32_0 : i32, i32
  }
  func.func @transform_9(%arg0: i32, %arg1: i32) -> (i32, i32) {
    %c0_i32 = arith.constant 0 : i32
    %c0_i32_0 = arith.constant 0 : i32
    %c0_i32_1 = arith.constant 0 : i32
    return %c0_i32, %c0_i32_0 : i32, i32
  }
  func.func @transform_10(%arg0: i32, %arg1: i32) -> (i32, i32) {
    %c0_i32 = arith.constant 0 : i32
    %c0_i32_0 = arith.constant 0 : i32
    %c0_i32_1 = arith.constant 0 : i32
    return %c0_i32, %c0_i32_0 : i32, i32
  }
  func.func @transform_11(%arg0: i32, %arg1: i32) -> (i32, i32) {
    %c0_i32 = arith.constant 0 : i32
    %c0_i32_0 = arith.constant 0 : i32
    %c0_i32_1 = arith.constant 0 : i32
    return %c0_i32, %c0_i32_0 : i32, i32
  }
  func.func @transform_12(%arg0: i32, %arg1: i32) -> (i32, i32) {
    %c0_i32 = arith.constant 0 : i32
    %c0_i32_0 = arith.constant 0 : i32
    %c0_i32_1 = arith.constant 0 : i32
    return %c0_i32, %c0_i32_0 : i32, i32
  }
  func.func @transform_13(%arg0: i32, %arg1: i32) -> (i32, i32) {
    %c0_i32 = arith.constant 0 : i32
    %c0_i32_0 = arith.constant 0 : i32
    %c0_i32_1 = arith.constant 0 : i32
    return %c0_i32, %c0_i32_0 : i32, i32
  }
  func.func @transform_14(%arg0: i32, %arg1: i32) -> (i32, i32) {
    %c0_i32 = arith.constant 0 : i32
    %c0_i32_0 = arith.constant 0 : i32
    %c0_i32_1 = arith.constant 0 : i32
    return %c0_i32, %c0_i32_0 : i32, i32
  }
  func.func @transform_15(%arg0: i32, %arg1: i32) -> (i32, i32, i32) {
    %c0_i32 = arith.constant 0 : i32
    %c0_i32_0 = arith.constant 0 : i32
    return %arg0, %arg1, %c0_i32 : i32, i32, i32
  }
}

module attributes {stable_mosaic.version = 11 : i64} {
  func.func @_transformer_block_kernel(%arg0: i32, %arg1: i32, %arg2: memref<1x32x16xf32, #tpu.memory_space<vmem>>, %arg3: memref<16x32xbf16, #tpu.memory_space<vmem>>, %arg4: memref<1x32xf32, #tpu.memory_space<vmem>>, %arg5: memref<32x32xbf16, #tpu.memory_space<vmem>>, %arg6: memref<1x32xf32, #tpu.memory_space<vmem>>, %arg7: memref<32x32xbf16, #tpu.memory_space<vmem>>, %arg8: memref<1x32xf32, #tpu.memory_space<vmem>>, %arg9: memref<32x32xbf16, #tpu.memory_space<vmem>>, %arg10: memref<1x32xf32, #tpu.memory_space<vmem>>, %arg11: memref<32x32xbf16, #tpu.memory_space<vmem>>, %arg12: memref<1x32xf32, #tpu.memory_space<vmem>>, %arg13: memref<32x32xbf16, #tpu.memory_space<vmem>>, %arg14: memref<1x32xf32, #tpu.memory_space<vmem>>, %arg15: memref<32x32xbf16, #tpu.memory_space<vmem>>, %arg16: memref<1x32xf32, #tpu.memory_space<vmem>>, %arg17: memref<1x16x32xbf16, #tpu.memory_space<vmem>>, %arg18: memref<32x32xf32, #tpu.memory_space<vmem>>, %arg19: memref<4x32x8xbf16, #tpu.memory_space<vmem>>, %arg20: memref<4x32x8xbf16, #tpu.memory_space<vmem>>) attributes {dimension_semantics = [#tpu.dimension_semantics<parallel>, #tpu.dimension_semantics<arbitrary>], iteration_bounds = array<i64: 2, 2>, scalar_prefetch = 0 : i64, scratch_operands = 3 : i64, tpu.core_type = #tpu.core_type<tc>, window_params = [{transform_indices = @transform_0, window_bounds = array<i64: 1, 32, 16>}, {pipeline_mode = #tpu.pipeline_mode<synchronous>, transform_indices = @transform_1, window_bounds = array<i64: 16, 32>}, {pipeline_mode = #tpu.pipeline_mode<synchronous>, transform_indices = @transform_2, window_bounds = array<i64: 1, 32>}, {pipeline_mode = #tpu.pipeline_mode<synchronous>, transform_indices = @transform_3, window_bounds = array<i64: 32, 32>}, {pipeline_mode = #tpu.pipeline_mode<synchronous>, transform_indices = @transform_4, window_bounds = array<i64: 1, 32>}, {pipeline_mode = #tpu.pipeline_mode<synchronous>, transform_indices = @transform_5, window_bounds = array<i64: 32, 32>}, {pipeline_mode = #tpu.pipeline_mode<synchronous>, transform_indices = @transform_6, window_bounds = array<i64: 1, 32>}, {pipeline_mode = #tpu.pipeline_mode<synchronous>, transform_indices = @transform_7, window_bounds = array<i64: 32, 32>}, {pipeline_mode = #tpu.pipeline_mode<synchronous>, transform_indices = @transform_8, window_bounds = array<i64: 1, 32>}, {pipeline_mode = #tpu.pipeline_mode<synchronous>, transform_indices = @transform_9, window_bounds = array<i64: 32, 32>}, {pipeline_mode = #tpu.pipeline_mode<synchronous>, transform_indices = @transform_10, window_bounds = array<i64: 1, 32>}, {pipeline_mode = #tpu.pipeline_mode<synchronous>, transform_indices = @transform_11, window_bounds = array<i64: 32, 32>}, {pipeline_mode = #tpu.pipeline_mode<synchronous>, transform_indices = @transform_12, window_bounds = array<i64: 1, 32>}, {pipeline_mode = #tpu.pipeline_mode<synchronous>, transform_indices = @transform_13, window_bounds = array<i64: 32, 32>}, {pipeline_mode = #tpu.pipeline_mode<synchronous>, transform_indices = @transform_14, window_bounds = array<i64: 1, 32>}, {transform_indices = @transform_15, window_bounds = array<i64: 1, 16, 32>}]} {
    %c0_i32 = arith.constant 0 : i32
    %0 = arith.cmpi eq, %arg1, %c0_i32 : i32
    %1 = arith.extui %0 : i1 to i32
    %c0_i32_0 = arith.constant 0 : i32
    %2 = arith.cmpi ne, %1, %c0_i32_0 : i32
    scf.if %2 {
      %c0_34 = arith.constant 0 : index
      %c0_35 = arith.constant 0 : index
      %c0_36 = arith.constant 0 : index
      %59 = vector.load %arg2[%c0_34, %c0_35, %c0_36] : memref<1x32x16xf32, #tpu.memory_space<vmem>>, vector<1x32x16xf32>
      %60 = vector.shape_cast %59 : vector<1x32x16xf32> to vector<32x16xf32>
      %61 = arith.truncf %60 : vector<32x16xf32> to vector<32x16xbf16>
      %c0_37 = arith.constant 0 : index
      %c0_38 = arith.constant 0 : index
      %62 = vector.load %arg3[%c0_37, %c0_38] : memref<16x32xbf16, #tpu.memory_space<vmem>>, vector<16x32xbf16>
      %cst_39 = arith.constant dense<0.000000e+00> : vector<32x32xf32>
      %63 = tpu.matmul %61, %62, %cst_39 {dimension_numbers = #tpu.dot_dimension_numbers<[1], [0], [0], [1], [0, 0, 1, 1], [], []>} : vector<32x16xbf16>, vector<16x32xbf16>, vector<32x32xf32> -> vector<32x32xf32>
      %c0_40 = arith.constant 0 : index
      %c0_41 = arith.constant 0 : index
      %64 = vector.load %arg4[%c0_40, %c0_41] : memref<1x32xf32, #tpu.memory_space<vmem>>, vector<1x32xf32>
      %65 = vector.broadcast %64 : vector<1x32xf32> to vector<32x32xf32>
      %66 = arith.addf %63, %65 : vector<32x32xf32>
      %c0_42 = arith.constant 0 : index
      %c0_43 = arith.constant 0 : index
      %67 = vector.load %arg18[%c0_42, %c0_43] : memref<32x32xf32, #tpu.memory_space<vmem>>, vector<32x32xf32>
      tpu.vector_store %arg18[%c0_42, %c0_43], %66 {strides = array<i32>} : memref<32x32xf32, #tpu.memory_space<vmem>>, vector<32x32xf32>,
      %68 = arith.truncf %66 : vector<32x32xf32> to vector<32x32xbf16>
      %c0_44 = arith.constant 0 : index
      %c0_45 = arith.constant 0 : index
      %69 = vector.load %arg7[%c0_44, %c0_45] : memref<32x32xbf16, #tpu.memory_space<vmem>>, vector<32x32xbf16>
      %cst_46 = arith.constant dense<0.000000e+00> : vector<32x32xf32>
      %70 = tpu.matmul %68, %69, %cst_46 {dimension_numbers = #tpu.dot_dimension_numbers<[1], [0], [0], [1], [0, 0, 1, 1], [], []>} : vector<32x32xbf16>, vector<32x32xbf16>, vector<32x32xf32> -> vector<32x32xf32>
      %c0_47 = arith.constant 0 : index
      %c0_48 = arith.constant 0 : index
      %71 = vector.load %arg8[%c0_47, %c0_48] : memref<1x32xf32, #tpu.memory_space<vmem>>, vector<1x32xf32>
      %72 = vector.broadcast %71 : vector<1x32xf32> to vector<32x32xf32>
      %73 = arith.addf %70, %72 : vector<32x32xf32>
      %c0_49 = arith.constant 0 : index
      %c0_50 = arith.constant 0 : index
      %74 = vector.load %arg9[%c0_49, %c0_50] : memref<32x32xbf16, #tpu.memory_space<vmem>>, vector<32x32xbf16>
      %cst_51 = arith.constant dense<0.000000e+00> : vector<32x32xf32>
      %75 = tpu.matmul %68, %74, %cst_51 {dimension_numbers = #tpu.dot_dimension_numbers<[1], [0], [0], [1], [0, 0, 1, 1], [], []>} : vector<32x32xbf16>, vector<32x32xbf16>, vector<32x32xf32> -> vector<32x32xf32>
      %c0_52 = arith.constant 0 : index
      %c0_53 = arith.constant 0 : index
      %76 = vector.load %arg10[%c0_52, %c0_53] : memref<1x32xf32, #tpu.memory_space<vmem>>, vector<1x32xf32>
      %77 = vector.broadcast %76 : vector<1x32xf32> to vector<32x32xf32>
      %78 = arith.addf %75, %77 : vector<32x32xf32>
      %79 = arith.truncf %73 : vector<32x32xf32> to vector<32x32xbf16>
      %80 = vector.shape_cast %79 : vector<32x32xbf16> to vector<32x4x8xbf16>
      %81 = tpu.transpose %80, [1, 0, 2] : vector<32x4x8xbf16> -> vector<4x32x8xbf16>
      %c0_54 = arith.constant 0 : index
      %c0_55 = arith.constant 0 : index
      %c0_56 = arith.constant 0 : index
      %82 = vector.load %arg19[%c0_54, %c0_55, %c0_56] : memref<4x32x8xbf16, #tpu.memory_space<vmem>>, vector<4x32x8xbf16>
      tpu.vector_store %arg19[%c0_54, %c0_55, %c0_56], %81 {strides = array<i32>} : memref<4x32x8xbf16, #tpu.memory_space<vmem>>, vector<4x32x8xbf16>,
      %83 = arith.truncf %78 : vector<32x32xf32> to vector<32x32xbf16>
      %84 = vector.shape_cast %83 : vector<32x32xbf16> to vector<32x4x8xbf16>
      %85 = tpu.transpose %84, [1, 0, 2] : vector<32x4x8xbf16> -> vector<4x32x8xbf16>
      %c0_57 = arith.constant 0 : index
      %c0_58 = arith.constant 0 : index
      %c0_59 = arith.constant 0 : index
      %86 = vector.load %arg20[%c0_57, %c0_58, %c0_59] : memref<4x32x8xbf16, #tpu.memory_space<vmem>>, vector<4x32x8xbf16>
      tpu.vector_store %arg20[%c0_57, %c0_58, %c0_59], %85 {strides = array<i32>} : memref<4x32x8xbf16, #tpu.memory_space<vmem>>, vector<4x32x8xbf16>,
    } else {
    }
    %c16_i32 = arith.constant 16 : i32
    %3 = arith.muli %arg1, %c16_i32 : i32
    %4 = tpu.assume_multiple %3, 16 : i32
    %5 = arith.index_cast %4 : i32 to index
    %c0 = arith.constant 0 : index
    %6 = vector.load %arg18[%5, %c0] : memref<32x32xf32, #tpu.memory_space<vmem>>, vector<16x32xf32>
    %7 = arith.truncf %6 : vector<16x32xf32> to vector<16x32xbf16>
    %c0_1 = arith.constant 0 : index
    %c0_2 = arith.constant 0 : index
    %8 = vector.load %arg5[%c0_1, %c0_2] : memref<32x32xbf16, #tpu.memory_space<vmem>>, vector<32x32xbf16>
    %cst = arith.constant dense<0.000000e+00> : vector<16x32xf32>
    %9 = tpu.matmul %7, %8, %cst {dimension_numbers = #tpu.dot_dimension_numbers<[1], [0], [0], [1], [0, 0, 1, 1], [], []>} : vector<16x32xbf16>, vector<32x32xbf16>, vector<16x32xf32> -> vector<16x32xf32>
    %c0_3 = arith.constant 0 : index
    %c0_4 = arith.constant 0 : index
    %10 = vector.load %arg6[%c0_3, %c0_4] : memref<1x32xf32, #tpu.memory_space<vmem>>, vector<1x32xf32>
    %11 = vector.broadcast %10 : vector<1x32xf32> to vector<16x32xf32>
    %12 = arith.addf %9, %11 : vector<16x32xf32>
    %13 = arith.truncf %12 : vector<16x32xf32> to vector<16x32xbf16>
    %14 = vector.shape_cast %13 : vector<16x32xbf16> to vector<16x4x8xbf16>
    %15 = tpu.transpose %14, [1, 0, 2] : vector<16x4x8xbf16> -> vector<4x16x8xbf16>
    %c0_5 = arith.constant 0 : index
    %c0_6 = arith.constant 0 : index
    %c0_7 = arith.constant 0 : index
    %16 = vector.load %arg19[%c0_5, %c0_6, %c0_7] : memref<4x32x8xbf16, #tpu.memory_space<vmem>>, vector<4x32x8xbf16>
    "tpu.trace_start"() <{level = 10 : i32, message = "hqd,hkd->hqk"}> : () -> ()
    %cst_8 = arith.constant dense<0.000000e+00> : vector<4x16x32xf32>
    %17 = tpu.matmul %15, %16, %cst_8 {dimension_numbers = #tpu.dot_dimension_numbers<[2], [2], [1], [1], [0, 0, 0, 1, 1, 1], [0], [0]>} : vector<4x16x8xbf16>, vector<4x32x8xbf16>, vector<4x16x32xf32> -> vector<4x16x32xf32>
    "tpu.trace_stop"() : () -> ()
    %cst_9 = arith.constant dense<0xFF800000> : vector<4x16xf32>
    %18 = vector.multi_reduction <maximumf>, %17, %cst_9 [2] : vector<4x16x32xf32> to vector<4x16xf32>
    %19 = vector.shape_cast %18 : vector<4x16xf32> to vector<4x16x1xf32>
    %20 = vector.broadcast %19 : vector<4x16x1xf32> to vector<4x16x32xf32>
    %21 = arith.subf %17, %20 : vector<4x16x32xf32>
    %22 = math.exp %21 : vector<4x16x32xf32>
    %cst_10 = arith.constant dense<0.000000e+00> : vector<4x16xf32>
    %23 = vector.multi_reduction <add>, %22, %cst_10 [2] : vector<4x16x32xf32> to vector<4x16xf32>
    %24 = vector.shape_cast %23 : vector<4x16xf32> to vector<4x16x1xf32>
    %25 = tpu.reciprocal %24 {approx = true} : vector<4x16x1xf32> -> vector<4x16x1xf32>
    %26 = vector.broadcast %25 : vector<4x16x1xf32> to vector<4x16x32xf32>
    %27 = arith.mulf %22, %26 : vector<4x16x32xf32>
    %28 = arith.truncf %27 : vector<4x16x32xf32> to vector<4x16x32xbf16>
    %c0_11 = arith.constant 0 : index
    %c0_12 = arith.constant 0 : index
    %c0_13 = arith.constant 0 : index
    %29 = vector.load %arg20[%c0_11, %c0_12, %c0_13] : memref<4x32x8xbf16, #tpu.memory_space<vmem>>, vector<4x32x8xbf16>
    "tpu.trace_start"() <{level = 10 : i32, message = "hqk,hkd->hqd"}> : () -> ()
    %cst_14 = arith.constant dense<0.000000e+00> : vector<4x16x8xf32>
    %30 = tpu.matmul %28, %29, %cst_14 {dimension_numbers = #tpu.dot_dimension_numbers<[2], [1], [1], [2], [0, 0, 0, 1, 1, 2], [0], [0]>} : vector<4x16x32xbf16>, vector<4x32x8xbf16>, vector<4x16x8xf32> -> vector<4x16x8xf32>
    "tpu.trace_stop"() : () -> ()
    %31 = arith.truncf %30 : vector<4x16x8xf32> to vector<4x16x8xbf16>
    %32 = tpu.transpose %31, [1, 0, 2] : vector<4x16x8xbf16> -> vector<16x4x8xbf16>
    %33 = vector.shape_cast %32 : vector<16x4x8xbf16> to vector<16x32xbf16>
    %c0_15 = arith.constant 0 : index
    %c0_16 = arith.constant 0 : index
    %34 = vector.load %arg11[%c0_15, %c0_16] : memref<32x32xbf16, #tpu.memory_space<vmem>>, vector<32x32xbf16>
    %cst_17 = arith.constant dense<0.000000e+00> : vector<16x32xf32>
    %35 = tpu.matmul %33, %34, %cst_17 {dimension_numbers = #tpu.dot_dimension_numbers<[1], [0], [0], [1], [0, 0, 1, 1], [], []>} : vector<16x32xbf16>, vector<32x32xbf16>, vector<16x32xf32> -> vector<16x32xf32>
    %c0_18 = arith.constant 0 : index
    %c0_19 = arith.constant 0 : index
    %36 = vector.load %arg12[%c0_18, %c0_19] : memref<1x32xf32, #tpu.memory_space<vmem>>, vector<1x32xf32>
    %37 = vector.broadcast %36 : vector<1x32xf32> to vector<16x32xf32>
    %38 = arith.addf %35, %37 : vector<16x32xf32>
    %39 = arith.addf %6, %38 : vector<16x32xf32>
    %40 = arith.truncf %39 : vector<16x32xf32> to vector<16x32xbf16>
    %c0_20 = arith.constant 0 : index
    %c0_21 = arith.constant 0 : index
    %41 = vector.load %arg13[%c0_20, %c0_21] : memref<32x32xbf16, #tpu.memory_space<vmem>>, vector<32x32xbf16>
    %cst_22 = arith.constant dense<0.000000e+00> : vector<16x32xf32>
    %42 = tpu.matmul %40, %41, %cst_22 {dimension_numbers = #tpu.dot_dimension_numbers<[1], [0], [0], [1], [0, 0, 1, 1], [], []>} : vector<16x32xbf16>, vector<32x32xbf16>, vector<16x32xf32> -> vector<16x32xf32>
    %c0_23 = arith.constant 0 : index
    %c0_24 = arith.constant 0 : index
    %43 = vector.load %arg14[%c0_23, %c0_24] : memref<1x32xf32, #tpu.memory_space<vmem>>, vector<1x32xf32>
    %44 = vector.broadcast %43 : vector<1x32xf32> to vector<16x32xf32>
    %45 = arith.addf %42, %44 : vector<16x32xf32>
    %cst_25 = arith.constant 0.000000e+00 : f32
    %46 = vector.broadcast %cst_25 : f32 to vector<16x32xf32>
    %47 = arith.maximumf %45, %46 : vector<16x32xf32>
    %48 = arith.truncf %47 : vector<16x32xf32> to vector<16x32xbf16>
    %c0_26 = arith.constant 0 : index
    %c0_27 = arith.constant 0 : index
    %49 = vector.load %arg15[%c0_26, %c0_27] : memref<32x32xbf16, #tpu.memory_space<vmem>>, vector<32x32xbf16>
    %cst_28 = arith.constant dense<0.000000e+00> : vector<16x32xf32>
    %50 = tpu.matmul %48, %49, %cst_28 {dimension_numbers = #tpu.dot_dimension_numbers<[1], [0], [0], [1], [0, 0, 1, 1], [], []>} : vector<16x32xbf16>, vector<32x32xbf16>, vector<16x32xf32> -> vector<16x32xf32>
    %c0_29 = arith.constant 0 : index
    %c0_30 = arith.constant 0 : index
    %51 = vector.load %arg16[%c0_29, %c0_30] : memref<1x32xf32, #tpu.memory_space<vmem>>, vector<1x32xf32>
    %52 = vector.broadcast %51 : vector<1x32xf32> to vector<16x32xf32>
    %53 = arith.addf %50, %52 : vector<16x32xf32>
    %54 = arith.addf %39, %53 : vector<16x32xf32>
    %55 = arith.truncf %54 : vector<16x32xf32> to vector<16x32xbf16>
    %c0_31 = arith.constant 0 : index
    %c0_32 = arith.constant 0 : index
    %c0_33 = arith.constant 0 : index
    %56 = vector.load %arg17[%c0_31, %c0_32, %c0_33] : memref<1x16x32xbf16, #tpu.memory_space<vmem>>, vector<1x16x32xbf16>
    %57 = vector.shape_cast %56 : vector<1x16x32xbf16> to vector<16x32xbf16>
    %58 = vector.shape_cast %55 : vector<16x32xbf16> to vector<1x16x32xbf16>
    tpu.vector_store %arg17[%c0_31, %c0_32, %c0_33], %58 {strides = array<i32>} : memref<1x16x32xbf16, #tpu.memory_space<vmem>>, vector<1x16x32xbf16>,
    return
  }
  func.func @transform_0(%arg0: i32, %arg1: i32) -> (i32, i32, i32) {
    %c0_i32 = arith.constant 0 : i32
    %c0_i32_0 = arith.constant 0 : i32
    %c0_i32_1 = arith.constant 0 : i32
    return %arg0, %c0_i32, %c0_i32_0 : i32, i32, i32
  }
  func.func @transform_1(%arg0: i32, %arg1: i32) -> (i32, i32) {
    %c0_i32 = arith.constant 0 : i32
    %c0_i32_0 = arith.constant 0 : i32
    %c0_i32_1 = arith.constant 0 : i32
    return %c0_i32, %c0_i32_0 : i32, i32
  }
  func.func @transform_2(%arg0: i32, %arg1: i32) -> (i32, i32) {
    %c0_i32 = arith.constant 0 : i32
    %c0_i32_0 = arith.constant 0 : i32
    %c0_i32_1 = arith.constant 0 : i32
    return %c0_i32, %c0_i32_0 : i32, i32
  }
  func.func @transform_3(%arg0: i32, %arg1: i32) -> (i32, i32) {
    %c0_i32 = arith.constant 0 : i32
    %c0_i32_0 = arith.constant 0 : i32
    %c0_i32_1 = arith.constant 0 : i32
    return %c0_i32, %c0_i32_0 : i32, i32
  }
  func.func @transform_4(%arg0: i32, %arg1: i32) -> (i32, i32) {
    %c0_i32 = arith.constant 0 : i32
    %c0_i32_0 = arith.constant 0 : i32
    %c0_i32_1 = arith.constant 0 : i32
    return %c0_i32, %c0_i32_0 : i32, i32
  }
  func.func @transform_5(%arg0: i32, %arg1: i32) -> (i32, i32) {
    %c0_i32 = arith.constant 0 : i32
    %c0_i32_0 = arith.constant 0 : i32
    %c0_i32_1 = arith.constant 0 : i32
    return %c0_i32, %c0_i32_0 : i32, i32
  }
  func.func @transform_6(%arg0: i32, %arg1: i32) -> (i32, i32) {
    %c0_i32 = arith.constant 0 : i32
    %c0_i32_0 = arith.constant 0 : i32
    %c0_i32_1 = arith.constant 0 : i32
    return %c0_i32, %c0_i32_0 : i32, i32
  }
  func.func @transform_7(%arg0: i32, %arg1: i32) -> (i32, i32) {
    %c0_i32 = arith.constant 0 : i32
    %c0_i32_0 = arith.constant 0 : i32
    %c0_i32_1 = arith.constant 0 : i32
    return %c0_i32, %c0_i32_0 : i32, i32
  }
  func.func @transform_8(%arg0: i32, %arg1: i32) -> (i32, i32) {
    %c0_i32 = arith.constant 0 : i32
    %c0_i32_0 = arith.constant 0 : i32
    %c0_i32_1 = arith.constant 0 : i32
    return %c0_i32, %c0_i32_0 : i32, i32
  }
  func.func @transform_9(%arg0: i32, %arg1: i32) -> (i32, i32) {
    %c0_i32 = arith.constant 0 : i32
    %c0_i32_0 = arith.constant 0 : i32
    %c0_i32_1 = arith.constant 0 : i32
    return %c0_i32, %c0_i32_0 : i32, i32
  }
  func.func @transform_10(%arg0: i32, %arg1: i32) -> (i32, i32) {
    %c0_i32 = arith.constant 0 : i32
    %c0_i32_0 = arith.constant 0 : i32
    %c0_i32_1 = arith.constant 0 : i32
    return %c0_i32, %c0_i32_0 : i32, i32
  }
  func.func @transform_11(%arg0: i32, %arg1: i32) -> (i32, i32) {
    %c0_i32 = arith.constant 0 : i32
    %c0_i32_0 = arith.constant 0 : i32
    %c0_i32_1 = arith.constant 0 : i32
    return %c0_i32, %c0_i32_0 : i32, i32
  }
  func.func @transform_12(%arg0: i32, %arg1: i32) -> (i32, i32) {
    %c0_i32 = arith.constant 0 : i32
    %c0_i32_0 = arith.constant 0 : i32
    %c0_i32_1 = arith.constant 0 : i32
    return %c0_i32, %c0_i32_0 : i32, i32
  }
  func.func @transform_13(%arg0: i32, %arg1: i32) -> (i32, i32) {
    %c0_i32 = arith.constant 0 : i32
    %c0_i32_0 = arith.constant 0 : i32
    %c0_i32_1 = arith.constant 0 : i32
    return %c0_i32, %c0_i32_0 : i32, i32
  }
  func.func @transform_14(%arg0: i32, %arg1: i32) -> (i32, i32) {
    %c0_i32 = arith.constant 0 : i32
    %c0_i32_0 = arith.constant 0 : i32
    %c0_i32_1 = arith.constant 0 : i32
    return %c0_i32, %c0_i32_0 : i32, i32
  }
  func.func @transform_15(%arg0: i32, %arg1: i32) -> (i32, i32, i32) {
    %c0_i32 = arith.constant 0 : i32
    %c0_i32_0 = arith.constant 0 : i32
    return %arg0, %arg1, %c0_i32 : i32, i32, i32
  }
}

</mosaic_0001>

<llo_original>
// kernel: transformer_encoder.2
$region0: #{transformer_encoder.2}
  #allocation0 [shape = 'u32[]', space=smem, size = 0x4, offset = 0x4, fixed_abs, tag = 'smem constant byte address 0x4 - core index']
  #allocation1 [shape = 'u32[144,128]{1,0:T(1,128)}', space=vmem, size = 0x12000, scoped, tag = 'internal scratch']
  #allocation2 [shape = 'f32[32,32]{1,0:T(8,128)}', space=vmem, size = 0x4000, scoped, tag = 'scratch operand']
  #allocation3 [shape = 'bf16[4,32,8]{2,1,0:T(8,128)(2,1)}', space=vmem, size = 0x8000, scoped, tag = 'scratch operand']
  #allocation4 [shape = 'bf16[4,32,8]{2,1,0:T(8,128)(2,1)}', space=vmem, size = 0x8000, scoped, tag = 'scratch operand']
  %s0 = inlined_call_operand.vmem [shape: f32[2,32,16], index: 0, kind: input, shape index: {}]
  %s1 = inlined_call_operand.vmem [shape: bf16[16,32], index: 1, kind: input, shape index: {}]
  %s2 = inlined_call_operand.vmem [shape: f32[1,32], index: 2, kind: input, shape index: {}]
  %s3 = inlined_call_operand.vmem [shape: bf16[32,32], index: 3, kind: input, shape index: {}]
  %s4 = inlined_call_operand.vmem [shape: f32[1,32], index: 4, kind: input, shape index: {}]
  %s5 = inlined_call_operand.vmem [shape: bf16[32,32], index: 5, kind: input, shape index: {}]
  %s6 = inlined_call_operand.hbm [shape: f32[1,32], index: 6, kind: input, shape index: {}]
  %s7 = inlined_call_operand.vmem [shape: bf16[32,32], index: 7, kind: input, shape index: {}]
  %s8 = inlined_call_operand.vmem [shape: f32[1,32], index: 8, kind: input, shape index: {}]
  %s9 = inlined_call_operand.vmem [shape: bf16[32,32], index: 9, kind: input, shape index: {}]
  %s10 = inlined_call_operand.hbm [shape: f32[1,32], index: 10, kind: input, shape index: {}]
  %s11 = inlined_call_operand.vmem [shape: bf16[32,32], index: 11, kind: input, shape index: {}]
  %s12 = inlined_call_operand.hbm [shape: f32[1,32], index: 12, kind: input, shape index: {}]
  %s13 = inlined_call_operand.vmem [shape: bf16[32,32], index: 13, kind: input, shape index: {}]
  %s14 = inlined_call_operand.hbm [shape: f32[1,32], index: 14, kind: input, shape index: {}]
  %s15 = inlined_call_operand.vmem [shape: bf16[2,32,32], index: 15, kind: output, shape index: {}]
  %s16 = sld [smem:[#allocation0]]
  $region113: #{transformer_encoder.2} parent=0
    _
  %s18 = ssub.s32 1, %s16
  %s19 = scalar_select 0, %s18, %s16
  $region1: #{transformer_encoder.2} parent=0
    #allocation5 [shape = 'u8[512]{0}', space=vmem, size = 0x400, scoped, tag = 'input window, operand 6, single buffered']
    #allocation6 [shape = 's32[2]{0}', space=sflag, size = 0x8, scoped, tag = 'scoped memory for transformer_encoder.2']
    #allocation7 [shape = 'u8[512]{0}', space=vmem, size = 0x400, scoped, tag = 'input window, operand 10, single buffered']
    #allocation8 [shape = 's32[1]{0}', space=sflag, size = 0x4, scoped, tag = 'scoped memory for transformer_encoder.2']
    #allocation9 [shape = 'u8[512]{0}', space=vmem, size = 0x400, scoped, tag = 'input window, operand 12, single buffered']
    #allocation10 [shape = 'u8[512]{0}', space=vmem, size = 0x400, scoped, tag = 'input window, operand 14, single buffered']
    #allocation11 [shape = 's32[1]{0}', space=sflag, size = 0x4, scoped, tag = 'scoped memory for transformer_encoder.2']
    %20 = vsyncpa [#allocation6], 0
    %21 = vsyncpa [#allocation8], 0
    %22 = vsyncpa [#allocation11], 0
    loop: start=0, step=1, limit=6
    $region2: #{transformer_encoder.2} parent=1 // loop_pre_header
      _
    $region3: #{transformer_encoder.2} parent=1 // loop_header
      %s24 = sphi 0, %s28
      %p25 = scmp.ge.s32.totalorder %s24, 6
      %s31 = sphi 0, %s43
      %s32 = sphi 0, %s39
      %s33 = sphi 0, %s31
      %s34 = sphi 0, %s32
      %s35 = sphi 0, %s33
      %s36 = sphi 0, %s34
      %s46 = sphi 0, %s48
      %s49 = sphi 0, %s46
      %s50 = sphi 0, %s49
      %s66 = sphi 0, %s50
      %s70 = sphi 0, %s70
      %s72 = sphi 0, %s70
      %s73 = sphi 0, %s72
      %s87 = sphi 0, %s73
      %s91 = sphi 0, %s91
      %s93 = sphi 0, %s91
      %s94 = sphi 0, %s93
      %s108 = sphi 0, %s94
      %s112 = sphi 0, %s112
      %s114 = sphi 0, %s112
      %s115 = sphi 0, %s114
      %s129 = sphi 0, %s115
      %s133 = sphi 0, %s133
      %s135 = sphi 0, %s133
      %s136 = sphi 0, %s135
      %s150 = sphi 0, %s136
      %s154 = sphi 0, %s154
      %s156 = sphi 0, %s154
      %s157 = sphi 0, %s156
      %s171 = sphi 0, %s157
      %s175 = sphi 0, %s175
      %s177 = sphi 0, %s175
      %s178 = sphi 0, %s177
      %s192 = sphi 0, %s178
      %s196 = sphi 0, %s196
      %s198 = sphi 0, %s196
      %s199 = sphi 0, %s198
      %s213 = sphi 0, %s199
      %s217 = sphi 0, %s217
      %s219 = sphi 0, %s217
      %s220 = sphi 0, %s219
      %s234 = sphi 0, %s220
      %s238 = sphi 0, %s238
      %s240 = sphi 0, %s238
      %s241 = sphi 0, %s240
      %s255 = sphi 0, %s241
      %s259 = sphi 0, %s259
      %s261 = sphi 0, %s259
      %s262 = sphi 0, %s261
      %s276 = sphi 0, %s262
      %s280 = sphi 0, %s280
      %s282 = sphi 0, %s280
      %s283 = sphi 0, %s282
      %s297 = sphi 0, %s283
      %s301 = sphi 0, %s301
      %s303 = sphi 0, %s301
      %s304 = sphi 0, %s303
      %s318 = sphi 0, %s304
      %s322 = sphi 0, %s322
      %s324 = sphi 0, %s322
      %s325 = sphi 0, %s324
      %s339 = sphi 0, %s325
      %s343 = sphi 0, %s343
      %s345 = sphi 0, %s343
      %s346 = sphi 0, %s345
      %s360 = sphi 0, %s346
      %s368 = sphi 0, %s370
      %s371 = sphi 0, %s368
      %s372 = sphi 0, %s371
      %s388 = sphi 0, %s372
    $region4: #{transformer_encoder.2} parent=1 // loop_header_branch
      %27 = sbr.rel (%p25) target = $region8
    $region5: #{transformer_encoder.2} parent=1 // loop_body
      %s29 = ssub.s32 %s24, 1
      %s30 = ssub.s32 %s24, 2
      %s37 = sadd.s32 1, %s32
      %p38 = scmp.ge.s32.totalorder %s37, 2
      %s39 = scalar_select %p38, 0, %s37
      %s40 = sadd.s32 1, %s31
      %s41 = scalar_select %p38, %s40, %s31
      %p42 = scmp.ge.s32.totalorder %s41, 2
      %s43 = scalar_select %p42, 0, %s41
      %s44 = ssub.s32 %s31, %s43
      %p45 = scmp.eq.s32.totalorder %s44, 0
      %s47 = sadd.s32 %s46, 1
      %s48 = scalar_select %p45, %s46, %s47
      %p51 = pneg %p45
      %p52 = scmp.eq.s32.totalorder %s24, 3
      %p53 = por %p51, %p52
      %p54 = scmp.ne.s32.totalorder %s46, %s49
      %p55 = scmp.eq.s32.totalorder %s24, 0
      %p56 = por %p54, %p55
      %p57 = scmp.ne.s32.totalorder %s46, %s49
      %p58 = scmp.eq.s32.totalorder %s29, 3
      %p59 = por %p57, %p58
      %p60 = scmp.ne.s32.totalorder %s49, %s50
      %p61 = scmp.eq.s32.totalorder %s29, 0
      %p62 = por %p60, %p61
      %p63 = scmp.ne.s32.totalorder %s49, %s50
      %p64 = scmp.eq.s32.totalorder %s30, 3
      %p65 = por %p63, %p64
      %p67 = scmp.ne.s32.totalorder %s50, %s66
      %p68 = scmp.eq.s32.totalorder %s30, 0
      %p69 = por %p67, %p68
      %s71 = sadd.s32 %s70, 1
      %p74 = scmp.eq.s32.totalorder %s24, 3
      %p75 = scmp.ne.s32.totalorder %s70, %s72
      %p76 = scmp.eq.s32.totalorder %s24, 0
      %p77 = por %p75, %p76
      %p78 = scmp.ne.s32.totalorder %s70, %s72
      %p79 = scmp.eq.s32.totalorder %s29, 3
      %p80 = por %p78, %p79
      %p81 = scmp.ne.s32.totalorder %s72, %s73
      %p82 = scmp.eq.s32.totalorder %s29, 0
      %p83 = por %p81, %p82
      %p84 = scmp.ne.s32.totalorder %s72, %s73
      %p85 = scmp.eq.s32.totalorder %s30, 3
      %p86 = por %p84, %p85
      %p88 = scmp.ne.s32.totalorder %s73, %s87
      %p89 = scmp.eq.s32.totalorder %s30, 0
      %p90 = por %p88, %p89
      %s92 = sadd.s32 %s91, 1
      %p95 = scmp.eq.s32.totalorder %s24, 3
      %p96 = scmp.ne.s32.totalorder %s91, %s93
      %p97 = scmp.eq.s32.totalorder %s24, 0
      %p98 = por %p96, %p97
      %p99 = scmp.ne.s32.totalorder %s91, %s93
      %p100 = scmp.eq.s32.totalorder %s29, 3
      %p101 = por %p99, %p100
      %p102 = scmp.ne.s32.totalorder %s93, %s94
      %p103 = scmp.eq.s32.totalorder %s29, 0
      %p104 = por %p102, %p103
      %p105 = scmp.ne.s32.totalorder %s93, %s94
      %p106 = scmp.eq.s32.totalorder %s30, 3
      %p107 = por %p105, %p106
      %p109 = scmp.ne.s32.totalorder %s94, %s108
      %p110 = scmp.eq.s32.totalorder %s30, 0
      %p111 = por %p109, %p110
      %s113 = sadd.s32 %s112, 1
      %p116 = scmp.eq.s32.totalorder %s24, 3
      %p117 = scmp.ne.s32.totalorder %s112, %s114
      %p118 = scmp.eq.s32.totalorder %s24, 0
      %p119 = por %p117, %p118
      %p120 = scmp.ne.s32.totalorder %s112, %s114
      %p121 = scmp.eq.s32.totalorder %s29, 3
      %p122 = por %p120, %p121
      %p123 = scmp.ne.s32.totalorder %s114, %s115
      %p124 = scmp.eq.s32.totalorder %s29, 0
      %p125 = por %p123, %p124
      %p126 = scmp.ne.s32.totalorder %s114, %s115
      %p127 = scmp.eq.s32.totalorder %s30, 3
      %p128 = por %p126, %p127
      %p130 = scmp.ne.s32.totalorder %s115, %s129
      %p131 = scmp.eq.s32.totalorder %s30, 0
      %p132 = por %p130, %p131
      %s134 = sadd.s32 %s133, 1
      %p137 = scmp.eq.s32.totalorder %s24, 3
      %p138 = scmp.ne.s32.totalorder %s133, %s135
      %p139 = scmp.eq.s32.totalorder %s24, 0
      %p140 = por %p138, %p139
      %p141 = scmp.ne.s32.totalorder %s133, %s135
      %p142 = scmp.eq.s32.totalorder %s29, 3
      %p143 = por %p141, %p142
      %p144 = scmp.ne.s32.totalorder %s135, %s136
      %p145 = scmp.eq.s32.totalorder %s29, 0
      %p146 = por %p144, %p145
      %p147 = scmp.ne.s32.totalorder %s135, %s136
      %p148 = scmp.eq.s32.totalorder %s30, 3
      %p149 = por %p147, %p148
      %p151 = scmp.ne.s32.totalorder %s136, %s150
      %p152 = scmp.eq.s32.totalorder %s30, 0
      %p153 = por %p151, %p152
      %s155 = sadd.s32 %s154, 1
      %p158 = scmp.eq.s32.totalorder %s24, 3
      %p159 = scmp.ne.s32.totalorder %s154, %s156
      %p160 = scmp.eq.s32.totalorder %s24, 0
      %p161 = por %p159, %p160
      %p162 = scmp.ne.s32.totalorder %s154, %s156
      %p163 = scmp.eq.s32.totalorder %s29, 3
      %p164 = por %p162, %p163
      %p165 = scmp.ne.s32.totalorder %s156, %s157
      %p166 = scmp.eq.s32.totalorder %s29, 0
      %p167 = por %p165, %p166
      %p168 = scmp.ne.s32.totalorder %s156, %s157
      %p169 = scmp.eq.s32.totalorder %s30, 3
      %p170 = por %p168, %p169
      %p172 = scmp.ne.s32.totalorder %s157, %s171
      %p173 = scmp.eq.s32.totalorder %s30, 0
      %p174 = por %p172, %p173
      %s176 = sadd.s32 %s175, 1
      %p179 = scmp.eq.s32.totalorder %s24, 3
      %p180 = scmp.ne.s32.totalorder %s175, %s177
      %p181 = scmp.eq.s32.totalorder %s24, 0
      %p182 = por %p180, %p181
      %p183 = scmp.ne.s32.totalorder %s175, %s177
      %p184 = scmp.eq.s32.totalorder %s29, 3
      %p185 = por %p183, %p184
      %p186 = scmp.ne.s32.totalorder %s177, %s178
      %p187 = scmp.eq.s32.totalorder %s29, 0
      %p188 = por %p186, %p187
      %p189 = scmp.ne.s32.totalorder %s177, %s178
      %p190 = scmp.eq.s32.totalorder %s30, 3
      %p191 = por %p189, %p190
      %p193 = scmp.ne.s32.totalorder %s178, %s192
      %p194 = scmp.eq.s32.totalorder %s30, 0
      %p195 = por %p193, %p194
      %s197 = sadd.s32 %s196, 1
      %p200 = scmp.eq.s32.totalorder %s24, 3
      %p201 = scmp.ne.s32.totalorder %s196, %s198
      %p202 = scmp.eq.s32.totalorder %s24, 0
      %p203 = por %p201, %p202
      %p204 = scmp.ne.s32.totalorder %s196, %s198
      %p205 = scmp.eq.s32.totalorder %s29, 3
      %p206 = por %p204, %p205
      %p207 = scmp.ne.s32.totalorder %s198, %s199
      %p208 = scmp.eq.s32.totalorder %s29, 0
      %p209 = por %p207, %p208
      %p210 = scmp.ne.s32.totalorder %s198, %s199
      %p211 = scmp.eq.s32.totalorder %s30, 3
      %p212 = por %p210, %p211
      %p214 = scmp.ne.s32.totalorder %s199, %s213
      %p215 = scmp.eq.s32.totalorder %s30, 0
      %p216 = por %p214, %p215
      %s218 = sadd.s32 %s217, 1
      %p221 = scmp.eq.s32.totalorder %s24, 3
      %p222 = scmp.ne.s32.totalorder %s217, %s219
      %p223 = scmp.eq.s32.totalorder %s24, 0
      %p224 = por %p222, %p223
      %p225 = scmp.ne.s32.totalorder %s217, %s219
      %p226 = scmp.eq.s32.totalorder %s29, 3
      %p227 = por %p225, %p226
      %p228 = scmp.ne.s32.totalorder %s219, %s220
      %p229 = scmp.eq.s32.totalorder %s29, 0
      %p230 = por %p228, %p229
      %p231 = scmp.ne.s32.totalorder %s219, %s220
      %p232 = scmp.eq.s32.totalorder %s30, 3
      %p233 = por %p231, %p232
      %p235 = scmp.ne.s32.totalorder %s220, %s234
      %p236 = scmp.eq.s32.totalorder %s30, 0
      %p237 = por %p235, %p236
      %s239 = sadd.s32 %s238, 1
      %p242 = scmp.eq.s32.totalorder %s24, 3
      %p243 = scmp.ne.s32.totalorder %s238, %s240
      %p244 = scmp.eq.s32.totalorder %s24, 0
      %p245 = por %p243, %p244
      %p246 = scmp.ne.s32.totalorder %s238, %s240
      %p247 = scmp.eq.s32.totalorder %s29, 3
      %p248 = por %p246, %p247
      %p249 = scmp.ne.s32.totalorder %s240, %s241
      %p250 = scmp.eq.s32.totalorder %s29, 0
      %p251 = por %p249, %p250
      %p252 = scmp.ne.s32.totalorder %s240, %s241
      %p253 = scmp.eq.s32.totalorder %s30, 3
      %p254 = por %p252, %p253
      %p256 = scmp.ne.s32.totalorder %s241, %s255
      %p257 = scmp.eq.s32.totalorder %s30, 0
      %p258 = por %p256, %p257
      %s260 = sadd.s32 %s259, 1
      %p263 = scmp.eq.s32.totalorder %s24, 3
      %p264 = scmp.ne.s32.totalorder %s259, %s261
      %p265 = scmp.eq.s32.totalorder %s24, 0
      %p266 = por %p264, %p265
      %p267 = scmp.ne.s32.totalorder %s259, %s261
      %p268 = scmp.eq.s32.totalorder %s29, 3
      %p269 = por %p267, %p268
      %p270 = scmp.ne.s32.totalorder %s261, %s262
      %p271 = scmp.eq.s32.totalorder %s29, 0
      %p272 = por %p270, %p271
      %p273 = scmp.ne.s32.totalorder %s261, %s262
      %p274 = scmp.eq.s32.totalorder %s30, 3
      %p275 = por %p273, %p274
      %p277 = scmp.ne.s32.totalorder %s262, %s276
      %p278 = scmp.eq.s32.totalorder %s30, 0
      %p279 = por %p277, %p278
      %s281 = sadd.s32 %s280, 1
      %p284 = scmp.eq.s32.totalorder %s24, 3
      %p285 = scmp.ne.s32.totalorder %s280, %s282
      %p286 = scmp.eq.s32.totalorder %s24, 0
      %p287 = por %p285, %p286
      %p288 = scmp.ne.s32.totalorder %s280, %s282
      %p289 = scmp.eq.s32.totalorder %s29, 3
      %p290 = por %p288, %p289
      %p291 = scmp.ne.s32.totalorder %s282, %s283
      %p292 = scmp.eq.s32.totalorder %s29, 0
      %p293 = por %p291, %p292
      %p294 = scmp.ne.s32.totalorder %s282, %s283
      %p295 = scmp.eq.s32.totalorder %s30, 3
      %p296 = por %p294, %p295
      %p298 = scmp.ne.s32.totalorder %s283, %s297
      %p299 = scmp.eq.s32.totalorder %s30, 0
      %p300 = por %p298, %p299
      %s302 = sadd.s32 %s301, 1
      %p305 = scmp.eq.s32.totalorder %s24, 3
      %p306 = scmp.ne.s32.totalorder %s301, %s303
      %p307 = scmp.eq.s32.totalorder %s24, 0
      %p308 = por %p306, %p307
      %p309 = scmp.ne.s32.totalorder %s301, %s303
      %p310 = scmp.eq.s32.totalorder %s29, 3
      %p311 = por %p309, %p310
      %p312 = scmp.ne.s32.totalorder %s303, %s304
      %p313 = scmp.eq.s32.totalorder %s29, 0
      %p314 = por %p312, %p313
      %p315 = scmp.ne.s32.totalorder %s303, %s304
      %p316 = scmp.eq.s32.totalorder %s30, 3
      %p317 = por %p315, %p316
      %p319 = scmp.ne.s32.totalorder %s304, %s318
      %p320 = scmp.eq.s32.totalorder %s30, 0
      %p321 = por %p319, %p320
      %s323 = sadd.s32 %s322, 1
      %p326 = scmp.eq.s32.totalorder %s24, 3
      %p327 = scmp.ne.s32.totalorder %s322, %s324
      %p328 = scmp.eq.s32.totalorder %s24, 0
      %p329 = por %p327, %p328
      %p330 = scmp.ne.s32.totalorder %s322, %s324
      %p331 = scmp.eq.s32.totalorder %s29, 3
      %p332 = por %p330, %p331
      %p333 = scmp.ne.s32.totalorder %s324, %s325
      %p334 = scmp.eq.s32.totalorder %s29, 0
      %p335 = por %p333, %p334
      %p336 = scmp.ne.s32.totalorder %s324, %s325
      %p337 = scmp.eq.s32.totalorder %s30, 3
      %p338 = por %p336, %p337
      %p340 = scmp.ne.s32.totalorder %s325, %s339
      %p341 = scmp.eq.s32.totalorder %s30, 0
      %p342 = por %p340, %p341
      %s344 = sadd.s32 %s343, 1
      %p347 = scmp.eq.s32.totalorder %s24, 3
      %p348 = scmp.ne.s32.totalorder %s343, %s345
      %p349 = scmp.eq.s32.totalorder %s24, 0
      %p350 = por %p348, %p349
      %p351 = scmp.ne.s32.totalorder %s343, %s345
      %p352 = scmp.eq.s32.totalorder %s29, 3
      %p353 = por %p351, %p352
      %p354 = scmp.ne.s32.totalorder %s345, %s346
      %p355 = scmp.eq.s32.totalorder %s29, 0
      %p356 = por %p354, %p355
      %p357 = scmp.ne.s32.totalorder %s345, %s346
      %p358 = scmp.eq.s32.totalorder %s30, 3
      %p359 = por %p357, %p358
      %p361 = scmp.ne.s32.totalorder %s346, %s360
      %p362 = scmp.eq.s32.totalorder %s30, 0
      %p363 = por %p361, %p362
      %s364 = ssub.s32 %s31, %s43
      %s365 = ssub.s32 %s32, %s39
      %s366 = sor.u32 %s364, %s365
      %p367 = scmp.eq.s32.totalorder %s366, 0
      %s369 = sadd.s32 %s368, 1
      %s370 = scalar_select %p367, %s368, %s369
      %p373 = pneg %p367
      %p374 = scmp.eq.s32.totalorder %s24, 3
      %p375 = por %p373, %p374
      %p376 = scmp.ne.s32.totalorder %s368, %s371
      %p377 = scmp.eq.s32.totalorder %s24, 0
      %p378 = por %p376, %p377
      %p379 = scmp.ne.s32.totalorder %s368, %s371
      %p380 = scmp.eq.s32.totalorder %s29, 3
      %p381 = por %p379, %p380
      %p382 = scmp.ne.s32.totalorder %s371, %s372
      %p383 = scmp.eq.s32.totalorder %s29, 0
      %p384 = por %p382, %p383
      %p385 = scmp.ne.s32.totalorder %s371, %s372
      %p386 = scmp.eq.s32.totalorder %s30, 3
      %p387 = por %p385, %p386
      %p389 = scmp.ne.s32.totalorder %s372, %s388
      %p390 = scmp.eq.s32.totalorder %s30, 0
      %p391 = por %p389, %p390
      %p392 = scmp.le.s32.totalorder 1, %s24
      %p393 = scmp.lt.s32.totalorder %s24, 5
      %p394 = pnand %p392, %p393
      %p395 = pneg %p394
      // Predicated region
      $region9: #{transformer_encoder.2} parent=5 // pred_check
        _
      $region10: #{transformer_encoder.2} parent=5 // pred_check_branch
        %397 = sbr.rel (%p394) target = $region12
      $region11: #{transformer_encoder.2} parent=5 // pred_region
        %s398 = ssub.s32 %s24, 1
        // Predicated region
        $region13: #{transformer_encoder.2} parent=11 // pred_check
          %p399 = pneg %p83
        $region14: #{transformer_encoder.2} parent=11 // pred_check_branch
          %401 = sbr.rel (%p399) target = $region16
        $region15: #{transformer_encoder.2} parent=11 // pred_region
          _
        $region16: #{transformer_encoder.2} parent=11 // pred_fallthru
          _
        // Predicated region
        $region17: #{transformer_encoder.2} parent=11 // pred_check
          %p402 = pneg %p104
        $region18: #{transformer_encoder.2} parent=11 // pred_check_branch
          %404 = sbr.rel (%p402) target = $region20
        $region19: #{transformer_encoder.2} parent=11 // pred_region
          _
        $region20: #{transformer_encoder.2} parent=11 // pred_fallthru
          _
        // Predicated region
        $region21: #{transformer_encoder.2} parent=11 // pred_check
          %p405 = pneg %p125
        $region22: #{transformer_encoder.2} parent=11 // pred_check_branch
          %407 = sbr.rel (%p405) target = $region24
        $region23: #{transformer_encoder.2} parent=11 // pred_region
          _
        $region24: #{transformer_encoder.2} parent=11 // pred_fallthru
          _
        // Predicated region
        $region25: #{transformer_encoder.2} parent=11 // pred_check
          %p408 = pneg %p146
        $region26: #{transformer_encoder.2} parent=11 // pred_check_branch
          %410 = sbr.rel (%p408) target = $region28
        $region27: #{transformer_encoder.2} parent=11 // pred_region
          _
        $region28: #{transformer_encoder.2} parent=11 // pred_fallthru
          _
        // Predicated region
        $region29: #{transformer_encoder.2} parent=11 // pred_check
          %p411 = pneg %p167
        $region30: #{transformer_encoder.2} parent=11 // pred_check_branch
          %413 = sbr.rel (%p411) target = $region32
        $region31: #{transformer_encoder.2} parent=11 // pred_region
          _
        $region32: #{transformer_encoder.2} parent=11 // pred_fallthru
          _
        // Predicated region
        $region33: #{transformer_encoder.2} parent=11 // pred_check
          %p414 = pneg %p188
        $region34: #{transformer_encoder.2} parent=11 // pred_check_branch
          %416 = sbr.rel (%p414) target = $region36
        $region35: #{transformer_encoder.2} parent=11 // pred_region
          %s418 = ssub.s32 16, 16
          %419 = vsyncadd [#allocation6], %s418
          %s421 = sshll.u32 [#allocation5], 4
          %s422 = int_to_ptr.vmem [resolvable:$true] %s421
          %424 = dma.hbm_to_vmem [thread:$0]  %s6, 16, %s422, [#allocation6]
        $region36: #{transformer_encoder.2} parent=11 // pred_fallthru
          _
        // Predicated region
        $region37: #{transformer_encoder.2} parent=11 // pred_check
          %p425 = pneg %p209
        $region38: #{transformer_encoder.2} parent=11 // pred_check_branch
          %427 = sbr.rel (%p425) target = $region40
        $region39: #{transformer_encoder.2} parent=11 // pred_region
          _
        $region40: #{transformer_encoder.2} parent=11 // pred_fallthru
          _
        // Predicated region
        $region41: #{transformer_encoder.2} parent=11 // pred_check
          %p428 = pneg %p230
        $region42: #{transformer_encoder.2} parent=11 // pred_check_branch
          %430 = sbr.rel (%p428) target = $region44
        $region43: #{transformer_encoder.2} parent=11 // pred_region
          _
        $region44: #{transformer_encoder.2} parent=11 // pred_fallthru
          _
        // Predicated region
        $region45: #{transformer_encoder.2} parent=11 // pred_check
          %p431 = pneg %p251
        $region46: #{transformer_encoder.2} parent=11 // pred_check_branch
          %433 = sbr.rel (%p431) target = $region48
        $region47: #{transformer_encoder.2} parent=11 // pred_region
          _
        $region48: #{transformer_encoder.2} parent=11 // pred_fallthru
          _
        // Predicated region
        $region49: #{transformer_encoder.2} parent=11 // pred_check
          %p434 = pneg %p272
        $region50: #{transformer_encoder.2} parent=11 // pred_check_branch
          %436 = sbr.rel (%p434) target = $region52
        $region51: #{transformer_encoder.2} parent=11 // pred_region
          %s438 = ssub.s32 16, 16
          %439 = vsyncadd [#allocation8], %s438
          %s441 = sshll.u32 [#allocation7], 4
          %s442 = int_to_ptr.vmem [resolvable:$true] %s441
          %444 = dma.hbm_to_vmem [thread:$0]  %s10, 16, %s442, [#allocation8]
        $region52: #{transformer_encoder.2} parent=11 // pred_fallthru
          _
        // Predicated region
        $region53: #{transformer_encoder.2} parent=11 // pred_check
          %p445 = pneg %p293
        $region54: #{transformer_encoder.2} parent=11 // pred_check_branch
          %447 = sbr.rel (%p445) target = $region56
        $region55: #{transformer_encoder.2} parent=11 // pred_region
          _
        $region56: #{transformer_encoder.2} parent=11 // pred_fallthru
          _
        // Predicated region
        $region57: #{transformer_encoder.2} parent=11 // pred_check
          %p448 = pneg %p314
        $region58: #{transformer_encoder.2} parent=11 // pred_check_branch
          %450 = sbr.rel (%p448) target = $region60
        $region59: #{transformer_encoder.2} parent=11 // pred_region
          %s452 = ssub.s32 16, 16
          %453 = vsyncadd [#allocation8], %s452
          %s455 = sshll.u32 [#allocation9], 4
          %s456 = int_to_ptr.vmem [resolvable:$true] %s455
          %458 = dma.hbm_to_vmem [thread:$0]  %s12, 16, %s456, [#allocation8]
        $region60: #{transformer_encoder.2} parent=11 // pred_fallthru
          _
        // Predicated region
        $region61: #{transformer_encoder.2} parent=11 // pred_check
          %p459 = pneg %p335
        $region62: #{transformer_encoder.2} parent=11 // pred_check_branch
          %461 = sbr.rel (%p459) target = $region64
        $region63: #{transformer_encoder.2} parent=11 // pred_region
          _
        $region64: #{transformer_encoder.2} parent=11 // pred_fallthru
          _
        // Predicated region
        $region65: #{transformer_encoder.2} parent=11 // pred_check
          %p462 = pneg %p356
        $region66: #{transformer_encoder.2} parent=11 // pred_check_branch
          %464 = sbr.rel (%p462) target = $region68
        $region67: #{transformer_encoder.2} parent=11 // pred_region
          %s466 = ssub.s32 16, 16
          %467 = vsyncadd [#allocation11], %s466
          %s469 = sshll.u32 [#allocation10], 4
          %s470 = int_to_ptr.vmem [resolvable:$true] %s469
          %472 = dma.hbm_to_vmem [thread:$0]  %s14, 16, %s470, [#allocation11]
        $region68: #{transformer_encoder.2} parent=11 // pred_fallthru
          _
      $region12: #{transformer_encoder.2} parent=5 // pred_fallthru
        _
      %p473 = scmp.lt.s32.totalorder %s24, 4
      // Predicated region
      $region69: #{transformer_encoder.2} parent=5 // pred_check
        %p474 = pneg %p473
      $region70: #{transformer_encoder.2} parent=5 // pred_check_branch
        %476 = sbr.rel (%p474) target = $region72
      $region71: #{transformer_encoder.2} parent=5 // pred_region
        // Predicated region
        $region73: #{transformer_encoder.2} parent=71 // pred_check
          %p477 = pneg %p56
        $region74: #{transformer_encoder.2} parent=71 // pred_check_branch
          %479 = sbr.rel (%p477) target = $region76
        $region75: #{transformer_encoder.2} parent=71 // pred_region
          %p480 = scmp.lt.s32.totalorder %s31, 1
          %s481 = scalar_select %p480, %s31, 1
          %s482 = smul.addr %s481, 4
          %s483 = smul.addr %s482, 8
          %s484 = scalar_lea.vmem %s0, %s483
        $region76: #{transformer_encoder.2} parent=71 // pred_fallthru
          _
      $region72: #{transformer_encoder.2} parent=5 // pred_fallthru
        _
      %p485 = scmp.le.s32.totalorder 1, %s24
      %p486 = scmp.lt.s32.totalorder %s24, 5
      %p487 = pnand %p485, %p486
      %p488 = pneg %p487
      // Predicated region
      $region77: #{transformer_encoder.2} parent=5 // pred_check
        _
      $region78: #{transformer_encoder.2} parent=5 // pred_check_branch
        %490 = sbr.rel (%p487) target = $region80
      $region79: #{transformer_encoder.2} parent=5 // pred_region
        %s491 = ssub.s32 %s24, 1
        // Predicated region
        $region81: #{transformer_encoder.2} parent=79 // pred_check
          %p492 = pneg %p188
        $region82: #{transformer_encoder.2} parent=79 // pred_check_branch
          %494 = sbr.rel (%p492) target = $region84
        $region83: #{transformer_encoder.2} parent=79 // pred_region
          %495 = dma.done [#allocation6], 16
        $region84: #{transformer_encoder.2} parent=79 // pred_fallthru
          _
        // Predicated region
        $region85: #{transformer_encoder.2} parent=79 // pred_check
          %p496 = pneg %p272
        $region86: #{transformer_encoder.2} parent=79 // pred_check_branch
          %498 = sbr.rel (%p496) target = $region88
        $region87: #{transformer_encoder.2} parent=79 // pred_region
          %499 = dma.done [#allocation8], 16
        $region88: #{transformer_encoder.2} parent=79 // pred_fallthru
          _
        // Predicated region
        $region89: #{transformer_encoder.2} parent=79 // pred_check
          %p500 = pneg %p314
        $region90: #{transformer_encoder.2} parent=79 // pred_check_branch
          %502 = sbr.rel (%p500) target = $region92
        $region91: #{transformer_encoder.2} parent=79 // pred_region
          %503 = dma.done [#allocation8], 16
        $region92: #{transformer_encoder.2} parent=79 // pred_fallthru
          _
        // Predicated region
        $region93: #{transformer_encoder.2} parent=79 // pred_check
          %p504 = pneg %p356
        $region94: #{transformer_encoder.2} parent=79 // pred_check_branch
          %506 = sbr.rel (%p504) target = $region96
        $region95: #{transformer_encoder.2} parent=79 // pred_region
          %507 = dma.done [#allocation11], 16
        $region96: #{transformer_encoder.2} parent=79 // pred_fallthru
          _
        %p508 = scmp.lt.s32.totalorder %s33, 1
        %s509 = scalar_select %p508, %s33, 1
        %s510 = smul.addr %s509, 4
        %s511 = smul.addr %s510, 8
        %s512 = scalar_lea.vmem %s0, %s511
        %p513 = pneg %p62
        %p514 = pneg %p59
        %p515 = pneg %p83
        %p516 = pneg %p80
        %p517 = pneg %p104
        %p518 = pneg %p101
        %p519 = pneg %p125
        %p520 = pneg %p122
        %p521 = pneg %p146
        %p522 = pneg %p143
        %p523 = pneg %p167
        %p524 = pneg %p164
        %p525 = pneg %p188
        %p526 = pneg %p185
        %p527 = pneg %p209
        %p528 = pneg %p206
        %p529 = pneg %p230
        %p530 = pneg %p227
        %p531 = pneg %p251
        %p532 = pneg %p248
        %p533 = pneg %p272
        %p534 = pneg %p269
        %p535 = pneg %p293
        %p536 = pneg %p290
        %p537 = pneg %p314
        %p538 = pneg %p311
        %p539 = pneg %p335
        %p540 = pneg %p332
        %p541 = pneg %p356
        %p542 = pneg %p353
        %p543 = pneg %p384
        %p544 = pneg %p381
        %s545 = smul.u32 2, %s34
        %p546 = scmp.lt.s32.totalorder %s33, 1
        %s547 = scalar_select %p546, %s33, 1
        %p548 = scmp.lt.s32.totalorder %s545, 3
        %s549 = scalar_select %p548, %s545, 3
        %s550 = smul.addr %s547, 4
        %s551 = sadd.s32 %s549, %s550
        %s552 = smul.addr %s551, 4
        %s553 = scalar_lea.vmem %s15, %s552
        %p554 = scmp.lt.s32.totalorder %s33, 1
        %s555 = scalar_select %p554, %s33, 1
        %s556 = smul.addr %s555, 4
        %s557 = smul.addr %s556, 8
        %s558 = scalar_lea.vmem %s0, %s557
        %s559 = smul.u32 2, %s34
        %p560 = scmp.lt.s32.totalorder %s33, 1
        %s561 = scalar_select %p560, %s33, 1
        %p562 = scmp.lt.s32.totalorder %s559, 3
        %s563 = scalar_select %p562, %s559, 3
        %s564 = smul.addr %s561, 4
        %s565 = sadd.s32 %s563, %s564
        %s566 = smul.addr %s565, 4
        %s567 = scalar_lea.vmem %s15, %s566
        %s568 = smul.u32 2, %s34
        %p570 = scmp.eq.s32.totalorder %s34, 0
        // Predicated region
        $region97: #{transformer_encoder.2} parent=79 // pred_check
          %p571 = pneg %p570
        $region98: #{transformer_encoder.2} parent=79 // pred_check_branch
          %573 = sbr.rel (%p571) target = $region100
        $region99: #{transformer_encoder.2} parent=79 // pred_region
          %v574 = vld [vmem:[%s558] sm:$0xff]
          %v575 = vld [vmem:[%s558 + $0x8] sm:$0xff]
          %v576 = vld [vmem:[%s558 + $0x10] sm:$0xff]
          %v577 = vld [vmem:[%s558 + $0x18] sm:$0xff]
          %v578 = vpack.c.bf16 %v575, %v574
          %v579 = vpack.c.bf16 %v577, %v576
          %v580 = vld [vmem:[%s1] sm:$0xf]
          %v581 = vld [vmem:[%s1 + $0x4] sm:$0xf]
          %v582 = vld [vmem:[%s2] sm:$0x1]
          %v584 = vlaneseq
          %v585 = vshrl.u32 %v584, 7
          %v586 = vsub.s32 0, %v585
          %v587 = vrot.slane %v582, %v586
          %v591 = vunpack.c.l.b16 %v580
          %v592 = vunpack.c.l.b16 %v581
          %v593 = vpack.c.b16 %v592, %v591
          %vm595 = vcmask 130048
          %v597 = vsel %vm595, %v578, 0
          %v600 = vsel %vm595, %v579, 0
          %602 = vmatprep.subr.bf16.mxu0 0
          %603 = vmatpush1.bf16.msra.mxu0 0
          %604 = vmatprep.subr.bf16.mxu0 0
          %605 = vmatpush1.bf16.msra.mxu0 0
          %606 = vmatprep.subr.bf16.mxu0 0
          %607 = vmatpush1.bf16.msra.mxu0 0
          %608 = vmatprep.subr.bf16.mxu0 0
          %609 = vmatpush1.bf16.msra.mxu0 0
          %610 = vmatprep.subr.bf16.mxu0 0
          %611 = vmatpush1.bf16.msra.mxu0 0
          %612 = vmatprep.subr.bf16.mxu0 0
          %613 = vmatpush1.bf16.msra.mxu0 0
          %614 = vmatprep.subr.bf16.mxu0 0
          %615 = vmatpush1.bf16.msra.mxu0 0
          %616 = vmatprep.subr.bf16.mxu0 0
          %617 = vmatpush1.bf16.msra.mxu0 %v593
          %618 = vmatprep.subr.bf16.mxu0 0
          %619 = vmatpush2.bf16.msra.mxu0 0
          %620 = vmatprep.subr.bf16.mxu0 0
          %621 = vmatpush2.bf16.msra.mxu0 0
          %622 = vmatprep.subr.bf16.mxu0 0
          %623 = vmatpush2.bf16.msra.mxu0 0
          %624 = vmatprep.subr.bf16.mxu0 0
          %625 = vmatpush2.bf16.msra.mxu0 0
          %626 = vmatprep.subr.bf16.mxu0 0
          %627 = vmatpush2.bf16.msra.mxu0 0
          %628 = vmatprep.subr.bf16.mxu0 0
          %629 = vmatpush2.bf16.msra.mxu0 0
          %630 = vmatprep.subr.bf16.mxu0 0
          %631 = vmatpush2.bf16.msra.mxu0 0
          %632 = vmatprep.subr.bf16.mxu0 0
          %633 = vmatpush2.bf16.msra.mxu0 0
          %634 = vmatprep.mubr.bf16.mxu0 0
          %635 = vmatmul.mubr.bf16.gmra.mxu0 %v597
          %v636 = vpop.f32.mrf.mxu0
          %v637 = vadd.f32 %v587, %v636
          %v638 = vpop.f32.mrf.mxu0
          %v639 = vpop.f32.mrf.mxu0
          %v640 = vadd.f32 %v587, %v639
          %v641 = vpop.f32.mrf.mxu0
          %642 = vmatprep.mubr.bf16.mxu0 0
          %643 = vmatmul.mubr.bf16.gmra.mxu0 %v600
          %v644 = vpop.f32.mrf.mxu0
          %v645 = vadd.f32 %v587, %v644
          %v646 = vpop.f32.mrf.mxu0
          %v647 = vpop.f32.mrf.mxu0
          %v648 = vadd.f32 %v587, %v647
          %v649 = vpop.f32.mrf.mxu0
          %650 = vdwg.mxu0
          %vm651 = vcmask 261120
          %652 = vst.msk [vmem:[#allocation2] sm:$0xff] %vm651, %v637
          %653 = vst.msk [vmem:[#allocation2 + $0x8] sm:$0xff] %vm651, %v640
          %654 = vst.msk [vmem:[#allocation2 + $0x10] sm:$0xff] %vm651, %v645
          %655 = vst.msk [vmem:[#allocation2 + $0x18] sm:$0xff] %vm651, %v648
          %v656 = vpack.c.bf16 %v640, %v637
          %v657 = vpack.c.bf16 %v648, %v645
          %v658 = vld [vmem:[%s5] sm:$0xf]
          %v659 = vld [vmem:[%s5 + $0x4] sm:$0xf]
          %v660 = vld [vmem:[%s5 + $0x8] sm:$0xf]
          %v661 = vld [vmem:[%s5 + $0xc] sm:$0xf]
          %v662 = vld [vmem:[#allocation5] sm:$0x1]
          %v664 = vlaneseq
          %v665 = vshrl.u32 %v664, 7
          %v666 = vsub.s32 0, %v665
          %v667 = vrot.slane %v662, %v666
          %v673 = vunpack.c.l.b16 %v658
          %v674 = vunpack.c.l.b16 %v659
          %v675 = vunpack.c.l.b16 %v660
          %v676 = vunpack.c.l.b16 %v661
          %v677 = vpack.c.b16 %v674, %v673
          %v678 = vpack.c.b16 %v676, %v675
          %v682 = vsel %vm651, %v656, 0
          %v685 = vsel %vm651, %v657, 0
          %687 = vmatprep.subr.bf16.mxu0 0
          %688 = vmatpush1.bf16.msra.mxu0 0
          %689 = vmatprep.subr.bf16.mxu0 0
          %690 = vmatpush1.bf16.msra.mxu0 0
          %691 = vmatprep.subr.bf16.mxu0 0
          %692 = vmatpush1.bf16.msra.mxu0 0
          %693 = vmatprep.subr.bf16.mxu0 0
          %694 = vmatpush1.bf16.msra.mxu0 0
          %695 = vmatprep.subr.bf16.mxu0 0
          %696 = vmatpush1.bf16.msra.mxu0 0
          %697 = vmatprep.subr.bf16.mxu0 0
          %698 = vmatpush1.bf16.msra.mxu0 0
          %699 = vmatprep.subr.bf16.mxu0 0
          %700 = vmatpush1.bf16.msra.mxu0 %v678
          %701 = vmatprep.subr.bf16.mxu0 0
          %702 = vmatpush1.bf16.msra.mxu0 %v677
          %703 = vmatprep.subr.bf16.mxu0 0
          %704 = vmatpush2.bf16.msra.mxu0 0
          %705 = vmatprep.subr.bf16.mxu0 0
          %706 = vmatpush2.bf16.msra.mxu0 0
          %707 = vmatprep.subr.bf16.mxu0 0
          %708 = vmatpush2.bf16.msra.mxu0 0
          %709 = vmatprep.subr.bf16.mxu0 0
          %710 = vmatpush2.bf16.msra.mxu0 0
          %711 = vmatprep.subr.bf16.mxu0 0
          %712 = vmatpush2.bf16.msra.mxu0 0
          %713 = vmatprep.subr.bf16.mxu0 0
          %714 = vmatpush2.bf16.msra.mxu0 0
          %715 = vmatprep.subr.bf16.mxu0 0
          %716 = vmatpush2.bf16.msra.mxu0 0
          %717 = vmatprep.subr.bf16.mxu0 0
          %718 = vmatpush2.bf16.msra.mxu0 0
          %719 = vmatprep.mubr.bf16.mxu0 0
          %720 = vmatmul.mubr.bf16.gmra.mxu0 %v682
          %v721 = vpop.f32.mrf.mxu0
          %v722 = vadd.f32 %v667, %v721
          %v723 = vpop.f32.mrf.mxu0
          %v724 = vpop.f32.mrf.mxu0
          %v725 = vadd.f32 %v667, %v724
          %v726 = vpop.f32.mrf.mxu0
          %727 = vmatprep.mubr.bf16.mxu0 0
          %728 = vmatmul.mubr.bf16.gmra.mxu0 %v685
          %v729 = vpop.f32.mrf.mxu0
          %v730 = vadd.f32 %v667, %v729
          %v731 = vpop.f32.mrf.mxu0
          %v732 = vpop.f32.mrf.mxu0
          %v733 = vadd.f32 %v667, %v732
          %v734 = vpop.f32.mrf.mxu0
          %735 = vdwg.mxu0
          %v736 = vld [vmem:[%s7] sm:$0xf]
          %v737 = vld [vmem:[%s7 + $0x4] sm:$0xf]
          %v738 = vld [vmem:[%s7 + $0x8] sm:$0xf]
          %v739 = vld [vmem:[%s7 + $0xc] sm:$0xf]
          %v740 = vld [vmem:[%s8] sm:$0x1]
          %v742 = vlaneseq
          %v743 = vshrl.u32 %v742, 7
          %v744 = vsub.s32 0, %v743
          %v745 = vrot.slane %v740, %v744
          %v751 = vunpack.c.l.b16 %v736
          %v752 = vunpack.c.l.b16 %v737
          %v753 = vunpack.c.l.b16 %v738
          %v754 = vunpack.c.l.b16 %v739
          %v755 = vpack.c.b16 %v752, %v751
          %v756 = vpack.c.b16 %v754, %v753
          %759 = vmatprep.subr.bf16.mxu0 0
          %760 = vmatpush1.bf16.msra.mxu0 0
          %761 = vmatprep.subr.bf16.mxu0 0
          %762 = vmatpush1.bf16.msra.mxu0 0
          %763 = vmatprep.subr.bf16.mxu0 0
          %764 = vmatpush1.bf16.msra.mxu0 0
          %765 = vmatprep.subr.bf16.mxu0 0
          %766 = vmatpush1.bf16.msra.mxu0 0
          %767 = vmatprep.subr.bf16.mxu0 0
          %768 = vmatpush1.bf16.msra.mxu0 0
          %769 = vmatprep.subr.bf16.mxu0 0
          %770 = vmatpush1.bf16.msra.mxu0 0
          %771 = vmatprep.subr.bf16.mxu0 0
          %772 = vmatpush1.bf16.msra.mxu0 %v756
          %773 = vmatprep.subr.bf16.mxu0 0
          %774 = vmatpush1.bf16.msra.mxu0 %v755
          %775 = vmatprep.subr.bf16.mxu0 0
          %776 = vmatpush2.bf16.msra.mxu0 0
          %777 = vmatprep.subr.bf16.mxu0 0
          %778 = vmatpush2.bf16.msra.mxu0 0
          %779 = vmatprep.subr.bf16.mxu0 0
          %780 = vmatpush2.bf16.msra.mxu0 0
          %781 = vmatprep.subr.bf16.mxu0 0
          %782 = vmatpush2.bf16.msra.mxu0 0
          %783 = vmatprep.subr.bf16.mxu0 0
          %784 = vmatpush2.bf16.msra.mxu0 0
          %785 = vmatprep.subr.bf16.mxu0 0
          %786 = vmatpush2.bf16.msra.mxu0 0
          %787 = vmatprep.subr.bf16.mxu0 0
          %788 = vmatpush2.bf16.msra.mxu0 0
          %789 = vmatprep.subr.bf16.mxu0 0
          %790 = vmatpush2.bf16.msra.mxu0 0
          %791 = vmatprep.mubr.bf16.mxu0 0
          %792 = vmatmul.mubr.bf16.gmra.mxu0 %v682
          %v793 = vpop.f32.mrf.mxu0
          %v794 = vadd.f32 %v745, %v793
          %v795 = vpop.f32.mrf.mxu0
          %v796 = vpop.f32.mrf.mxu0
          %v797 = vadd.f32 %v745, %v796
          %v798 = vpop.f32.mrf.mxu0
          %799 = vmatprep.mubr.bf16.mxu0 0
          %800 = vmatmul.mubr.bf16.gmra.mxu0 %v685
          %v801 = vpop.f32.mrf.mxu0
          %v802 = vadd.f32 %v745, %v801
          %v803 = vpop.f32.mrf.mxu0
          %v804 = vpop.f32.mrf.mxu0
          %v805 = vadd.f32 %v745, %v804
          %v806 = vpop.f32.mrf.mxu0
          %807 = vdwg.mxu0
          %v808 = vpack.c.bf16 %v725, %v722
          %v809 = vpack.c.bf16 %v733, %v730
          %812 = vrot.lane.b32.xlu0 %v808, 120
          %v813 = vpop.permute.xlu0 %812
          %814 = vrot.lane.b32.xlu0 %v809, 120
          %v815 = vpop.permute.xlu0 %814
          %816 = vrot.lane.b32.xlu0 %v808, 112
          %v817 = vpop.permute.xlu0 %816
          %818 = vrot.lane.b32.xlu0 %v809, 112
          %v819 = vpop.permute.xlu0 %818
          %820 = vrot.lane.b32.xlu0 %v808, 104
          %v821 = vpop.permute.xlu0 %820
          %822 = vrot.lane.b32.xlu0 %v809, 104
          %v823 = vpop.permute.xlu0 %822
          %v826 = vpack.i.b16 %v813, %v808
          %v828 = vshrl.u32 %v808, 16
          %v829 = vshrl.u32 %v813, 16
          %v830 = vpack.i.b16 %v829, %v828
          %v834 = vpack.i.b16 %v821, %v817
          %v836 = vshrl.u32 %v817, 16
          %v837 = vshrl.u32 %v821, 16
          %v838 = vpack.i.b16 %v837, %v836
          %v841 = vpack.i.b16 0, 0
          %v843 = vshrl.u32 0, 16
          %v844 = vpack.i.b16 %v843, %v843
          %v848 = vpack.i.b16 %v815, %v809
          %v850 = vshrl.u32 %v809, 16
          %v851 = vshrl.u32 %v815, 16
          %v852 = vpack.i.b16 %v851, %v850
          %v856 = vpack.i.b16 %v823, %v819
          %v858 = vshrl.u32 %v819, 16
          %v859 = vshrl.u32 %v823, 16
          %v860 = vpack.i.b16 %v859, %v858
          %v862 = vcombine.high %v826, %v841
          %v864 = vunpack.c.l.s4 1983009808
          %v865 = vunpack.c.0.s8 %v864
          %v866 = vlaneseq
          %v867 = vshrl.u32 %v866, 7
          %v868 = vsub.s32 %v865, %v867
          %v869 = vrot.slane %v826, %v868
          %v871 = vunpack.c.l.s4 1983009808
          %v872 = vunpack.c.0.s8 %v871
          %v873 = vlaneseq
          %v874 = vshrl.u32 %v873, 7
          %v875 = vsub.s32 %v872, %v874
          %v876 = vrot.slane %v862, %v875
          %v877 = vcombine.high %v834, %v841
          %v879 = vunpack.c.l.s4 1983009808
          %v880 = vunpack.c.0.s8 %v879
          %v881 = vlaneseq
          %v882 = vshrl.u32 %v881, 7
          %v883 = vsub.s32 %v880, %v882
          %v884 = vrot.slane %v834, %v883
          %v886 = vunpack.c.l.s4 1983009808
          %v887 = vunpack.c.0.s8 %v886
          %v888 = vlaneseq
          %v889 = vshrl.u32 %v888, 7
          %v890 = vsub.s32 %v887, %v889
          %v891 = vrot.slane %v877, %v890
          %v892 = vcombine.low %v869, %v884
          %v893 = vcombine.high %v869, %v884
          %v895 = vunpack.c.l.s4 1934713408
          %v896 = vunpack.c.0.s8 %v895
          %v897 = vlaneseq
          %v898 = vshrl.u32 %v897, 7
          %v899 = vsub.s32 %v896, %v898
          %v900 = vrot.slane %v892, %v899
          %v902 = vunpack.c.l.s4 1934713408
          %v903 = vunpack.c.0.s8 %v902
          %v904 = vlaneseq
          %v905 = vshrl.u32 %v904, 7
          %v906 = vsub.s32 %v903, %v905
          %v907 = vrot.slane %v893, %v906
          %v908 = vcombine.low %v876, %v891
          %v909 = vcombine.high %v876, %v891
          %v911 = vunpack.c.l.s4 1934713408
          %v912 = vunpack.c.0.s8 %v911
          %v913 = vlaneseq
          %v914 = vshrl.u32 %v913, 7
          %v915 = vsub.s32 %v912, %v914
          %v916 = vrot.slane %v908, %v915
          %v918 = vunpack.c.l.s4 1934713408
          %v919 = vunpack.c.0.s8 %v918
          %v920 = vlaneseq
          %v921 = vshrl.u32 %v920, 7
          %v922 = vsub.s32 %v919, %v921
          %v923 = vrot.slane %v909, %v922
          %v924 = vcombine.high %v900, 0
          %v925 = vcombine.high %v907, 0
          %v926 = vcombine.high %v916, 0
          %v927 = vcombine.high %v923, 0
          %v928 = vcombine.high %v830, %v844
          %v930 = vunpack.c.l.s4 1983009808
          %v931 = vunpack.c.0.s8 %v930
          %v932 = vlaneseq
          %v933 = vshrl.u32 %v932, 7
          %v934 = vsub.s32 %v931, %v933
          %v935 = vrot.slane %v830, %v934
          %v937 = vunpack.c.l.s4 1983009808
          %v938 = vunpack.c.0.s8 %v937
          %v939 = vlaneseq
          %v940 = vshrl.u32 %v939, 7
          %v941 = vsub.s32 %v938, %v940
          %v942 = vrot.slane %v928, %v941
          %v943 = vcombine.high %v838, %v844
          %v945 = vunpack.c.l.s4 1983009808
          %v946 = vunpack.c.0.s8 %v945
          %v947 = vlaneseq
          %v948 = vshrl.u32 %v947, 7
          %v949 = vsub.s32 %v946, %v948
          %v950 = vrot.slane %v838, %v949
          %v952 = vunpack.c.l.s4 1983009808
          %v953 = vunpack.c.0.s8 %v952
          %v954 = vlaneseq
          %v955 = vshrl.u32 %v954, 7
          %v956 = vsub.s32 %v953, %v955
          %v957 = vrot.slane %v943, %v956
          %v958 = vcombine.low %v935, %v950
          %v959 = vcombine.high %v935, %v950
          %v961 = vunpack.c.l.s4 1934713408
          %v962 = vunpack.c.0.s8 %v961
          %v963 = vlaneseq
          %v964 = vshrl.u32 %v963, 7
          %v965 = vsub.s32 %v962, %v964
          %v966 = vrot.slane %v958, %v965
          %v968 = vunpack.c.l.s4 1934713408
          %v969 = vunpack.c.0.s8 %v968
          %v970 = vlaneseq
          %v971 = vshrl.u32 %v970, 7
          %v972 = vsub.s32 %v969, %v971
          %v973 = vrot.slane %v959, %v972
          %v974 = vcombine.low %v942, %v957
          %v975 = vcombine.high %v942, %v957
          %v977 = vunpack.c.l.s4 1934713408
          %v978 = vunpack.c.0.s8 %v977
          %v979 = vlaneseq
          %v980 = vshrl.u32 %v979, 7
          %v981 = vsub.s32 %v978, %v980
          %v982 = vrot.slane %v974, %v981
          %v984 = vunpack.c.l.s4 1934713408
          %v985 = vunpack.c.0.s8 %v984
          %v986 = vlaneseq
          %v987 = vshrl.u32 %v986, 7
          %v988 = vsub.s32 %v985, %v987
          %v989 = vrot.slane %v975, %v988
          %v990 = vcombine.high %v966, 0
          %v991 = vcombine.high %v973, 0
          %v992 = vcombine.high %v982, 0
          %v993 = vcombine.high %v989, 0
          %v994 = vcombine.high %v848, %v841
          %v996 = vunpack.c.l.s4 1983009808
          %v997 = vunpack.c.0.s8 %v996
          %v998 = vlaneseq
          %v999 = vshrl.u32 %v998, 7
          %v1000 = vsub.s32 %v997, %v999
          %v1001 = vrot.slane %v848, %v1000
          %v1003 = vunpack.c.l.s4 1983009808
          %v1004 = vunpack.c.0.s8 %v1003
          %v1005 = vlaneseq
          %v1006 = vshrl.u32 %v1005, 7
          %v1007 = vsub.s32 %v1004, %v1006
          %v1008 = vrot.slane %v994, %v1007
          %v1009 = vcombine.high %v856, %v841
          %v1011 = vunpack.c.l.s4 1983009808
          %v1012 = vunpack.c.0.s8 %v1011
          %v1013 = vlaneseq
          %v1014 = vshrl.u32 %v1013, 7
          %v1015 = vsub.s32 %v1012, %v1014
          %v1016 = vrot.slane %v856, %v1015
          %v1018 = vunpack.c.l.s4 1983009808
          %v1019 = vunpack.c.0.s8 %v1018
          %v1020 = vlaneseq
          %v1021 = vshrl.u32 %v1020, 7
          %v1022 = vsub.s32 %v1019, %v1021
          %v1023 = vrot.slane %v1009, %v1022
          %v1024 = vcombine.low %v1001, %v1016
          %v1025 = vcombine.high %v1001, %v1016
          %v1027 = vunpack.c.l.s4 1934713408
          %v1028 = vunpack.c.0.s8 %v1027
          %v1029 = vlaneseq
          %v1030 = vshrl.u32 %v1029, 7
          %v1031 = vsub.s32 %v1028, %v1030
          %v1032 = vrot.slane %v1024, %v1031
          %v1034 = vunpack.c.l.s4 1934713408
          %v1035 = vunpack.c.0.s8 %v1034
          %v1036 = vlaneseq
          %v1037 = vshrl.u32 %v1036, 7
          %v1038 = vsub.s32 %v1035, %v1037
          %v1039 = vrot.slane %v1025, %v1038
          %v1040 = vcombine.low %v1008, %v1023
          %v1041 = vcombine.high %v1008, %v1023
          %v1043 = vunpack.c.l.s4 1934713408
          %v1044 = vunpack.c.0.s8 %v1043
          %v1045 = vlaneseq
          %v1046 = vshrl.u32 %v1045, 7
          %v1047 = vsub.s32 %v1044, %v1046
          %v1048 = vrot.slane %v1040, %v1047
          %v1050 = vunpack.c.l.s4 1934713408
          %v1051 = vunpack.c.0.s8 %v1050
          %v1052 = vlaneseq
          %v1053 = vshrl.u32 %v1052, 7
          %v1054 = vsub.s32 %v1051, %v1053
          %v1055 = vrot.slane %v1041, %v1054
          %v1056 = vcombine.high %v1032, 0
          %v1057 = vcombine.high %v1039, 0
          %v1058 = vcombine.high %v1048, 0
          %v1059 = vcombine.high %v1055, 0
          %v1060 = vcombine.high %v852, %v844
          %v1062 = vunpack.c.l.s4 1983009808
          %v1063 = vunpack.c.0.s8 %v1062
          %v1064 = vlaneseq
          %v1065 = vshrl.u32 %v1064, 7
          %v1066 = vsub.s32 %v1063, %v1065
          %v1067 = vrot.slane %v852, %v1066
          %v1069 = vunpack.c.l.s4 1983009808
          %v1070 = vunpack.c.0.s8 %v1069
          %v1071 = vlaneseq
          %v1072 = vshrl.u32 %v1071, 7
          %v1073 = vsub.s32 %v1070, %v1072
          %v1074 = vrot.slane %v1060, %v1073
          %v1075 = vcombine.high %v860, %v844
          %v1077 = vunpack.c.l.s4 1983009808
          %v1078 = vunpack.c.0.s8 %v1077
          %v1079 = vlaneseq
          %v1080 = vshrl.u32 %v1079, 7
          %v1081 = vsub.s32 %v1078, %v1080
          %v1082 = vrot.slane %v860, %v1081
          %v1084 = vunpack.c.l.s4 1983009808
          %v1085 = vunpack.c.0.s8 %v1084
          %v1086 = vlaneseq
          %v1087 = vshrl.u32 %v1086, 7
          %v1088 = vsub.s32 %v1085, %v1087
          %v1089 = vrot.slane %v1075, %v1088
          %v1090 = vcombine.low %v1067, %v1082
          %v1091 = vcombine.high %v1067, %v1082
          %v1093 = vunpack.c.l.s4 1934713408
          %v1094 = vunpack.c.0.s8 %v1093
          %v1095 = vlaneseq
          %v1096 = vshrl.u32 %v1095, 7
          %v1097 = vsub.s32 %v1094, %v1096
          %v1098 = vrot.slane %v1090, %v1097
          %v1100 = vunpack.c.l.s4 1934713408
          %v1101 = vunpack.c.0.s8 %v1100
          %v1102 = vlaneseq
          %v1103 = vshrl.u32 %v1102, 7
          %v1104 = vsub.s32 %v1101, %v1103
          %v1105 = vrot.slane %v1091, %v1104
          %v1106 = vcombine.low %v1074, %v1089
          %v1107 = vcombine.high %v1074, %v1089
          %v1109 = vunpack.c.l.s4 1934713408
          %v1110 = vunpack.c.0.s8 %v1109
          %v1111 = vlaneseq
          %v1112 = vshrl.u32 %v1111, 7
          %v1113 = vsub.s32 %v1110, %v1112
          %v1114 = vrot.slane %v1106, %v1113
          %v1116 = vunpack.c.l.s4 1934713408
          %v1117 = vunpack.c.0.s8 %v1116
          %v1118 = vlaneseq
          %v1119 = vshrl.u32 %v1118, 7
          %v1120 = vsub.s32 %v1117, %v1119
          %v1121 = vrot.slane %v1107, %v1120
          %v1122 = vcombine.high %v1098, 0
          %v1123 = vcombine.high %v1105, 0
          %v1124 = vcombine.high %v1114, 0
          %v1125 = vcombine.high %v1121, 0
          %v1126 = vcombine.low %v900, %v907
          %v1128 = vunpack.c.l.s4 1983009808
          %v1129 = vunpack.c.0.s8 %v1128
          %v1130 = vlaneseq
          %v1131 = vshrl.u32 %v1130, 7
          %v1132 = vsub.s32 %v1129, %v1131
          %v1133 = vrot.slane %v1126, %v1132
          %v1134 = vcombine.low %v924, %v925
          %v1136 = vunpack.c.l.s4 1983009808
          %v1137 = vunpack.c.0.s8 %v1136
          %v1138 = vlaneseq
          %v1139 = vshrl.u32 %v1138, 7
          %v1140 = vsub.s32 %v1137, %v1139
          %v1141 = vrot.slane %v1134, %v1140
          %v1142 = vcombine.low %v916, %v923
          %v1144 = vunpack.c.l.s4 1983009808
          %v1145 = vunpack.c.0.s8 %v1144
          %v1146 = vlaneseq
          %v1147 = vshrl.u32 %v1146, 7
          %v1148 = vsub.s32 %v1145, %v1147
          %v1149 = vrot.slane %v1142, %v1148
          %v1150 = vcombine.low %v926, %v927
          %v1152 = vunpack.c.l.s4 1983009808
          %v1153 = vunpack.c.0.s8 %v1152
          %v1154 = vlaneseq
          %v1155 = vshrl.u32 %v1154, 7
          %v1156 = vsub.s32 %v1153, %v1155
          %v1157 = vrot.slane %v1150, %v1156
          %v1158 = vcombine.low %v1133, %v1141
          %v1160 = vunpack.c.l.s4 1934713408
          %v1161 = vunpack.c.0.s8 %v1160
          %v1162 = vlaneseq
          %v1163 = vshrl.u32 %v1162, 7
          %v1164 = vsub.s32 %v1161, %v1163
          %v1165 = vrot.slane %v1158, %v1164
          %v1166 = vcombine.low %v1149, %v1157
          %v1168 = vunpack.c.l.s4 1934713408
          %v1169 = vunpack.c.0.s8 %v1168
          %v1170 = vlaneseq
          %v1171 = vshrl.u32 %v1170, 7
          %v1172 = vsub.s32 %v1169, %v1171
          %v1173 = vrot.slane %v1166, %v1172
          %v1174 = vcombine.low %v1165, %v1173
          %v1175 = vcombine.high %v1165, %v1173
          %v1176 = vcombine.low %v966, %v973
          %v1178 = vunpack.c.l.s4 1983009808
          %v1179 = vunpack.c.0.s8 %v1178
          %v1180 = vlaneseq
          %v1181 = vshrl.u32 %v1180, 7
          %v1182 = vsub.s32 %v1179, %v1181
          %v1183 = vrot.slane %v1176, %v1182
          %v1184 = vcombine.low %v990, %v991
          %v1186 = vunpack.c.l.s4 1983009808
          %v1187 = vunpack.c.0.s8 %v1186
          %v1188 = vlaneseq
          %v1189 = vshrl.u32 %v1188, 7
          %v1190 = vsub.s32 %v1187, %v1189
          %v1191 = vrot.slane %v1184, %v1190
          %v1192 = vcombine.low %v982, %v989
          %v1194 = vunpack.c.l.s4 1983009808
          %v1195 = vunpack.c.0.s8 %v1194
          %v1196 = vlaneseq
          %v1197 = vshrl.u32 %v1196, 7
          %v1198 = vsub.s32 %v1195, %v1197
          %v1199 = vrot.slane %v1192, %v1198
          %v1200 = vcombine.low %v992, %v993
          %v1202 = vunpack.c.l.s4 1983009808
          %v1203 = vunpack.c.0.s8 %v1202
          %v1204 = vlaneseq
          %v1205 = vshrl.u32 %v1204, 7
          %v1206 = vsub.s32 %v1203, %v1205
          %v1207 = vrot.slane %v1200, %v1206
          %v1208 = vcombine.low %v1183, %v1191
          %v1210 = vunpack.c.l.s4 1934713408
          %v1211 = vunpack.c.0.s8 %v1210
          %v1212 = vlaneseq
          %v1213 = vshrl.u32 %v1212, 7
          %v1214 = vsub.s32 %v1211, %v1213
          %v1215 = vrot.slane %v1208, %v1214
          %v1216 = vcombine.low %v1199, %v1207
          %v1218 = vunpack.c.l.s4 1934713408
          %v1219 = vunpack.c.0.s8 %v1218
          %v1220 = vlaneseq
          %v1221 = vshrl.u32 %v1220, 7
          %v1222 = vsub.s32 %v1219, %v1221
          %v1223 = vrot.slane %v1216, %v1222
          %v1224 = vcombine.low %v1215, %v1223
          %v1225 = vcombine.high %v1215, %v1223
          %v1226 = vcombine.low %v1032, %v1039
          %v1228 = vunpack.c.l.s4 1983009808
          %v1229 = vunpack.c.0.s8 %v1228
          %v1230 = vlaneseq
          %v1231 = vshrl.u32 %v1230, 7
          %v1232 = vsub.s32 %v1229, %v1231
          %v1233 = vrot.slane %v1226, %v1232
          %v1234 = vcombine.low %v1056, %v1057
          %v1236 = vunpack.c.l.s4 1983009808
          %v1237 = vunpack.c.0.s8 %v1236
          %v1238 = vlaneseq
          %v1239 = vshrl.u32 %v1238, 7
          %v1240 = vsub.s32 %v1237, %v1239
          %v1241 = vrot.slane %v1234, %v1240
          %v1242 = vcombine.low %v1048, %v1055
          %v1244 = vunpack.c.l.s4 1983009808
          %v1245 = vunpack.c.0.s8 %v1244
          %v1246 = vlaneseq
          %v1247 = vshrl.u32 %v1246, 7
          %v1248 = vsub.s32 %v1245, %v1247
          %v1249 = vrot.slane %v1242, %v1248
          %v1250 = vcombine.low %v1058, %v1059
          %v1252 = vunpack.c.l.s4 1983009808
          %v1253 = vunpack.c.0.s8 %v1252
          %v1254 = vlaneseq
          %v1255 = vshrl.u32 %v1254, 7
          %v1256 = vsub.s32 %v1253, %v1255
          %v1257 = vrot.slane %v1250, %v1256
          %v1258 = vcombine.low %v1233, %v1241
          %v1260 = vunpack.c.l.s4 1934713408
          %v1261 = vunpack.c.0.s8 %v1260
          %v1262 = vlaneseq
          %v1263 = vshrl.u32 %v1262, 7
          %v1264 = vsub.s32 %v1261, %v1263
          %v1265 = vrot.slane %v1258, %v1264
          %v1266 = vcombine.low %v1249, %v1257
          %v1268 = vunpack.c.l.s4 1934713408
          %v1269 = vunpack.c.0.s8 %v1268
          %v1270 = vlaneseq
          %v1271 = vshrl.u32 %v1270, 7
          %v1272 = vsub.s32 %v1269, %v1271
          %v1273 = vrot.slane %v1266, %v1272
          %v1274 = vcombine.low %v1265, %v1273
          %v1275 = vcombine.high %v1265, %v1273
          %v1276 = vcombine.low %v1098, %v1105
          %v1278 = vunpack.c.l.s4 1983009808
          %v1279 = vunpack.c.0.s8 %v1278
          %v1280 = vlaneseq
          %v1281 = vshrl.u32 %v1280, 7
          %v1282 = vsub.s32 %v1279, %v1281
          %v1283 = vrot.slane %v1276, %v1282
          %v1284 = vcombine.low %v1122, %v1123
          %v1286 = vunpack.c.l.s4 1983009808
          %v1287 = vunpack.c.0.s8 %v1286
          %v1288 = vlaneseq
          %v1289 = vshrl.u32 %v1288, 7
          %v1290 = vsub.s32 %v1287, %v1289
          %v1291 = vrot.slane %v1284, %v1290
          %v1292 = vcombine.low %v1114, %v1121
          %v1294 = vunpack.c.l.s4 1983009808
          %v1295 = vunpack.c.0.s8 %v1294
          %v1296 = vlaneseq
          %v1297 = vshrl.u32 %v1296, 7
          %v1298 = vsub.s32 %v1295, %v1297
          %v1299 = vrot.slane %v1292, %v1298
          %v1300 = vcombine.low %v1124, %v1125
          %v1302 = vunpack.c.l.s4 1983009808
          %v1303 = vunpack.c.0.s8 %v1302
          %v1304 = vlaneseq
          %v1305 = vshrl.u32 %v1304, 7
          %v1306 = vsub.s32 %v1303, %v1305
          %v1307 = vrot.slane %v1300, %v1306
          %v1308 = vcombine.low %v1283, %v1291
          %v1310 = vunpack.c.l.s4 1934713408
          %v1311 = vunpack.c.0.s8 %v1310
          %v1312 = vlaneseq
          %v1313 = vshrl.u32 %v1312, 7
          %v1314 = vsub.s32 %v1311, %v1313
          %v1315 = vrot.slane %v1308, %v1314
          %v1316 = vcombine.low %v1299, %v1307
          %v1318 = vunpack.c.l.s4 1934713408
          %v1319 = vunpack.c.0.s8 %v1318
          %v1320 = vlaneseq
          %v1321 = vshrl.u32 %v1320, 7
          %v1322 = vsub.s32 %v1319, %v1321
          %v1323 = vrot.slane %v1316, %v1322
          %v1324 = vcombine.low %v1315, %v1323
          %v1325 = vcombine.high %v1315, %v1323
          %v1328 = vpack.i.b16 %v1224, %v1174
          %v1329 = vshrl.u32 %v1174, 16
          %v1330 = vshrl.u32 %v1224, 16
          %v1331 = vpack.i.b16 %v1330, %v1329
          %v1334 = vpack.i.b16 %v1225, %v1175
          %v1335 = vshrl.u32 %v1175, 16
          %v1336 = vshrl.u32 %v1225, 16
          %v1337 = vpack.i.b16 %v1336, %v1335
          %v1340 = vpack.i.b16 %v1324, %v1274
          %v1341 = vshrl.u32 %v1274, 16
          %v1342 = vshrl.u32 %v1324, 16
          %v1343 = vpack.i.b16 %v1342, %v1341
          %v1346 = vpack.i.b16 %v1325, %v1275
          %v1347 = vshrl.u32 %v1275, 16
          %v1348 = vshrl.u32 %v1325, 16
          %v1349 = vpack.i.b16 %v1348, %v1347
          %v1350 = vunpack.c.l.b16 %v1328
          %v1351 = vunpack.c.h.b16 %v1328
          %v1352 = vunpack.c.l.b16 %v1340
          %v1353 = vunpack.c.h.b16 %v1340
          %v1354 = vunpack.c.l.b16 %v1331
          %v1355 = vunpack.c.h.b16 %v1331
          %v1356 = vunpack.c.l.b16 %v1343
          %v1357 = vunpack.c.h.b16 %v1343
          %v1358 = vunpack.c.l.b16 %v1334
          %v1359 = vunpack.c.h.b16 %v1334
          %v1360 = vunpack.c.l.b16 %v1346
          %v1361 = vunpack.c.h.b16 %v1346
          %v1362 = vunpack.c.l.b16 %v1337
          %v1363 = vunpack.c.h.b16 %v1337
          %v1364 = vunpack.c.l.b16 %v1349
          %v1365 = vunpack.c.h.b16 %v1349
          %v1366 = vpack.c.b16 %v1350, %v1350
          %v1367 = vpack.c.b16 %v1351, %v1351
          %v1368 = vpack.c.b16 %v1352, %v1352
          %v1369 = vpack.c.b16 %v1353, %v1353
          %v1370 = vpack.c.b16 %v1354, %v1354
          %v1371 = vpack.c.b16 %v1355, %v1355
          %v1372 = vpack.c.b16 %v1356, %v1356
          %v1373 = vpack.c.b16 %v1357, %v1357
          %v1374 = vpack.c.b16 %v1358, %v1358
          %v1375 = vpack.c.b16 %v1359, %v1359
          %v1376 = vpack.c.b16 %v1360, %v1360
          %v1377 = vpack.c.b16 %v1361, %v1361
          %v1378 = vpack.c.b16 %v1362, %v1362
          %v1379 = vpack.c.b16 %v1363, %v1363
          %v1380 = vpack.c.b16 %v1364, %v1364
          %v1381 = vpack.c.b16 %v1365, %v1365
          %vm1398 = vcmask 60416
          %1399 = vst.msk [vmem:[#allocation3] sm:$0xf] %vm1398, %v1366
          %1400 = vst.msk [vmem:[#allocation3 + $0x4] sm:$0xf] %vm1398, %v1367
          %1401 = vst.msk [vmem:[#allocation3 + $0x8] sm:$0xf] %vm1398, %v1368
          %1402 = vst.msk [vmem:[#allocation3 + $0xc] sm:$0xf] %vm1398, %v1369
          %1403 = vst.msk [vmem:[#allocation3 + $0x10] sm:$0xf] %vm1398, %v1370
          %1404 = vst.msk [vmem:[#allocation3 + $0x14] sm:$0xf] %vm1398, %v1371
          %1405 = vst.msk [vmem:[#allocation3 + $0x18] sm:$0xf] %vm1398, %v1372
          %1406 = vst.msk [vmem:[#allocation3 + $0x1c] sm:$0xf] %vm1398, %v1373
          %1407 = vst.msk [vmem:[#allocation3 + $0x20] sm:$0xf] %vm1398, %v1374
          %1408 = vst.msk [vmem:[#allocation3 + $0x24] sm:$0xf] %vm1398, %v1375
          %1409 = vst.msk [vmem:[#allocation3 + $0x28] sm:$0xf] %vm1398, %v1376
          %1410 = vst.msk [vmem:[#allocation3 + $0x2c] sm:$0xf] %vm1398, %v1377
          %1411 = vst.msk [vmem:[#allocation3 + $0x30] sm:$0xf] %vm1398, %v1378
          %1412 = vst.msk [vmem:[#allocation3 + $0x34] sm:$0xf] %vm1398, %v1379
          %1413 = vst.msk [vmem:[#allocation3 + $0x38] sm:$0xf] %vm1398, %v1380
          %1414 = vst.msk [vmem:[#allocation3 + $0x3c] sm:$0xf] %vm1398, %v1381
          %v1415 = vpack.c.bf16 %v797, %v794
          %v1416 = vpack.c.bf16 %v805, %v802
          %1419 = vrot.lane.b32.xlu0 %v1415, 120
          %v1420 = vpop.permute.xlu0 %1419
          %1421 = vrot.lane.b32.xlu0 %v1416, 120
          %v1422 = vpop.permute.xlu0 %1421
          %1423 = vrot.lane.b32.xlu0 %v1415, 112
          %v1424 = vpop.permute.xlu0 %1423
          %1425 = vrot.lane.b32.xlu0 %v1416, 112
          %v1426 = vpop.permute.xlu0 %1425
          %1427 = vrot.lane.b32.xlu0 %v1415, 104
          %v1428 = vpop.permute.xlu0 %1427
          %1429 = vrot.lane.b32.xlu0 %v1416, 104
          %v1430 = vpop.permute.xlu0 %1429
          %v1433 = vpack.i.b16 %v1420, %v1415
          %v1435 = vshrl.u32 %v1415, 16
          %v1436 = vshrl.u32 %v1420, 16
          %v1437 = vpack.i.b16 %v1436, %v1435
          %v1441 = vpack.i.b16 %v1428, %v1424
          %v1443 = vshrl.u32 %v1424, 16
          %v1444 = vshrl.u32 %v1428, 16
          %v1445 = vpack.i.b16 %v1444, %v1443
          %v1449 = vpack.i.b16 %v1422, %v1416
          %v1451 = vshrl.u32 %v1416, 16
          %v1452 = vshrl.u32 %v1422, 16
          %v1453 = vpack.i.b16 %v1452, %v1451
          %v1457 = vpack.i.b16 %v1430, %v1426
          %v1459 = vshrl.u32 %v1426, 16
          %v1460 = vshrl.u32 %v1430, 16
          %v1461 = vpack.i.b16 %v1460, %v1459
          %v1463 = vcombine.high %v1433, %v841
          %v1465 = vunpack.c.l.s4 1983009808
          %v1466 = vunpack.c.0.s8 %v1465
          %v1467 = vlaneseq
          %v1468 = vshrl.u32 %v1467, 7
          %v1469 = vsub.s32 %v1466, %v1468
          %v1470 = vrot.slane %v1433, %v1469
          %v1472 = vunpack.c.l.s4 1983009808
          %v1473 = vunpack.c.0.s8 %v1472
          %v1474 = vlaneseq
          %v1475 = vshrl.u32 %v1474, 7
          %v1476 = vsub.s32 %v1473, %v1475
          %v1477 = vrot.slane %v1463, %v1476
          %v1478 = vcombine.high %v1441, %v841
          %v1480 = vunpack.c.l.s4 1983009808
          %v1481 = vunpack.c.0.s8 %v1480
          %v1482 = vlaneseq
          %v1483 = vshrl.u32 %v1482, 7
          %v1484 = vsub.s32 %v1481, %v1483
          %v1485 = vrot.slane %v1441, %v1484
          %v1487 = vunpack.c.l.s4 1983009808
          %v1488 = vunpack.c.0.s8 %v1487
          %v1489 = vlaneseq
          %v1490 = vshrl.u32 %v1489, 7
          %v1491 = vsub.s32 %v1488, %v1490
          %v1492 = vrot.slane %v1478, %v1491
          %v1493 = vcombine.low %v1470, %v1485
          %v1494 = vcombine.high %v1470, %v1485
          %v1496 = vunpack.c.l.s4 1934713408
          %v1497 = vunpack.c.0.s8 %v1496
          %v1498 = vlaneseq
          %v1499 = vshrl.u32 %v1498, 7
          %v1500 = vsub.s32 %v1497, %v1499
          %v1501 = vrot.slane %v1493, %v1500
          %v1503 = vunpack.c.l.s4 1934713408
          %v1504 = vunpack.c.0.s8 %v1503
          %v1505 = vlaneseq
          %v1506 = vshrl.u32 %v1505, 7
          %v1507 = vsub.s32 %v1504, %v1506
          %v1508 = vrot.slane %v1494, %v1507
          %v1509 = vcombine.low %v1477, %v1492
          %v1510 = vcombine.high %v1477, %v1492
          %v1512 = vunpack.c.l.s4 1934713408
          %v1513 = vunpack.c.0.s8 %v1512
          %v1514 = vlaneseq
          %v1515 = vshrl.u32 %v1514, 7
          %v1516 = vsub.s32 %v1513, %v1515
          %v1517 = vrot.slane %v1509, %v1516
          %v1519 = vunpack.c.l.s4 1934713408
          %v1520 = vunpack.c.0.s8 %v1519
          %v1521 = vlaneseq
          %v1522 = vshrl.u32 %v1521, 7
          %v1523 = vsub.s32 %v1520, %v1522
          %v1524 = vrot.slane %v1510, %v1523
          %v1525 = vcombine.high %v1501, 0
          %v1526 = vcombine.high %v1508, 0
          %v1527 = vcombine.high %v1517, 0
          %v1528 = vcombine.high %v1524, 0
          %v1529 = vcombine.high %v1437, %v844
          %v1531 = vunpack.c.l.s4 1983009808
          %v1532 = vunpack.c.0.s8 %v1531
          %v1533 = vlaneseq
          %v1534 = vshrl.u32 %v1533, 7
          %v1535 = vsub.s32 %v1532, %v1534
          %v1536 = vrot.slane %v1437, %v1535
          %v1538 = vunpack.c.l.s4 1983009808
          %v1539 = vunpack.c.0.s8 %v1538
          %v1540 = vlaneseq
          %v1541 = vshrl.u32 %v1540, 7
          %v1542 = vsub.s32 %v1539, %v1541
          %v1543 = vrot.slane %v1529, %v1542
          %v1544 = vcombine.high %v1445, %v844
          %v1546 = vunpack.c.l.s4 1983009808
          %v1547 = vunpack.c.0.s8 %v1546
          %v1548 = vlaneseq
          %v1549 = vshrl.u32 %v1548, 7
          %v1550 = vsub.s32 %v1547, %v1549
          %v1551 = vrot.slane %v1445, %v1550
          %v1553 = vunpack.c.l.s4 1983009808
          %v1554 = vunpack.c.0.s8 %v1553
          %v1555 = vlaneseq
          %v1556 = vshrl.u32 %v1555, 7
          %v1557 = vsub.s32 %v1554, %v1556
          %v1558 = vrot.slane %v1544, %v1557
          %v1559 = vcombine.low %v1536, %v1551
          %v1560 = vcombine.high %v1536, %v1551
          %v1562 = vunpack.c.l.s4 1934713408
          %v1563 = vunpack.c.0.s8 %v1562
          %v1564 = vlaneseq
          %v1565 = vshrl.u32 %v1564, 7
          %v1566 = vsub.s32 %v1563, %v1565
          %v1567 = vrot.slane %v1559, %v1566
          %v1569 = vunpack.c.l.s4 1934713408
          %v1570 = vunpack.c.0.s8 %v1569
          %v1571 = vlaneseq
          %v1572 = vshrl.u32 %v1571, 7
          %v1573 = vsub.s32 %v1570, %v1572
          %v1574 = vrot.slane %v1560, %v1573
          %v1575 = vcombine.low %v1543, %v1558
          %v1576 = vcombine.high %v1543, %v1558
          %v1578 = vunpack.c.l.s4 1934713408
          %v1579 = vunpack.c.0.s8 %v1578
          %v1580 = vlaneseq
          %v1581 = vshrl.u32 %v1580, 7
          %v1582 = vsub.s32 %v1579, %v1581
          %v1583 = vrot.slane %v1575, %v1582
          %v1585 = vunpack.c.l.s4 1934713408
          %v1586 = vunpack.c.0.s8 %v1585
          %v1587 = vlaneseq
          %v1588 = vshrl.u32 %v1587, 7
          %v1589 = vsub.s32 %v1586, %v1588
          %v1590 = vrot.slane %v1576, %v1589
          %v1591 = vcombine.high %v1567, 0
          %v1592 = vcombine.high %v1574, 0
          %v1593 = vcombine.high %v1583, 0
          %v1594 = vcombine.high %v1590, 0
          %v1595 = vcombine.high %v1449, %v841
          %v1597 = vunpack.c.l.s4 1983009808
          %v1598 = vunpack.c.0.s8 %v1597
          %v1599 = vlaneseq
          %v1600 = vshrl.u32 %v1599, 7
          %v1601 = vsub.s32 %v1598, %v1600
          %v1602 = vrot.slane %v1449, %v1601
          %v1604 = vunpack.c.l.s4 1983009808
          %v1605 = vunpack.c.0.s8 %v1604
          %v1606 = vlaneseq
          %v1607 = vshrl.u32 %v1606, 7
          %v1608 = vsub.s32 %v1605, %v1607
          %v1609 = vrot.slane %v1595, %v1608
          %v1610 = vcombine.high %v1457, %v841
          %v1612 = vunpack.c.l.s4 1983009808
          %v1613 = vunpack.c.0.s8 %v1612
          %v1614 = vlaneseq
          %v1615 = vshrl.u32 %v1614, 7
          %v1616 = vsub.s32 %v1613, %v1615
          %v1617 = vrot.slane %v1457, %v1616
          %v1619 = vunpack.c.l.s4 1983009808
          %v1620 = vunpack.c.0.s8 %v1619
          %v1621 = vlaneseq
          %v1622 = vshrl.u32 %v1621, 7
          %v1623 = vsub.s32 %v1620, %v1622
          %v1624 = vrot.slane %v1610, %v1623
          %v1625 = vcombine.low %v1602, %v1617
          %v1626 = vcombine.high %v1602, %v1617
          %v1628 = vunpack.c.l.s4 1934713408
          %v1629 = vunpack.c.0.s8 %v1628
          %v1630 = vlaneseq
          %v1631 = vshrl.u32 %v1630, 7
          %v1632 = vsub.s32 %v1629, %v1631
          %v1633 = vrot.slane %v1625, %v1632
          %v1635 = vunpack.c.l.s4 1934713408
          %v1636 = vunpack.c.0.s8 %v1635
          %v1637 = vlaneseq
          %v1638 = vshrl.u32 %v1637, 7
          %v1639 = vsub.s32 %v1636, %v1638
          %v1640 = vrot.slane %v1626, %v1639
          %v1641 = vcombine.low %v1609, %v1624
          %v1642 = vcombine.high %v1609, %v1624
          %v1644 = vunpack.c.l.s4 1934713408
          %v1645 = vunpack.c.0.s8 %v1644
          %v1646 = vlaneseq
          %v1647 = vshrl.u32 %v1646, 7
          %v1648 = vsub.s32 %v1645, %v1647
          %v1649 = vrot.slane %v1641, %v1648
          %v1651 = vunpack.c.l.s4 1934713408
          %v1652 = vunpack.c.0.s8 %v1651
          %v1653 = vlaneseq
          %v1654 = vshrl.u32 %v1653, 7
          %v1655 = vsub.s32 %v1652, %v1654
          %v1656 = vrot.slane %v1642, %v1655
          %v1657 = vcombine.high %v1633, 0
          %v1658 = vcombine.high %v1640, 0
          %v1659 = vcombine.high %v1649, 0
          %v1660 = vcombine.high %v1656, 0
          %v1661 = vcombine.high %v1453, %v844
          %v1663 = vunpack.c.l.s4 1983009808
          %v1664 = vunpack.c.0.s8 %v1663
          %v1665 = vlaneseq
          %v1666 = vshrl.u32 %v1665, 7
          %v1667 = vsub.s32 %v1664, %v1666
          %v1668 = vrot.slane %v1453, %v1667
          %v1670 = vunpack.c.l.s4 1983009808
          %v1671 = vunpack.c.0.s8 %v1670
          %v1672 = vlaneseq
          %v1673 = vshrl.u32 %v1672, 7
          %v1674 = vsub.s32 %v1671, %v1673
          %v1675 = vrot.slane %v1661, %v1674
          %v1676 = vcombine.high %v1461, %v844
          %v1678 = vunpack.c.l.s4 1983009808
          %v1679 = vunpack.c.0.s8 %v1678
          %v1680 = vlaneseq
          %v1681 = vshrl.u32 %v1680, 7
          %v1682 = vsub.s32 %v1679, %v1681
          %v1683 = vrot.slane %v1461, %v1682
          %v1685 = vunpack.c.l.s4 1983009808
          %v1686 = vunpack.c.0.s8 %v1685
          %v1687 = vlaneseq
          %v1688 = vshrl.u32 %v1687, 7
          %v1689 = vsub.s32 %v1686, %v1688
          %v1690 = vrot.slane %v1676, %v1689
          %v1691 = vcombine.low %v1668, %v1683
          %v1692 = vcombine.high %v1668, %v1683
          %v1694 = vunpack.c.l.s4 1934713408
          %v1695 = vunpack.c.0.s8 %v1694
          %v1696 = vlaneseq
          %v1697 = vshrl.u32 %v1696, 7
          %v1698 = vsub.s32 %v1695, %v1697
          %v1699 = vrot.slane %v1691, %v1698
          %v1701 = vunpack.c.l.s4 1934713408
          %v1702 = vunpack.c.0.s8 %v1701
          %v1703 = vlaneseq
          %v1704 = vshrl.u32 %v1703, 7
          %v1705 = vsub.s32 %v1702, %v1704
          %v1706 = vrot.slane %v1692, %v1705
          %v1707 = vcombine.low %v1675, %v1690
          %v1708 = vcombine.high %v1675, %v1690
          %v1710 = vunpack.c.l.s4 1934713408
          %v1711 = vunpack.c.0.s8 %v1710
          %v1712 = vlaneseq
          %v1713 = vshrl.u32 %v1712, 7
          %v1714 = vsub.s32 %v1711, %v1713
          %v1715 = vrot.slane %v1707, %v1714
          %v1717 = vunpack.c.l.s4 1934713408
          %v1718 = vunpack.c.0.s8 %v1717
          %v1719 = vlaneseq
          %v1720 = vshrl.u32 %v1719, 7
          %v1721 = vsub.s32 %v1718, %v1720
          %v1722 = vrot.slane %v1708, %v1721
          %v1723 = vcombine.high %v1699, 0
          %v1724 = vcombine.high %v1706, 0
          %v1725 = vcombine.high %v1715, 0
          %v1726 = vcombine.high %v1722, 0
          %v1727 = vcombine.low %v1501, %v1508
          %v1729 = vunpack.c.l.s4 1983009808
          %v1730 = vunpack.c.0.s8 %v1729
          %v1731 = vlaneseq
          %v1732 = vshrl.u32 %v1731, 7
          %v1733 = vsub.s32 %v1730, %v1732
          %v1734 = vrot.slane %v1727, %v1733
          %v1735 = vcombine.low %v1525, %v1526
          %v1737 = vunpack.c.l.s4 1983009808
          %v1738 = vunpack.c.0.s8 %v1737
          %v1739 = vlaneseq
          %v1740 = vshrl.u32 %v1739, 7
          %v1741 = vsub.s32 %v1738, %v1740
          %v1742 = vrot.slane %v1735, %v1741
          %v1743 = vcombine.low %v1517, %v1524
          %v1745 = vunpack.c.l.s4 1983009808
          %v1746 = vunpack.c.0.s8 %v1745
          %v1747 = vlaneseq
          %v1748 = vshrl.u32 %v1747, 7
          %v1749 = vsub.s32 %v1746, %v1748
          %v1750 = vrot.slane %v1743, %v1749
          %v1751 = vcombine.low %v1527, %v1528
          %v1753 = vunpack.c.l.s4 1983009808
          %v1754 = vunpack.c.0.s8 %v1753
          %v1755 = vlaneseq
          %v1756 = vshrl.u32 %v1755, 7
          %v1757 = vsub.s32 %v1754, %v1756
          %v1758 = vrot.slane %v1751, %v1757
          %v1759 = vcombine.low %v1734, %v1742
          %v1761 = vunpack.c.l.s4 1934713408
          %v1762 = vunpack.c.0.s8 %v1761
          %v1763 = vlaneseq
          %v1764 = vshrl.u32 %v1763, 7
          %v1765 = vsub.s32 %v1762, %v1764
          %v1766 = vrot.slane %v1759, %v1765
          %v1767 = vcombine.low %v1750, %v1758
          %v1769 = vunpack.c.l.s4 1934713408
          %v1770 = vunpack.c.0.s8 %v1769
          %v1771 = vlaneseq
          %v1772 = vshrl.u32 %v1771, 7
          %v1773 = vsub.s32 %v1770, %v1772
          %v1774 = vrot.slane %v1767, %v1773
          %v1775 = vcombine.low %v1766, %v1774
          %v1776 = vcombine.high %v1766, %v1774
          %v1777 = vcombine.low %v1567, %v1574
          %v1779 = vunpack.c.l.s4 1983009808
          %v1780 = vunpack.c.0.s8 %v1779
          %v1781 = vlaneseq
          %v1782 = vshrl.u32 %v1781, 7
          %v1783 = vsub.s32 %v1780, %v1782
          %v1784 = vrot.slane %v1777, %v1783
          %v1785 = vcombine.low %v1591, %v1592
          %v1787 = vunpack.c.l.s4 1983009808
          %v1788 = vunpack.c.0.s8 %v1787
          %v1789 = vlaneseq
          %v1790 = vshrl.u32 %v1789, 7
          %v1791 = vsub.s32 %v1788, %v1790
          %v1792 = vrot.slane %v1785, %v1791
          %v1793 = vcombine.low %v1583, %v1590
          %v1795 = vunpack.c.l.s4 1983009808
          %v1796 = vunpack.c.0.s8 %v1795
          %v1797 = vlaneseq
          %v1798 = vshrl.u32 %v1797, 7
          %v1799 = vsub.s32 %v1796, %v1798
          %v1800 = vrot.slane %v1793, %v1799
          %v1801 = vcombine.low %v1593, %v1594
          %v1803 = vunpack.c.l.s4 1983009808
          %v1804 = vunpack.c.0.s8 %v1803
          %v1805 = vlaneseq
          %v1806 = vshrl.u32 %v1805, 7
          %v1807 = vsub.s32 %v1804, %v1806
          %v1808 = vrot.slane %v1801, %v1807
          %v1809 = vcombine.low %v1784, %v1792
          %v1811 = vunpack.c.l.s4 1934713408
          %v1812 = vunpack.c.0.s8 %v1811
          %v1813 = vlaneseq
          %v1814 = vshrl.u32 %v1813, 7
          %v1815 = vsub.s32 %v1812, %v1814
          %v1816 = vrot.slane %v1809, %v1815
          %v1817 = vcombine.low %v1800, %v1808
          %v1819 = vunpack.c.l.s4 1934713408
          %v1820 = vunpack.c.0.s8 %v1819
          %v1821 = vlaneseq
          %v1822 = vshrl.u32 %v1821, 7
          %v1823 = vsub.s32 %v1820, %v1822
          %v1824 = vrot.slane %v1817, %v1823
          %v1825 = vcombine.low %v1816, %v1824
          %v1826 = vcombine.high %v1816, %v1824
          %v1827 = vcombine.low %v1633, %v1640
          %v1829 = vunpack.c.l.s4 1983009808
          %v1830 = vunpack.c.0.s8 %v1829
          %v1831 = vlaneseq
          %v1832 = vshrl.u32 %v1831, 7
          %v1833 = vsub.s32 %v1830, %v1832
          %v1834 = vrot.slane %v1827, %v1833
          %v1835 = vcombine.low %v1657, %v1658
          %v1837 = vunpack.c.l.s4 1983009808
          %v1838 = vunpack.c.0.s8 %v1837
          %v1839 = vlaneseq
          %v1840 = vshrl.u32 %v1839, 7
          %v1841 = vsub.s32 %v1838, %v1840
          %v1842 = vrot.slane %v1835, %v1841
          %v1843 = vcombine.low %v1649, %v1656
          %v1845 = vunpack.c.l.s4 1983009808
          %v1846 = vunpack.c.0.s8 %v1845
          %v1847 = vlaneseq
          %v1848 = vshrl.u32 %v1847, 7
          %v1849 = vsub.s32 %v1846, %v1848
          %v1850 = vrot.slane %v1843, %v1849
          %v1851 = vcombine.low %v1659, %v1660
          %v1853 = vunpack.c.l.s4 1983009808
          %v1854 = vunpack.c.0.s8 %v1853
          %v1855 = vlaneseq
          %v1856 = vshrl.u32 %v1855, 7
          %v1857 = vsub.s32 %v1854, %v1856
          %v1858 = vrot.slane %v1851, %v1857
          %v1859 = vcombine.low %v1834, %v1842
          %v1861 = vunpack.c.l.s4 1934713408
          %v1862 = vunpack.c.0.s8 %v1861
          %v1863 = vlaneseq
          %v1864 = vshrl.u32 %v1863, 7
          %v1865 = vsub.s32 %v1862, %v1864
          %v1866 = vrot.slane %v1859, %v1865
          %v1867 = vcombine.low %v1850, %v1858
          %v1869 = vunpack.c.l.s4 1934713408
          %v1870 = vunpack.c.0.s8 %v1869
          %v1871 = vlaneseq
          %v1872 = vshrl.u32 %v1871, 7
          %v1873 = vsub.s32 %v1870, %v1872
          %v1874 = vrot.slane %v1867, %v1873
          %v1875 = vcombine.low %v1866, %v1874
          %v1876 = vcombine.high %v1866, %v1874
          %v1877 = vcombine.low %v1699, %v1706
          %v1879 = vunpack.c.l.s4 1983009808
          %v1880 = vunpack.c.0.s8 %v1879
          %v1881 = vlaneseq
          %v1882 = vshrl.u32 %v1881, 7
          %v1883 = vsub.s32 %v1880, %v1882
          %v1884 = vrot.slane %v1877, %v1883
          %v1885 = vcombine.low %v1723, %v1724
          %v1887 = vunpack.c.l.s4 1983009808
          %v1888 = vunpack.c.0.s8 %v1887
          %v1889 = vlaneseq
          %v1890 = vshrl.u32 %v1889, 7
          %v1891 = vsub.s32 %v1888, %v1890
          %v1892 = vrot.slane %v1885, %v1891
          %v1893 = vcombine.low %v1715, %v1722
          %v1895 = vunpack.c.l.s4 1983009808
          %v1896 = vunpack.c.0.s8 %v1895
          %v1897 = vlaneseq
          %v1898 = vshrl.u32 %v1897, 7
          %v1899 = vsub.s32 %v1896, %v1898
          %v1900 = vrot.slane %v1893, %v1899
          %v1901 = vcombine.low %v1725, %v1726
          %v1903 = vunpack.c.l.s4 1983009808
          %v1904 = vunpack.c.0.s8 %v1903
          %v1905 = vlaneseq
          %v1906 = vshrl.u32 %v1905, 7
          %v1907 = vsub.s32 %v1904, %v1906
          %v1908 = vrot.slane %v1901, %v1907
          %v1909 = vcombine.low %v1884, %v1892
          %v1911 = vunpack.c.l.s4 1934713408
          %v1912 = vunpack.c.0.s8 %v1911
          %v1913 = vlaneseq
          %v1914 = vshrl.u32 %v1913, 7
          %v1915 = vsub.s32 %v1912, %v1914
          %v1916 = vrot.slane %v1909, %v1915
          %v1917 = vcombine.low %v1900, %v1908
          %v1919 = vunpack.c.l.s4 1934713408
          %v1920 = vunpack.c.0.s8 %v1919
          %v1921 = vlaneseq
          %v1922 = vshrl.u32 %v1921, 7
          %v1923 = vsub.s32 %v1920, %v1922
          %v1924 = vrot.slane %v1917, %v1923
          %v1925 = vcombine.low %v1916, %v1924
          %v1926 = vcombine.high %v1916, %v1924
          %v1929 = vpack.i.b16 %v1825, %v1775
          %v1930 = vshrl.u32 %v1775, 16
          %v1931 = vshrl.u32 %v1825, 16
          %v1932 = vpack.i.b16 %v1931, %v1930
          %v1935 = vpack.i.b16 %v1826, %v1776
          %v1936 = vshrl.u32 %v1776, 16
          %v1937 = vshrl.u32 %v1826, 16
          %v1938 = vpack.i.b16 %v1937, %v1936
          %v1941 = vpack.i.b16 %v1925, %v1875
          %v1942 = vshrl.u32 %v1875, 16
          %v1943 = vshrl.u32 %v1925, 16
          %v1944 = vpack.i.b16 %v1943, %v1942
          %v1947 = vpack.i.b16 %v1926, %v1876
          %v1948 = vshrl.u32 %v1876, 16
          %v1949 = vshrl.u32 %v1926, 16
          %v1950 = vpack.i.b16 %v1949, %v1948
          %v1951 = vunpack.c.l.b16 %v1929
          %v1952 = vunpack.c.h.b16 %v1929
          %v1953 = vunpack.c.l.b16 %v1941
          %v1954 = vunpack.c.h.b16 %v1941
          %v1955 = vunpack.c.l.b16 %v1932
          %v1956 = vunpack.c.h.b16 %v1932
          %v1957 = vunpack.c.l.b16 %v1944
          %v1958 = vunpack.c.h.b16 %v1944
          %v1959 = vunpack.c.l.b16 %v1935
          %v1960 = vunpack.c.h.b16 %v1935
          %v1961 = vunpack.c.l.b16 %v1947
          %v1962 = vunpack.c.h.b16 %v1947
          %v1963 = vunpack.c.l.b16 %v1938
          %v1964 = vunpack.c.h.b16 %v1938
          %v1965 = vunpack.c.l.b16 %v1950
          %v1966 = vunpack.c.h.b16 %v1950
          %v1967 = vpack.c.b16 %v1951, %v1951
          %v1968 = vpack.c.b16 %v1952, %v1952
          %v1969 = vpack.c.b16 %v1953, %v1953
          %v1970 = vpack.c.b16 %v1954, %v1954
          %v1971 = vpack.c.b16 %v1955, %v1955
          %v1972 = vpack.c.b16 %v1956, %v1956
          %v1973 = vpack.c.b16 %v1957, %v1957
          %v1974 = vpack.c.b16 %v1958, %v1958
          %v1975 = vpack.c.b16 %v1959, %v1959
          %v1976 = vpack.c.b16 %v1960, %v1960
          %v1977 = vpack.c.b16 %v1961, %v1961
          %v1978 = vpack.c.b16 %v1962, %v1962
          %v1979 = vpack.c.b16 %v1963, %v1963
          %v1980 = vpack.c.b16 %v1964, %v1964
          %v1981 = vpack.c.b16 %v1965, %v1965
          %v1982 = vpack.c.b16 %v1966, %v1966
          %1999 = vst.msk [vmem:[#allocation4] sm:$0xf] %vm1398, %v1967
          %2000 = vst.msk [vmem:[#allocation4 + $0x4] sm:$0xf] %vm1398, %v1968
          %2001 = vst.msk [vmem:[#allocation4 + $0x8] sm:$0xf] %vm1398, %v1969
          %2002 = vst.msk [vmem:[#allocation4 + $0xc] sm:$0xf] %vm1398, %v1970
          %2003 = vst.msk [vmem:[#allocation4 + $0x10] sm:$0xf] %vm1398, %v1971
          %2004 = vst.msk [vmem:[#allocation4 + $0x14] sm:$0xf] %vm1398, %v1972
          %2005 = vst.msk [vmem:[#allocation4 + $0x18] sm:$0xf] %vm1398, %v1973
          %2006 = vst.msk [vmem:[#allocation4 + $0x1c] sm:$0xf] %vm1398, %v1974
          %2007 = vst.msk [vmem:[#allocation4 + $0x20] sm:$0xf] %vm1398, %v1975
          %2008 = vst.msk [vmem:[#allocation4 + $0x24] sm:$0xf] %vm1398, %v1976
          %2009 = vst.msk [vmem:[#allocation4 + $0x28] sm:$0xf] %vm1398, %v1977
          %2010 = vst.msk [vmem:[#allocation4 + $0x2c] sm:$0xf] %vm1398, %v1978
          %2011 = vst.msk [vmem:[#allocation4 + $0x30] sm:$0xf] %vm1398, %v1979
          %2012 = vst.msk [vmem:[#allocation4 + $0x34] sm:$0xf] %vm1398, %v1980
          %2013 = vst.msk [vmem:[#allocation4 + $0x38] sm:$0xf] %vm1398, %v1981
          %2014 = vst.msk [vmem:[#allocation4 + $0x3c] sm:$0xf] %vm1398, %v1982
        $region100: #{transformer_encoder.2} parent=79 // pred_fallthru
          _
        %s2015 = smul.u32 %s34, 16
        %s2016 = scalar_lea.vmem [#allocation2], %s2015
        %v2017 = vld [vmem:[%s2016] sm:$0xff]
        %v2018 = vld [vmem:[%s2016 + $0x8] sm:$0xff]
        %v2019 = vpack.c.bf16 %v2018, %v2017
        %v2020 = vld [vmem:[%s3] sm:$0xf]
        %v2021 = vld [vmem:[%s3 + $0x4] sm:$0xf]
        %v2022 = vld [vmem:[%s3 + $0x8] sm:$0xf]
        %v2023 = vld [vmem:[%s3 + $0xc] sm:$0xf]
        %v2024 = vld [vmem:[%s4] sm:$0x1]
        %v2026 = vlaneseq
        %v2027 = vshrl.u32 %v2026, 7
        %v2028 = vsub.s32 0, %v2027
        %v2029 = vrot.slane %v2024, %v2028
        %v2035 = vunpack.c.l.b16 %v2020
        %v2036 = vunpack.c.l.b16 %v2021
        %v2037 = vunpack.c.l.b16 %v2022
        %v2038 = vunpack.c.l.b16 %v2023
        %v2039 = vpack.c.b16 %v2036, %v2035
        %v2040 = vpack.c.b16 %v2038, %v2037
        %vm2043 = vcmask 261120
        %v2045 = vsel %vm2043, %v2019, 0
        %2047 = vmatprep.subr.bf16.mxu0 0
        %2048 = vmatpush1.bf16.msra.mxu0 0
        %2049 = vmatprep.subr.bf16.mxu0 0
        %2050 = vmatpush1.bf16.msra.mxu0 0
        %2051 = vmatprep.subr.bf16.mxu0 0
        %2052 = vmatpush1.bf16.msra.mxu0 0
        %2053 = vmatprep.subr.bf16.mxu0 0
        %2054 = vmatpush1.bf16.msra.mxu0 0
        %2055 = vmatprep.subr.bf16.mxu0 0
        %2056 = vmatpush1.bf16.msra.mxu0 0
        %2057 = vmatprep.subr.bf16.mxu0 0
        %2058 = vmatpush1.bf16.msra.mxu0 0
        %2059 = vmatprep.subr.bf16.mxu0 0
        %2060 = vmatpush1.bf16.msra.mxu0 %v2040
        %2061 = vmatprep.subr.bf16.mxu0 0
        %2062 = vmatpush1.bf16.msra.mxu0 %v2039
        %2063 = vmatprep.subr.bf16.mxu0 0
        %2064 = vmatpush2.bf16.msra.mxu0 0
        %2065 = vmatprep.subr.bf16.mxu0 0
        %2066 = vmatpush2.bf16.msra.mxu0 0
        %2067 = vmatprep.subr.bf16.mxu0 0
        %2068 = vmatpush2.bf16.msra.mxu0 0
        %2069 = vmatprep.subr.bf16.mxu0 0
        %2070 = vmatpush2.bf16.msra.mxu0 0
        %2071 = vmatprep.subr.bf16.mxu0 0
        %2072 = vmatpush2.bf16.msra.mxu0 0
        %2073 = vmatprep.subr.bf16.mxu0 0
        %2074 = vmatpush2.bf16.msra.mxu0 0
        %2075 = vmatprep.subr.bf16.mxu0 0
        %2076 = vmatpush2.bf16.msra.mxu0 0
        %2077 = vmatprep.subr.bf16.mxu0 0
        %2078 = vmatpush2.bf16.msra.mxu0 0
        %2079 = vmatprep.mubr.bf16.mxu0 0
        %2080 = vmatmul.mubr.bf16.gmra.mxu0 %v2045
        %v2081 = vpop.f32.mrf.mxu0
        %v2082 = vadd.f32 %v2029, %v2081
        %v2083 = vpop.f32.mrf.mxu0
        %v2084 = vpop.f32.mrf.mxu0
        %v2085 = vadd.f32 %v2029, %v2084
        %v2086 = vpop.f32.mrf.mxu0
        %2087 = vdwg.mxu0
        %v2088 = vpack.c.bf16 %v2085, %v2082
        %2090 = vrot.lane.b32.xlu0 %v2088, 120
        %v2091 = vpop.permute.xlu0 %2090
        %2092 = vrot.lane.b32.xlu0 %v2088, 112
        %v2093 = vpop.permute.xlu0 %2092
        %2094 = vrot.lane.b32.xlu0 %v2088, 104
        %v2095 = vpop.permute.xlu0 %2094
        %v2098 = vpack.i.b16 %v2091, %v2088
        %v2100 = vshrl.u32 %v2088, 16
        %v2101 = vshrl.u32 %v2091, 16
        %v2102 = vpack.i.b16 %v2101, %v2100
        %v2106 = vpack.i.b16 %v2095, %v2093
        %v2108 = vshrl.u32 %v2093, 16
        %v2109 = vshrl.u32 %v2095, 16
        %v2110 = vpack.i.b16 %v2109, %v2108
        %v2113 = vpack.i.b16 0, 0
        %v2115 = vshrl.u32 0, 16
        %v2116 = vpack.i.b16 %v2115, %v2115
        %v2118 = vcombine.high %v2098, %v2113
        %v2120 = vunpack.c.l.s4 1983009808
        %v2121 = vunpack.c.0.s8 %v2120
        %v2122 = vlaneseq
        %v2123 = vshrl.u32 %v2122, 7
        %v2124 = vsub.s32 %v2121, %v2123
        %v2125 = vrot.slane %v2098, %v2124
        %v2127 = vunpack.c.l.s4 1983009808
        %v2128 = vunpack.c.0.s8 %v2127
        %v2129 = vlaneseq
        %v2130 = vshrl.u32 %v2129, 7
        %v2131 = vsub.s32 %v2128, %v2130
        %v2132 = vrot.slane %v2118, %v2131
        %v2133 = vcombine.high %v2106, %v2113
        %v2135 = vunpack.c.l.s4 1983009808
        %v2136 = vunpack.c.0.s8 %v2135
        %v2137 = vlaneseq
        %v2138 = vshrl.u32 %v2137, 7
        %v2139 = vsub.s32 %v2136, %v2138
        %v2140 = vrot.slane %v2106, %v2139
        %v2142 = vunpack.c.l.s4 1983009808
        %v2143 = vunpack.c.0.s8 %v2142
        %v2144 = vlaneseq
        %v2145 = vshrl.u32 %v2144, 7
        %v2146 = vsub.s32 %v2143, %v2145
        %v2147 = vrot.slane %v2133, %v2146
        %v2148 = vcombine.low %v2125, %v2140
        %v2149 = vcombine.high %v2125, %v2140
        %v2151 = vunpack.c.l.s4 1934713408
        %v2152 = vunpack.c.0.s8 %v2151
        %v2153 = vlaneseq
        %v2154 = vshrl.u32 %v2153, 7
        %v2155 = vsub.s32 %v2152, %v2154
        %v2156 = vrot.slane %v2148, %v2155
        %v2158 = vunpack.c.l.s4 1934713408
        %v2159 = vunpack.c.0.s8 %v2158
        %v2160 = vlaneseq
        %v2161 = vshrl.u32 %v2160, 7
        %v2162 = vsub.s32 %v2159, %v2161
        %v2163 = vrot.slane %v2149, %v2162
        %v2164 = vcombine.low %v2132, %v2147
        %v2165 = vcombine.high %v2132, %v2147
        %v2167 = vunpack.c.l.s4 1934713408
        %v2168 = vunpack.c.0.s8 %v2167
        %v2169 = vlaneseq
        %v2170 = vshrl.u32 %v2169, 7
        %v2171 = vsub.s32 %v2168, %v2170
        %v2172 = vrot.slane %v2164, %v2171
        %v2174 = vunpack.c.l.s4 1934713408
        %v2175 = vunpack.c.0.s8 %v2174
        %v2176 = vlaneseq
        %v2177 = vshrl.u32 %v2176, 7
        %v2178 = vsub.s32 %v2175, %v2177
        %v2179 = vrot.slane %v2165, %v2178
        %v2180 = vcombine.high %v2156, 0
        %v2181 = vcombine.high %v2163, 0
        %v2182 = vcombine.high %v2172, 0
        %v2183 = vcombine.high %v2179, 0
        %v2184 = vcombine.high %v2102, %v2116
        %v2186 = vunpack.c.l.s4 1983009808
        %v2187 = vunpack.c.0.s8 %v2186
        %v2188 = vlaneseq
        %v2189 = vshrl.u32 %v2188, 7
        %v2190 = vsub.s32 %v2187, %v2189
        %v2191 = vrot.slane %v2102, %v2190
        %v2193 = vunpack.c.l.s4 1983009808
        %v2194 = vunpack.c.0.s8 %v2193
        %v2195 = vlaneseq
        %v2196 = vshrl.u32 %v2195, 7
        %v2197 = vsub.s32 %v2194, %v2196
        %v2198 = vrot.slane %v2184, %v2197
        %v2199 = vcombine.high %v2110, %v2116
        %v2201 = vunpack.c.l.s4 1983009808
        %v2202 = vunpack.c.0.s8 %v2201
        %v2203 = vlaneseq
        %v2204 = vshrl.u32 %v2203, 7
        %v2205 = vsub.s32 %v2202, %v2204
        %v2206 = vrot.slane %v2110, %v2205
        %v2208 = vunpack.c.l.s4 1983009808
        %v2209 = vunpack.c.0.s8 %v2208
        %v2210 = vlaneseq
        %v2211 = vshrl.u32 %v2210, 7
        %v2212 = vsub.s32 %v2209, %v2211
        %v2213 = vrot.slane %v2199, %v2212
        %v2214 = vcombine.low %v2191, %v2206
        %v2215 = vcombine.high %v2191, %v2206
        %v2217 = vunpack.c.l.s4 1934713408
        %v2218 = vunpack.c.0.s8 %v2217
        %v2219 = vlaneseq
        %v2220 = vshrl.u32 %v2219, 7
        %v2221 = vsub.s32 %v2218, %v2220
        %v2222 = vrot.slane %v2214, %v2221
        %v2224 = vunpack.c.l.s4 1934713408
        %v2225 = vunpack.c.0.s8 %v2224
        %v2226 = vlaneseq
        %v2227 = vshrl.u32 %v2226, 7
        %v2228 = vsub.s32 %v2225, %v2227
        %v2229 = vrot.slane %v2215, %v2228
        %v2230 = vcombine.low %v2198, %v2213
        %v2231 = vcombine.high %v2198, %v2213
        %v2233 = vunpack.c.l.s4 1934713408
        %v2234 = vunpack.c.0.s8 %v2233
        %v2235 = vlaneseq
        %v2236 = vshrl.u32 %v2235, 7
        %v2237 = vsub.s32 %v2234, %v2236
        %v2238 = vrot.slane %v2230, %v2237
        %v2240 = vunpack.c.l.s4 1934713408
        %v2241 = vunpack.c.0.s8 %v2240
        %v2242 = vlaneseq
        %v2243 = vshrl.u32 %v2242, 7
        %v2244 = vsub.s32 %v2241, %v2243
        %v2245 = vrot.slane %v2231, %v2244
        %v2246 = vcombine.high %v2222, 0
        %v2247 = vcombine.high %v2229, 0
        %v2248 = vcombine.high %v2238, 0
        %v2249 = vcombine.high %v2245, 0
        %v2250 = vcombine.low %v2156, %v2163
        %v2252 = vunpack.c.l.s4 1983009808
        %v2253 = vunpack.c.0.s8 %v2252
        %v2254 = vlaneseq
        %v2255 = vshrl.u32 %v2254, 7
        %v2256 = vsub.s32 %v2253, %v2255
        %v2257 = vrot.slane %v2250, %v2256
        %v2258 = vcombine.low %v2180, %v2181
        %v2260 = vunpack.c.l.s4 1983009808
        %v2261 = vunpack.c.0.s8 %v2260
        %v2262 = vlaneseq
        %v2263 = vshrl.u32 %v2262, 7
        %v2264 = vsub.s32 %v2261, %v2263
        %v2265 = vrot.slane %v2258, %v2264
        %v2266 = vcombine.low %v2172, %v2179
        %v2268 = vunpack.c.l.s4 1983009808
        %v2269 = vunpack.c.0.s8 %v2268
        %v2270 = vlaneseq
        %v2271 = vshrl.u32 %v2270, 7
        %v2272 = vsub.s32 %v2269, %v2271
        %v2273 = vrot.slane %v2266, %v2272
        %v2274 = vcombine.low %v2182, %v2183
        %v2276 = vunpack.c.l.s4 1983009808
        %v2277 = vunpack.c.0.s8 %v2276
        %v2278 = vlaneseq
        %v2279 = vshrl.u32 %v2278, 7
        %v2280 = vsub.s32 %v2277, %v2279
        %v2281 = vrot.slane %v2274, %v2280
        %v2282 = vcombine.low %v2257, %v2265
        %v2284 = vunpack.c.l.s4 1934713408
        %v2285 = vunpack.c.0.s8 %v2284
        %v2286 = vlaneseq
        %v2287 = vshrl.u32 %v2286, 7
        %v2288 = vsub.s32 %v2285, %v2287
        %v2289 = vrot.slane %v2282, %v2288
        %v2290 = vcombine.low %v2273, %v2281
        %v2292 = vunpack.c.l.s4 1934713408
        %v2293 = vunpack.c.0.s8 %v2292
        %v2294 = vlaneseq
        %v2295 = vshrl.u32 %v2294, 7
        %v2296 = vsub.s32 %v2293, %v2295
        %v2297 = vrot.slane %v2290, %v2296
        %v2298 = vcombine.low %v2289, %v2297
        %v2299 = vcombine.high %v2289, %v2297
        %v2300 = vcombine.low %v2222, %v2229
        %v2302 = vunpack.c.l.s4 1983009808
        %v2303 = vunpack.c.0.s8 %v2302
        %v2304 = vlaneseq
        %v2305 = vshrl.u32 %v2304, 7
        %v2306 = vsub.s32 %v2303, %v2305
        %v2307 = vrot.slane %v2300, %v2306
        %v2308 = vcombine.low %v2246, %v2247
        %v2310 = vunpack.c.l.s4 1983009808
        %v2311 = vunpack.c.0.s8 %v2310
        %v2312 = vlaneseq
        %v2313 = vshrl.u32 %v2312, 7
        %v2314 = vsub.s32 %v2311, %v2313
        %v2315 = vrot.slane %v2308, %v2314
        %v2316 = vcombine.low %v2238, %v2245
        %v2318 = vunpack.c.l.s4 1983009808
        %v2319 = vunpack.c.0.s8 %v2318
        %v2320 = vlaneseq
        %v2321 = vshrl.u32 %v2320, 7
        %v2322 = vsub.s32 %v2319, %v2321
        %v2323 = vrot.slane %v2316, %v2322
        %v2324 = vcombine.low %v2248, %v2249
        %v2326 = vunpack.c.l.s4 1983009808
        %v2327 = vunpack.c.0.s8 %v2326
        %v2328 = vlaneseq
        %v2329 = vshrl.u32 %v2328, 7
        %v2330 = vsub.s32 %v2327, %v2329
        %v2331 = vrot.slane %v2324, %v2330
        %v2332 = vcombine.low %v2307, %v2315
        %v2334 = vunpack.c.l.s4 1934713408
        %v2335 = vunpack.c.0.s8 %v2334
        %v2336 = vlaneseq
        %v2337 = vshrl.u32 %v2336, 7
        %v2338 = vsub.s32 %v2335, %v2337
        %v2339 = vrot.slane %v2332, %v2338
        %v2340 = vcombine.low %v2323, %v2331
        %v2342 = vunpack.c.l.s4 1934713408
        %v2343 = vunpack.c.0.s8 %v2342
        %v2344 = vlaneseq
        %v2345 = vshrl.u32 %v2344, 7
        %v2346 = vsub.s32 %v2343, %v2345
        %v2347 = vrot.slane %v2340, %v2346
        %v2348 = vcombine.low %v2339, %v2347
        %v2349 = vcombine.high %v2339, %v2347
        %v2352 = vpack.i.b16 %v2348, %v2298
        %v2353 = vshrl.u32 %v2298, 16
        %v2354 = vshrl.u32 %v2348, 16
        %v2355 = vpack.i.b16 %v2354, %v2353
        %v2358 = vpack.i.b16 %v2349, %v2299
        %v2359 = vshrl.u32 %v2299, 16
        %v2360 = vshrl.u32 %v2349, 16
        %v2361 = vpack.i.b16 %v2360, %v2359
        %v2362 = vld [vmem:[#allocation3] sm:$0xf]
        %v2363 = vld [vmem:[#allocation3 + $0x4] sm:$0xf]
        %v2364 = vld [vmem:[#allocation3 + $0x8] sm:$0xf]
        %v2365 = vld [vmem:[#allocation3 + $0xc] sm:$0xf]
        %v2366 = vld [vmem:[#allocation3 + $0x10] sm:$0xf]
        %v2367 = vld [vmem:[#allocation3 + $0x14] sm:$0xf]
        %v2368 = vld [vmem:[#allocation3 + $0x18] sm:$0xf]
        %v2369 = vld [vmem:[#allocation3 + $0x1c] sm:$0xf]
        %v2370 = vld [vmem:[#allocation3 + $0x20] sm:$0xf]
        %v2371 = vld [vmem:[#allocation3 + $0x24] sm:$0xf]
        %v2372 = vld [vmem:[#allocation3 + $0x28] sm:$0xf]
        %v2373 = vld [vmem:[#allocation3 + $0x2c] sm:$0xf]
        %v2374 = vld [vmem:[#allocation3 + $0x30] sm:$0xf]
        %v2375 = vld [vmem:[#allocation3 + $0x34] sm:$0xf]
        %v2376 = vld [vmem:[#allocation3 + $0x38] sm:$0xf]
        %v2377 = vld [vmem:[#allocation3 + $0x3c] sm:$0xf]
        %v2382 = vunpack.c.l.b16 %v2362
        %v2383 = vunpack.c.l.b16 %v2363
        %v2384 = vunpack.c.l.b16 %v2364
        %v2385 = vunpack.c.l.b16 %v2365
        %v2386 = vpack.c.b16 %v2383, %v2382
        %v2387 = vpack.c.b16 %v2385, %v2384
        %vm2388 = vcmask 64512
        %v2390 = vsel %vm2388, %v2352, 0
        %v2393 = vsel %vm2388, %v2386, 0
        %v2396 = vsel %vm2388, %v2387, 0
        %2398 = vmatprep.subr.bf16.mxu0 0
        %2399 = vmatpush1.bf16.xpose.msra.mxu0 0
        %2400 = vmatprep.subr.bf16.mxu0 0
        %2401 = vmatpush1.bf16.xpose.msra.mxu0 0
        %2402 = vmatprep.subr.bf16.mxu0 0
        %2403 = vmatpush1.bf16.xpose.msra.mxu0 0
        %2404 = vmatprep.subr.bf16.mxu0 0
        %2405 = vmatpush1.bf16.xpose.msra.mxu0 0
        %2406 = vmatprep.subr.bf16.mxu0 0
        %2407 = vmatpush1.bf16.xpose.msra.mxu0 0
        %2408 = vmatprep.subr.bf16.mxu0 0
        %2409 = vmatpush1.bf16.xpose.msra.mxu0 0
        %2410 = vmatprep.subr.bf16.mxu0 0
        %2411 = vmatpush1.bf16.xpose.msra.mxu0 %v2396
        %2412 = vmatprep.subr.bf16.mxu0 0
        %2413 = vmatpush1.bf16.xpose.msra.mxu0 %v2393
        %2414 = vmatprep.subr.bf16.mxu0 0
        %2415 = vmatpush2.bf16.xpose.msra.mxu0 0
        %2416 = vmatprep.subr.bf16.mxu0 0
        %2417 = vmatpush2.bf16.xpose.msra.mxu0 0
        %2418 = vmatprep.subr.bf16.mxu0 0
        %2419 = vmatpush2.bf16.xpose.msra.mxu0 0
        %2420 = vmatprep.subr.bf16.mxu0 0
        %2421 = vmatpush2.bf16.xpose.msra.mxu0 0
        %2422 = vmatprep.subr.bf16.mxu0 0
        %2423 = vmatpush2.bf16.xpose.msra.mxu0 0
        %2424 = vmatprep.subr.bf16.mxu0 0
        %2425 = vmatpush2.bf16.xpose.msra.mxu0 0
        %2426 = vmatprep.subr.bf16.mxu0 0
        %2427 = vmatpush2.bf16.xpose.msra.mxu0 0
        %2428 = vmatprep.subr.bf16.mxu0 0
        %2429 = vmatpush2.bf16.xpose.msra.mxu0 0
        %2430 = vmatprep.mubr.bf16.mxu0 0
        %2431 = vmatmul.mubr.bf16.gmra.mxu0 %v2390
        %v2432 = vpop.f32.mrf.mxu0
        %v2433 = vadd.f32 0.0, %v2432
        %v2434 = vpop.f32.mrf.mxu0
        %v2435 = vpop.f32.mrf.mxu0
        %v2436 = vadd.f32 0.0, %v2435
        %v2437 = vpop.f32.mrf.mxu0
        %2438 = vdwg.mxu0
        %v2443 = vunpack.c.l.b16 %v2366
        %v2444 = vunpack.c.l.b16 %v2367
        %v2445 = vunpack.c.l.b16 %v2368
        %v2446 = vunpack.c.l.b16 %v2369
        %v2447 = vpack.c.b16 %v2444, %v2443
        %v2448 = vpack.c.b16 %v2446, %v2445
        %v2450 = vsel %vm2388, %v2355, 0
        %v2453 = vsel %vm2388, %v2447, 0
        %v2456 = vsel %vm2388, %v2448, 0
        %2458 = vmatprep.subr.bf16.mxu0 0
        %2459 = vmatpush1.bf16.xpose.msra.mxu0 0
        %2460 = vmatprep.subr.bf16.mxu0 0
        %2461 = vmatpush1.bf16.xpose.msra.mxu0 0
        %2462 = vmatprep.subr.bf16.mxu0 0
        %2463 = vmatpush1.bf16.xpose.msra.mxu0 0
        %2464 = vmatprep.subr.bf16.mxu0 0
        %2465 = vmatpush1.bf16.xpose.msra.mxu0 0
        %2466 = vmatprep.subr.bf16.mxu0 0
        %2467 = vmatpush1.bf16.xpose.msra.mxu0 0
        %2468 = vmatprep.subr.bf16.mxu0 0
        %2469 = vmatpush1.bf16.xpose.msra.mxu0 0
        %2470 = vmatprep.subr.bf16.mxu0 0
        %2471 = vmatpush1.bf16.xpose.msra.mxu0 %v2456
        %2472 = vmatprep.subr.bf16.mxu0 0
        %2473 = vmatpush1.bf16.xpose.msra.mxu0 %v2453
        %2474 = vmatprep.subr.bf16.mxu0 0
        %2475 = vmatpush2.bf16.xpose.msra.mxu0 0
        %2476 = vmatprep.subr.bf16.mxu0 0
        %2477 = vmatpush2.bf16.xpose.msra.mxu0 0
        %2478 = vmatprep.subr.bf16.mxu0 0
        %2479 = vmatpush2.bf16.xpose.msra.mxu0 0
        %2480 = vmatprep.subr.bf16.mxu0 0
        %2481 = vmatpush2.bf16.xpose.msra.mxu0 0
        %2482 = vmatprep.subr.bf16.mxu0 0
        %2483 = vmatpush2.bf16.xpose.msra.mxu0 0
        %2484 = vmatprep.subr.bf16.mxu0 0
        %2485 = vmatpush2.bf16.xpose.msra.mxu0 0
        %2486 = vmatprep.subr.bf16.mxu0 0
        %2487 = vmatpush2.bf16.xpose.msra.mxu0 0
        %2488 = vmatprep.subr.bf16.mxu0 0
        %2489 = vmatpush2.bf16.xpose.msra.mxu0 0
        %2490 = vmatprep.mubr.bf16.mxu0 0
        %2491 = vmatmul.mubr.bf16.gmra.mxu0 %v2450
        %v2492 = vpop.f32.mrf.mxu0
        %v2493 = vadd.f32 0.0, %v2492
        %v2494 = vpop.f32.mrf.mxu0
        %v2495 = vpop.f32.mrf.mxu0
        %v2496 = vadd.f32 0.0, %v2495
        %v2497 = vpop.f32.mrf.mxu0
        %2498 = vdwg.mxu0
        %v2503 = vunpack.c.l.b16 %v2370
        %v2504 = vunpack.c.l.b16 %v2371
        %v2505 = vunpack.c.l.b16 %v2372
        %v2506 = vunpack.c.l.b16 %v2373
        %v2507 = vpack.c.b16 %v2504, %v2503
        %v2508 = vpack.c.b16 %v2506, %v2505
        %v2510 = vsel %vm2388, %v2358, 0
        %v2513 = vsel %vm2388, %v2507, 0
        %v2516 = vsel %vm2388, %v2508, 0
        %2518 = vmatprep.subr.bf16.mxu0 0
        %2519 = vmatpush1.bf16.xpose.msra.mxu0 0
        %2520 = vmatprep.subr.bf16.mxu0 0
        %2521 = vmatpush1.bf16.xpose.msra.mxu0 0
        %2522 = vmatprep.subr.bf16.mxu0 0
        %2523 = vmatpush1.bf16.xpose.msra.mxu0 0
        %2524 = vmatprep.subr.bf16.mxu0 0
        %2525 = vmatpush1.bf16.xpose.msra.mxu0 0
        %2526 = vmatprep.subr.bf16.mxu0 0
        %2527 = vmatpush1.bf16.xpose.msra.mxu0 0
        %2528 = vmatprep.subr.bf16.mxu0 0
        %2529 = vmatpush1.bf16.xpose.msra.mxu0 0
        %2530 = vmatprep.subr.bf16.mxu0 0
        %2531 = vmatpush1.bf16.xpose.msra.mxu0 %v2516
        %2532 = vmatprep.subr.bf16.mxu0 0
        %2533 = vmatpush1.bf16.xpose.msra.mxu0 %v2513
        %2534 = vmatprep.subr.bf16.mxu0 0
        %2535 = vmatpush2.bf16.xpose.msra.mxu0 0
        %2536 = vmatprep.subr.bf16.mxu0 0
        %2537 = vmatpush2.bf16.xpose.msra.mxu0 0
        %2538 = vmatprep.subr.bf16.mxu0 0
        %2539 = vmatpush2.bf16.xpose.msra.mxu0 0
        %2540 = vmatprep.subr.bf16.mxu0 0
        %2541 = vmatpush2.bf16.xpose.msra.mxu0 0
        %2542 = vmatprep.subr.bf16.mxu0 0
        %2543 = vmatpush2.bf16.xpose.msra.mxu0 0
        %2544 = vmatprep.subr.bf16.mxu0 0
        %2545 = vmatpush2.bf16.xpose.msra.mxu0 0
        %2546 = vmatprep.subr.bf16.mxu0 0
        %2547 = vmatpush2.bf16.xpose.msra.mxu0 0
        %2548 = vmatprep.subr.bf16.mxu0 0
        %2549 = vmatpush2.bf16.xpose.msra.mxu0 0
        %2550 = vmatprep.mubr.bf16.mxu0 0
        %2551 = vmatmul.mubr.bf16.gmra.mxu0 %v2510
        %v2552 = vpop.f32.mrf.mxu0
        %v2553 = vadd.f32 0.0, %v2552
        %v2554 = vpop.f32.mrf.mxu0
        %v2555 = vpop.f32.mrf.mxu0
        %v2556 = vadd.f32 0.0, %v2555
        %v2557 = vpop.f32.mrf.mxu0
        %2558 = vdwg.mxu0
        %v2563 = vunpack.c.l.b16 %v2374
        %v2564 = vunpack.c.l.b16 %v2375
        %v2565 = vunpack.c.l.b16 %v2376
        %v2566 = vunpack.c.l.b16 %v2377
        %v2567 = vpack.c.b16 %v2564, %v2563
        %v2568 = vpack.c.b16 %v2566, %v2565
        %v2570 = vsel %vm2388, %v2361, 0
        %v2573 = vsel %vm2388, %v2567, 0
        %v2576 = vsel %vm2388, %v2568, 0
        %2578 = vmatprep.subr.bf16.mxu0 0
        %2579 = vmatpush1.bf16.xpose.msra.mxu0 0
        %2580 = vmatprep.subr.bf16.mxu0 0
        %2581 = vmatpush1.bf16.xpose.msra.mxu0 0
        %2582 = vmatprep.subr.bf16.mxu0 0
        %2583 = vmatpush1.bf16.xpose.msra.mxu0 0
        %2584 = vmatprep.subr.bf16.mxu0 0
        %2585 = vmatpush1.bf16.xpose.msra.mxu0 0
        %2586 = vmatprep.subr.bf16.mxu0 0
        %2587 = vmatpush1.bf16.xpose.msra.mxu0 0
        %2588 = vmatprep.subr.bf16.mxu0 0
        %2589 = vmatpush1.bf16.xpose.msra.mxu0 0
        %2590 = vmatprep.subr.bf16.mxu0 0
        %2591 = vmatpush1.bf16.xpose.msra.mxu0 %v2576
        %2592 = vmatprep.subr.bf16.mxu0 0
        %2593 = vmatpush1.bf16.xpose.msra.mxu0 %v2573
        %2594 = vmatprep.subr.bf16.mxu0 0
        %2595 = vmatpush2.bf16.xpose.msra.mxu0 0
        %2596 = vmatprep.subr.bf16.mxu0 0
        %2597 = vmatpush2.bf16.xpose.msra.mxu0 0
        %2598 = vmatprep.subr.bf16.mxu0 0
        %2599 = vmatpush2.bf16.xpose.msra.mxu0 0
        %2600 = vmatprep.subr.bf16.mxu0 0
        %2601 = vmatpush2.bf16.xpose.msra.mxu0 0
        %2602 = vmatprep.subr.bf16.mxu0 0
        %2603 = vmatpush2.bf16.xpose.msra.mxu0 0
        %2604 = vmatprep.subr.bf16.mxu0 0
        %2605 = vmatpush2.bf16.xpose.msra.mxu0 0
        %2606 = vmatprep.subr.bf16.mxu0 0
        %2607 = vmatpush2.bf16.xpose.msra.mxu0 0
        %2608 = vmatprep.subr.bf16.mxu0 0
        %2609 = vmatpush2.bf16.xpose.msra.mxu0 0
        %2610 = vmatprep.mubr.bf16.mxu0 0
        %2611 = vmatmul.mubr.bf16.gmra.mxu0 %v2570
        %v2612 = vpop.f32.mrf.mxu0
        %v2613 = vadd.f32 0.0, %v2612
        %v2614 = vpop.f32.mrf.mxu0
        %v2615 = vpop.f32.mrf.mxu0
        %v2616 = vadd.f32 0.0, %v2615
        %v2617 = vpop.f32.mrf.mxu0
        %2618 = vdwg.mxu0
        %v2619 = vsel %vm2043, %v2433, -inf
        %2620 = vmax.xlane.f32.xlu0 %v2619
        %v2621 = vpop.xlane.xlu0 %2620
        %v2622 = vsel %vm2043, %v2436, -inf
        %2623 = vmax.xlane.f32.xlu0 %v2622
        %v2624 = vpop.xlane.xlu0 %2623
        %v2625 = vsel %vm2043, %v2493, -inf
        %2626 = vmax.xlane.f32.xlu0 %v2625
        %v2627 = vpop.xlane.xlu0 %2626
        %v2628 = vsel %vm2043, %v2496, -inf
        %2629 = vmax.xlane.f32.xlu0 %v2628
        %v2630 = vpop.xlane.xlu0 %2629
        %v2631 = vsel %vm2043, %v2553, -inf
        %2632 = vmax.xlane.f32.xlu0 %v2631
        %v2633 = vpop.xlane.xlu0 %2632
        %v2634 = vsel %vm2043, %v2556, -inf
        %2635 = vmax.xlane.f32.xlu0 %v2634
        %v2636 = vpop.xlane.xlu0 %2635
        %v2637 = vsel %vm2043, %v2613, -inf
        %2638 = vmax.xlane.f32.xlu0 %v2637
        %v2639 = vpop.xlane.xlu0 %2638
        %v2640 = vsel %vm2043, %v2616, -inf
        %2641 = vmax.xlane.f32.xlu0 %v2640
        %v2642 = vpop.xlane.xlu0 %2641
        %v2643 = vsub.f32 %v2433, %v2621
        %v2644 = vsub.f32 %v2436, %v2624
        %v2645 = vsub.f32 %v2493, %v2627
        %v2646 = vsub.f32 %v2496, %v2630
        %v2647 = vsub.f32 %v2553, %v2633
        %v2648 = vsub.f32 %v2556, %v2636
        %v2649 = vsub.f32 %v2613, %v2639
        %v2650 = vsub.f32 %v2616, %v2642
        %v2651 = vmul.f32 %v2643, 1.442695
        %v2652 = vpow.pop %v2651
        %v2653 = vmul.f32 %v2644, 1.442695
        %v2654 = vpow.pop %v2653
        %v2655 = vmul.f32 %v2645, 1.442695
        %v2656 = vpow.pop %v2655
        %v2657 = vmul.f32 %v2646, 1.442695
        %v2658 = vpow.pop %v2657
        %v2659 = vmul.f32 %v2647, 1.442695
        %v2660 = vpow.pop %v2659
        %v2661 = vmul.f32 %v2648, 1.442695
        %v2662 = vpow.pop %v2661
        %v2663 = vmul.f32 %v2649, 1.442695
        %v2664 = vpow.pop %v2663
        %v2665 = vmul.f32 %v2650, 1.442695
        %v2666 = vpow.pop %v2665
        %v2667 = vsel %vm2043, %v2652, 0.0
        %2668 = vadd.xlane.f32.xlu0 %v2667
        %v2669 = vpop.xlane.xlu0 %2668
        %v2670 = vsel %vm2043, %v2654, 0.0
        %2671 = vadd.xlane.f32.xlu0 %v2670
        %v2672 = vpop.xlane.xlu0 %2671
        %v2673 = vsel %vm2043, %v2656, 0.0
        %2674 = vadd.xlane.f32.xlu0 %v2673
        %v2675 = vpop.xlane.xlu0 %2674
        %v2676 = vsel %vm2043, %v2658, 0.0
        %2677 = vadd.xlane.f32.xlu0 %v2676
        %v2678 = vpop.xlane.xlu0 %2677
        %v2679 = vsel %vm2043, %v2660, 0.0
        %2680 = vadd.xlane.f32.xlu0 %v2679
        %v2681 = vpop.xlane.xlu0 %2680
        %v2682 = vsel %vm2043, %v2662, 0.0
        %2683 = vadd.xlane.f32.xlu0 %v2682
        %v2684 = vpop.xlane.xlu0 %2683
        %v2685 = vsel %vm2043, %v2664, 0.0
        %2686 = vadd.xlane.f32.xlu0 %v2685
        %v2687 = vpop.xlane.xlu0 %2686
        %v2688 = vsel %vm2043, %v2666, 0.0
        %2689 = vadd.xlane.f32.xlu0 %v2688
        %v2690 = vpop.xlane.xlu0 %2689
        %v2691 = vrcp.pop %v2669
        %v2692 = vrcp.pop %v2672
        %v2693 = vrcp.pop %v2675
        %v2694 = vrcp.pop %v2678
        %v2695 = vrcp.pop %v2681
        %v2696 = vrcp.pop %v2684
        %v2697 = vrcp.pop %v2687
        %v2698 = vrcp.pop %v2690
        %v2699 = vmul.f32 %v2652, %v2691
        %v2700 = vmul.f32 %v2654, %v2692
        %v2701 = vmul.f32 %v2656, %v2693
        %v2702 = vmul.f32 %v2658, %v2694
        %v2703 = vmul.f32 %v2660, %v2695
        %v2704 = vmul.f32 %v2662, %v2696
        %v2705 = vmul.f32 %v2664, %v2697
        %v2706 = vmul.f32 %v2666, %v2698
        %v2707 = vpack.c.bf16 %v2700, %v2699
        %v2708 = vpack.c.bf16 %v2702, %v2701
        %v2709 = vpack.c.bf16 %v2704, %v2703
        %v2710 = vpack.c.bf16 %v2706, %v2705
        %v2711 = vld [vmem:[#allocation4] sm:$0xf]
        %v2712 = vld [vmem:[#allocation4 + $0x4] sm:$0xf]
        %v2713 = vld [vmem:[#allocation4 + $0x8] sm:$0xf]
        %v2714 = vld [vmem:[#allocation4 + $0xc] sm:$0xf]
        %v2715 = vld [vmem:[#allocation4 + $0x10] sm:$0xf]
        %v2716 = vld [vmem:[#allocation4 + $0x14] sm:$0xf]
        %v2717 = vld [vmem:[#allocation4 + $0x18] sm:$0xf]
        %v2718 = vld [vmem:[#allocation4 + $0x1c] sm:$0xf]
        %v2719 = vld [vmem:[#allocation4 + $0x20] sm:$0xf]
        %v2720 = vld [vmem:[#allocation4 + $0x24] sm:$0xf]
        %v2721 = vld [vmem:[#allocation4 + $0x28] sm:$0xf]
        %v2722 = vld [vmem:[#allocation4 + $0x2c] sm:$0xf]
        %v2723 = vld [vmem:[#allocation4 + $0x30] sm:$0xf]
        %v2724 = vld [vmem:[#allocation4 + $0x34] sm:$0xf]
        %v2725 = vld [vmem:[#allocation4 + $0x38] sm:$0xf]
        %v2726 = vld [vmem:[#allocation4 + $0x3c] sm:$0xf]
        %v2731 = vunpack.c.l.b16 %v2711
        %v2732 = vunpack.c.l.b16 %v2712
        %v2733 = vunpack.c.l.b16 %v2713
        %v2734 = vunpack.c.l.b16 %v2714
        %v2735 = vpack.c.b16 %v2732, %v2731
        %v2736 = vpack.c.b16 %v2734, %v2733
        %v2740 = vsel %vm2043, %v2707, 0
        %2742 = vmatprep.subr.bf16.mxu0 0
        %2743 = vmatpush1.bf16.msra.mxu0 0
        %2744 = vmatprep.subr.bf16.mxu0 0
        %2745 = vmatpush1.bf16.msra.mxu0 0
        %2746 = vmatprep.subr.bf16.mxu0 0
        %2747 = vmatpush1.bf16.msra.mxu0 0
        %2748 = vmatprep.subr.bf16.mxu0 0
        %2749 = vmatpush1.bf16.msra.mxu0 0
        %2750 = vmatprep.subr.bf16.mxu0 0
        %2751 = vmatpush1.bf16.msra.mxu0 0
        %2752 = vmatprep.subr.bf16.mxu0 0
        %2753 = vmatpush1.bf16.msra.mxu0 0
        %2754 = vmatprep.subr.bf16.mxu0 0
        %2755 = vmatpush1.bf16.msra.mxu0 %v2736
        %2756 = vmatprep.subr.bf16.mxu0 0
        %2757 = vmatpush1.bf16.msra.mxu0 %v2735
        %2758 = vmatprep.subr.bf16.mxu0 0
        %2759 = vmatpush2.bf16.msra.mxu0 0
        %2760 = vmatprep.subr.bf16.mxu0 0
        %2761 = vmatpush2.bf16.msra.mxu0 0
        %2762 = vmatprep.subr.bf16.mxu0 0
        %2763 = vmatpush2.bf16.msra.mxu0 0
        %2764 = vmatprep.subr.bf16.mxu0 0
        %2765 = vmatpush2.bf16.msra.mxu0 0
        %2766 = vmatprep.subr.bf16.mxu0 0
        %2767 = vmatpush2.bf16.msra.mxu0 0
        %2768 = vmatprep.subr.bf16.mxu0 0
        %2769 = vmatpush2.bf16.msra.mxu0 0
        %2770 = vmatprep.subr.bf16.mxu0 0
        %2771 = vmatpush2.bf16.msra.mxu0 0
        %2772 = vmatprep.subr.bf16.mxu0 0
        %2773 = vmatpush2.bf16.msra.mxu0 0
        %2774 = vmatprep.mubr.bf16.mxu0 0
        %2775 = vmatmul.mubr.bf16.gmra.mxu0 %v2740
        %v2776 = vpop.f32.mrf.mxu0
        %v2777 = vadd.f32 0.0, %v2776
        %v2778 = vpop.f32.mrf.mxu0
        %v2779 = vpop.f32.mrf.mxu0
        %v2780 = vadd.f32 0.0, %v2779
        %v2781 = vpop.f32.mrf.mxu0
        %2782 = vdwg.mxu0
        %v2787 = vunpack.c.l.b16 %v2715
        %v2788 = vunpack.c.l.b16 %v2716
        %v2789 = vunpack.c.l.b16 %v2717
        %v2790 = vunpack.c.l.b16 %v2718
        %v2791 = vpack.c.b16 %v2788, %v2787
        %v2792 = vpack.c.b16 %v2790, %v2789
        %v2796 = vsel %vm2043, %v2708, 0
        %2798 = vmatprep.subr.bf16.mxu0 0
        %2799 = vmatpush1.bf16.msra.mxu0 0
        %2800 = vmatprep.subr.bf16.mxu0 0
        %2801 = vmatpush1.bf16.msra.mxu0 0
        %2802 = vmatprep.subr.bf16.mxu0 0
        %2803 = vmatpush1.bf16.msra.mxu0 0
        %2804 = vmatprep.subr.bf16.mxu0 0
        %2805 = vmatpush1.bf16.msra.mxu0 0
        %2806 = vmatprep.subr.bf16.mxu0 0
        %2807 = vmatpush1.bf16.msra.mxu0 0
        %2808 = vmatprep.subr.bf16.mxu0 0
        %2809 = vmatpush1.bf16.msra.mxu0 0
        %2810 = vmatprep.subr.bf16.mxu0 0
        %2811 = vmatpush1.bf16.msra.mxu0 %v2792
        %2812 = vmatprep.subr.bf16.mxu0 0
        %2813 = vmatpush1.bf16.msra.mxu0 %v2791
        %2814 = vmatprep.subr.bf16.mxu0 0
        %2815 = vmatpush2.bf16.msra.mxu0 0
        %2816 = vmatprep.subr.bf16.mxu0 0
        %2817 = vmatpush2.bf16.msra.mxu0 0
        %2818 = vmatprep.subr.bf16.mxu0 0
        %2819 = vmatpush2.bf16.msra.mxu0 0
        %2820 = vmatprep.subr.bf16.mxu0 0
        %2821 = vmatpush2.bf16.msra.mxu0 0
        %2822 = vmatprep.subr.bf16.mxu0 0
        %2823 = vmatpush2.bf16.msra.mxu0 0
        %2824 = vmatprep.subr.bf16.mxu0 0
        %2825 = vmatpush2.bf16.msra.mxu0 0
        %2826 = vmatprep.subr.bf16.mxu0 0
        %2827 = vmatpush2.bf16.msra.mxu0 0
        %2828 = vmatprep.subr.bf16.mxu0 0
        %2829 = vmatpush2.bf16.msra.mxu0 0
        %2830 = vmatprep.mubr.bf16.mxu0 0
        %2831 = vmatmul.mubr.bf16.gmra.mxu0 %v2796
        %v2832 = vpop.f32.mrf.mxu0
        %v2833 = vadd.f32 0.0, %v2832
        %v2834 = vpop.f32.mrf.mxu0
        %v2835 = vpop.f32.mrf.mxu0
        %v2836 = vadd.f32 0.0, %v2835
        %v2837 = vpop.f32.mrf.mxu0
        %2838 = vdwg.mxu0
        %v2843 = vunpack.c.l.b16 %v2719
        %v2844 = vunpack.c.l.b16 %v2720
        %v2845 = vunpack.c.l.b16 %v2721
        %v2846 = vunpack.c.l.b16 %v2722
        %v2847 = vpack.c.b16 %v2844, %v2843
        %v2848 = vpack.c.b16 %v2846, %v2845
        %v2852 = vsel %vm2043, %v2709, 0
        %2854 = vmatprep.subr.bf16.mxu0 0
        %2855 = vmatpush1.bf16.msra.mxu0 0
        %2856 = vmatprep.subr.bf16.mxu0 0
        %2857 = vmatpush1.bf16.msra.mxu0 0
        %2858 = vmatprep.subr.bf16.mxu0 0
        %2859 = vmatpush1.bf16.msra.mxu0 0
        %2860 = vmatprep.subr.bf16.mxu0 0
        %2861 = vmatpush1.bf16.msra.mxu0 0
        %2862 = vmatprep.subr.bf16.mxu0 0
        %2863 = vmatpush1.bf16.msra.mxu0 0
        %2864 = vmatprep.subr.bf16.mxu0 0
        %2865 = vmatpush1.bf16.msra.mxu0 0
        %2866 = vmatprep.subr.bf16.mxu0 0
        %2867 = vmatpush1.bf16.msra.mxu0 %v2848
        %2868 = vmatprep.subr.bf16.mxu0 0
        %2869 = vmatpush1.bf16.msra.mxu0 %v2847
        %2870 = vmatprep.subr.bf16.mxu0 0
        %2871 = vmatpush2.bf16.msra.mxu0 0
        %2872 = vmatprep.subr.bf16.mxu0 0
        %2873 = vmatpush2.bf16.msra.mxu0 0
        %2874 = vmatprep.subr.bf16.mxu0 0
        %2875 = vmatpush2.bf16.msra.mxu0 0
        %2876 = vmatprep.subr.bf16.mxu0 0
        %2877 = vmatpush2.bf16.msra.mxu0 0
        %2878 = vmatprep.subr.bf16.mxu0 0
        %2879 = vmatpush2.bf16.msra.mxu0 0
        %2880 = vmatprep.subr.bf16.mxu0 0
        %2881 = vmatpush2.bf16.msra.mxu0 0
        %2882 = vmatprep.subr.bf16.mxu0 0
        %2883 = vmatpush2.bf16.msra.mxu0 0
        %2884 = vmatprep.subr.bf16.mxu0 0
        %2885 = vmatpush2.bf16.msra.mxu0 0
        %2886 = vmatprep.mubr.bf16.mxu0 0
        %2887 = vmatmul.mubr.bf16.gmra.mxu0 %v2852
        %v2888 = vpop.f32.mrf.mxu0
        %v2889 = vadd.f32 0.0, %v2888
        %v2890 = vpop.f32.mrf.mxu0
        %v2891 = vpop.f32.mrf.mxu0
        %v2892 = vadd.f32 0.0, %v2891
        %v2893 = vpop.f32.mrf.mxu0
        %2894 = vdwg.mxu0
        %v2899 = vunpack.c.l.b16 %v2723
        %v2900 = vunpack.c.l.b16 %v2724
        %v2901 = vunpack.c.l.b16 %v2725
        %v2902 = vunpack.c.l.b16 %v2726
        %v2903 = vpack.c.b16 %v2900, %v2899
        %v2904 = vpack.c.b16 %v2902, %v2901
        %v2908 = vsel %vm2043, %v2710, 0
        %2910 = vmatprep.subr.bf16.mxu0 0
        %2911 = vmatpush1.bf16.msra.mxu0 0
        %2912 = vmatprep.subr.bf16.mxu0 0
        %2913 = vmatpush1.bf16.msra.mxu0 0
        %2914 = vmatprep.subr.bf16.mxu0 0
        %2915 = vmatpush1.bf16.msra.mxu0 0
        %2916 = vmatprep.subr.bf16.mxu0 0
        %2917 = vmatpush1.bf16.msra.mxu0 0
        %2918 = vmatprep.subr.bf16.mxu0 0
        %2919 = vmatpush1.bf16.msra.mxu0 0
        %2920 = vmatprep.subr.bf16.mxu0 0
        %2921 = vmatpush1.bf16.msra.mxu0 0
        %2922 = vmatprep.subr.bf16.mxu0 0
        %2923 = vmatpush1.bf16.msra.mxu0 %v2904
        %2924 = vmatprep.subr.bf16.mxu0 0
        %2925 = vmatpush1.bf16.msra.mxu0 %v2903
        %2926 = vmatprep.subr.bf16.mxu0 0
        %2927 = vmatpush2.bf16.msra.mxu0 0
        %2928 = vmatprep.subr.bf16.mxu0 0
        %2929 = vmatpush2.bf16.msra.mxu0 0
        %2930 = vmatprep.subr.bf16.mxu0 0
        %2931 = vmatpush2.bf16.msra.mxu0 0
        %2932 = vmatprep.subr.bf16.mxu0 0
        %2933 = vmatpush2.bf16.msra.mxu0 0
        %2934 = vmatprep.subr.bf16.mxu0 0
        %2935 = vmatpush2.bf16.msra.mxu0 0
        %2936 = vmatprep.subr.bf16.mxu0 0
        %2937 = vmatpush2.bf16.msra.mxu0 0
        %2938 = vmatprep.subr.bf16.mxu0 0
        %2939 = vmatpush2.bf16.msra.mxu0 0
        %2940 = vmatprep.subr.bf16.mxu0 0
        %2941 = vmatpush2.bf16.msra.mxu0 0
        %2942 = vmatprep.mubr.bf16.mxu0 0
        %2943 = vmatmul.mubr.bf16.gmra.mxu0 %v2908
        %v2944 = vpop.f32.mrf.mxu0
        %v2945 = vadd.f32 0.0, %v2944
        %v2946 = vpop.f32.mrf.mxu0
        %v2947 = vpop.f32.mrf.mxu0
        %v2948 = vadd.f32 0.0, %v2947
        %v2949 = vpop.f32.mrf.mxu0
        %2950 = vdwg.mxu0
        %v2951 = vpack.c.bf16 %v2780, %v2777
        %v2952 = vpack.c.bf16 %v2836, %v2833
        %v2953 = vpack.c.bf16 %v2892, %v2889
        %v2954 = vpack.c.bf16 %v2948, %v2945
        %v2957 = vpack.i.b16 %v2952, %v2951
        %v2959 = vshrl.u32 %v2951, 16
        %v2960 = vshrl.u32 %v2952, 16
        %v2961 = vpack.i.b16 %v2960, %v2959
        %v2965 = vpack.i.b16 %v2954, %v2953
        %v2967 = vshrl.u32 %v2953, 16
        %v2968 = vshrl.u32 %v2954, 16
        %v2969 = vpack.i.b16 %v2968, %v2967
        %v2971 = vcombine.high %v2957, %v2113
        %v2973 = vunpack.c.l.s4 1983009808
        %v2974 = vunpack.c.0.s8 %v2973
        %v2975 = vlaneseq
        %v2976 = vshrl.u32 %v2975, 7
        %v2977 = vsub.s32 %v2974, %v2976
        %v2978 = vrot.slane %v2957, %v2977
        %v2980 = vunpack.c.l.s4 1983009808
        %v2981 = vunpack.c.0.s8 %v2980
        %v2982 = vlaneseq
        %v2983 = vshrl.u32 %v2982, 7
        %v2984 = vsub.s32 %v2981, %v2983
        %v2985 = vrot.slane %v2971, %v2984
        %v2986 = vcombine.high %v2965, %v2113
        %v2988 = vunpack.c.l.s4 1983009808
        %v2989 = vunpack.c.0.s8 %v2988
        %v2990 = vlaneseq
        %v2991 = vshrl.u32 %v2990, 7
        %v2992 = vsub.s32 %v2989, %v2991
        %v2993 = vrot.slane %v2965, %v2992
        %v2995 = vunpack.c.l.s4 1983009808
        %v2996 = vunpack.c.0.s8 %v2995
        %v2997 = vlaneseq
        %v2998 = vshrl.u32 %v2997, 7
        %v2999 = vsub.s32 %v2996, %v2998
        %v3000 = vrot.slane %v2986, %v2999
        %v3001 = vcombine.low %v2978, %v2993
        %v3002 = vcombine.high %v2978, %v2993
        %v3004 = vunpack.c.l.s4 1934713408
        %v3005 = vunpack.c.0.s8 %v3004
        %v3006 = vlaneseq
        %v3007 = vshrl.u32 %v3006, 7
        %v3008 = vsub.s32 %v3005, %v3007
        %v3009 = vrot.slane %v3001, %v3008
        %v3011 = vunpack.c.l.s4 1934713408
        %v3012 = vunpack.c.0.s8 %v3011
        %v3013 = vlaneseq
        %v3014 = vshrl.u32 %v3013, 7
        %v3015 = vsub.s32 %v3012, %v3014
        %v3016 = vrot.slane %v3002, %v3015
        %v3017 = vcombine.low %v2985, %v3000
        %v3018 = vcombine.high %v2985, %v3000
        %v3020 = vunpack.c.l.s4 1934713408
        %v3021 = vunpack.c.0.s8 %v3020
        %v3022 = vlaneseq
        %v3023 = vshrl.u32 %v3022, 7
        %v3024 = vsub.s32 %v3021, %v3023
        %v3025 = vrot.slane %v3017, %v3024
        %v3027 = vunpack.c.l.s4 1934713408
        %v3028 = vunpack.c.0.s8 %v3027
        %v3029 = vlaneseq
        %v3030 = vshrl.u32 %v3029, 7
        %v3031 = vsub.s32 %v3028, %v3030
        %v3032 = vrot.slane %v3018, %v3031
        %v3033 = vcombine.high %v3009, 0
        %v3034 = vcombine.high %v3016, 0
        %v3035 = vcombine.high %v3025, 0
        %v3036 = vcombine.high %v3032, 0
        %v3037 = vcombine.high %v2961, %v2116
        %v3039 = vunpack.c.l.s4 1983009808
        %v3040 = vunpack.c.0.s8 %v3039
        %v3041 = vlaneseq
        %v3042 = vshrl.u32 %v3041, 7
        %v3043 = vsub.s32 %v3040, %v3042
        %v3044 = vrot.slane %v2961, %v3043
        %v3046 = vunpack.c.l.s4 1983009808
        %v3047 = vunpack.c.0.s8 %v3046
        %v3048 = vlaneseq
        %v3049 = vshrl.u32 %v3048, 7
        %v3050 = vsub.s32 %v3047, %v3049
        %v3051 = vrot.slane %v3037, %v3050
        %v3052 = vcombine.high %v2969, %v2116
        %v3054 = vunpack.c.l.s4 1983009808
        %v3055 = vunpack.c.0.s8 %v3054
        %v3056 = vlaneseq
        %v3057 = vshrl.u32 %v3056, 7
        %v3058 = vsub.s32 %v3055, %v3057
        %v3059 = vrot.slane %v2969, %v3058
        %v3061 = vunpack.c.l.s4 1983009808
        %v3062 = vunpack.c.0.s8 %v3061
        %v3063 = vlaneseq
        %v3064 = vshrl.u32 %v3063, 7
        %v3065 = vsub.s32 %v3062, %v3064
        %v3066 = vrot.slane %v3052, %v3065
        %v3067 = vcombine.low %v3044, %v3059
        %v3068 = vcombine.high %v3044, %v3059
        %v3070 = vunpack.c.l.s4 1934713408
        %v3071 = vunpack.c.0.s8 %v3070
        %v3072 = vlaneseq
        %v3073 = vshrl.u32 %v3072, 7
        %v3074 = vsub.s32 %v3071, %v3073
        %v3075 = vrot.slane %v3067, %v3074
        %v3077 = vunpack.c.l.s4 1934713408
        %v3078 = vunpack.c.0.s8 %v3077
        %v3079 = vlaneseq
        %v3080 = vshrl.u32 %v3079, 7
        %v3081 = vsub.s32 %v3078, %v3080
        %v3082 = vrot.slane %v3068, %v3081
        %v3083 = vcombine.low %v3051, %v3066
        %v3084 = vcombine.high %v3051, %v3066
        %v3086 = vunpack.c.l.s4 1934713408
        %v3087 = vunpack.c.0.s8 %v3086
        %v3088 = vlaneseq
        %v3089 = vshrl.u32 %v3088, 7
        %v3090 = vsub.s32 %v3087, %v3089
        %v3091 = vrot.slane %v3083, %v3090
        %v3093 = vunpack.c.l.s4 1934713408
        %v3094 = vunpack.c.0.s8 %v3093
        %v3095 = vlaneseq
        %v3096 = vshrl.u32 %v3095, 7
        %v3097 = vsub.s32 %v3094, %v3096
        %v3098 = vrot.slane %v3084, %v3097
        %v3099 = vcombine.high %v3075, 0
        %v3100 = vcombine.high %v3082, 0
        %v3101 = vcombine.high %v3091, 0
        %v3102 = vcombine.high %v3098, 0
        %v3103 = vcombine.low %v3009, %v3016
        %v3105 = vunpack.c.l.s4 1983009808
        %v3106 = vunpack.c.0.s8 %v3105
        %v3107 = vlaneseq
        %v3108 = vshrl.u32 %v3107, 7
        %v3109 = vsub.s32 %v3106, %v3108
        %v3110 = vrot.slane %v3103, %v3109
        %v3111 = vcombine.low %v3033, %v3034
        %v3113 = vunpack.c.l.s4 1983009808
        %v3114 = vunpack.c.0.s8 %v3113
        %v3115 = vlaneseq
        %v3116 = vshrl.u32 %v3115, 7
        %v3117 = vsub.s32 %v3114, %v3116
        %v3118 = vrot.slane %v3111, %v3117
        %v3119 = vcombine.low %v3025, %v3032
        %v3121 = vunpack.c.l.s4 1983009808
        %v3122 = vunpack.c.0.s8 %v3121
        %v3123 = vlaneseq
        %v3124 = vshrl.u32 %v3123, 7
        %v3125 = vsub.s32 %v3122, %v3124
        %v3126 = vrot.slane %v3119, %v3125
        %v3127 = vcombine.low %v3035, %v3036
        %v3129 = vunpack.c.l.s4 1983009808
        %v3130 = vunpack.c.0.s8 %v3129
        %v3131 = vlaneseq
        %v3132 = vshrl.u32 %v3131, 7
        %v3133 = vsub.s32 %v3130, %v3132
        %v3134 = vrot.slane %v3127, %v3133
        %v3135 = vcombine.low %v3110, %v3118
        %v3137 = vunpack.c.l.s4 1934713408
        %v3138 = vunpack.c.0.s8 %v3137
        %v3139 = vlaneseq
        %v3140 = vshrl.u32 %v3139, 7
        %v3141 = vsub.s32 %v3138, %v3140
        %v3142 = vrot.slane %v3135, %v3141
        %v3143 = vcombine.low %v3126, %v3134
        %v3145 = vunpack.c.l.s4 1934713408
        %v3146 = vunpack.c.0.s8 %v3145
        %v3147 = vlaneseq
        %v3148 = vshrl.u32 %v3147, 7
        %v3149 = vsub.s32 %v3146, %v3148
        %v3150 = vrot.slane %v3143, %v3149
        %v3151 = vcombine.low %v3142, %v3150
        %v3152 = vcombine.high %v3142, %v3150
        %v3153 = vcombine.low %v3075, %v3082
        %v3155 = vunpack.c.l.s4 1983009808
        %v3156 = vunpack.c.0.s8 %v3155
        %v3157 = vlaneseq
        %v3158 = vshrl.u32 %v3157, 7
        %v3159 = vsub.s32 %v3156, %v3158
        %v3160 = vrot.slane %v3153, %v3159
        %v3161 = vcombine.low %v3099, %v3100
        %v3163 = vunpack.c.l.s4 1983009808
        %v3164 = vunpack.c.0.s8 %v3163
        %v3165 = vlaneseq
        %v3166 = vshrl.u32 %v3165, 7
        %v3167 = vsub.s32 %v3164, %v3166
        %v3168 = vrot.slane %v3161, %v3167
        %v3169 = vcombine.low %v3091, %v3098
        %v3171 = vunpack.c.l.s4 1983009808
        %v3172 = vunpack.c.0.s8 %v3171
        %v3173 = vlaneseq
        %v3174 = vshrl.u32 %v3173, 7
        %v3175 = vsub.s32 %v3172, %v3174
        %v3176 = vrot.slane %v3169, %v3175
        %v3177 = vcombine.low %v3101, %v3102
        %v3179 = vunpack.c.l.s4 1983009808
        %v3180 = vunpack.c.0.s8 %v3179
        %v3181 = vlaneseq
        %v3182 = vshrl.u32 %v3181, 7
        %v3183 = vsub.s32 %v3180, %v3182
        %v3184 = vrot.slane %v3177, %v3183
        %v3185 = vcombine.low %v3160, %v3168
        %v3187 = vunpack.c.l.s4 1934713408
        %v3188 = vunpack.c.0.s8 %v3187
        %v3189 = vlaneseq
        %v3190 = vshrl.u32 %v3189, 7
        %v3191 = vsub.s32 %v3188, %v3190
        %v3192 = vrot.slane %v3185, %v3191
        %v3193 = vcombine.low %v3176, %v3184
        %v3195 = vunpack.c.l.s4 1934713408
        %v3196 = vunpack.c.0.s8 %v3195
        %v3197 = vlaneseq
        %v3198 = vshrl.u32 %v3197, 7
        %v3199 = vsub.s32 %v3196, %v3198
        %v3200 = vrot.slane %v3193, %v3199
        %v3201 = vcombine.low %v3192, %v3200
        %v3202 = vcombine.high %v3192, %v3200
        %v3205 = vpack.i.b16 %v3201, %v3151
        %v3206 = vshrl.u32 %v3151, 16
        %v3207 = vshrl.u32 %v3201, 16
        %v3208 = vpack.i.b16 %v3207, %v3206
        %v3211 = vpack.i.b16 %v3202, %v3152
        %v3212 = vshrl.u32 %v3152, 16
        %v3213 = vshrl.u32 %v3202, 16
        %v3214 = vpack.i.b16 %v3213, %v3212
        %3215 = vrot.lane.b32.xlu0 %v3208, 8
        %v3216 = vpop.permute.xlu0 %3215
        %3217 = vrot.lane.b32.xlu0 %v3211, 16
        %v3218 = vpop.permute.xlu0 %3217
        %3219 = vrot.lane.b32.xlu0 %v3214, 24
        %v3220 = vpop.permute.xlu0 %3219
        %v3223 = vsel %vm2388, %v3205, %v3216
        %vm3224 = vcmask 130048
        %v3226 = vsel %vm3224, %v3223, %v3218
        %vm3227 = vcmask 195584
        %v3229 = vsel %vm3227, %v3226, %v3220
        %v3230 = vld [vmem:[%s9] sm:$0xf]
        %v3231 = vld [vmem:[%s9 + $0x4] sm:$0xf]
        %v3232 = vld [vmem:[%s9 + $0x8] sm:$0xf]
        %v3233 = vld [vmem:[%s9 + $0xc] sm:$0xf]
        %v3234 = vld [vmem:[#allocation7] sm:$0x1]
        %v3236 = vlaneseq
        %v3237 = vshrl.u32 %v3236, 7
        %v3238 = vsub.s32 0, %v3237
        %v3239 = vrot.slane %v3234, %v3238
        %v3245 = vunpack.c.l.b16 %v3230
        %v3246 = vunpack.c.l.b16 %v3231
        %v3247 = vunpack.c.l.b16 %v3232
        %v3248 = vunpack.c.l.b16 %v3233
        %v3249 = vpack.c.b16 %v3246, %v3245
        %v3250 = vpack.c.b16 %v3248, %v3247
        %v3253 = vsel %vm2043, %v3229, 0
        %3255 = vmatprep.subr.bf16.mxu0 0
        %3256 = vmatpush1.bf16.msra.mxu0 0
        %3257 = vmatprep.subr.bf16.mxu0 0
        %3258 = vmatpush1.bf16.msra.mxu0 0
        %3259 = vmatprep.subr.bf16.mxu0 0
        %3260 = vmatpush1.bf16.msra.mxu0 0
        %3261 = vmatprep.subr.bf16.mxu0 0
        %3262 = vmatpush1.bf16.msra.mxu0 0
        %3263 = vmatprep.subr.bf16.mxu0 0
        %3264 = vmatpush1.bf16.msra.mxu0 0
        %3265 = vmatprep.subr.bf16.mxu0 0
        %3266 = vmatpush1.bf16.msra.mxu0 0
        %3267 = vmatprep.subr.bf16.mxu0 0
        %3268 = vmatpush1.bf16.msra.mxu0 %v3250
        %3269 = vmatprep.subr.bf16.mxu0 0
        %3270 = vmatpush1.bf16.msra.mxu0 %v3249
        %3271 = vmatprep.subr.bf16.mxu0 0
        %3272 = vmatpush2.bf16.msra.mxu0 0
        %3273 = vmatprep.subr.bf16.mxu0 0
        %3274 = vmatpush2.bf16.msra.mxu0 0
        %3275 = vmatprep.subr.bf16.mxu0 0
        %3276 = vmatpush2.bf16.msra.mxu0 0
        %3277 = vmatprep.subr.bf16.mxu0 0
        %3278 = vmatpush2.bf16.msra.mxu0 0
        %3279 = vmatprep.subr.bf16.mxu0 0
        %3280 = vmatpush2.bf16.msra.mxu0 0
        %3281 = vmatprep.subr.bf16.mxu0 0
        %3282 = vmatpush2.bf16.msra.mxu0 0
        %3283 = vmatprep.subr.bf16.mxu0 0
        %3284 = vmatpush2.bf16.msra.mxu0 0
        %3285 = vmatprep.subr.bf16.mxu0 0
        %3286 = vmatpush2.bf16.msra.mxu0 0
        %3287 = vmatprep.mubr.bf16.mxu0 0
        %3288 = vmatmul.mubr.bf16.gmra.mxu0 %v3253
        %v3289 = vpop.f32.mrf.mxu0
        %v3290 = vadd.f32 %v3239, %v3289
        %v3291 = vpop.f32.mrf.mxu0
        %v3292 = vpop.f32.mrf.mxu0
        %v3293 = vadd.f32 %v3239, %v3292
        %v3294 = vpop.f32.mrf.mxu0
        %3295 = vdwg.mxu0
        %v3296 = vadd.f32 %v2017, %v3290
        %v3297 = vadd.f32 %v2018, %v3293
        %v3298 = vpack.c.bf16 %v3297, %v3296
        %v3299 = vld [vmem:[%s11] sm:$0xf]
        %v3300 = vld [vmem:[%s11 + $0x4] sm:$0xf]
        %v3301 = vld [vmem:[%s11 + $0x8] sm:$0xf]
        %v3302 = vld [vmem:[%s11 + $0xc] sm:$0xf]
        %v3303 = vld [vmem:[#allocation9] sm:$0x1]
        %v3305 = vlaneseq
        %v3306 = vshrl.u32 %v3305, 7
        %v3307 = vsub.s32 0, %v3306
        %v3308 = vrot.slane %v3303, %v3307
        %v3314 = vunpack.c.l.b16 %v3299
        %v3315 = vunpack.c.l.b16 %v3300
        %v3316 = vunpack.c.l.b16 %v3301
        %v3317 = vunpack.c.l.b16 %v3302
        %v3318 = vpack.c.b16 %v3315, %v3314
        %v3319 = vpack.c.b16 %v3317, %v3316
        %v3323 = vsel %vm2043, %v3298, 0
        %3325 = vmatprep.subr.bf16.mxu0 0
        %3326 = vmatpush1.bf16.msra.mxu0 0
        %3327 = vmatprep.subr.bf16.mxu0 0
        %3328 = vmatpush1.bf16.msra.mxu0 0
        %3329 = vmatprep.subr.bf16.mxu0 0
        %3330 = vmatpush1.bf16.msra.mxu0 0
        %3331 = vmatprep.subr.bf16.mxu0 0
        %3332 = vmatpush1.bf16.msra.mxu0 0
        %3333 = vmatprep.subr.bf16.mxu0 0
        %3334 = vmatpush1.bf16.msra.mxu0 0
        %3335 = vmatprep.subr.bf16.mxu0 0
        %3336 = vmatpush1.bf16.msra.mxu0 0
        %3337 = vmatprep.subr.bf16.mxu0 0
        %3338 = vmatpush1.bf16.msra.mxu0 %v3319
        %3339 = vmatprep.subr.bf16.mxu0 0
        %3340 = vmatpush1.bf16.msra.mxu0 %v3318
        %3341 = vmatprep.subr.bf16.mxu0 0
        %3342 = vmatpush2.bf16.msra.mxu0 0
        %3343 = vmatprep.subr.bf16.mxu0 0
        %3344 = vmatpush2.bf16.msra.mxu0 0
        %3345 = vmatprep.subr.bf16.mxu0 0
        %3346 = vmatpush2.bf16.msra.mxu0 0
        %3347 = vmatprep.subr.bf16.mxu0 0
        %3348 = vmatpush2.bf16.msra.mxu0 0
        %3349 = vmatprep.subr.bf16.mxu0 0
        %3350 = vmatpush2.bf16.msra.mxu0 0
        %3351 = vmatprep.subr.bf16.mxu0 0
        %3352 = vmatpush2.bf16.msra.mxu0 0
        %3353 = vmatprep.subr.bf16.mxu0 0
        %3354 = vmatpush2.bf16.msra.mxu0 0
        %3355 = vmatprep.subr.bf16.mxu0 0
        %3356 = vmatpush2.bf16.msra.mxu0 0
        %3357 = vmatprep.mubr.bf16.mxu0 0
        %3358 = vmatmul.mubr.bf16.gmra.mxu0 %v3323
        %v3359 = vpop.f32.mrf.mxu0
        %v3360 = vadd.f32 %v3308, %v3359
        %v3361 = vpop.f32.mrf.mxu0
        %v3362 = vpop.f32.mrf.mxu0
        %v3363 = vadd.f32 %v3308, %v3362
        %v3364 = vpop.f32.mrf.mxu0
        %3365 = vdwg.mxu0
        %v3366 = vmax.f32 %v3360, 0.0
        %v3367 = vmax.f32 %v3363, 0.0
        %v3368 = vpack.c.bf16 %v3367, %v3366
        %v3369 = vld [vmem:[%s13] sm:$0xf]
        %v3370 = vld [vmem:[%s13 + $0x4] sm:$0xf]
        %v3371 = vld [vmem:[%s13 + $0x8] sm:$0xf]
        %v3372 = vld [vmem:[%s13 + $0xc] sm:$0xf]
        %v3373 = vld [vmem:[#allocation10] sm:$0x1]
        %v3375 = vlaneseq
        %v3376 = vshrl.u32 %v3375, 7
        %v3377 = vsub.s32 0, %v3376
        %v3378 = vrot.slane %v3373, %v3377
        %v3384 = vunpack.c.l.b16 %v3369
        %v3385 = vunpack.c.l.b16 %v3370
        %v3386 = vunpack.c.l.b16 %v3371
        %v3387 = vunpack.c.l.b16 %v3372
        %v3388 = vpack.c.b16 %v3385, %v3384
        %v3389 = vpack.c.b16 %v3387, %v3386
        %v3393 = vsel %vm2043, %v3368, 0
        %3395 = vmatprep.subr.bf16.mxu0 0
        %3396 = vmatpush1.bf16.msra.mxu0 0
        %3397 = vmatprep.subr.bf16.mxu0 0
        %3398 = vmatpush1.bf16.msra.mxu0 0
        %3399 = vmatprep.subr.bf16.mxu0 0
        %3400 = vmatpush1.bf16.msra.mxu0 0
        %3401 = vmatprep.subr.bf16.mxu0 0
        %3402 = vmatpush1.bf16.msra.mxu0 0
        %3403 = vmatprep.subr.bf16.mxu0 0
        %3404 = vmatpush1.bf16.msra.mxu0 0
        %3405 = vmatprep.subr.bf16.mxu0 0
        %3406 = vmatpush1.bf16.msra.mxu0 0
        %3407 = vmatprep.subr.bf16.mxu0 0
        %3408 = vmatpush1.bf16.msra.mxu0 %v3389
        %3409 = vmatprep.subr.bf16.mxu0 0
        %3410 = vmatpush1.bf16.msra.mxu0 %v3388
        %3411 = vmatprep.subr.bf16.mxu0 0
        %3412 = vmatpush2.bf16.msra.mxu0 0
        %3413 = vmatprep.subr.bf16.mxu0 0
        %3414 = vmatpush2.bf16.msra.mxu0 0
        %3415 = vmatprep.subr.bf16.mxu0 0
        %3416 = vmatpush2.bf16.msra.mxu0 0
        %3417 = vmatprep.subr.bf16.mxu0 0
        %3418 = vmatpush2.bf16.msra.mxu0 0
        %3419 = vmatprep.subr.bf16.mxu0 0
        %3420 = vmatpush2.bf16.msra.mxu0 0
        %3421 = vmatprep.subr.bf16.mxu0 0
        %3422 = vmatpush2.bf16.msra.mxu0 0
        %3423 = vmatprep.subr.bf16.mxu0 0
        %3424 = vmatpush2.bf16.msra.mxu0 0
        %3425 = vmatprep.subr.bf16.mxu0 0
        %3426 = vmatpush2.bf16.msra.mxu0 0
        %3427 = vmatprep.mubr.bf16.mxu0 0
        %3428 = vmatmul.mubr.bf16.gmra.mxu0 %v3393
        %v3429 = vpop.f32.mrf.mxu0
        %v3430 = vadd.f32 %v3378, %v3429
        %v3431 = vpop.f32.mrf.mxu0
        %v3432 = vpop.f32.mrf.mxu0
        %v3433 = vadd.f32 %v3378, %v3432
        %v3434 = vpop.f32.mrf.mxu0
        %3435 = vdwg.mxu0
        %v3436 = vadd.f32 %v3296, %v3430
        %v3437 = vadd.f32 %v3297, %v3433
        %v3438 = vpack.c.bf16 %v3437, %v3436
        %v3440 = vunpack.c.l.b16 %v3438
        %v3441 = vunpack.c.h.b16 %v3438
        %v3442 = vpack.c.b16 %v3440, %v3440
        %v3443 = vpack.c.b16 %v3441, %v3441
        %vm3446 = vcmask 257024
        %3447 = vst.msk [vmem:[%s567] sm:$0xf] %vm3446, %v3442
        %3448 = vst.msk [vmem:[%s567 + $0x4] sm:$0xf] %vm3446, %v3443
        %s3449 = smul.u32 2, %s34
        %p3450 = scmp.lt.s32.totalorder %s33, 1
        %s3451 = scalar_select %p3450, %s33, 1
        %p3452 = scmp.lt.s32.totalorder %s3449, 3
        %s3453 = scalar_select %p3452, %s3449, 3
        %s3454 = smul.addr %s3451, 4
        %s3455 = sadd.s32 %s3453, %s3454
        %s3456 = smul.addr %s3455, 4
        %s3457 = scalar_lea.vmem %s15, %s3456
        // Predicated region
        $region101: #{transformer_encoder.2} parent=79 // pred_check
          %p3458 = pneg %p381
        $region102: #{transformer_encoder.2} parent=79 // pred_check_branch
          %3460 = sbr.rel (%p3458) target = $region104
        $region103: #{transformer_encoder.2} parent=79 // pred_region
          %s3461 = smul.u32 2, %s34
        $region104: #{transformer_encoder.2} parent=79 // pred_fallthru
          _
      $region80: #{transformer_encoder.2} parent=5 // pred_fallthru
        _
      %p3462 = scmp.le.s32.totalorder 2, %s24
      // Predicated region
      $region105: #{transformer_encoder.2} parent=5 // pred_check
        %p3463 = pneg %p3462
      $region106: #{transformer_encoder.2} parent=5 // pred_check_branch
        %3465 = sbr.rel (%p3463) target = $region108
      $region107: #{transformer_encoder.2} parent=5 // pred_region
        %s3466 = ssub.s32 %s24, 2
        // Predicated region
        $region109: #{transformer_encoder.2} parent=107 // pred_check
          %p3467 = pneg %p387
        $region110: #{transformer_encoder.2} parent=107 // pred_check_branch
          %3469 = sbr.rel (%p3467) target = $region112
        $region111: #{transformer_encoder.2} parent=107 // pred_region
          %s3470 = smul.u32 2, %s36
          %p3471 = scmp.lt.s32.totalorder %s35, 1
          %s3472 = scalar_select %p3471, %s35, 1
          %p3473 = scmp.lt.s32.totalorder %s3470, 3
          %s3474 = scalar_select %p3473, %s3470, 3
          %s3475 = smul.addr %s3472, 4
          %s3476 = sadd.s32 %s3474, %s3475
          %s3477 = smul.addr %s3476, 4
          %s3478 = scalar_lea.vmem %s15, %s3477
        $region112: #{transformer_encoder.2} parent=107 // pred_fallthru
          _
      $region108: #{transformer_encoder.2} parent=5 // pred_fallthru
        _
    $region6: #{transformer_encoder.2} parent=1 // loop_footer
      %s28 = sadd.s32 1, %s24
    $region7: #{transformer_encoder.2} parent=1 // loop_footer_branch
      %23 = sbr.rel target = $region3
    $region8: #{transformer_encoder.2} parent=1 // loop_exit
      _
    %3479 = vsyncpa [#allocation6], 1
    %s3480 = scalar_lea.sflag [#allocation6], 1
    %3481 = vsyncpa %s3480, 1
    %3482 = vsyncpa [#allocation8], 1
    %3483 = vsyncpa [#allocation11], 1

// kernel: transformer_encoder.3
$region0: #{transformer_encoder.3}
  #allocation0 [shape = 'u32[]', space=smem, size = 0x4, offset = 0x4, fixed_abs, tag = 'smem constant byte address 0x4 - core index']
  #allocation1 [shape = 'u32[144,128]{1,0:T(1,128)}', space=vmem, size = 0x12000, scoped, tag = 'internal scratch']
  #allocation2 [shape = 'f32[32,32]{1,0:T(8,128)}', space=vmem, size = 0x4000, scoped, tag = 'scratch operand']
  #allocation3 [shape = 'bf16[4,32,8]{2,1,0:T(8,128)(2,1)}', space=vmem, size = 0x8000, scoped, tag = 'scratch operand']
  #allocation4 [shape = 'bf16[4,32,8]{2,1,0:T(8,128)(2,1)}', space=vmem, size = 0x8000, scoped, tag = 'scratch operand']
  %s0 = inlined_call_operand.vmem [shape: bf16[2,32,32], index: 0, kind: input, shape index: {}]
  %s1 = inlined_call_operand.vmem [shape: bf16[32,32], index: 1, kind: input, shape index: {}]
  %s2 = inlined_call_operand.vmem [shape: f32[1,32], index: 2, kind: input, shape index: {}]
  %s3 = inlined_call_operand.vmem [shape: bf16[32,32], index: 3, kind: input, shape index: {}]
  %s4 = inlined_call_operand.vmem [shape: f32[1,32], index: 4, kind: input, shape index: {}]
  %s5 = inlined_call_operand.vmem [shape: bf16[32,32], index: 5, kind: input, shape index: {}]
  %s6 = inlined_call_operand.vmem [shape: f32[1,32], index: 6, kind: input, shape index: {}]
  %s7 = inlined_call_operand.vmem [shape: bf16[32,32], index: 7, kind: input, shape index: {}]
  %s8 = inlined_call_operand.vmem [shape: f32[1,32], index: 8, kind: input, shape index: {}]
  %s9 = inlined_call_operand.vmem [shape: bf16[32,32], index: 9, kind: input, shape index: {}]
  %s10 = inlined_call_operand.vmem [shape: f32[1,32], index: 10, kind: input, shape index: {}]
  %s11 = inlined_call_operand.vmem [shape: bf16[32,32], index: 11, kind: input, shape index: {}]
  %s12 = inlined_call_operand.vmem [shape: f32[1,32], index: 12, kind: input, shape index: {}]
  %s13 = inlined_call_operand.vmem [shape: bf16[32,32], index: 13, kind: input, shape index: {}]
  %s14 = inlined_call_operand.vmem [shape: f32[1,32], index: 14, kind: input, shape index: {}]
  %s15 = inlined_call_operand.hbm [shape: f32[2,32,32], index: 15, kind: output, shape index: {}]
  %s16 = sld [smem:[#allocation0]]
  $region97: #{transformer_encoder.3} parent=0
    _
  %s18 = ssub.s32 1, %s16
  %s19 = scalar_select 0, %s18, %s16
  $region1: #{transformer_encoder.3} parent=0
    #allocation5 [shape = 'u8[16384]{0}', space=vmem, size = 0x4000, scoped, tag = 'output window, operand 0']
    #allocation6 [shape = 's32[2]{0}', space=sflag, size = 0x8, scoped, tag = 'scoped memory for transformer_encoder.3']
    %20 = vsyncpa [#allocation6], 0
    %s21 = scalar_lea.sflag [#allocation6], 1
    %22 = vsyncpa %s21, 0
    loop: start=0, step=1, limit=6
    $region2: #{transformer_encoder.3} parent=1 // loop_pre_header
      _
    $region3: #{transformer_encoder.3} parent=1 // loop_header
      %s24 = sphi 0, %s28
      %p25 = scmp.ge.s32.totalorder %s24, 6
      %s31 = sphi 0, %s43
      %s32 = sphi 0, %s39
      %s33 = sphi 0, %s31
      %s34 = sphi 0, %s32
      %s35 = sphi 0, %s33
      %s36 = sphi 0, %s34
      %s46 = sphi 0, %s48
      %s49 = sphi 0, %s46
      %s50 = sphi 0, %s49
      %s66 = sphi 0, %s50
      %s70 = sphi 0, %s70
      %s72 = sphi 0, %s70
      %s73 = sphi 0, %s72
      %s87 = sphi 0, %s73
      %s91 = sphi 0, %s91
      %s93 = sphi 0, %s91
      %s94 = sphi 0, %s93
      %s108 = sphi 0, %s94
      %s112 = sphi 0, %s112
      %s114 = sphi 0, %s112
      %s115 = sphi 0, %s114
      %s129 = sphi 0, %s115
      %s133 = sphi 0, %s133
      %s135 = sphi 0, %s133
      %s136 = sphi 0, %s135
      %s150 = sphi 0, %s136
      %s154 = sphi 0, %s154
      %s156 = sphi 0, %s154
      %s157 = sphi 0, %s156
      %s171 = sphi 0, %s157
      %s175 = sphi 0, %s175
      %s177 = sphi 0, %s175
      %s178 = sphi 0, %s177
      %s192 = sphi 0, %s178
      %s196 = sphi 0, %s196
      %s198 = sphi 0, %s196
      %s199 = sphi 0, %s198
      %s213 = sphi 0, %s199
      %s217 = sphi 0, %s217
      %s219 = sphi 0, %s217
      %s220 = sphi 0, %s219
      %s234 = sphi 0, %s220
      %s238 = sphi 0, %s238
      %s240 = sphi 0, %s238
      %s241 = sphi 0, %s240
      %s255 = sphi 0, %s241
      %s259 = sphi 0, %s259
      %s261 = sphi 0, %s259
      %s262 = sphi 0, %s261
      %s276 = sphi 0, %s262
      %s280 = sphi 0, %s280
      %s282 = sphi 0, %s280
      %s283 = sphi 0, %s282
      %s297 = sphi 0, %s283
      %s301 = sphi 0, %s301
      %s303 = sphi 0, %s301
      %s304 = sphi 0, %s303
      %s318 = sphi 0, %s304
      %s322 = sphi 0, %s322
      %s324 = sphi 0, %s322
      %s325 = sphi 0, %s324
      %s339 = sphi 0, %s325
      %s343 = sphi 0, %s343
      %s345 = sphi 0, %s343
      %s346 = sphi 0, %s345
      %s360 = sphi 0, %s346
      %s368 = sphi 0, %s370
      %s371 = sphi 0, %s368
      %s372 = sphi 0, %s371
      %s388 = sphi 0, %s372
    $region4: #{transformer_encoder.3} parent=1 // loop_header_branch
      %27 = sbr.rel (%p25) target = $region8
    $region5: #{transformer_encoder.3} parent=1 // loop_body
      %s29 = ssub.s32 %s24, 1
      %s30 = ssub.s32 %s24, 2
      %s37 = sadd.s32 1, %s32
      %p38 = scmp.ge.s32.totalorder %s37, 2
      %s39 = scalar_select %p38, 0, %s37
      %s40 = sadd.s32 1, %s31
      %s41 = scalar_select %p38, %s40, %s31
      %p42 = scmp.ge.s32.totalorder %s41, 2
      %s43 = scalar_select %p42, 0, %s41
      %s44 = ssub.s32 %s31, %s43
      %p45 = scmp.eq.s32.totalorder %s44, 0
      %s47 = sadd.s32 %s46, 1
      %s48 = scalar_select %p45, %s46, %s47
      %p51 = pneg %p45
      %p52 = scmp.eq.s32.totalorder %s24, 3
      %p53 = por %p51, %p52
      %p54 = scmp.ne.s32.totalorder %s46, %s49
      %p55 = scmp.eq.s32.totalorder %s24, 0
      %p56 = por %p54, %p55
      %p57 = scmp.ne.s32.totalorder %s46, %s49
      %p58 = scmp.eq.s32.totalorder %s29, 3
      %p59 = por %p57, %p58
      %p60 = scmp.ne.s32.totalorder %s49, %s50
      %p61 = scmp.eq.s32.totalorder %s29, 0
      %p62 = por %p60, %p61
      %p63 = scmp.ne.s32.totalorder %s49, %s50
      %p64 = scmp.eq.s32.totalorder %s30, 3
      %p65 = por %p63, %p64
      %p67 = scmp.ne.s32.totalorder %s50, %s66
      %p68 = scmp.eq.s32.totalorder %s30, 0
      %p69 = por %p67, %p68
      %s71 = sadd.s32 %s70, 1
      %p74 = scmp.eq.s32.totalorder %s24, 3
      %p75 = scmp.ne.s32.totalorder %s70, %s72
      %p76 = scmp.eq.s32.totalorder %s24, 0
      %p77 = por %p75, %p76
      %p78 = scmp.ne.s32.totalorder %s70, %s72
      %p79 = scmp.eq.s32.totalorder %s29, 3
      %p80 = por %p78, %p79
      %p81 = scmp.ne.s32.totalorder %s72, %s73
      %p82 = scmp.eq.s32.totalorder %s29, 0
      %p83 = por %p81, %p82
      %p84 = scmp.ne.s32.totalorder %s72, %s73
      %p85 = scmp.eq.s32.totalorder %s30, 3
      %p86 = por %p84, %p85
      %p88 = scmp.ne.s32.totalorder %s73, %s87
      %p89 = scmp.eq.s32.totalorder %s30, 0
      %p90 = por %p88, %p89
      %s92 = sadd.s32 %s91, 1
      %p95 = scmp.eq.s32.totalorder %s24, 3
      %p96 = scmp.ne.s32.totalorder %s91, %s93
      %p97 = scmp.eq.s32.totalorder %s24, 0
      %p98 = por %p96, %p97
      %p99 = scmp.ne.s32.totalorder %s91, %s93
      %p100 = scmp.eq.s32.totalorder %s29, 3
      %p101 = por %p99, %p100
      %p102 = scmp.ne.s32.totalorder %s93, %s94
      %p103 = scmp.eq.s32.totalorder %s29, 0
      %p104 = por %p102, %p103
      %p105 = scmp.ne.s32.totalorder %s93, %s94
      %p106 = scmp.eq.s32.totalorder %s30, 3
      %p107 = por %p105, %p106
      %p109 = scmp.ne.s32.totalorder %s94, %s108
      %p110 = scmp.eq.s32.totalorder %s30, 0
      %p111 = por %p109, %p110
      %s113 = sadd.s32 %s112, 1
      %p116 = scmp.eq.s32.totalorder %s24, 3
      %p117 = scmp.ne.s32.totalorder %s112, %s114
      %p118 = scmp.eq.s32.totalorder %s24, 0
      %p119 = por %p117, %p118
      %p120 = scmp.ne.s32.totalorder %s112, %s114
      %p121 = scmp.eq.s32.totalorder %s29, 3
      %p122 = por %p120, %p121
      %p123 = scmp.ne.s32.totalorder %s114, %s115
      %p124 = scmp.eq.s32.totalorder %s29, 0
      %p125 = por %p123, %p124
      %p126 = scmp.ne.s32.totalorder %s114, %s115
      %p127 = scmp.eq.s32.totalorder %s30, 3
      %p128 = por %p126, %p127
      %p130 = scmp.ne.s32.totalorder %s115, %s129
      %p131 = scmp.eq.s32.totalorder %s30, 0
      %p132 = por %p130, %p131
      %s134 = sadd.s32 %s133, 1
      %p137 = scmp.eq.s32.totalorder %s24, 3
      %p138 = scmp.ne.s32.totalorder %s133, %s135
      %p139 = scmp.eq.s32.totalorder %s24, 0
      %p140 = por %p138, %p139
      %p141 = scmp.ne.s32.totalorder %s133, %s135
      %p142 = scmp.eq.s32.totalorder %s29, 3
      %p143 = por %p141, %p142
      %p144 = scmp.ne.s32.totalorder %s135, %s136
      %p145 = scmp.eq.s32.totalorder %s29, 0
      %p146 = por %p144, %p145
      %p147 = scmp.ne.s32.totalorder %s135, %s136
      %p148 = scmp.eq.s32.totalorder %s30, 3
      %p149 = por %p147, %p148
      %p151 = scmp.ne.s32.totalorder %s136, %s150
      %p152 = scmp.eq.s32.totalorder %s30, 0
      %p153 = por %p151, %p152
      %s155 = sadd.s32 %s154, 1
      %p158 = scmp.eq.s32.totalorder %s24, 3
      %p159 = scmp.ne.s32.totalorder %s154, %s156
      %p160 = scmp.eq.s32.totalorder %s24, 0
      %p161 = por %p159, %p160
      %p162 = scmp.ne.s32.totalorder %s154, %s156
      %p163 = scmp.eq.s32.totalorder %s29, 3
      %p164 = por %p162, %p163
      %p165 = scmp.ne.s32.totalorder %s156, %s157
      %p166 = scmp.eq.s32.totalorder %s29, 0
      %p167 = por %p165, %p166
      %p168 = scmp.ne.s32.totalorder %s156, %s157
      %p169 = scmp.eq.s32.totalorder %s30, 3
      %p170 = por %p168, %p169
      %p172 = scmp.ne.s32.totalorder %s157, %s171
      %p173 = scmp.eq.s32.totalorder %s30, 0
      %p174 = por %p172, %p173
      %s176 = sadd.s32 %s175, 1
      %p179 = scmp.eq.s32.totalorder %s24, 3
      %p180 = scmp.ne.s32.totalorder %s175, %s177
      %p181 = scmp.eq.s32.totalorder %s24, 0
      %p182 = por %p180, %p181
      %p183 = scmp.ne.s32.totalorder %s175, %s177
      %p184 = scmp.eq.s32.totalorder %s29, 3
      %p185 = por %p183, %p184
      %p186 = scmp.ne.s32.totalorder %s177, %s178
      %p187 = scmp.eq.s32.totalorder %s29, 0
      %p188 = por %p186, %p187
      %p189 = scmp.ne.s32.totalorder %s177, %s178
      %p190 = scmp.eq.s32.totalorder %s30, 3
      %p191 = por %p189, %p190
      %p193 = scmp.ne.s32.totalorder %s178, %s192
      %p194 = scmp.eq.s32.totalorder %s30, 0
      %p195 = por %p193, %p194
      %s197 = sadd.s32 %s196, 1
      %p200 = scmp.eq.s32.totalorder %s24, 3
      %p201 = scmp.ne.s32.totalorder %s196, %s198
      %p202 = scmp.eq.s32.totalorder %s24, 0
      %p203 = por %p201, %p202
      %p204 = scmp.ne.s32.totalorder %s196, %s198
      %p205 = scmp.eq.s32.totalorder %s29, 3
      %p206 = por %p204, %p205
      %p207 = scmp.ne.s32.totalorder %s198, %s199
      %p208 = scmp.eq.s32.totalorder %s29, 0
      %p209 = por %p207, %p208
      %p210 = scmp.ne.s32.totalorder %s198, %s199
      %p211 = scmp.eq.s32.totalorder %s30, 3
      %p212 = por %p210, %p211
      %p214 = scmp.ne.s32.totalorder %s199, %s213
      %p215 = scmp.eq.s32.totalorder %s30, 0
      %p216 = por %p214, %p215
      %s218 = sadd.s32 %s217, 1
      %p221 = scmp.eq.s32.totalorder %s24, 3
      %p222 = scmp.ne.s32.totalorder %s217, %s219
      %p223 = scmp.eq.s32.totalorder %s24, 0
      %p224 = por %p222, %p223
      %p225 = scmp.ne.s32.totalorder %s217, %s219
      %p226 = scmp.eq.s32.totalorder %s29, 3
      %p227 = por %p225, %p226
      %p228 = scmp.ne.s32.totalorder %s219, %s220
      %p229 = scmp.eq.s32.totalorder %s29, 0
      %p230 = por %p228, %p229
      %p231 = scmp.ne.s32.totalorder %s219, %s220
      %p232 = scmp.eq.s32.totalorder %s30, 3
      %p233 = por %p231, %p232
      %p235 = scmp.ne.s32.totalorder %s220, %s234
      %p236 = scmp.eq.s32.totalorder %s30, 0
      %p237 = por %p235, %p236
      %s239 = sadd.s32 %s238, 1
      %p242 = scmp.eq.s32.totalorder %s24, 3
      %p243 = scmp.ne.s32.totalorder %s238, %s240
      %p244 = scmp.eq.s32.totalorder %s24, 0
      %p245 = por %p243, %p244
      %p246 = scmp.ne.s32.totalorder %s238, %s240
      %p247 = scmp.eq.s32.totalorder %s29, 3
      %p248 = por %p246, %p247
      %p249 = scmp.ne.s32.totalorder %s240, %s241
      %p250 = scmp.eq.s32.totalorder %s29, 0
      %p251 = por %p249, %p250
      %p252 = scmp.ne.s32.totalorder %s240, %s241
      %p253 = scmp.eq.s32.totalorder %s30, 3
      %p254 = por %p252, %p253
      %p256 = scmp.ne.s32.totalorder %s241, %s255
      %p257 = scmp.eq.s32.totalorder %s30, 0
      %p258 = por %p256, %p257
      %s260 = sadd.s32 %s259, 1
      %p263 = scmp.eq.s32.totalorder %s24, 3
      %p264 = scmp.ne.s32.totalorder %s259, %s261
      %p265 = scmp.eq.s32.totalorder %s24, 0
      %p266 = por %p264, %p265
      %p267 = scmp.ne.s32.totalorder %s259, %s261
      %p268 = scmp.eq.s32.totalorder %s29, 3
      %p269 = por %p267, %p268
      %p270 = scmp.ne.s32.totalorder %s261, %s262
      %p271 = scmp.eq.s32.totalorder %s29, 0
      %p272 = por %p270, %p271
      %p273 = scmp.ne.s32.totalorder %s261, %s262
      %p274 = scmp.eq.s32.totalorder %s30, 3
      %p275 = por %p273, %p274
      %p277 = scmp.ne.s32.totalorder %s262, %s276
      %p278 = scmp.eq.s32.totalorder %s30, 0
      %p279 = por %p277, %p278
      %s281 = sadd.s32 %s280, 1
      %p284 = scmp.eq.s32.totalorder %s24, 3
      %p285 = scmp.ne.s32.totalorder %s280, %s282
      %p286 = scmp.eq.s32.totalorder %s24, 0
      %p287 = por %p285, %p286
      %p288 = scmp.ne.s32.totalorder %s280, %s282
      %p289 = scmp.eq.s32.totalorder %s29, 3
      %p290 = por %p288, %p289
      %p291 = scmp.ne.s32.totalorder %s282, %s283
      %p292 = scmp.eq.s32.totalorder %s29, 0
      %p293 = por %p291, %p292
      %p294 = scmp.ne.s32.totalorder %s282, %s283
      %p295 = scmp.eq.s32.totalorder %s30, 3
      %p296 = por %p294, %p295
      %p298 = scmp.ne.s32.totalorder %s283, %s297
      %p299 = scmp.eq.s32.totalorder %s30, 0
      %p300 = por %p298, %p299
      %s302 = sadd.s32 %s301, 1
      %p305 = scmp.eq.s32.totalorder %s24, 3
      %p306 = scmp.ne.s32.totalorder %s301, %s303
      %p307 = scmp.eq.s32.totalorder %s24, 0
      %p308 = por %p306, %p307
      %p309 = scmp.ne.s32.totalorder %s301, %s303
      %p310 = scmp.eq.s32.totalorder %s29, 3
      %p311 = por %p309, %p310
      %p312 = scmp.ne.s32.totalorder %s303, %s304
      %p313 = scmp.eq.s32.totalorder %s29, 0
      %p314 = por %p312, %p313
      %p315 = scmp.ne.s32.totalorder %s303, %s304
      %p316 = scmp.eq.s32.totalorder %s30, 3
      %p317 = por %p315, %p316
      %p319 = scmp.ne.s32.totalorder %s304, %s318
      %p320 = scmp.eq.s32.totalorder %s30, 0
      %p321 = por %p319, %p320
      %s323 = sadd.s32 %s322, 1
      %p326 = scmp.eq.s32.totalorder %s24, 3
      %p327 = scmp.ne.s32.totalorder %s322, %s324
      %p328 = scmp.eq.s32.totalorder %s24, 0
      %p329 = por %p327, %p328
      %p330 = scmp.ne.s32.totalorder %s322, %s324
      %p331 = scmp.eq.s32.totalorder %s29, 3
      %p332 = por %p330, %p331
      %p333 = scmp.ne.s32.totalorder %s324, %s325
      %p334 = scmp.eq.s32.totalorder %s29, 0
      %p335 = por %p333, %p334
      %p336 = scmp.ne.s32.totalorder %s324, %s325
      %p337 = scmp.eq.s32.totalorder %s30, 3
      %p338 = por %p336, %p337
      %p340 = scmp.ne.s32.totalorder %s325, %s339
      %p341 = scmp.eq.s32.totalorder %s30, 0
      %p342 = por %p340, %p341
      %s344 = sadd.s32 %s343, 1
      %p347 = scmp.eq.s32.totalorder %s24, 3
      %p348 = scmp.ne.s32.totalorder %s343, %s345
      %p349 = scmp.eq.s32.totalorder %s24, 0
      %p350 = por %p348, %p349
      %p351 = scmp.ne.s32.totalorder %s343, %s345
      %p352 = scmp.eq.s32.totalorder %s29, 3
      %p353 = por %p351, %p352
      %p354 = scmp.ne.s32.totalorder %s345, %s346
      %p355 = scmp.eq.s32.totalorder %s29, 0
      %p356 = por %p354, %p355
      %p357 = scmp.ne.s32.totalorder %s345, %s346
      %p358 = scmp.eq.s32.totalorder %s30, 3
      %p359 = por %p357, %p358
      %p361 = scmp.ne.s32.totalorder %s346, %s360
      %p362 = scmp.eq.s32.totalorder %s30, 0
      %p363 = por %p361, %p362
      %s364 = ssub.s32 %s31, %s43
      %s365 = ssub.s32 %s32, %s39
      %s366 = sor.u32 %s364, %s365
      %p367 = scmp.eq.s32.totalorder %s366, 0
      %s369 = sadd.s32 %s368, 1
      %s370 = scalar_select %p367, %s368, %s369
      %p373 = pneg %p367
      %p374 = scmp.eq.s32.totalorder %s24, 3
      %p375 = por %p373, %p374
      %p376 = scmp.ne.s32.totalorder %s368, %s371
      %p377 = scmp.eq.s32.totalorder %s24, 0
      %p378 = por %p376, %p377
      %p379 = scmp.ne.s32.totalorder %s368, %s371
      %p380 = scmp.eq.s32.totalorder %s29, 3
      %p381 = por %p379, %p380
      %p382 = scmp.ne.s32.totalorder %s371, %s372
      %p383 = scmp.eq.s32.totalorder %s29, 0
      %p384 = por %p382, %p383
      %p385 = scmp.ne.s32.totalorder %s371, %s372
      %p386 = scmp.eq.s32.totalorder %s30, 3
      %p387 = por %p385, %p386
      %p389 = scmp.ne.s32.totalorder %s372, %s388
      %p390 = scmp.eq.s32.totalorder %s30, 0
      %p391 = por %p389, %p390
      %p392 = scmp.le.s32.totalorder 1, %s24
      %p393 = scmp.lt.s32.totalorder %s24, 5
      %p394 = pnand %p392, %p393
      %p395 = pneg %p394
      // Predicated region
      $region9: #{transformer_encoder.3} parent=5 // pred_check
        _
      $region10: #{transformer_encoder.3} parent=5 // pred_check_branch
        %397 = sbr.rel (%p394) target = $region12
      $region11: #{transformer_encoder.3} parent=5 // pred_region
        %s398 = ssub.s32 %s24, 1
        // Predicated region
        $region13: #{transformer_encoder.3} parent=11 // pred_check
          %p399 = pneg %p83
        $region14: #{transformer_encoder.3} parent=11 // pred_check_branch
          %401 = sbr.rel (%p399) target = $region16
        $region15: #{transformer_encoder.3} parent=11 // pred_region
          _
        $region16: #{transformer_encoder.3} parent=11 // pred_fallthru
          _
        // Predicated region
        $region17: #{transformer_encoder.3} parent=11 // pred_check
          %p402 = pneg %p104
        $region18: #{transformer_encoder.3} parent=11 // pred_check_branch
          %404 = sbr.rel (%p402) target = $region20
        $region19: #{transformer_encoder.3} parent=11 // pred_region
          _
        $region20: #{transformer_encoder.3} parent=11 // pred_fallthru
          _
        // Predicated region
        $region21: #{transformer_encoder.3} parent=11 // pred_check
          %p405 = pneg %p125
        $region22: #{transformer_encoder.3} parent=11 // pred_check_branch
          %407 = sbr.rel (%p405) target = $region24
        $region23: #{transformer_encoder.3} parent=11 // pred_region
          _
        $region24: #{transformer_encoder.3} parent=11 // pred_fallthru
          _
        // Predicated region
        $region25: #{transformer_encoder.3} parent=11 // pred_check
          %p408 = pneg %p146
        $region26: #{transformer_encoder.3} parent=11 // pred_check_branch
          %410 = sbr.rel (%p408) target = $region28
        $region27: #{transformer_encoder.3} parent=11 // pred_region
          _
        $region28: #{transformer_encoder.3} parent=11 // pred_fallthru
          _
        // Predicated region
        $region29: #{transformer_encoder.3} parent=11 // pred_check
          %p411 = pneg %p167
        $region30: #{transformer_encoder.3} parent=11 // pred_check_branch
          %413 = sbr.rel (%p411) target = $region32
        $region31: #{transformer_encoder.3} parent=11 // pred_region
          _
        $region32: #{transformer_encoder.3} parent=11 // pred_fallthru
          _
        // Predicated region
        $region33: #{transformer_encoder.3} parent=11 // pred_check
          %p414 = pneg %p188
        $region34: #{transformer_encoder.3} parent=11 // pred_check_branch
          %416 = sbr.rel (%p414) target = $region36
        $region35: #{transformer_encoder.3} parent=11 // pred_region
          _
        $region36: #{transformer_encoder.3} parent=11 // pred_fallthru
          _
        // Predicated region
        $region37: #{transformer_encoder.3} parent=11 // pred_check
          %p417 = pneg %p209
        $region38: #{transformer_encoder.3} parent=11 // pred_check_branch
          %419 = sbr.rel (%p417) target = $region40
        $region39: #{transformer_encoder.3} parent=11 // pred_region
          _
        $region40: #{transformer_encoder.3} parent=11 // pred_fallthru
          _
        // Predicated region
        $region41: #{transformer_encoder.3} parent=11 // pred_check
          %p420 = pneg %p230
        $region42: #{transformer_encoder.3} parent=11 // pred_check_branch
          %422 = sbr.rel (%p420) target = $region44
        $region43: #{transformer_encoder.3} parent=11 // pred_region
          _
        $region44: #{transformer_encoder.3} parent=11 // pred_fallthru
          _
        // Predicated region
        $region45: #{transformer_encoder.3} parent=11 // pred_check
          %p423 = pneg %p251
        $region46: #{transformer_encoder.3} parent=11 // pred_check_branch
          %425 = sbr.rel (%p423) target = $region48
        $region47: #{transformer_encoder.3} parent=11 // pred_region
          _
        $region48: #{transformer_encoder.3} parent=11 // pred_fallthru
          _
        // Predicated region
        $region49: #{transformer_encoder.3} parent=11 // pred_check
          %p426 = pneg %p272
        $region50: #{transformer_encoder.3} parent=11 // pred_check_branch
          %428 = sbr.rel (%p426) target = $region52
        $region51: #{transformer_encoder.3} parent=11 // pred_region
          _
        $region52: #{transformer_encoder.3} parent=11 // pred_fallthru
          _
        // Predicated region
        $region53: #{transformer_encoder.3} parent=11 // pred_check
          %p429 = pneg %p293
        $region54: #{transformer_encoder.3} parent=11 // pred_check_branch
          %431 = sbr.rel (%p429) target = $region56
        $region55: #{transformer_encoder.3} parent=11 // pred_region
          _
        $region56: #{transformer_encoder.3} parent=11 // pred_fallthru
          _
        // Predicated region
        $region57: #{transformer_encoder.3} parent=11 // pred_check
          %p432 = pneg %p314
        $region58: #{transformer_encoder.3} parent=11 // pred_check_branch
          %434 = sbr.rel (%p432) target = $region60
        $region59: #{transformer_encoder.3} parent=11 // pred_region
          _
        $region60: #{transformer_encoder.3} parent=11 // pred_fallthru
          _
        // Predicated region
        $region61: #{transformer_encoder.3} parent=11 // pred_check
          %p435 = pneg %p335
        $region62: #{transformer_encoder.3} parent=11 // pred_check_branch
          %437 = sbr.rel (%p435) target = $region64
        $region63: #{transformer_encoder.3} parent=11 // pred_region
          _
        $region64: #{transformer_encoder.3} parent=11 // pred_fallthru
          _
        // Predicated region
        $region65: #{transformer_encoder.3} parent=11 // pred_check
          %p438 = pneg %p356
        $region66: #{transformer_encoder.3} parent=11 // pred_check_branch
          %440 = sbr.rel (%p438) target = $region68
        $region67: #{transformer_encoder.3} parent=11 // pred_region
          _
        $region68: #{transformer_encoder.3} parent=11 // pred_fallthru
          _
      $region12: #{transformer_encoder.3} parent=5 // pred_fallthru
        _
      %p441 = scmp.lt.s32.totalorder %s24, 4
      // Predicated region
      $region69: #{transformer_encoder.3} parent=5 // pred_check
        %p442 = pneg %p441
      $region70: #{transformer_encoder.3} parent=5 // pred_check_branch
        %444 = sbr.rel (%p442) target = $region72
      $region71: #{transformer_encoder.3} parent=5 // pred_region
        // Predicated region
        $region73: #{transformer_encoder.3} parent=71 // pred_check
          %p445 = pneg %p56
        $region74: #{transformer_encoder.3} parent=71 // pred_check_branch
          %447 = sbr.rel (%p445) target = $region76
        $region75: #{transformer_encoder.3} parent=71 // pred_region
          %p448 = scmp.lt.s32.totalorder %s31, 1
          %s449 = scalar_select %p448, %s31, 1
          %s450 = smul.addr %s449, 4
          %s451 = smul.addr %s450, 4
          %s452 = scalar_lea.vmem %s0, %s451
        $region76: #{transformer_encoder.3} parent=71 // pred_fallthru
          _
      $region72: #{transformer_encoder.3} parent=5 // pred_fallthru
        _
      %p453 = scmp.le.s32.totalorder 1, %s24
      %p454 = scmp.lt.s32.totalorder %s24, 5
      %p455 = pnand %p453, %p454
      %p456 = pneg %p455
      // Predicated region
      $region77: #{transformer_encoder.3} parent=5 // pred_check
        _
      $region78: #{transformer_encoder.3} parent=5 // pred_check_branch
        %458 = sbr.rel (%p455) target = $region80
      $region79: #{transformer_encoder.3} parent=5 // pred_region
        %s459 = ssub.s32 %s24, 1
        %p460 = scmp.lt.s32.totalorder %s33, 1
        %s461 = scalar_select %p460, %s33, 1
        %s462 = smul.addr %s461, 4
        %s463 = smul.addr %s462, 4
        %s464 = scalar_lea.vmem %s0, %s463
        %p465 = pneg %p62
        %p466 = pneg %p59
        %p467 = pneg %p83
        %p468 = pneg %p80
        %p469 = pneg %p104
        %p470 = pneg %p101
        %p471 = pneg %p125
        %p472 = pneg %p122
        %p473 = pneg %p146
        %p474 = pneg %p143
        %p475 = pneg %p167
        %p476 = pneg %p164
        %p477 = pneg %p188
        %p478 = pneg %p185
        %p479 = pneg %p209
        %p480 = pneg %p206
        %p481 = pneg %p230
        %p482 = pneg %p227
        %p483 = pneg %p251
        %p484 = pneg %p248
        %p485 = pneg %p272
        %p486 = pneg %p269
        %p487 = pneg %p293
        %p488 = pneg %p290
        %p489 = pneg %p314
        %p490 = pneg %p311
        %p491 = pneg %p335
        %p492 = pneg %p332
        %p493 = pneg %p356
        %p494 = pneg %p353
        %p495 = pneg %p384
        %p496 = pneg %p381
        %s497 = sand.u32 %s371, 1
        %s498 = scalar_lea.sflag [#allocation6], %s497
        %s499 = sand.u32 %s371, 1
        %s500 = smul.addr %s499, 16
        %s501 = scalar_lea.vmem [#allocation5], %s500
        %p502 = scmp.lt.s32.totalorder %s33, 1
        %s503 = scalar_select %p502, %s33, 1
        %s504 = smul.addr %s503, 4
        %s505 = smul.addr %s504, 4
        %s506 = scalar_lea.vmem %s0, %s505
        %s507 = smul.u32 2, %s34
        %p509 = scmp.eq.s32.totalorder %s34, 0
        // Predicated region
        $region81: #{transformer_encoder.3} parent=79 // pred_check
          %p510 = pneg %p509
        $region82: #{transformer_encoder.3} parent=79 // pred_check_branch
          %512 = sbr.rel (%p510) target = $region84
        $region83: #{transformer_encoder.3} parent=79 // pred_region
          %v513 = vld [vmem:[%s506] sm:$0xf]
          %v514 = vld [vmem:[%s506 + $0x4] sm:$0xf]
          %v515 = vld [vmem:[%s506 + $0x8] sm:$0xf]
          %v516 = vld [vmem:[%s506 + $0xc] sm:$0xf]
          %v517 = vld [vmem:[%s1] sm:$0xf]
          %v518 = vld [vmem:[%s1 + $0x4] sm:$0xf]
          %v519 = vld [vmem:[%s1 + $0x8] sm:$0xf]
          %v520 = vld [vmem:[%s1 + $0xc] sm:$0xf]
          %v521 = vld [vmem:[%s2] sm:$0x1]
          %v523 = vlaneseq
          %v524 = vshrl.u32 %v523, 7
          %v525 = vsub.s32 0, %v524
          %v526 = vrot.slane %v521, %v525
          %v532 = vunpack.c.l.b16 %v513
          %v533 = vunpack.c.l.b16 %v514
          %v534 = vunpack.c.l.b16 %v515
          %v535 = vunpack.c.l.b16 %v516
          %v536 = vpack.c.b16 %v533, %v532
          %v537 = vpack.c.b16 %v535, %v534
          %v542 = vunpack.c.l.b16 %v517
          %v543 = vunpack.c.l.b16 %v518
          %v544 = vunpack.c.l.b16 %v519
          %v545 = vunpack.c.l.b16 %v520
          %v546 = vpack.c.b16 %v543, %v542
          %v547 = vpack.c.b16 %v545, %v544
          %vm550 = vcmask 261120
          %v552 = vsel %vm550, %v536, 0
          %v555 = vsel %vm550, %v537, 0
          %557 = vmatprep.subr.bf16.mxu0 0
          %558 = vmatpush1.bf16.msra.mxu0 0
          %559 = vmatprep.subr.bf16.mxu0 0
          %560 = vmatpush1.bf16.msra.mxu0 0
          %561 = vmatprep.subr.bf16.mxu0 0
          %562 = vmatpush1.bf16.msra.mxu0 0
          %563 = vmatprep.subr.bf16.mxu0 0
          %564 = vmatpush1.bf16.msra.mxu0 0
          %565 = vmatprep.subr.bf16.mxu0 0
          %566 = vmatpush1.bf16.msra.mxu0 0
          %567 = vmatprep.subr.bf16.mxu0 0
          %568 = vmatpush1.bf16.msra.mxu0 0
          %569 = vmatprep.subr.bf16.mxu0 0
          %570 = vmatpush1.bf16.msra.mxu0 %v547
          %571 = vmatprep.subr.bf16.mxu0 0
          %572 = vmatpush1.bf16.msra.mxu0 %v546
          %573 = vmatprep.subr.bf16.mxu0 0
          %574 = vmatpush2.bf16.msra.mxu0 0
          %575 = vmatprep.subr.bf16.mxu0 0
          %576 = vmatpush2.bf16.msra.mxu0 0
          %577 = vmatprep.subr.bf16.mxu0 0
          %578 = vmatpush2.bf16.msra.mxu0 0
          %579 = vmatprep.subr.bf16.mxu0 0
          %580 = vmatpush2.bf16.msra.mxu0 0
          %581 = vmatprep.subr.bf16.mxu0 0
          %582 = vmatpush2.bf16.msra.mxu0 0
          %583 = vmatprep.subr.bf16.mxu0 0
          %584 = vmatpush2.bf16.msra.mxu0 0
          %585 = vmatprep.subr.bf16.mxu0 0
          %586 = vmatpush2.bf16.msra.mxu0 0
          %587 = vmatprep.subr.bf16.mxu0 0
          %588 = vmatpush2.bf16.msra.mxu0 0
          %589 = vmatprep.mubr.bf16.mxu0 0
          %590 = vmatmul.mubr.bf16.gmra.mxu0 %v552
          %v591 = vpop.f32.mrf.mxu0
          %v592 = vadd.f32 %v526, %v591
          %v593 = vpop.f32.mrf.mxu0
          %v594 = vpop.f32.mrf.mxu0
          %v595 = vadd.f32 %v526, %v594
          %v596 = vpop.f32.mrf.mxu0
          %597 = vmatprep.mubr.bf16.mxu0 0
          %598 = vmatmul.mubr.bf16.gmra.mxu0 %v555
          %v599 = vpop.f32.mrf.mxu0
          %v600 = vadd.f32 %v526, %v599
          %v601 = vpop.f32.mrf.mxu0
          %v602 = vpop.f32.mrf.mxu0
          %v603 = vadd.f32 %v526, %v602
          %v604 = vpop.f32.mrf.mxu0
          %605 = vdwg.mxu0
          %606 = vst.msk [vmem:[#allocation2] sm:$0xff] %vm550, %v592
          %607 = vst.msk [vmem:[#allocation2 + $0x8] sm:$0xff] %vm550, %v595
          %608 = vst.msk [vmem:[#allocation2 + $0x10] sm:$0xff] %vm550, %v600
          %609 = vst.msk [vmem:[#allocation2 + $0x18] sm:$0xff] %vm550, %v603
          %v610 = vpack.c.bf16 %v595, %v592
          %v611 = vpack.c.bf16 %v603, %v600
          %v612 = vld [vmem:[%s5] sm:$0xf]
          %v613 = vld [vmem:[%s5 + $0x4] sm:$0xf]
          %v614 = vld [vmem:[%s5 + $0x8] sm:$0xf]
          %v615 = vld [vmem:[%s5 + $0xc] sm:$0xf]
          %v616 = vld [vmem:[%s6] sm:$0x1]
          %v618 = vlaneseq
          %v619 = vshrl.u32 %v618, 7
          %v620 = vsub.s32 0, %v619
          %v621 = vrot.slane %v616, %v620
          %v627 = vunpack.c.l.b16 %v612
          %v628 = vunpack.c.l.b16 %v613
          %v629 = vunpack.c.l.b16 %v614
          %v630 = vunpack.c.l.b16 %v615
          %v631 = vpack.c.b16 %v628, %v627
          %v632 = vpack.c.b16 %v630, %v629
          %v636 = vsel %vm550, %v610, 0
          %v639 = vsel %vm550, %v611, 0
          %641 = vmatprep.subr.bf16.mxu0 0
          %642 = vmatpush1.bf16.msra.mxu0 0
          %643 = vmatprep.subr.bf16.mxu0 0
          %644 = vmatpush1.bf16.msra.mxu0 0
          %645 = vmatprep.subr.bf16.mxu0 0
          %646 = vmatpush1.bf16.msra.mxu0 0
          %647 = vmatprep.subr.bf16.mxu0 0
          %648 = vmatpush1.bf16.msra.mxu0 0
          %649 = vmatprep.subr.bf16.mxu0 0
          %650 = vmatpush1.bf16.msra.mxu0 0
          %651 = vmatprep.subr.bf16.mxu0 0
          %652 = vmatpush1.bf16.msra.mxu0 0
          %653 = vmatprep.subr.bf16.mxu0 0
          %654 = vmatpush1.bf16.msra.mxu0 %v632
          %655 = vmatprep.subr.bf16.mxu0 0
          %656 = vmatpush1.bf16.msra.mxu0 %v631
          %657 = vmatprep.subr.bf16.mxu0 0
          %658 = vmatpush2.bf16.msra.mxu0 0
          %659 = vmatprep.subr.bf16.mxu0 0
          %660 = vmatpush2.bf16.msra.mxu0 0
          %661 = vmatprep.subr.bf16.mxu0 0
          %662 = vmatpush2.bf16.msra.mxu0 0
          %663 = vmatprep.subr.bf16.mxu0 0
          %664 = vmatpush2.bf16.msra.mxu0 0
          %665 = vmatprep.subr.bf16.mxu0 0
          %666 = vmatpush2.bf16.msra.mxu0 0
          %667 = vmatprep.subr.bf16.mxu0 0
          %668 = vmatpush2.bf16.msra.mxu0 0
          %669 = vmatprep.subr.bf16.mxu0 0
          %670 = vmatpush2.bf16.msra.mxu0 0
          %671 = vmatprep.subr.bf16.mxu0 0
          %672 = vmatpush2.bf16.msra.mxu0 0
          %673 = vmatprep.mubr.bf16.mxu0 0
          %674 = vmatmul.mubr.bf16.gmra.mxu0 %v636
          %v675 = vpop.f32.mrf.mxu0
          %v676 = vadd.f32 %v621, %v675
          %v677 = vpop.f32.mrf.mxu0
          %v678 = vpop.f32.mrf.mxu0
          %v679 = vadd.f32 %v621, %v678
          %v680 = vpop.f32.mrf.mxu0
          %681 = vmatprep.mubr.bf16.mxu0 0
          %682 = vmatmul.mubr.bf16.gmra.mxu0 %v639
          %v683 = vpop.f32.mrf.mxu0
          %v684 = vadd.f32 %v621, %v683
          %v685 = vpop.f32.mrf.mxu0
          %v686 = vpop.f32.mrf.mxu0
          %v687 = vadd.f32 %v621, %v686
          %v688 = vpop.f32.mrf.mxu0
          %689 = vdwg.mxu0
          %v690 = vld [vmem:[%s7] sm:$0xf]
          %v691 = vld [vmem:[%s7 + $0x4] sm:$0xf]
          %v692 = vld [vmem:[%s7 + $0x8] sm:$0xf]
          %v693 = vld [vmem:[%s7 + $0xc] sm:$0xf]
          %v694 = vld [vmem:[%s8] sm:$0x1]
          %v696 = vlaneseq
          %v697 = vshrl.u32 %v696, 7
          %v698 = vsub.s32 0, %v697
          %v699 = vrot.slane %v694, %v698
          %v705 = vunpack.c.l.b16 %v690
          %v706 = vunpack.c.l.b16 %v691
          %v707 = vunpack.c.l.b16 %v692
          %v708 = vunpack.c.l.b16 %v693
          %v709 = vpack.c.b16 %v706, %v705
          %v710 = vpack.c.b16 %v708, %v707
          %713 = vmatprep.subr.bf16.mxu0 0
          %714 = vmatpush1.bf16.msra.mxu0 0
          %715 = vmatprep.subr.bf16.mxu0 0
          %716 = vmatpush1.bf16.msra.mxu0 0
          %717 = vmatprep.subr.bf16.mxu0 0
          %718 = vmatpush1.bf16.msra.mxu0 0
          %719 = vmatprep.subr.bf16.mxu0 0
          %720 = vmatpush1.bf16.msra.mxu0 0
          %721 = vmatprep.subr.bf16.mxu0 0
          %722 = vmatpush1.bf16.msra.mxu0 0
          %723 = vmatprep.subr.bf16.mxu0 0
          %724 = vmatpush1.bf16.msra.mxu0 0
          %725 = vmatprep.subr.bf16.mxu0 0
          %726 = vmatpush1.bf16.msra.mxu0 %v710
          %727 = vmatprep.subr.bf16.mxu0 0
          %728 = vmatpush1.bf16.msra.mxu0 %v709
          %729 = vmatprep.subr.bf16.mxu0 0
          %730 = vmatpush2.bf16.msra.mxu0 0
          %731 = vmatprep.subr.bf16.mxu0 0
          %732 = vmatpush2.bf16.msra.mxu0 0
          %733 = vmatprep.subr.bf16.mxu0 0
          %734 = vmatpush2.bf16.msra.mxu0 0
          %735 = vmatprep.subr.bf16.mxu0 0
          %736 = vmatpush2.bf16.msra.mxu0 0
          %737 = vmatprep.subr.bf16.mxu0 0
          %738 = vmatpush2.bf16.msra.mxu0 0
          %739 = vmatprep.subr.bf16.mxu0 0
          %740 = vmatpush2.bf16.msra.mxu0 0
          %741 = vmatprep.subr.bf16.mxu0 0
          %742 = vmatpush2.bf16.msra.mxu0 0
          %743 = vmatprep.subr.bf16.mxu0 0
          %744 = vmatpush2.bf16.msra.mxu0 0
          %745 = vmatprep.mubr.bf16.mxu0 0
          %746 = vmatmul.mubr.bf16.gmra.mxu0 %v636
          %v747 = vpop.f32.mrf.mxu0
          %v748 = vadd.f32 %v699, %v747
          %v749 = vpop.f32.mrf.mxu0
          %v750 = vpop.f32.mrf.mxu0
          %v751 = vadd.f32 %v699, %v750
          %v752 = vpop.f32.mrf.mxu0
          %753 = vmatprep.mubr.bf16.mxu0 0
          %754 = vmatmul.mubr.bf16.gmra.mxu0 %v639
          %v755 = vpop.f32.mrf.mxu0
          %v756 = vadd.f32 %v699, %v755
          %v757 = vpop.f32.mrf.mxu0
          %v758 = vpop.f32.mrf.mxu0
          %v759 = vadd.f32 %v699, %v758
          %v760 = vpop.f32.mrf.mxu0
          %761 = vdwg.mxu0
          %v762 = vpack.c.bf16 %v679, %v676
          %v763 = vpack.c.bf16 %v687, %v684
          %766 = vrot.lane.b32.xlu0 %v762, 120
          %v767 = vpop.permute.xlu0 %766
          %768 = vrot.lane.b32.xlu0 %v763, 120
          %v769 = vpop.permute.xlu0 %768
          %770 = vrot.lane.b32.xlu0 %v762, 112
          %v771 = vpop.permute.xlu0 %770
          %772 = vrot.lane.b32.xlu0 %v763, 112
          %v773 = vpop.permute.xlu0 %772
          %774 = vrot.lane.b32.xlu0 %v762, 104
          %v775 = vpop.permute.xlu0 %774
          %776 = vrot.lane.b32.xlu0 %v763, 104
          %v777 = vpop.permute.xlu0 %776
          %v780 = vpack.i.b16 %v767, %v762
          %v782 = vshrl.u32 %v762, 16
          %v783 = vshrl.u32 %v767, 16
          %v784 = vpack.i.b16 %v783, %v782
          %v788 = vpack.i.b16 %v775, %v771
          %v790 = vshrl.u32 %v771, 16
          %v791 = vshrl.u32 %v775, 16
          %v792 = vpack.i.b16 %v791, %v790
          %v795 = vpack.i.b16 0, 0
          %v797 = vshrl.u32 0, 16
          %v798 = vpack.i.b16 %v797, %v797
          %v802 = vpack.i.b16 %v769, %v763
          %v804 = vshrl.u32 %v763, 16
          %v805 = vshrl.u32 %v769, 16
          %v806 = vpack.i.b16 %v805, %v804
          %v810 = vpack.i.b16 %v777, %v773
          %v812 = vshrl.u32 %v773, 16
          %v813 = vshrl.u32 %v777, 16
          %v814 = vpack.i.b16 %v813, %v812
          %v816 = vcombine.high %v780, %v795
          %v818 = vunpack.c.l.s4 1983009808
          %v819 = vunpack.c.0.s8 %v818
          %v820 = vlaneseq
          %v821 = vshrl.u32 %v820, 7
          %v822 = vsub.s32 %v819, %v821
          %v823 = vrot.slane %v780, %v822
          %v825 = vunpack.c.l.s4 1983009808
          %v826 = vunpack.c.0.s8 %v825
          %v827 = vlaneseq
          %v828 = vshrl.u32 %v827, 7
          %v829 = vsub.s32 %v826, %v828
          %v830 = vrot.slane %v816, %v829
          %v831 = vcombine.high %v788, %v795
          %v833 = vunpack.c.l.s4 1983009808
          %v834 = vunpack.c.0.s8 %v833
          %v835 = vlaneseq
          %v836 = vshrl.u32 %v835, 7
          %v837 = vsub.s32 %v834, %v836
          %v838 = vrot.slane %v788, %v837
          %v840 = vunpack.c.l.s4 1983009808
          %v841 = vunpack.c.0.s8 %v840
          %v842 = vlaneseq
          %v843 = vshrl.u32 %v842, 7
          %v844 = vsub.s32 %v841, %v843
          %v845 = vrot.slane %v831, %v844
          %v846 = vcombine.low %v823, %v838
          %v847 = vcombine.high %v823, %v838
          %v849 = vunpack.c.l.s4 1934713408
          %v850 = vunpack.c.0.s8 %v849
          %v851 = vlaneseq
          %v852 = vshrl.u32 %v851, 7
          %v853 = vsub.s32 %v850, %v852
          %v854 = vrot.slane %v846, %v853
          %v856 = vunpack.c.l.s4 1934713408
          %v857 = vunpack.c.0.s8 %v856
          %v858 = vlaneseq
          %v859 = vshrl.u32 %v858, 7
          %v860 = vsub.s32 %v857, %v859
          %v861 = vrot.slane %v847, %v860
          %v862 = vcombine.low %v830, %v845
          %v863 = vcombine.high %v830, %v845
          %v865 = vunpack.c.l.s4 1934713408
          %v866 = vunpack.c.0.s8 %v865
          %v867 = vlaneseq
          %v868 = vshrl.u32 %v867, 7
          %v869 = vsub.s32 %v866, %v868
          %v870 = vrot.slane %v862, %v869
          %v872 = vunpack.c.l.s4 1934713408
          %v873 = vunpack.c.0.s8 %v872
          %v874 = vlaneseq
          %v875 = vshrl.u32 %v874, 7
          %v876 = vsub.s32 %v873, %v875
          %v877 = vrot.slane %v863, %v876
          %v878 = vcombine.high %v854, 0
          %v879 = vcombine.high %v861, 0
          %v880 = vcombine.high %v870, 0
          %v881 = vcombine.high %v877, 0
          %v882 = vcombine.high %v784, %v798
          %v884 = vunpack.c.l.s4 1983009808
          %v885 = vunpack.c.0.s8 %v884
          %v886 = vlaneseq
          %v887 = vshrl.u32 %v886, 7
          %v888 = vsub.s32 %v885, %v887
          %v889 = vrot.slane %v784, %v888
          %v891 = vunpack.c.l.s4 1983009808
          %v892 = vunpack.c.0.s8 %v891
          %v893 = vlaneseq
          %v894 = vshrl.u32 %v893, 7
          %v895 = vsub.s32 %v892, %v894
          %v896 = vrot.slane %v882, %v895
          %v897 = vcombine.high %v792, %v798
          %v899 = vunpack.c.l.s4 1983009808
          %v900 = vunpack.c.0.s8 %v899
          %v901 = vlaneseq
          %v902 = vshrl.u32 %v901, 7
          %v903 = vsub.s32 %v900, %v902
          %v904 = vrot.slane %v792, %v903
          %v906 = vunpack.c.l.s4 1983009808
          %v907 = vunpack.c.0.s8 %v906
          %v908 = vlaneseq
          %v909 = vshrl.u32 %v908, 7
          %v910 = vsub.s32 %v907, %v909
          %v911 = vrot.slane %v897, %v910
          %v912 = vcombine.low %v889, %v904
          %v913 = vcombine.high %v889, %v904
          %v915 = vunpack.c.l.s4 1934713408
          %v916 = vunpack.c.0.s8 %v915
          %v917 = vlaneseq
          %v918 = vshrl.u32 %v917, 7
          %v919 = vsub.s32 %v916, %v918
          %v920 = vrot.slane %v912, %v919
          %v922 = vunpack.c.l.s4 1934713408
          %v923 = vunpack.c.0.s8 %v922
          %v924 = vlaneseq
          %v925 = vshrl.u32 %v924, 7
          %v926 = vsub.s32 %v923, %v925
          %v927 = vrot.slane %v913, %v926
          %v928 = vcombine.low %v896, %v911
          %v929 = vcombine.high %v896, %v911
          %v931 = vunpack.c.l.s4 1934713408
          %v932 = vunpack.c.0.s8 %v931
          %v933 = vlaneseq
          %v934 = vshrl.u32 %v933, 7
          %v935 = vsub.s32 %v932, %v934
          %v936 = vrot.slane %v928, %v935
          %v938 = vunpack.c.l.s4 1934713408
          %v939 = vunpack.c.0.s8 %v938
          %v940 = vlaneseq
          %v941 = vshrl.u32 %v940, 7
          %v942 = vsub.s32 %v939, %v941
          %v943 = vrot.slane %v929, %v942
          %v944 = vcombine.high %v920, 0
          %v945 = vcombine.high %v927, 0
          %v946 = vcombine.high %v936, 0
          %v947 = vcombine.high %v943, 0
          %v948 = vcombine.high %v802, %v795
          %v950 = vunpack.c.l.s4 1983009808
          %v951 = vunpack.c.0.s8 %v950
          %v952 = vlaneseq
          %v953 = vshrl.u32 %v952, 7
          %v954 = vsub.s32 %v951, %v953
          %v955 = vrot.slane %v802, %v954
          %v957 = vunpack.c.l.s4 1983009808
          %v958 = vunpack.c.0.s8 %v957
          %v959 = vlaneseq
          %v960 = vshrl.u32 %v959, 7
          %v961 = vsub.s32 %v958, %v960
          %v962 = vrot.slane %v948, %v961
          %v963 = vcombine.high %v810, %v795
          %v965 = vunpack.c.l.s4 1983009808
          %v966 = vunpack.c.0.s8 %v965
          %v967 = vlaneseq
          %v968 = vshrl.u32 %v967, 7
          %v969 = vsub.s32 %v966, %v968
          %v970 = vrot.slane %v810, %v969
          %v972 = vunpack.c.l.s4 1983009808
          %v973 = vunpack.c.0.s8 %v972
          %v974 = vlaneseq
          %v975 = vshrl.u32 %v974, 7
          %v976 = vsub.s32 %v973, %v975
          %v977 = vrot.slane %v963, %v976
          %v978 = vcombine.low %v955, %v970
          %v979 = vcombine.high %v955, %v970
          %v981 = vunpack.c.l.s4 1934713408
          %v982 = vunpack.c.0.s8 %v981
          %v983 = vlaneseq
          %v984 = vshrl.u32 %v983, 7
          %v985 = vsub.s32 %v982, %v984
          %v986 = vrot.slane %v978, %v985
          %v988 = vunpack.c.l.s4 1934713408
          %v989 = vunpack.c.0.s8 %v988
          %v990 = vlaneseq
          %v991 = vshrl.u32 %v990, 7
          %v992 = vsub.s32 %v989, %v991
          %v993 = vrot.slane %v979, %v992
          %v994 = vcombine.low %v962, %v977
          %v995 = vcombine.high %v962, %v977
          %v997 = vunpack.c.l.s4 1934713408
          %v998 = vunpack.c.0.s8 %v997
          %v999 = vlaneseq
          %v1000 = vshrl.u32 %v999, 7
          %v1001 = vsub.s32 %v998, %v1000
          %v1002 = vrot.slane %v994, %v1001
          %v1004 = vunpack.c.l.s4 1934713408
          %v1005 = vunpack.c.0.s8 %v1004
          %v1006 = vlaneseq
          %v1007 = vshrl.u32 %v1006, 7
          %v1008 = vsub.s32 %v1005, %v1007
          %v1009 = vrot.slane %v995, %v1008
          %v1010 = vcombine.high %v986, 0
          %v1011 = vcombine.high %v993, 0
          %v1012 = vcombine.high %v1002, 0
          %v1013 = vcombine.high %v1009, 0
          %v1014 = vcombine.high %v806, %v798
          %v1016 = vunpack.c.l.s4 1983009808
          %v1017 = vunpack.c.0.s8 %v1016
          %v1018 = vlaneseq
          %v1019 = vshrl.u32 %v1018, 7
          %v1020 = vsub.s32 %v1017, %v1019
          %v1021 = vrot.slane %v806, %v1020
          %v1023 = vunpack.c.l.s4 1983009808
          %v1024 = vunpack.c.0.s8 %v1023
          %v1025 = vlaneseq
          %v1026 = vshrl.u32 %v1025, 7
          %v1027 = vsub.s32 %v1024, %v1026
          %v1028 = vrot.slane %v1014, %v1027
          %v1029 = vcombine.high %v814, %v798
          %v1031 = vunpack.c.l.s4 1983009808
          %v1032 = vunpack.c.0.s8 %v1031
          %v1033 = vlaneseq
          %v1034 = vshrl.u32 %v1033, 7
          %v1035 = vsub.s32 %v1032, %v1034
          %v1036 = vrot.slane %v814, %v1035
          %v1038 = vunpack.c.l.s4 1983009808
          %v1039 = vunpack.c.0.s8 %v1038
          %v1040 = vlaneseq
          %v1041 = vshrl.u32 %v1040, 7
          %v1042 = vsub.s32 %v1039, %v1041
          %v1043 = vrot.slane %v1029, %v1042
          %v1044 = vcombine.low %v1021, %v1036
          %v1045 = vcombine.high %v1021, %v1036
          %v1047 = vunpack.c.l.s4 1934713408
          %v1048 = vunpack.c.0.s8 %v1047
          %v1049 = vlaneseq
          %v1050 = vshrl.u32 %v1049, 7
          %v1051 = vsub.s32 %v1048, %v1050
          %v1052 = vrot.slane %v1044, %v1051
          %v1054 = vunpack.c.l.s4 1934713408
          %v1055 = vunpack.c.0.s8 %v1054
          %v1056 = vlaneseq
          %v1057 = vshrl.u32 %v1056, 7
          %v1058 = vsub.s32 %v1055, %v1057
          %v1059 = vrot.slane %v1045, %v1058
          %v1060 = vcombine.low %v1028, %v1043
          %v1061 = vcombine.high %v1028, %v1043
          %v1063 = vunpack.c.l.s4 1934713408
          %v1064 = vunpack.c.0.s8 %v1063
          %v1065 = vlaneseq
          %v1066 = vshrl.u32 %v1065, 7
          %v1067 = vsub.s32 %v1064, %v1066
          %v1068 = vrot.slane %v1060, %v1067
          %v1070 = vunpack.c.l.s4 1934713408
          %v1071 = vunpack.c.0.s8 %v1070
          %v1072 = vlaneseq
          %v1073 = vshrl.u32 %v1072, 7
          %v1074 = vsub.s32 %v1071, %v1073
          %v1075 = vrot.slane %v1061, %v1074
          %v1076 = vcombine.high %v1052, 0
          %v1077 = vcombine.high %v1059, 0
          %v1078 = vcombine.high %v1068, 0
          %v1079 = vcombine.high %v1075, 0
          %v1080 = vcombine.low %v854, %v861
          %v1082 = vunpack.c.l.s4 1983009808
          %v1083 = vunpack.c.0.s8 %v1082
          %v1084 = vlaneseq
          %v1085 = vshrl.u32 %v1084, 7
          %v1086 = vsub.s32 %v1083, %v1085
          %v1087 = vrot.slane %v1080, %v1086
          %v1088 = vcombine.low %v878, %v879
          %v1090 = vunpack.c.l.s4 1983009808
          %v1091 = vunpack.c.0.s8 %v1090
          %v1092 = vlaneseq
          %v1093 = vshrl.u32 %v1092, 7
          %v1094 = vsub.s32 %v1091, %v1093
          %v1095 = vrot.slane %v1088, %v1094
          %v1096 = vcombine.low %v870, %v877
          %v1098 = vunpack.c.l.s4 1983009808
          %v1099 = vunpack.c.0.s8 %v1098
          %v1100 = vlaneseq
          %v1101 = vshrl.u32 %v1100, 7
          %v1102 = vsub.s32 %v1099, %v1101
          %v1103 = vrot.slane %v1096, %v1102
          %v1104 = vcombine.low %v880, %v881
          %v1106 = vunpack.c.l.s4 1983009808
          %v1107 = vunpack.c.0.s8 %v1106
          %v1108 = vlaneseq
          %v1109 = vshrl.u32 %v1108, 7
          %v1110 = vsub.s32 %v1107, %v1109
          %v1111 = vrot.slane %v1104, %v1110
          %v1112 = vcombine.low %v1087, %v1095
          %v1114 = vunpack.c.l.s4 1934713408
          %v1115 = vunpack.c.0.s8 %v1114
          %v1116 = vlaneseq
          %v1117 = vshrl.u32 %v1116, 7
          %v1118 = vsub.s32 %v1115, %v1117
          %v1119 = vrot.slane %v1112, %v1118
          %v1120 = vcombine.low %v1103, %v1111
          %v1122 = vunpack.c.l.s4 1934713408
          %v1123 = vunpack.c.0.s8 %v1122
          %v1124 = vlaneseq
          %v1125 = vshrl.u32 %v1124, 7
          %v1126 = vsub.s32 %v1123, %v1125
          %v1127 = vrot.slane %v1120, %v1126
          %v1128 = vcombine.low %v1119, %v1127
          %v1129 = vcombine.high %v1119, %v1127
          %v1130 = vcombine.low %v920, %v927
          %v1132 = vunpack.c.l.s4 1983009808
          %v1133 = vunpack.c.0.s8 %v1132
          %v1134 = vlaneseq
          %v1135 = vshrl.u32 %v1134, 7
          %v1136 = vsub.s32 %v1133, %v1135
          %v1137 = vrot.slane %v1130, %v1136
          %v1138 = vcombine.low %v944, %v945
          %v1140 = vunpack.c.l.s4 1983009808
          %v1141 = vunpack.c.0.s8 %v1140
          %v1142 = vlaneseq
          %v1143 = vshrl.u32 %v1142, 7
          %v1144 = vsub.s32 %v1141, %v1143
          %v1145 = vrot.slane %v1138, %v1144
          %v1146 = vcombine.low %v936, %v943
          %v1148 = vunpack.c.l.s4 1983009808
          %v1149 = vunpack.c.0.s8 %v1148
          %v1150 = vlaneseq
          %v1151 = vshrl.u32 %v1150, 7
          %v1152 = vsub.s32 %v1149, %v1151
          %v1153 = vrot.slane %v1146, %v1152
          %v1154 = vcombine.low %v946, %v947
          %v1156 = vunpack.c.l.s4 1983009808
          %v1157 = vunpack.c.0.s8 %v1156
          %v1158 = vlaneseq
          %v1159 = vshrl.u32 %v1158, 7
          %v1160 = vsub.s32 %v1157, %v1159
          %v1161 = vrot.slane %v1154, %v1160
          %v1162 = vcombine.low %v1137, %v1145
          %v1164 = vunpack.c.l.s4 1934713408
          %v1165 = vunpack.c.0.s8 %v1164
          %v1166 = vlaneseq
          %v1167 = vshrl.u32 %v1166, 7
          %v1168 = vsub.s32 %v1165, %v1167
          %v1169 = vrot.slane %v1162, %v1168
          %v1170 = vcombine.low %v1153, %v1161
          %v1172 = vunpack.c.l.s4 1934713408
          %v1173 = vunpack.c.0.s8 %v1172
          %v1174 = vlaneseq
          %v1175 = vshrl.u32 %v1174, 7
          %v1176 = vsub.s32 %v1173, %v1175
          %v1177 = vrot.slane %v1170, %v1176
          %v1178 = vcombine.low %v1169, %v1177
          %v1179 = vcombine.high %v1169, %v1177
          %v1180 = vcombine.low %v986, %v993
          %v1182 = vunpack.c.l.s4 1983009808
          %v1183 = vunpack.c.0.s8 %v1182
          %v1184 = vlaneseq
          %v1185 = vshrl.u32 %v1184, 7
          %v1186 = vsub.s32 %v1183, %v1185
          %v1187 = vrot.slane %v1180, %v1186
          %v1188 = vcombine.low %v1010, %v1011
          %v1190 = vunpack.c.l.s4 1983009808
          %v1191 = vunpack.c.0.s8 %v1190
          %v1192 = vlaneseq
          %v1193 = vshrl.u32 %v1192, 7
          %v1194 = vsub.s32 %v1191, %v1193
          %v1195 = vrot.slane %v1188, %v1194
          %v1196 = vcombine.low %v1002, %v1009
          %v1198 = vunpack.c.l.s4 1983009808
          %v1199 = vunpack.c.0.s8 %v1198
          %v1200 = vlaneseq
          %v1201 = vshrl.u32 %v1200, 7
          %v1202 = vsub.s32 %v1199, %v1201
          %v1203 = vrot.slane %v1196, %v1202
          %v1204 = vcombine.low %v1012, %v1013
          %v1206 = vunpack.c.l.s4 1983009808
          %v1207 = vunpack.c.0.s8 %v1206
          %v1208 = vlaneseq
          %v1209 = vshrl.u32 %v1208, 7
          %v1210 = vsub.s32 %v1207, %v1209
          %v1211 = vrot.slane %v1204, %v1210
          %v1212 = vcombine.low %v1187, %v1195
          %v1214 = vunpack.c.l.s4 1934713408
          %v1215 = vunpack.c.0.s8 %v1214
          %v1216 = vlaneseq
          %v1217 = vshrl.u32 %v1216, 7
          %v1218 = vsub.s32 %v1215, %v1217
          %v1219 = vrot.slane %v1212, %v1218
          %v1220 = vcombine.low %v1203, %v1211
          %v1222 = vunpack.c.l.s4 1934713408
          %v1223 = vunpack.c.0.s8 %v1222
          %v1224 = vlaneseq
          %v1225 = vshrl.u32 %v1224, 7
          %v1226 = vsub.s32 %v1223, %v1225
          %v1227 = vrot.slane %v1220, %v1226
          %v1228 = vcombine.low %v1219, %v1227
          %v1229 = vcombine.high %v1219, %v1227
          %v1230 = vcombine.low %v1052, %v1059
          %v1232 = vunpack.c.l.s4 1983009808
          %v1233 = vunpack.c.0.s8 %v1232
          %v1234 = vlaneseq
          %v1235 = vshrl.u32 %v1234, 7
          %v1236 = vsub.s32 %v1233, %v1235
          %v1237 = vrot.slane %v1230, %v1236
          %v1238 = vcombine.low %v1076, %v1077
          %v1240 = vunpack.c.l.s4 1983009808
          %v1241 = vunpack.c.0.s8 %v1240
          %v1242 = vlaneseq
          %v1243 = vshrl.u32 %v1242, 7
          %v1244 = vsub.s32 %v1241, %v1243
          %v1245 = vrot.slane %v1238, %v1244
          %v1246 = vcombine.low %v1068, %v1075
          %v1248 = vunpack.c.l.s4 1983009808
          %v1249 = vunpack.c.0.s8 %v1248
          %v1250 = vlaneseq
          %v1251 = vshrl.u32 %v1250, 7
          %v1252 = vsub.s32 %v1249, %v1251
          %v1253 = vrot.slane %v1246, %v1252
          %v1254 = vcombine.low %v1078, %v1079
          %v1256 = vunpack.c.l.s4 1983009808
          %v1257 = vunpack.c.0.s8 %v1256
          %v1258 = vlaneseq
          %v1259 = vshrl.u32 %v1258, 7
          %v1260 = vsub.s32 %v1257, %v1259
          %v1261 = vrot.slane %v1254, %v1260
          %v1262 = vcombine.low %v1237, %v1245
          %v1264 = vunpack.c.l.s4 1934713408
          %v1265 = vunpack.c.0.s8 %v1264
          %v1266 = vlaneseq
          %v1267 = vshrl.u32 %v1266, 7
          %v1268 = vsub.s32 %v1265, %v1267
          %v1269 = vrot.slane %v1262, %v1268
          %v1270 = vcombine.low %v1253, %v1261
          %v1272 = vunpack.c.l.s4 1934713408
          %v1273 = vunpack.c.0.s8 %v1272
          %v1274 = vlaneseq
          %v1275 = vshrl.u32 %v1274, 7
          %v1276 = vsub.s32 %v1273, %v1275
          %v1277 = vrot.slane %v1270, %v1276
          %v1278 = vcombine.low %v1269, %v1277
          %v1279 = vcombine.high %v1269, %v1277
          %v1282 = vpack.i.b16 %v1178, %v1128
          %v1283 = vshrl.u32 %v1128, 16
          %v1284 = vshrl.u32 %v1178, 16
          %v1285 = vpack.i.b16 %v1284, %v1283
          %v1288 = vpack.i.b16 %v1179, %v1129
          %v1289 = vshrl.u32 %v1129, 16
          %v1290 = vshrl.u32 %v1179, 16
          %v1291 = vpack.i.b16 %v1290, %v1289
          %v1294 = vpack.i.b16 %v1278, %v1228
          %v1295 = vshrl.u32 %v1228, 16
          %v1296 = vshrl.u32 %v1278, 16
          %v1297 = vpack.i.b16 %v1296, %v1295
          %v1300 = vpack.i.b16 %v1279, %v1229
          %v1301 = vshrl.u32 %v1229, 16
          %v1302 = vshrl.u32 %v1279, 16
          %v1303 = vpack.i.b16 %v1302, %v1301
          %v1304 = vunpack.c.l.b16 %v1282
          %v1305 = vunpack.c.h.b16 %v1282
          %v1306 = vunpack.c.l.b16 %v1294
          %v1307 = vunpack.c.h.b16 %v1294
          %v1308 = vunpack.c.l.b16 %v1285
          %v1309 = vunpack.c.h.b16 %v1285
          %v1310 = vunpack.c.l.b16 %v1297
          %v1311 = vunpack.c.h.b16 %v1297
          %v1312 = vunpack.c.l.b16 %v1288
          %v1313 = vunpack.c.h.b16 %v1288
          %v1314 = vunpack.c.l.b16 %v1300
          %v1315 = vunpack.c.h.b16 %v1300
          %v1316 = vunpack.c.l.b16 %v1291
          %v1317 = vunpack.c.h.b16 %v1291
          %v1318 = vunpack.c.l.b16 %v1303
          %v1319 = vunpack.c.h.b16 %v1303
          %v1320 = vpack.c.b16 %v1304, %v1304
          %v1321 = vpack.c.b16 %v1305, %v1305
          %v1322 = vpack.c.b16 %v1306, %v1306
          %v1323 = vpack.c.b16 %v1307, %v1307
          %v1324 = vpack.c.b16 %v1308, %v1308
          %v1325 = vpack.c.b16 %v1309, %v1309
          %v1326 = vpack.c.b16 %v1310, %v1310
          %v1327 = vpack.c.b16 %v1311, %v1311
          %v1328 = vpack.c.b16 %v1312, %v1312
          %v1329 = vpack.c.b16 %v1313, %v1313
          %v1330 = vpack.c.b16 %v1314, %v1314
          %v1331 = vpack.c.b16 %v1315, %v1315
          %v1332 = vpack.c.b16 %v1316, %v1316
          %v1333 = vpack.c.b16 %v1317, %v1317
          %v1334 = vpack.c.b16 %v1318, %v1318
          %v1335 = vpack.c.b16 %v1319, %v1319
          %vm1352 = vcmask 60416
          %1353 = vst.msk [vmem:[#allocation3] sm:$0xf] %vm1352, %v1320
          %1354 = vst.msk [vmem:[#allocation3 + $0x4] sm:$0xf] %vm1352, %v1321
          %1355 = vst.msk [vmem:[#allocation3 + $0x8] sm:$0xf] %vm1352, %v1322
          %1356 = vst.msk [vmem:[#allocation3 + $0xc] sm:$0xf] %vm1352, %v1323
          %1357 = vst.msk [vmem:[#allocation3 + $0x10] sm:$0xf] %vm1352, %v1324
          %1358 = vst.msk [vmem:[#allocation3 + $0x14] sm:$0xf] %vm1352, %v1325
          %1359 = vst.msk [vmem:[#allocation3 + $0x18] sm:$0xf] %vm1352, %v1326
          %1360 = vst.msk [vmem:[#allocation3 + $0x1c] sm:$0xf] %vm1352, %v1327
          %1361 = vst.msk [vmem:[#allocation3 + $0x20] sm:$0xf] %vm1352, %v1328
          %1362 = vst.msk [vmem:[#allocation3 + $0x24] sm:$0xf] %vm1352, %v1329
          %1363 = vst.msk [vmem:[#allocation3 + $0x28] sm:$0xf] %vm1352, %v1330
          %1364 = vst.msk [vmem:[#allocation3 + $0x2c] sm:$0xf] %vm1352, %v1331
          %1365 = vst.msk [vmem:[#allocation3 + $0x30] sm:$0xf] %vm1352, %v1332
          %1366 = vst.msk [vmem:[#allocation3 + $0x34] sm:$0xf] %vm1352, %v1333
          %1367 = vst.msk [vmem:[#allocation3 + $0x38] sm:$0xf] %vm1352, %v1334
          %1368 = vst.msk [vmem:[#allocation3 + $0x3c] sm:$0xf] %vm1352, %v1335
          %v1369 = vpack.c.bf16 %v751, %v748
          %v1370 = vpack.c.bf16 %v759, %v756
          %1373 = vrot.lane.b32.xlu0 %v1369, 120
          %v1374 = vpop.permute.xlu0 %1373
          %1375 = vrot.lane.b32.xlu0 %v1370, 120
          %v1376 = vpop.permute.xlu0 %1375
          %1377 = vrot.lane.b32.xlu0 %v1369, 112
          %v1378 = vpop.permute.xlu0 %1377
          %1379 = vrot.lane.b32.xlu0 %v1370, 112
          %v1380 = vpop.permute.xlu0 %1379
          %1381 = vrot.lane.b32.xlu0 %v1369, 104
          %v1382 = vpop.permute.xlu0 %1381
          %1383 = vrot.lane.b32.xlu0 %v1370, 104
          %v1384 = vpop.permute.xlu0 %1383
          %v1387 = vpack.i.b16 %v1374, %v1369
          %v1389 = vshrl.u32 %v1369, 16
          %v1390 = vshrl.u32 %v1374, 16
          %v1391 = vpack.i.b16 %v1390, %v1389
          %v1395 = vpack.i.b16 %v1382, %v1378
          %v1397 = vshrl.u32 %v1378, 16
          %v1398 = vshrl.u32 %v1382, 16
          %v1399 = vpack.i.b16 %v1398, %v1397
          %v1403 = vpack.i.b16 %v1376, %v1370
          %v1405 = vshrl.u32 %v1370, 16
          %v1406 = vshrl.u32 %v1376, 16
          %v1407 = vpack.i.b16 %v1406, %v1405
          %v1411 = vpack.i.b16 %v1384, %v1380
          %v1413 = vshrl.u32 %v1380, 16
          %v1414 = vshrl.u32 %v1384, 16
          %v1415 = vpack.i.b16 %v1414, %v1413
          %v1417 = vcombine.high %v1387, %v795
          %v1419 = vunpack.c.l.s4 1983009808
          %v1420 = vunpack.c.0.s8 %v1419
          %v1421 = vlaneseq
          %v1422 = vshrl.u32 %v1421, 7
          %v1423 = vsub.s32 %v1420, %v1422
          %v1424 = vrot.slane %v1387, %v1423
          %v1426 = vunpack.c.l.s4 1983009808
          %v1427 = vunpack.c.0.s8 %v1426
          %v1428 = vlaneseq
          %v1429 = vshrl.u32 %v1428, 7
          %v1430 = vsub.s32 %v1427, %v1429
          %v1431 = vrot.slane %v1417, %v1430
          %v1432 = vcombine.high %v1395, %v795
          %v1434 = vunpack.c.l.s4 1983009808
          %v1435 = vunpack.c.0.s8 %v1434
          %v1436 = vlaneseq
          %v1437 = vshrl.u32 %v1436, 7
          %v1438 = vsub.s32 %v1435, %v1437
          %v1439 = vrot.slane %v1395, %v1438
          %v1441 = vunpack.c.l.s4 1983009808
          %v1442 = vunpack.c.0.s8 %v1441
          %v1443 = vlaneseq
          %v1444 = vshrl.u32 %v1443, 7
          %v1445 = vsub.s32 %v1442, %v1444
          %v1446 = vrot.slane %v1432, %v1445
          %v1447 = vcombine.low %v1424, %v1439
          %v1448 = vcombine.high %v1424, %v1439
          %v1450 = vunpack.c.l.s4 1934713408
          %v1451 = vunpack.c.0.s8 %v1450
          %v1452 = vlaneseq
          %v1453 = vshrl.u32 %v1452, 7
          %v1454 = vsub.s32 %v1451, %v1453
          %v1455 = vrot.slane %v1447, %v1454
          %v1457 = vunpack.c.l.s4 1934713408
          %v1458 = vunpack.c.0.s8 %v1457
          %v1459 = vlaneseq
          %v1460 = vshrl.u32 %v1459, 7
          %v1461 = vsub.s32 %v1458, %v1460
          %v1462 = vrot.slane %v1448, %v1461
          %v1463 = vcombine.low %v1431, %v1446
          %v1464 = vcombine.high %v1431, %v1446
          %v1466 = vunpack.c.l.s4 1934713408
          %v1467 = vunpack.c.0.s8 %v1466
          %v1468 = vlaneseq
          %v1469 = vshrl.u32 %v1468, 7
          %v1470 = vsub.s32 %v1467, %v1469
          %v1471 = vrot.slane %v1463, %v1470
          %v1473 = vunpack.c.l.s4 1934713408
          %v1474 = vunpack.c.0.s8 %v1473
          %v1475 = vlaneseq
          %v1476 = vshrl.u32 %v1475, 7
          %v1477 = vsub.s32 %v1474, %v1476
          %v1478 = vrot.slane %v1464, %v1477
          %v1479 = vcombine.high %v1455, 0
          %v1480 = vcombine.high %v1462, 0
          %v1481 = vcombine.high %v1471, 0
          %v1482 = vcombine.high %v1478, 0
          %v1483 = vcombine.high %v1391, %v798
          %v1485 = vunpack.c.l.s4 1983009808
          %v1486 = vunpack.c.0.s8 %v1485
          %v1487 = vlaneseq
          %v1488 = vshrl.u32 %v1487, 7
          %v1489 = vsub.s32 %v1486, %v1488
          %v1490 = vrot.slane %v1391, %v1489
          %v1492 = vunpack.c.l.s4 1983009808
          %v1493 = vunpack.c.0.s8 %v1492
          %v1494 = vlaneseq
          %v1495 = vshrl.u32 %v1494, 7
          %v1496 = vsub.s32 %v1493, %v1495
          %v1497 = vrot.slane %v1483, %v1496
          %v1498 = vcombine.high %v1399, %v798
          %v1500 = vunpack.c.l.s4 1983009808
          %v1501 = vunpack.c.0.s8 %v1500
          %v1502 = vlaneseq
          %v1503 = vshrl.u32 %v1502, 7
          %v1504 = vsub.s32 %v1501, %v1503
          %v1505 = vrot.slane %v1399, %v1504
          %v1507 = vunpack.c.l.s4 1983009808
          %v1508 = vunpack.c.0.s8 %v1507
          %v1509 = vlaneseq
          %v1510 = vshrl.u32 %v1509, 7
          %v1511 = vsub.s32 %v1508, %v1510
          %v1512 = vrot.slane %v1498, %v1511
          %v1513 = vcombine.low %v1490, %v1505
          %v1514 = vcombine.high %v1490, %v1505
          %v1516 = vunpack.c.l.s4 1934713408
          %v1517 = vunpack.c.0.s8 %v1516
          %v1518 = vlaneseq
          %v1519 = vshrl.u32 %v1518, 7
          %v1520 = vsub.s32 %v1517, %v1519
          %v1521 = vrot.slane %v1513, %v1520
          %v1523 = vunpack.c.l.s4 1934713408
          %v1524 = vunpack.c.0.s8 %v1523
          %v1525 = vlaneseq
          %v1526 = vshrl.u32 %v1525, 7
          %v1527 = vsub.s32 %v1524, %v1526
          %v1528 = vrot.slane %v1514, %v1527
          %v1529 = vcombine.low %v1497, %v1512
          %v1530 = vcombine.high %v1497, %v1512
          %v1532 = vunpack.c.l.s4 1934713408
          %v1533 = vunpack.c.0.s8 %v1532
          %v1534 = vlaneseq
          %v1535 = vshrl.u32 %v1534, 7
          %v1536 = vsub.s32 %v1533, %v1535
          %v1537 = vrot.slane %v1529, %v1536
          %v1539 = vunpack.c.l.s4 1934713408
          %v1540 = vunpack.c.0.s8 %v1539
          %v1541 = vlaneseq
          %v1542 = vshrl.u32 %v1541, 7
          %v1543 = vsub.s32 %v1540, %v1542
          %v1544 = vrot.slane %v1530, %v1543
          %v1545 = vcombine.high %v1521, 0
          %v1546 = vcombine.high %v1528, 0
          %v1547 = vcombine.high %v1537, 0
          %v1548 = vcombine.high %v1544, 0
          %v1549 = vcombine.high %v1403, %v795
          %v1551 = vunpack.c.l.s4 1983009808
          %v1552 = vunpack.c.0.s8 %v1551
          %v1553 = vlaneseq
          %v1554 = vshrl.u32 %v1553, 7
          %v1555 = vsub.s32 %v1552, %v1554
          %v1556 = vrot.slane %v1403, %v1555
          %v1558 = vunpack.c.l.s4 1983009808
          %v1559 = vunpack.c.0.s8 %v1558
          %v1560 = vlaneseq
          %v1561 = vshrl.u32 %v1560, 7
          %v1562 = vsub.s32 %v1559, %v1561
          %v1563 = vrot.slane %v1549, %v1562
          %v1564 = vcombine.high %v1411, %v795
          %v1566 = vunpack.c.l.s4 1983009808
          %v1567 = vunpack.c.0.s8 %v1566
          %v1568 = vlaneseq
          %v1569 = vshrl.u32 %v1568, 7
          %v1570 = vsub.s32 %v1567, %v1569
          %v1571 = vrot.slane %v1411, %v1570
          %v1573 = vunpack.c.l.s4 1983009808
          %v1574 = vunpack.c.0.s8 %v1573
          %v1575 = vlaneseq
          %v1576 = vshrl.u32 %v1575, 7
          %v1577 = vsub.s32 %v1574, %v1576
          %v1578 = vrot.slane %v1564, %v1577
          %v1579 = vcombine.low %v1556, %v1571
          %v1580 = vcombine.high %v1556, %v1571
          %v1582 = vunpack.c.l.s4 1934713408
          %v1583 = vunpack.c.0.s8 %v1582
          %v1584 = vlaneseq
          %v1585 = vshrl.u32 %v1584, 7
          %v1586 = vsub.s32 %v1583, %v1585
          %v1587 = vrot.slane %v1579, %v1586
          %v1589 = vunpack.c.l.s4 1934713408
          %v1590 = vunpack.c.0.s8 %v1589
          %v1591 = vlaneseq
          %v1592 = vshrl.u32 %v1591, 7
          %v1593 = vsub.s32 %v1590, %v1592
          %v1594 = vrot.slane %v1580, %v1593
          %v1595 = vcombine.low %v1563, %v1578
          %v1596 = vcombine.high %v1563, %v1578
          %v1598 = vunpack.c.l.s4 1934713408
          %v1599 = vunpack.c.0.s8 %v1598
          %v1600 = vlaneseq
          %v1601 = vshrl.u32 %v1600, 7
          %v1602 = vsub.s32 %v1599, %v1601
          %v1603 = vrot.slane %v1595, %v1602
          %v1605 = vunpack.c.l.s4 1934713408
          %v1606 = vunpack.c.0.s8 %v1605
          %v1607 = vlaneseq
          %v1608 = vshrl.u32 %v1607, 7
          %v1609 = vsub.s32 %v1606, %v1608
          %v1610 = vrot.slane %v1596, %v1609
          %v1611 = vcombine.high %v1587, 0
          %v1612 = vcombine.high %v1594, 0
          %v1613 = vcombine.high %v1603, 0
          %v1614 = vcombine.high %v1610, 0
          %v1615 = vcombine.high %v1407, %v798
          %v1617 = vunpack.c.l.s4 1983009808
          %v1618 = vunpack.c.0.s8 %v1617
          %v1619 = vlaneseq
          %v1620 = vshrl.u32 %v1619, 7
          %v1621 = vsub.s32 %v1618, %v1620
          %v1622 = vrot.slane %v1407, %v1621
          %v1624 = vunpack.c.l.s4 1983009808
          %v1625 = vunpack.c.0.s8 %v1624
          %v1626 = vlaneseq
          %v1627 = vshrl.u32 %v1626, 7
          %v1628 = vsub.s32 %v1625, %v1627
          %v1629 = vrot.slane %v1615, %v1628
          %v1630 = vcombine.high %v1415, %v798
          %v1632 = vunpack.c.l.s4 1983009808
          %v1633 = vunpack.c.0.s8 %v1632
          %v1634 = vlaneseq
          %v1635 = vshrl.u32 %v1634, 7
          %v1636 = vsub.s32 %v1633, %v1635
          %v1637 = vrot.slane %v1415, %v1636
          %v1639 = vunpack.c.l.s4 1983009808
          %v1640 = vunpack.c.0.s8 %v1639
          %v1641 = vlaneseq
          %v1642 = vshrl.u32 %v1641, 7
          %v1643 = vsub.s32 %v1640, %v1642
          %v1644 = vrot.slane %v1630, %v1643
          %v1645 = vcombine.low %v1622, %v1637
          %v1646 = vcombine.high %v1622, %v1637
          %v1648 = vunpack.c.l.s4 1934713408
          %v1649 = vunpack.c.0.s8 %v1648
          %v1650 = vlaneseq
          %v1651 = vshrl.u32 %v1650, 7
          %v1652 = vsub.s32 %v1649, %v1651
          %v1653 = vrot.slane %v1645, %v1652
          %v1655 = vunpack.c.l.s4 1934713408
          %v1656 = vunpack.c.0.s8 %v1655
          %v1657 = vlaneseq
          %v1658 = vshrl.u32 %v1657, 7
          %v1659 = vsub.s32 %v1656, %v1658
          %v1660 = vrot.slane %v1646, %v1659
          %v1661 = vcombine.low %v1629, %v1644
          %v1662 = vcombine.high %v1629, %v1644
          %v1664 = vunpack.c.l.s4 1934713408
          %v1665 = vunpack.c.0.s8 %v1664
          %v1666 = vlaneseq
          %v1667 = vshrl.u32 %v1666, 7
          %v1668 = vsub.s32 %v1665, %v1667
          %v1669 = vrot.slane %v1661, %v1668
          %v1671 = vunpack.c.l.s4 1934713408
          %v1672 = vunpack.c.0.s8 %v1671
          %v1673 = vlaneseq
          %v1674 = vshrl.u32 %v1673, 7
          %v1675 = vsub.s32 %v1672, %v1674
          %v1676 = vrot.slane %v1662, %v1675
          %v1677 = vcombine.high %v1653, 0
          %v1678 = vcombine.high %v1660, 0
          %v1679 = vcombine.high %v1669, 0
          %v1680 = vcombine.high %v1676, 0
          %v1681 = vcombine.low %v1455, %v1462
          %v1683 = vunpack.c.l.s4 1983009808
          %v1684 = vunpack.c.0.s8 %v1683
          %v1685 = vlaneseq
          %v1686 = vshrl.u32 %v1685, 7
          %v1687 = vsub.s32 %v1684, %v1686
          %v1688 = vrot.slane %v1681, %v1687
          %v1689 = vcombine.low %v1479, %v1480
          %v1691 = vunpack.c.l.s4 1983009808
          %v1692 = vunpack.c.0.s8 %v1691
          %v1693 = vlaneseq
          %v1694 = vshrl.u32 %v1693, 7
          %v1695 = vsub.s32 %v1692, %v1694
          %v1696 = vrot.slane %v1689, %v1695
          %v1697 = vcombine.low %v1471, %v1478
          %v1699 = vunpack.c.l.s4 1983009808
          %v1700 = vunpack.c.0.s8 %v1699
          %v1701 = vlaneseq
          %v1702 = vshrl.u32 %v1701, 7
          %v1703 = vsub.s32 %v1700, %v1702
          %v1704 = vrot.slane %v1697, %v1703
          %v1705 = vcombine.low %v1481, %v1482
          %v1707 = vunpack.c.l.s4 1983009808
          %v1708 = vunpack.c.0.s8 %v1707
          %v1709 = vlaneseq
          %v1710 = vshrl.u32 %v1709, 7
          %v1711 = vsub.s32 %v1708, %v1710
          %v1712 = vrot.slane %v1705, %v1711
          %v1713 = vcombine.low %v1688, %v1696
          %v1715 = vunpack.c.l.s4 1934713408
          %v1716 = vunpack.c.0.s8 %v1715
          %v1717 = vlaneseq
          %v1718 = vshrl.u32 %v1717, 7
          %v1719 = vsub.s32 %v1716, %v1718
          %v1720 = vrot.slane %v1713, %v1719
          %v1721 = vcombine.low %v1704, %v1712
          %v1723 = vunpack.c.l.s4 1934713408
          %v1724 = vunpack.c.0.s8 %v1723
          %v1725 = vlaneseq
          %v1726 = vshrl.u32 %v1725, 7
          %v1727 = vsub.s32 %v1724, %v1726
          %v1728 = vrot.slane %v1721, %v1727
          %v1729 = vcombine.low %v1720, %v1728
          %v1730 = vcombine.high %v1720, %v1728
          %v1731 = vcombine.low %v1521, %v1528
          %v1733 = vunpack.c.l.s4 1983009808
          %v1734 = vunpack.c.0.s8 %v1733
          %v1735 = vlaneseq
          %v1736 = vshrl.u32 %v1735, 7
          %v1737 = vsub.s32 %v1734, %v1736
          %v1738 = vrot.slane %v1731, %v1737
          %v1739 = vcombine.low %v1545, %v1546
          %v1741 = vunpack.c.l.s4 1983009808
          %v1742 = vunpack.c.0.s8 %v1741
          %v1743 = vlaneseq
          %v1744 = vshrl.u32 %v1743, 7
          %v1745 = vsub.s32 %v1742, %v1744
          %v1746 = vrot.slane %v1739, %v1745
          %v1747 = vcombine.low %v1537, %v1544
          %v1749 = vunpack.c.l.s4 1983009808
          %v1750 = vunpack.c.0.s8 %v1749
          %v1751 = vlaneseq
          %v1752 = vshrl.u32 %v1751, 7
          %v1753 = vsub.s32 %v1750, %v1752
          %v1754 = vrot.slane %v1747, %v1753
          %v1755 = vcombine.low %v1547, %v1548
          %v1757 = vunpack.c.l.s4 1983009808
          %v1758 = vunpack.c.0.s8 %v1757
          %v1759 = vlaneseq
          %v1760 = vshrl.u32 %v1759, 7
          %v1761 = vsub.s32 %v1758, %v1760
          %v1762 = vrot.slane %v1755, %v1761
          %v1763 = vcombine.low %v1738, %v1746
          %v1765 = vunpack.c.l.s4 1934713408
          %v1766 = vunpack.c.0.s8 %v1765
          %v1767 = vlaneseq
          %v1768 = vshrl.u32 %v1767, 7
          %v1769 = vsub.s32 %v1766, %v1768
          %v1770 = vrot.slane %v1763, %v1769
          %v1771 = vcombine.low %v1754, %v1762
          %v1773 = vunpack.c.l.s4 1934713408
          %v1774 = vunpack.c.0.s8 %v1773
          %v1775 = vlaneseq
          %v1776 = vshrl.u32 %v1775, 7
          %v1777 = vsub.s32 %v1774, %v1776
          %v1778 = vrot.slane %v1771, %v1777
          %v1779 = vcombine.low %v1770, %v1778
          %v1780 = vcombine.high %v1770, %v1778
          %v1781 = vcombine.low %v1587, %v1594
          %v1783 = vunpack.c.l.s4 1983009808
          %v1784 = vunpack.c.0.s8 %v1783
          %v1785 = vlaneseq
          %v1786 = vshrl.u32 %v1785, 7
          %v1787 = vsub.s32 %v1784, %v1786
          %v1788 = vrot.slane %v1781, %v1787
          %v1789 = vcombine.low %v1611, %v1612
          %v1791 = vunpack.c.l.s4 1983009808
          %v1792 = vunpack.c.0.s8 %v1791
          %v1793 = vlaneseq
          %v1794 = vshrl.u32 %v1793, 7
          %v1795 = vsub.s32 %v1792, %v1794
          %v1796 = vrot.slane %v1789, %v1795
          %v1797 = vcombine.low %v1603, %v1610
          %v1799 = vunpack.c.l.s4 1983009808
          %v1800 = vunpack.c.0.s8 %v1799
          %v1801 = vlaneseq
          %v1802 = vshrl.u32 %v1801, 7
          %v1803 = vsub.s32 %v1800, %v1802
          %v1804 = vrot.slane %v1797, %v1803
          %v1805 = vcombine.low %v1613, %v1614
          %v1807 = vunpack.c.l.s4 1983009808
          %v1808 = vunpack.c.0.s8 %v1807
          %v1809 = vlaneseq
          %v1810 = vshrl.u32 %v1809, 7
          %v1811 = vsub.s32 %v1808, %v1810
          %v1812 = vrot.slane %v1805, %v1811
          %v1813 = vcombine.low %v1788, %v1796
          %v1815 = vunpack.c.l.s4 1934713408
          %v1816 = vunpack.c.0.s8 %v1815
          %v1817 = vlaneseq
          %v1818 = vshrl.u32 %v1817, 7
          %v1819 = vsub.s32 %v1816, %v1818
          %v1820 = vrot.slane %v1813, %v1819
          %v1821 = vcombine.low %v1804, %v1812
          %v1823 = vunpack.c.l.s4 1934713408
          %v1824 = vunpack.c.0.s8 %v1823
          %v1825 = vlaneseq
          %v1826 = vshrl.u32 %v1825, 7
          %v1827 = vsub.s32 %v1824, %v1826
          %v1828 = vrot.slane %v1821, %v1827
          %v1829 = vcombine.low %v1820, %v1828
          %v1830 = vcombine.high %v1820, %v1828
          %v1831 = vcombine.low %v1653, %v1660
          %v1833 = vunpack.c.l.s4 1983009808
          %v1834 = vunpack.c.0.s8 %v1833
          %v1835 = vlaneseq
          %v1836 = vshrl.u32 %v1835, 7
          %v1837 = vsub.s32 %v1834, %v1836
          %v1838 = vrot.slane %v1831, %v1837
          %v1839 = vcombine.low %v1677, %v1678
          %v1841 = vunpack.c.l.s4 1983009808
          %v1842 = vunpack.c.0.s8 %v1841
          %v1843 = vlaneseq
          %v1844 = vshrl.u32 %v1843, 7
          %v1845 = vsub.s32 %v1842, %v1844
          %v1846 = vrot.slane %v1839, %v1845
          %v1847 = vcombine.low %v1669, %v1676
          %v1849 = vunpack.c.l.s4 1983009808
          %v1850 = vunpack.c.0.s8 %v1849
          %v1851 = vlaneseq
          %v1852 = vshrl.u32 %v1851, 7
          %v1853 = vsub.s32 %v1850, %v1852
          %v1854 = vrot.slane %v1847, %v1853
          %v1855 = vcombine.low %v1679, %v1680
          %v1857 = vunpack.c.l.s4 1983009808
          %v1858 = vunpack.c.0.s8 %v1857
          %v1859 = vlaneseq
          %v1860 = vshrl.u32 %v1859, 7
          %v1861 = vsub.s32 %v1858, %v1860
          %v1862 = vrot.slane %v1855, %v1861
          %v1863 = vcombine.low %v1838, %v1846
          %v1865 = vunpack.c.l.s4 1934713408
          %v1866 = vunpack.c.0.s8 %v1865
          %v1867 = vlaneseq
          %v1868 = vshrl.u32 %v1867, 7
          %v1869 = vsub.s32 %v1866, %v1868
          %v1870 = vrot.slane %v1863, %v1869
          %v1871 = vcombine.low %v1854, %v1862
          %v1873 = vunpack.c.l.s4 1934713408
          %v1874 = vunpack.c.0.s8 %v1873
          %v1875 = vlaneseq
          %v1876 = vshrl.u32 %v1875, 7
          %v1877 = vsub.s32 %v1874, %v1876
          %v1878 = vrot.slane %v1871, %v1877
          %v1879 = vcombine.low %v1870, %v1878
          %v1880 = vcombine.high %v1870, %v1878
          %v1883 = vpack.i.b16 %v1779, %v1729
          %v1884 = vshrl.u32 %v1729, 16
          %v1885 = vshrl.u32 %v1779, 16
          %v1886 = vpack.i.b16 %v1885, %v1884
          %v1889 = vpack.i.b16 %v1780, %v1730
          %v1890 = vshrl.u32 %v1730, 16
          %v1891 = vshrl.u32 %v1780, 16
          %v1892 = vpack.i.b16 %v1891, %v1890
          %v1895 = vpack.i.b16 %v1879, %v1829
          %v1896 = vshrl.u32 %v1829, 16
          %v1897 = vshrl.u32 %v1879, 16
          %v1898 = vpack.i.b16 %v1897, %v1896
          %v1901 = vpack.i.b16 %v1880, %v1830
          %v1902 = vshrl.u32 %v1830, 16
          %v1903 = vshrl.u32 %v1880, 16
          %v1904 = vpack.i.b16 %v1903, %v1902
          %v1905 = vunpack.c.l.b16 %v1883
          %v1906 = vunpack.c.h.b16 %v1883
          %v1907 = vunpack.c.l.b16 %v1895
          %v1908 = vunpack.c.h.b16 %v1895
          %v1909 = vunpack.c.l.b16 %v1886
          %v1910 = vunpack.c.h.b16 %v1886
          %v1911 = vunpack.c.l.b16 %v1898
          %v1912 = vunpack.c.h.b16 %v1898
          %v1913 = vunpack.c.l.b16 %v1889
          %v1914 = vunpack.c.h.b16 %v1889
          %v1915 = vunpack.c.l.b16 %v1901
          %v1916 = vunpack.c.h.b16 %v1901
          %v1917 = vunpack.c.l.b16 %v1892
          %v1918 = vunpack.c.h.b16 %v1892
          %v1919 = vunpack.c.l.b16 %v1904
          %v1920 = vunpack.c.h.b16 %v1904
          %v1921 = vpack.c.b16 %v1905, %v1905
          %v1922 = vpack.c.b16 %v1906, %v1906
          %v1923 = vpack.c.b16 %v1907, %v1907
          %v1924 = vpack.c.b16 %v1908, %v1908
          %v1925 = vpack.c.b16 %v1909, %v1909
          %v1926 = vpack.c.b16 %v1910, %v1910
          %v1927 = vpack.c.b16 %v1911, %v1911
          %v1928 = vpack.c.b16 %v1912, %v1912
          %v1929 = vpack.c.b16 %v1913, %v1913
          %v1930 = vpack.c.b16 %v1914, %v1914
          %v1931 = vpack.c.b16 %v1915, %v1915
          %v1932 = vpack.c.b16 %v1916, %v1916
          %v1933 = vpack.c.b16 %v1917, %v1917
          %v1934 = vpack.c.b16 %v1918, %v1918
          %v1935 = vpack.c.b16 %v1919, %v1919
          %v1936 = vpack.c.b16 %v1920, %v1920
          %1953 = vst.msk [vmem:[#allocation4] sm:$0xf] %vm1352, %v1921
          %1954 = vst.msk [vmem:[#allocation4 + $0x4] sm:$0xf] %vm1352, %v1922
          %1955 = vst.msk [vmem:[#allocation4 + $0x8] sm:$0xf] %vm1352, %v1923
          %1956 = vst.msk [vmem:[#allocation4 + $0xc] sm:$0xf] %vm1352, %v1924
          %1957 = vst.msk [vmem:[#allocation4 + $0x10] sm:$0xf] %vm1352, %v1925
          %1958 = vst.msk [vmem:[#allocation4 + $0x14] sm:$0xf] %vm1352, %v1926
          %1959 = vst.msk [vmem:[#allocation4 + $0x18] sm:$0xf] %vm1352, %v1927
          %1960 = vst.msk [vmem:[#allocation4 + $0x1c] sm:$0xf] %vm1352, %v1928
          %1961 = vst.msk [vmem:[#allocation4 + $0x20] sm:$0xf] %vm1352, %v1929
          %1962 = vst.msk [vmem:[#allocation4 + $0x24] sm:$0xf] %vm1352, %v1930
          %1963 = vst.msk [vmem:[#allocation4 + $0x28] sm:$0xf] %vm1352, %v1931
          %1964 = vst.msk [vmem:[#allocation4 + $0x2c] sm:$0xf] %vm1352, %v1932
          %1965 = vst.msk [vmem:[#allocation4 + $0x30] sm:$0xf] %vm1352, %v1933
          %1966 = vst.msk [vmem:[#allocation4 + $0x34] sm:$0xf] %vm1352, %v1934
          %1967 = vst.msk [vmem:[#allocation4 + $0x38] sm:$0xf] %vm1352, %v1935
          %1968 = vst.msk [vmem:[#allocation4 + $0x3c] sm:$0xf] %vm1352, %v1936
        $region84: #{transformer_encoder.3} parent=79 // pred_fallthru
          _
        %s1969 = smul.u32 %s34, 16
        %s1970 = scalar_lea.vmem [#allocation2], %s1969
        %v1971 = vld [vmem:[%s1970] sm:$0xff]
        %v1972 = vld [vmem:[%s1970 + $0x8] sm:$0xff]
        %v1973 = vpack.c.bf16 %v1972, %v1971
        %v1974 = vld [vmem:[%s3] sm:$0xf]
        %v1975 = vld [vmem:[%s3 + $0x4] sm:$0xf]
        %v1976 = vld [vmem:[%s3 + $0x8] sm:$0xf]
        %v1977 = vld [vmem:[%s3 + $0xc] sm:$0xf]
        %v1978 = vld [vmem:[%s4] sm:$0x1]
        %v1980 = vlaneseq
        %v1981 = vshrl.u32 %v1980, 7
        %v1982 = vsub.s32 0, %v1981
        %v1983 = vrot.slane %v1978, %v1982
        %v1989 = vunpack.c.l.b16 %v1974
        %v1990 = vunpack.c.l.b16 %v1975
        %v1991 = vunpack.c.l.b16 %v1976
        %v1992 = vunpack.c.l.b16 %v1977
        %v1993 = vpack.c.b16 %v1990, %v1989
        %v1994 = vpack.c.b16 %v1992, %v1991
        %vm1997 = vcmask 261120
        %v1999 = vsel %vm1997, %v1973, 0
        %2001 = vmatprep.subr.bf16.mxu0 0
        %2002 = vmatpush1.bf16.msra.mxu0 0
        %2003 = vmatprep.subr.bf16.mxu0 0
        %2004 = vmatpush1.bf16.msra.mxu0 0
        %2005 = vmatprep.subr.bf16.mxu0 0
        %2006 = vmatpush1.bf16.msra.mxu0 0
        %2007 = vmatprep.subr.bf16.mxu0 0
        %2008 = vmatpush1.bf16.msra.mxu0 0
        %2009 = vmatprep.subr.bf16.mxu0 0
        %2010 = vmatpush1.bf16.msra.mxu0 0
        %2011 = vmatprep.subr.bf16.mxu0 0
        %2012 = vmatpush1.bf16.msra.mxu0 0
        %2013 = vmatprep.subr.bf16.mxu0 0
        %2014 = vmatpush1.bf16.msra.mxu0 %v1994
        %2015 = vmatprep.subr.bf16.mxu0 0
        %2016 = vmatpush1.bf16.msra.mxu0 %v1993
        %2017 = vmatprep.subr.bf16.mxu0 0
        %2018 = vmatpush2.bf16.msra.mxu0 0
        %2019 = vmatprep.subr.bf16.mxu0 0
        %2020 = vmatpush2.bf16.msra.mxu0 0
        %2021 = vmatprep.subr.bf16.mxu0 0
        %2022 = vmatpush2.bf16.msra.mxu0 0
        %2023 = vmatprep.subr.bf16.mxu0 0
        %2024 = vmatpush2.bf16.msra.mxu0 0
        %2025 = vmatprep.subr.bf16.mxu0 0
        %2026 = vmatpush2.bf16.msra.mxu0 0
        %2027 = vmatprep.subr.bf16.mxu0 0
        %2028 = vmatpush2.bf16.msra.mxu0 0
        %2029 = vmatprep.subr.bf16.mxu0 0
        %2030 = vmatpush2.bf16.msra.mxu0 0
        %2031 = vmatprep.subr.bf16.mxu0 0
        %2032 = vmatpush2.bf16.msra.mxu0 0
        %2033 = vmatprep.mubr.bf16.mxu0 0
        %2034 = vmatmul.mubr.bf16.gmra.mxu0 %v1999
        %v2035 = vpop.f32.mrf.mxu0
        %v2036 = vadd.f32 %v1983, %v2035
        %v2037 = vpop.f32.mrf.mxu0
        %v2038 = vpop.f32.mrf.mxu0
        %v2039 = vadd.f32 %v1983, %v2038
        %v2040 = vpop.f32.mrf.mxu0
        %2041 = vdwg.mxu0
        %v2042 = vpack.c.bf16 %v2039, %v2036
        %2044 = vrot.lane.b32.xlu0 %v2042, 120
        %v2045 = vpop.permute.xlu0 %2044
        %2046 = vrot.lane.b32.xlu0 %v2042, 112
        %v2047 = vpop.permute.xlu0 %2046
        %2048 = vrot.lane.b32.xlu0 %v2042, 104
        %v2049 = vpop.permute.xlu0 %2048
        %v2052 = vpack.i.b16 %v2045, %v2042
        %v2054 = vshrl.u32 %v2042, 16
        %v2055 = vshrl.u32 %v2045, 16
        %v2056 = vpack.i.b16 %v2055, %v2054
        %v2060 = vpack.i.b16 %v2049, %v2047
        %v2062 = vshrl.u32 %v2047, 16
        %v2063 = vshrl.u32 %v2049, 16
        %v2064 = vpack.i.b16 %v2063, %v2062
        %v2067 = vpack.i.b16 0, 0
        %v2069 = vshrl.u32 0, 16
        %v2070 = vpack.i.b16 %v2069, %v2069
        %v2072 = vcombine.high %v2052, %v2067
        %v2074 = vunpack.c.l.s4 1983009808
        %v2075 = vunpack.c.0.s8 %v2074
        %v2076 = vlaneseq
        %v2077 = vshrl.u32 %v2076, 7
        %v2078 = vsub.s32 %v2075, %v2077
        %v2079 = vrot.slane %v2052, %v2078
        %v2081 = vunpack.c.l.s4 1983009808
        %v2082 = vunpack.c.0.s8 %v2081
        %v2083 = vlaneseq
        %v2084 = vshrl.u32 %v2083, 7
        %v2085 = vsub.s32 %v2082, %v2084
        %v2086 = vrot.slane %v2072, %v2085
        %v2087 = vcombine.high %v2060, %v2067
        %v2089 = vunpack.c.l.s4 1983009808
        %v2090 = vunpack.c.0.s8 %v2089
        %v2091 = vlaneseq
        %v2092 = vshrl.u32 %v2091, 7
        %v2093 = vsub.s32 %v2090, %v2092
        %v2094 = vrot.slane %v2060, %v2093
        %v2096 = vunpack.c.l.s4 1983009808
        %v2097 = vunpack.c.0.s8 %v2096
        %v2098 = vlaneseq
        %v2099 = vshrl.u32 %v2098, 7
        %v2100 = vsub.s32 %v2097, %v2099
        %v2101 = vrot.slane %v2087, %v2100
        %v2102 = vcombine.low %v2079, %v2094
        %v2103 = vcombine.high %v2079, %v2094
        %v2105 = vunpack.c.l.s4 1934713408
        %v2106 = vunpack.c.0.s8 %v2105
        %v2107 = vlaneseq
        %v2108 = vshrl.u32 %v2107, 7
        %v2109 = vsub.s32 %v2106, %v2108
        %v2110 = vrot.slane %v2102, %v2109
        %v2112 = vunpack.c.l.s4 1934713408
        %v2113 = vunpack.c.0.s8 %v2112
        %v2114 = vlaneseq
        %v2115 = vshrl.u32 %v2114, 7
        %v2116 = vsub.s32 %v2113, %v2115
        %v2117 = vrot.slane %v2103, %v2116
        %v2118 = vcombine.low %v2086, %v2101
        %v2119 = vcombine.high %v2086, %v2101
        %v2121 = vunpack.c.l.s4 1934713408
        %v2122 = vunpack.c.0.s8 %v2121
        %v2123 = vlaneseq
        %v2124 = vshrl.u32 %v2123, 7
        %v2125 = vsub.s32 %v2122, %v2124
        %v2126 = vrot.slane %v2118, %v2125
        %v2128 = vunpack.c.l.s4 1934713408
        %v2129 = vunpack.c.0.s8 %v2128
        %v2130 = vlaneseq
        %v2131 = vshrl.u32 %v2130, 7
        %v2132 = vsub.s32 %v2129, %v2131
        %v2133 = vrot.slane %v2119, %v2132
        %v2134 = vcombine.high %v2110, 0
        %v2135 = vcombine.high %v2117, 0
        %v2136 = vcombine.high %v2126, 0
        %v2137 = vcombine.high %v2133, 0
        %v2138 = vcombine.high %v2056, %v2070
        %v2140 = vunpack.c.l.s4 1983009808
        %v2141 = vunpack.c.0.s8 %v2140
        %v2142 = vlaneseq
        %v2143 = vshrl.u32 %v2142, 7
        %v2144 = vsub.s32 %v2141, %v2143
        %v2145 = vrot.slane %v2056, %v2144
        %v2147 = vunpack.c.l.s4 1983009808
        %v2148 = vunpack.c.0.s8 %v2147
        %v2149 = vlaneseq
        %v2150 = vshrl.u32 %v2149, 7
        %v2151 = vsub.s32 %v2148, %v2150
        %v2152 = vrot.slane %v2138, %v2151
        %v2153 = vcombine.high %v2064, %v2070
        %v2155 = vunpack.c.l.s4 1983009808
        %v2156 = vunpack.c.0.s8 %v2155
        %v2157 = vlaneseq
        %v2158 = vshrl.u32 %v2157, 7
        %v2159 = vsub.s32 %v2156, %v2158
        %v2160 = vrot.slane %v2064, %v2159
        %v2162 = vunpack.c.l.s4 1983009808
        %v2163 = vunpack.c.0.s8 %v2162
        %v2164 = vlaneseq
        %v2165 = vshrl.u32 %v2164, 7
        %v2166 = vsub.s32 %v2163, %v2165
        %v2167 = vrot.slane %v2153, %v2166
        %v2168 = vcombine.low %v2145, %v2160
        %v2169 = vcombine.high %v2145, %v2160
        %v2171 = vunpack.c.l.s4 1934713408
        %v2172 = vunpack.c.0.s8 %v2171
        %v2173 = vlaneseq
        %v2174 = vshrl.u32 %v2173, 7
        %v2175 = vsub.s32 %v2172, %v2174
        %v2176 = vrot.slane %v2168, %v2175
        %v2178 = vunpack.c.l.s4 1934713408
        %v2179 = vunpack.c.0.s8 %v2178
        %v2180 = vlaneseq
        %v2181 = vshrl.u32 %v2180, 7
        %v2182 = vsub.s32 %v2179, %v2181
        %v2183 = vrot.slane %v2169, %v2182
        %v2184 = vcombine.low %v2152, %v2167
        %v2185 = vcombine.high %v2152, %v2167
        %v2187 = vunpack.c.l.s4 1934713408
        %v2188 = vunpack.c.0.s8 %v2187
        %v2189 = vlaneseq
        %v2190 = vshrl.u32 %v2189, 7
        %v2191 = vsub.s32 %v2188, %v2190
        %v2192 = vrot.slane %v2184, %v2191
        %v2194 = vunpack.c.l.s4 1934713408
        %v2195 = vunpack.c.0.s8 %v2194
        %v2196 = vlaneseq
        %v2197 = vshrl.u32 %v2196, 7
        %v2198 = vsub.s32 %v2195, %v2197
        %v2199 = vrot.slane %v2185, %v2198
        %v2200 = vcombine.high %v2176, 0
        %v2201 = vcombine.high %v2183, 0
        %v2202 = vcombine.high %v2192, 0
        %v2203 = vcombine.high %v2199, 0
        %v2204 = vcombine.low %v2110, %v2117
        %v2206 = vunpack.c.l.s4 1983009808
        %v2207 = vunpack.c.0.s8 %v2206
        %v2208 = vlaneseq
        %v2209 = vshrl.u32 %v2208, 7
        %v2210 = vsub.s32 %v2207, %v2209
        %v2211 = vrot.slane %v2204, %v2210
        %v2212 = vcombine.low %v2134, %v2135
        %v2214 = vunpack.c.l.s4 1983009808
        %v2215 = vunpack.c.0.s8 %v2214
        %v2216 = vlaneseq
        %v2217 = vshrl.u32 %v2216, 7
        %v2218 = vsub.s32 %v2215, %v2217
        %v2219 = vrot.slane %v2212, %v2218
        %v2220 = vcombine.low %v2126, %v2133
        %v2222 = vunpack.c.l.s4 1983009808
        %v2223 = vunpack.c.0.s8 %v2222
        %v2224 = vlaneseq
        %v2225 = vshrl.u32 %v2224, 7
        %v2226 = vsub.s32 %v2223, %v2225
        %v2227 = vrot.slane %v2220, %v2226
        %v2228 = vcombine.low %v2136, %v2137
        %v2230 = vunpack.c.l.s4 1983009808
        %v2231 = vunpack.c.0.s8 %v2230
        %v2232 = vlaneseq
        %v2233 = vshrl.u32 %v2232, 7
        %v2234 = vsub.s32 %v2231, %v2233
        %v2235 = vrot.slane %v2228, %v2234
        %v2236 = vcombine.low %v2211, %v2219
        %v2238 = vunpack.c.l.s4 1934713408
        %v2239 = vunpack.c.0.s8 %v2238
        %v2240 = vlaneseq
        %v2241 = vshrl.u32 %v2240, 7
        %v2242 = vsub.s32 %v2239, %v2241
        %v2243 = vrot.slane %v2236, %v2242
        %v2244 = vcombine.low %v2227, %v2235
        %v2246 = vunpack.c.l.s4 1934713408
        %v2247 = vunpack.c.0.s8 %v2246
        %v2248 = vlaneseq
        %v2249 = vshrl.u32 %v2248, 7
        %v2250 = vsub.s32 %v2247, %v2249
        %v2251 = vrot.slane %v2244, %v2250
        %v2252 = vcombine.low %v2243, %v2251
        %v2253 = vcombine.high %v2243, %v2251
        %v2254 = vcombine.low %v2176, %v2183
        %v2256 = vunpack.c.l.s4 1983009808
        %v2257 = vunpack.c.0.s8 %v2256
        %v2258 = vlaneseq
        %v2259 = vshrl.u32 %v2258, 7
        %v2260 = vsub.s32 %v2257, %v2259
        %v2261 = vrot.slane %v2254, %v2260
        %v2262 = vcombine.low %v2200, %v2201
        %v2264 = vunpack.c.l.s4 1983009808
        %v2265 = vunpack.c.0.s8 %v2264
        %v2266 = vlaneseq
        %v2267 = vshrl.u32 %v2266, 7
        %v2268 = vsub.s32 %v2265, %v2267
        %v2269 = vrot.slane %v2262, %v2268
        %v2270 = vcombine.low %v2192, %v2199
        %v2272 = vunpack.c.l.s4 1983009808
        %v2273 = vunpack.c.0.s8 %v2272
        %v2274 = vlaneseq
        %v2275 = vshrl.u32 %v2274, 7
        %v2276 = vsub.s32 %v2273, %v2275
        %v2277 = vrot.slane %v2270, %v2276
        %v2278 = vcombine.low %v2202, %v2203
        %v2280 = vunpack.c.l.s4 1983009808
        %v2281 = vunpack.c.0.s8 %v2280
        %v2282 = vlaneseq
        %v2283 = vshrl.u32 %v2282, 7
        %v2284 = vsub.s32 %v2281, %v2283
        %v2285 = vrot.slane %v2278, %v2284
        %v2286 = vcombine.low %v2261, %v2269
        %v2288 = vunpack.c.l.s4 1934713408
        %v2289 = vunpack.c.0.s8 %v2288
        %v2290 = vlaneseq
        %v2291 = vshrl.u32 %v2290, 7
        %v2292 = vsub.s32 %v2289, %v2291
        %v2293 = vrot.slane %v2286, %v2292
        %v2294 = vcombine.low %v2277, %v2285
        %v2296 = vunpack.c.l.s4 1934713408
        %v2297 = vunpack.c.0.s8 %v2296
        %v2298 = vlaneseq
        %v2299 = vshrl.u32 %v2298, 7
        %v2300 = vsub.s32 %v2297, %v2299
        %v2301 = vrot.slane %v2294, %v2300
        %v2302 = vcombine.low %v2293, %v2301
        %v2303 = vcombine.high %v2293, %v2301
        %v2306 = vpack.i.b16 %v2302, %v2252
        %v2307 = vshrl.u32 %v2252, 16
        %v2308 = vshrl.u32 %v2302, 16
        %v2309 = vpack.i.b16 %v2308, %v2307
        %v2312 = vpack.i.b16 %v2303, %v2253
        %v2313 = vshrl.u32 %v2253, 16
        %v2314 = vshrl.u32 %v2303, 16
        %v2315 = vpack.i.b16 %v2314, %v2313
        %v2316 = vld [vmem:[#allocation3] sm:$0xf]
        %v2317 = vld [vmem:[#allocation3 + $0x4] sm:$0xf]
        %v2318 = vld [vmem:[#allocation3 + $0x8] sm:$0xf]
        %v2319 = vld [vmem:[#allocation3 + $0xc] sm:$0xf]
        %v2320 = vld [vmem:[#allocation3 + $0x10] sm:$0xf]
        %v2321 = vld [vmem:[#allocation3 + $0x14] sm:$0xf]
        %v2322 = vld [vmem:[#allocation3 + $0x18] sm:$0xf]
        %v2323 = vld [vmem:[#allocation3 + $0x1c] sm:$0xf]
        %v2324 = vld [vmem:[#allocation3 + $0x20] sm:$0xf]
        %v2325 = vld [vmem:[#allocation3 + $0x24] sm:$0xf]
        %v2326 = vld [vmem:[#allocation3 + $0x28] sm:$0xf]
        %v2327 = vld [vmem:[#allocation3 + $0x2c] sm:$0xf]
        %v2328 = vld [vmem:[#allocation3 + $0x30] sm:$0xf]
        %v2329 = vld [vmem:[#allocation3 + $0x34] sm:$0xf]
        %v2330 = vld [vmem:[#allocation3 + $0x38] sm:$0xf]
        %v2331 = vld [vmem:[#allocation3 + $0x3c] sm:$0xf]
        %v2336 = vunpack.c.l.b16 %v2316
        %v2337 = vunpack.c.l.b16 %v2317
        %v2338 = vunpack.c.l.b16 %v2318
        %v2339 = vunpack.c.l.b16 %v2319
        %v2340 = vpack.c.b16 %v2337, %v2336
        %v2341 = vpack.c.b16 %v2339, %v2338
        %vm2342 = vcmask 64512
        %v2344 = vsel %vm2342, %v2306, 0
        %v2347 = vsel %vm2342, %v2340, 0
        %v2350 = vsel %vm2342, %v2341, 0
        %2352 = vmatprep.subr.bf16.mxu0 0
        %2353 = vmatpush1.bf16.xpose.msra.mxu0 0
        %2354 = vmatprep.subr.bf16.mxu0 0
        %2355 = vmatpush1.bf16.xpose.msra.mxu0 0
        %2356 = vmatprep.subr.bf16.mxu0 0
        %2357 = vmatpush1.bf16.xpose.msra.mxu0 0
        %2358 = vmatprep.subr.bf16.mxu0 0
        %2359 = vmatpush1.bf16.xpose.msra.mxu0 0
        %2360 = vmatprep.subr.bf16.mxu0 0
        %2361 = vmatpush1.bf16.xpose.msra.mxu0 0
        %2362 = vmatprep.subr.bf16.mxu0 0
        %2363 = vmatpush1.bf16.xpose.msra.mxu0 0
        %2364 = vmatprep.subr.bf16.mxu0 0
        %2365 = vmatpush1.bf16.xpose.msra.mxu0 %v2350
        %2366 = vmatprep.subr.bf16.mxu0 0
        %2367 = vmatpush1.bf16.xpose.msra.mxu0 %v2347
        %2368 = vmatprep.subr.bf16.mxu0 0
        %2369 = vmatpush2.bf16.xpose.msra.mxu0 0
        %2370 = vmatprep.subr.bf16.mxu0 0
        %2371 = vmatpush2.bf16.xpose.msra.mxu0 0
        %2372 = vmatprep.subr.bf16.mxu0 0
        %2373 = vmatpush2.bf16.xpose.msra.mxu0 0
        %2374 = vmatprep.subr.bf16.mxu0 0
        %2375 = vmatpush2.bf16.xpose.msra.mxu0 0
        %2376 = vmatprep.subr.bf16.mxu0 0
        %2377 = vmatpush2.bf16.xpose.msra.mxu0 0
        %2378 = vmatprep.subr.bf16.mxu0 0
        %2379 = vmatpush2.bf16.xpose.msra.mxu0 0
        %2380 = vmatprep.subr.bf16.mxu0 0
        %2381 = vmatpush2.bf16.xpose.msra.mxu0 0
        %2382 = vmatprep.subr.bf16.mxu0 0
        %2383 = vmatpush2.bf16.xpose.msra.mxu0 0
        %2384 = vmatprep.mubr.bf16.mxu0 0
        %2385 = vmatmul.mubr.bf16.gmra.mxu0 %v2344
        %v2386 = vpop.f32.mrf.mxu0
        %v2387 = vadd.f32 0.0, %v2386
        %v2388 = vpop.f32.mrf.mxu0
        %v2389 = vpop.f32.mrf.mxu0
        %v2390 = vadd.f32 0.0, %v2389
        %v2391 = vpop.f32.mrf.mxu0
        %2392 = vdwg.mxu0
        %v2397 = vunpack.c.l.b16 %v2320
        %v2398 = vunpack.c.l.b16 %v2321
        %v2399 = vunpack.c.l.b16 %v2322
        %v2400 = vunpack.c.l.b16 %v2323
        %v2401 = vpack.c.b16 %v2398, %v2397
        %v2402 = vpack.c.b16 %v2400, %v2399
        %v2404 = vsel %vm2342, %v2309, 0
        %v2407 = vsel %vm2342, %v2401, 0
        %v2410 = vsel %vm2342, %v2402, 0
        %2412 = vmatprep.subr.bf16.mxu0 0
        %2413 = vmatpush1.bf16.xpose.msra.mxu0 0
        %2414 = vmatprep.subr.bf16.mxu0 0
        %2415 = vmatpush1.bf16.xpose.msra.mxu0 0
        %2416 = vmatprep.subr.bf16.mxu0 0
        %2417 = vmatpush1.bf16.xpose.msra.mxu0 0
        %2418 = vmatprep.subr.bf16.mxu0 0
        %2419 = vmatpush1.bf16.xpose.msra.mxu0 0
        %2420 = vmatprep.subr.bf16.mxu0 0
        %2421 = vmatpush1.bf16.xpose.msra.mxu0 0
        %2422 = vmatprep.subr.bf16.mxu0 0
        %2423 = vmatpush1.bf16.xpose.msra.mxu0 0
        %2424 = vmatprep.subr.bf16.mxu0 0
        %2425 = vmatpush1.bf16.xpose.msra.mxu0 %v2410
        %2426 = vmatprep.subr.bf16.mxu0 0
        %2427 = vmatpush1.bf16.xpose.msra.mxu0 %v2407
        %2428 = vmatprep.subr.bf16.mxu0 0
        %2429 = vmatpush2.bf16.xpose.msra.mxu0 0
        %2430 = vmatprep.subr.bf16.mxu0 0
        %2431 = vmatpush2.bf16.xpose.msra.mxu0 0
        %2432 = vmatprep.subr.bf16.mxu0 0
        %2433 = vmatpush2.bf16.xpose.msra.mxu0 0
        %2434 = vmatprep.subr.bf16.mxu0 0
        %2435 = vmatpush2.bf16.xpose.msra.mxu0 0
        %2436 = vmatprep.subr.bf16.mxu0 0
        %2437 = vmatpush2.bf16.xpose.msra.mxu0 0
        %2438 = vmatprep.subr.bf16.mxu0 0
        %2439 = vmatpush2.bf16.xpose.msra.mxu0 0
        %2440 = vmatprep.subr.bf16.mxu0 0
        %2441 = vmatpush2.bf16.xpose.msra.mxu0 0
        %2442 = vmatprep.subr.bf16.mxu0 0
        %2443 = vmatpush2.bf16.xpose.msra.mxu0 0
        %2444 = vmatprep.mubr.bf16.mxu0 0
        %2445 = vmatmul.mubr.bf16.gmra.mxu0 %v2404
        %v2446 = vpop.f32.mrf.mxu0
        %v2447 = vadd.f32 0.0, %v2446
        %v2448 = vpop.f32.mrf.mxu0
        %v2449 = vpop.f32.mrf.mxu0
        %v2450 = vadd.f32 0.0, %v2449
        %v2451 = vpop.f32.mrf.mxu0
        %2452 = vdwg.mxu0
        %v2457 = vunpack.c.l.b16 %v2324
        %v2458 = vunpack.c.l.b16 %v2325
        %v2459 = vunpack.c.l.b16 %v2326
        %v2460 = vunpack.c.l.b16 %v2327
        %v2461 = vpack.c.b16 %v2458, %v2457
        %v2462 = vpack.c.b16 %v2460, %v2459
        %v2464 = vsel %vm2342, %v2312, 0
        %v2467 = vsel %vm2342, %v2461, 0
        %v2470 = vsel %vm2342, %v2462, 0
        %2472 = vmatprep.subr.bf16.mxu0 0
        %2473 = vmatpush1.bf16.xpose.msra.mxu0 0
        %2474 = vmatprep.subr.bf16.mxu0 0
        %2475 = vmatpush1.bf16.xpose.msra.mxu0 0
        %2476 = vmatprep.subr.bf16.mxu0 0
        %2477 = vmatpush1.bf16.xpose.msra.mxu0 0
        %2478 = vmatprep.subr.bf16.mxu0 0
        %2479 = vmatpush1.bf16.xpose.msra.mxu0 0
        %2480 = vmatprep.subr.bf16.mxu0 0
        %2481 = vmatpush1.bf16.xpose.msra.mxu0 0
        %2482 = vmatprep.subr.bf16.mxu0 0
        %2483 = vmatpush1.bf16.xpose.msra.mxu0 0
        %2484 = vmatprep.subr.bf16.mxu0 0
        %2485 = vmatpush1.bf16.xpose.msra.mxu0 %v2470
        %2486 = vmatprep.subr.bf16.mxu0 0
        %2487 = vmatpush1.bf16.xpose.msra.mxu0 %v2467
        %2488 = vmatprep.subr.bf16.mxu0 0
        %2489 = vmatpush2.bf16.xpose.msra.mxu0 0
        %2490 = vmatprep.subr.bf16.mxu0 0
        %2491 = vmatpush2.bf16.xpose.msra.mxu0 0
        %2492 = vmatprep.subr.bf16.mxu0 0
        %2493 = vmatpush2.bf16.xpose.msra.mxu0 0
        %2494 = vmatprep.subr.bf16.mxu0 0
        %2495 = vmatpush2.bf16.xpose.msra.mxu0 0
        %2496 = vmatprep.subr.bf16.mxu0 0
        %2497 = vmatpush2.bf16.xpose.msra.mxu0 0
        %2498 = vmatprep.subr.bf16.mxu0 0
        %2499 = vmatpush2.bf16.xpose.msra.mxu0 0
        %2500 = vmatprep.subr.bf16.mxu0 0
        %2501 = vmatpush2.bf16.xpose.msra.mxu0 0
        %2502 = vmatprep.subr.bf16.mxu0 0
        %2503 = vmatpush2.bf16.xpose.msra.mxu0 0
        %2504 = vmatprep.mubr.bf16.mxu0 0
        %2505 = vmatmul.mubr.bf16.gmra.mxu0 %v2464
        %v2506 = vpop.f32.mrf.mxu0
        %v2507 = vadd.f32 0.0, %v2506
        %v2508 = vpop.f32.mrf.mxu0
        %v2509 = vpop.f32.mrf.mxu0
        %v2510 = vadd.f32 0.0, %v2509
        %v2511 = vpop.f32.mrf.mxu0
        %2512 = vdwg.mxu0
        %v2517 = vunpack.c.l.b16 %v2328
        %v2518 = vunpack.c.l.b16 %v2329
        %v2519 = vunpack.c.l.b16 %v2330
        %v2520 = vunpack.c.l.b16 %v2331
        %v2521 = vpack.c.b16 %v2518, %v2517
        %v2522 = vpack.c.b16 %v2520, %v2519
        %v2524 = vsel %vm2342, %v2315, 0
        %v2527 = vsel %vm2342, %v2521, 0
        %v2530 = vsel %vm2342, %v2522, 0
        %2532 = vmatprep.subr.bf16.mxu0 0
        %2533 = vmatpush1.bf16.xpose.msra.mxu0 0
        %2534 = vmatprep.subr.bf16.mxu0 0
        %2535 = vmatpush1.bf16.xpose.msra.mxu0 0
        %2536 = vmatprep.subr.bf16.mxu0 0
        %2537 = vmatpush1.bf16.xpose.msra.mxu0 0
        %2538 = vmatprep.subr.bf16.mxu0 0
        %2539 = vmatpush1.bf16.xpose.msra.mxu0 0
        %2540 = vmatprep.subr.bf16.mxu0 0
        %2541 = vmatpush1.bf16.xpose.msra.mxu0 0
        %2542 = vmatprep.subr.bf16.mxu0 0
        %2543 = vmatpush1.bf16.xpose.msra.mxu0 0
        %2544 = vmatprep.subr.bf16.mxu0 0
        %2545 = vmatpush1.bf16.xpose.msra.mxu0 %v2530
        %2546 = vmatprep.subr.bf16.mxu0 0
        %2547 = vmatpush1.bf16.xpose.msra.mxu0 %v2527
        %2548 = vmatprep.subr.bf16.mxu0 0
        %2549 = vmatpush2.bf16.xpose.msra.mxu0 0
        %2550 = vmatprep.subr.bf16.mxu0 0
        %2551 = vmatpush2.bf16.xpose.msra.mxu0 0
        %2552 = vmatprep.subr.bf16.mxu0 0
        %2553 = vmatpush2.bf16.xpose.msra.mxu0 0
        %2554 = vmatprep.subr.bf16.mxu0 0
        %2555 = vmatpush2.bf16.xpose.msra.mxu0 0
        %2556 = vmatprep.subr.bf16.mxu0 0
        %2557 = vmatpush2.bf16.xpose.msra.mxu0 0
        %2558 = vmatprep.subr.bf16.mxu0 0
        %2559 = vmatpush2.bf16.xpose.msra.mxu0 0
        %2560 = vmatprep.subr.bf16.mxu0 0
        %2561 = vmatpush2.bf16.xpose.msra.mxu0 0
        %2562 = vmatprep.subr.bf16.mxu0 0
        %2563 = vmatpush2.bf16.xpose.msra.mxu0 0
        %2564 = vmatprep.mubr.bf16.mxu0 0
        %2565 = vmatmul.mubr.bf16.gmra.mxu0 %v2524
        %v2566 = vpop.f32.mrf.mxu0
        %v2567 = vadd.f32 0.0, %v2566
        %v2568 = vpop.f32.mrf.mxu0
        %v2569 = vpop.f32.mrf.mxu0
        %v2570 = vadd.f32 0.0, %v2569
        %v2571 = vpop.f32.mrf.mxu0
        %2572 = vdwg.mxu0
        %v2573 = vsel %vm1997, %v2387, -inf
        %2574 = vmax.xlane.f32.xlu0 %v2573
        %v2575 = vpop.xlane.xlu0 %2574
        %v2576 = vsel %vm1997, %v2390, -inf
        %2577 = vmax.xlane.f32.xlu0 %v2576
        %v2578 = vpop.xlane.xlu0 %2577
        %v2579 = vsel %vm1997, %v2447, -inf
        %2580 = vmax.xlane.f32.xlu0 %v2579
        %v2581 = vpop.xlane.xlu0 %2580
        %v2582 = vsel %vm1997, %v2450, -inf
        %2583 = vmax.xlane.f32.xlu0 %v2582
        %v2584 = vpop.xlane.xlu0 %2583
        %v2585 = vsel %vm1997, %v2507, -inf
        %2586 = vmax.xlane.f32.xlu0 %v2585
        %v2587 = vpop.xlane.xlu0 %2586
        %v2588 = vsel %vm1997, %v2510, -inf
        %2589 = vmax.xlane.f32.xlu0 %v2588
        %v2590 = vpop.xlane.xlu0 %2589
        %v2591 = vsel %vm1997, %v2567, -inf
        %2592 = vmax.xlane.f32.xlu0 %v2591
        %v2593 = vpop.xlane.xlu0 %2592
        %v2594 = vsel %vm1997, %v2570, -inf
        %2595 = vmax.xlane.f32.xlu0 %v2594
        %v2596 = vpop.xlane.xlu0 %2595
        %v2597 = vsub.f32 %v2387, %v2575
        %v2598 = vsub.f32 %v2390, %v2578
        %v2599 = vsub.f32 %v2447, %v2581
        %v2600 = vsub.f32 %v2450, %v2584
        %v2601 = vsub.f32 %v2507, %v2587
        %v2602 = vsub.f32 %v2510, %v2590
        %v2603 = vsub.f32 %v2567, %v2593
        %v2604 = vsub.f32 %v2570, %v2596
        %v2605 = vmul.f32 %v2597, 1.442695
        %v2606 = vpow.pop %v2605
        %v2607 = vmul.f32 %v2598, 1.442695
        %v2608 = vpow.pop %v2607
        %v2609 = vmul.f32 %v2599, 1.442695
        %v2610 = vpow.pop %v2609
        %v2611 = vmul.f32 %v2600, 1.442695
        %v2612 = vpow.pop %v2611
        %v2613 = vmul.f32 %v2601, 1.442695
        %v2614 = vpow.pop %v2613
        %v2615 = vmul.f32 %v2602, 1.442695
        %v2616 = vpow.pop %v2615
        %v2617 = vmul.f32 %v2603, 1.442695
        %v2618 = vpow.pop %v2617
        %v2619 = vmul.f32 %v2604, 1.442695
        %v2620 = vpow.pop %v2619
        %v2621 = vsel %vm1997, %v2606, 0.0
        %2622 = vadd.xlane.f32.xlu0 %v2621
        %v2623 = vpop.xlane.xlu0 %2622
        %v2624 = vsel %vm1997, %v2608, 0.0
        %2625 = vadd.xlane.f32.xlu0 %v2624
        %v2626 = vpop.xlane.xlu0 %2625
        %v2627 = vsel %vm1997, %v2610, 0.0
        %2628 = vadd.xlane.f32.xlu0 %v2627
        %v2629 = vpop.xlane.xlu0 %2628
        %v2630 = vsel %vm1997, %v2612, 0.0
        %2631 = vadd.xlane.f32.xlu0 %v2630
        %v2632 = vpop.xlane.xlu0 %2631
        %v2633 = vsel %vm1997, %v2614, 0.0
        %2634 = vadd.xlane.f32.xlu0 %v2633
        %v2635 = vpop.xlane.xlu0 %2634
        %v2636 = vsel %vm1997, %v2616, 0.0
        %2637 = vadd.xlane.f32.xlu0 %v2636
        %v2638 = vpop.xlane.xlu0 %2637
        %v2639 = vsel %vm1997, %v2618, 0.0
        %2640 = vadd.xlane.f32.xlu0 %v2639
        %v2641 = vpop.xlane.xlu0 %2640
        %v2642 = vsel %vm1997, %v2620, 0.0
        %2643 = vadd.xlane.f32.xlu0 %v2642
        %v2644 = vpop.xlane.xlu0 %2643
        %v2645 = vrcp.pop %v2623
        %v2646 = vrcp.pop %v2626
        %v2647 = vrcp.pop %v2629
        %v2648 = vrcp.pop %v2632
        %v2649 = vrcp.pop %v2635
        %v2650 = vrcp.pop %v2638
        %v2651 = vrcp.pop %v2641
        %v2652 = vrcp.pop %v2644
        %v2653 = vmul.f32 %v2606, %v2645
        %v2654 = vmul.f32 %v2608, %v2646
        %v2655 = vmul.f32 %v2610, %v2647
        %v2656 = vmul.f32 %v2612, %v2648
        %v2657 = vmul.f32 %v2614, %v2649
        %v2658 = vmul.f32 %v2616, %v2650
        %v2659 = vmul.f32 %v2618, %v2651
        %v2660 = vmul.f32 %v2620, %v2652
        %v2661 = vpack.c.bf16 %v2654, %v2653
        %v2662 = vpack.c.bf16 %v2656, %v2655
        %v2663 = vpack.c.bf16 %v2658, %v2657
        %v2664 = vpack.c.bf16 %v2660, %v2659
        %v2665 = vld [vmem:[#allocation4] sm:$0xf]
        %v2666 = vld [vmem:[#allocation4 + $0x4] sm:$0xf]
        %v2667 = vld [vmem:[#allocation4 + $0x8] sm:$0xf]
        %v2668 = vld [vmem:[#allocation4 + $0xc] sm:$0xf]
        %v2669 = vld [vmem:[#allocation4 + $0x10] sm:$0xf]
        %v2670 = vld [vmem:[#allocation4 + $0x14] sm:$0xf]
        %v2671 = vld [vmem:[#allocation4 + $0x18] sm:$0xf]
        %v2672 = vld [vmem:[#allocation4 + $0x1c] sm:$0xf]
        %v2673 = vld [vmem:[#allocation4 + $0x20] sm:$0xf]
        %v2674 = vld [vmem:[#allocation4 + $0x24] sm:$0xf]
        %v2675 = vld [vmem:[#allocation4 + $0x28] sm:$0xf]
        %v2676 = vld [vmem:[#allocation4 + $0x2c] sm:$0xf]
        %v2677 = vld [vmem:[#allocation4 + $0x30] sm:$0xf]
        %v2678 = vld [vmem:[#allocation4 + $0x34] sm:$0xf]
        %v2679 = vld [vmem:[#allocation4 + $0x38] sm:$0xf]
        %v2680 = vld [vmem:[#allocation4 + $0x3c] sm:$0xf]
        %v2685 = vunpack.c.l.b16 %v2665
        %v2686 = vunpack.c.l.b16 %v2666
        %v2687 = vunpack.c.l.b16 %v2667
        %v2688 = vunpack.c.l.b16 %v2668
        %v2689 = vpack.c.b16 %v2686, %v2685
        %v2690 = vpack.c.b16 %v2688, %v2687
        %v2694 = vsel %vm1997, %v2661, 0
        %2696 = vmatprep.subr.bf16.mxu0 0
        %2697 = vmatpush1.bf16.msra.mxu0 0
        %2698 = vmatprep.subr.bf16.mxu0 0
        %2699 = vmatpush1.bf16.msra.mxu0 0
        %2700 = vmatprep.subr.bf16.mxu0 0
        %2701 = vmatpush1.bf16.msra.mxu0 0
        %2702 = vmatprep.subr.bf16.mxu0 0
        %2703 = vmatpush1.bf16.msra.mxu0 0
        %2704 = vmatprep.subr.bf16.mxu0 0
        %2705 = vmatpush1.bf16.msra.mxu0 0
        %2706 = vmatprep.subr.bf16.mxu0 0
        %2707 = vmatpush1.bf16.msra.mxu0 0
        %2708 = vmatprep.subr.bf16.mxu0 0
        %2709 = vmatpush1.bf16.msra.mxu0 %v2690
        %2710 = vmatprep.subr.bf16.mxu0 0
        %2711 = vmatpush1.bf16.msra.mxu0 %v2689
        %2712 = vmatprep.subr.bf16.mxu0 0
        %2713 = vmatpush2.bf16.msra.mxu0 0
        %2714 = vmatprep.subr.bf16.mxu0 0
        %2715 = vmatpush2.bf16.msra.mxu0 0
        %2716 = vmatprep.subr.bf16.mxu0 0
        %2717 = vmatpush2.bf16.msra.mxu0 0
        %2718 = vmatprep.subr.bf16.mxu0 0
        %2719 = vmatpush2.bf16.msra.mxu0 0
        %2720 = vmatprep.subr.bf16.mxu0 0
        %2721 = vmatpush2.bf16.msra.mxu0 0
        %2722 = vmatprep.subr.bf16.mxu0 0
        %2723 = vmatpush2.bf16.msra.mxu0 0
        %2724 = vmatprep.subr.bf16.mxu0 0
        %2725 = vmatpush2.bf16.msra.mxu0 0
        %2726 = vmatprep.subr.bf16.mxu0 0
        %2727 = vmatpush2.bf16.msra.mxu0 0
        %2728 = vmatprep.mubr.bf16.mxu0 0
        %2729 = vmatmul.mubr.bf16.gmra.mxu0 %v2694
        %v2730 = vpop.f32.mrf.mxu0
        %v2731 = vadd.f32 0.0, %v2730
        %v2732 = vpop.f32.mrf.mxu0
        %v2733 = vpop.f32.mrf.mxu0
        %v2734 = vadd.f32 0.0, %v2733
        %v2735 = vpop.f32.mrf.mxu0
        %2736 = vdwg.mxu0
        %v2741 = vunpack.c.l.b16 %v2669
        %v2742 = vunpack.c.l.b16 %v2670
        %v2743 = vunpack.c.l.b16 %v2671
        %v2744 = vunpack.c.l.b16 %v2672
        %v2745 = vpack.c.b16 %v2742, %v2741
        %v2746 = vpack.c.b16 %v2744, %v2743
        %v2750 = vsel %vm1997, %v2662, 0
        %2752 = vmatprep.subr.bf16.mxu0 0
        %2753 = vmatpush1.bf16.msra.mxu0 0
        %2754 = vmatprep.subr.bf16.mxu0 0
        %2755 = vmatpush1.bf16.msra.mxu0 0
        %2756 = vmatprep.subr.bf16.mxu0 0
        %2757 = vmatpush1.bf16.msra.mxu0 0
        %2758 = vmatprep.subr.bf16.mxu0 0
        %2759 = vmatpush1.bf16.msra.mxu0 0
        %2760 = vmatprep.subr.bf16.mxu0 0
        %2761 = vmatpush1.bf16.msra.mxu0 0
        %2762 = vmatprep.subr.bf16.mxu0 0
        %2763 = vmatpush1.bf16.msra.mxu0 0
        %2764 = vmatprep.subr.bf16.mxu0 0
        %2765 = vmatpush1.bf16.msra.mxu0 %v2746
        %2766 = vmatprep.subr.bf16.mxu0 0
        %2767 = vmatpush1.bf16.msra.mxu0 %v2745
        %2768 = vmatprep.subr.bf16.mxu0 0
        %2769 = vmatpush2.bf16.msra.mxu0 0
        %2770 = vmatprep.subr.bf16.mxu0 0
        %2771 = vmatpush2.bf16.msra.mxu0 0
        %2772 = vmatprep.subr.bf16.mxu0 0
        %2773 = vmatpush2.bf16.msra.mxu0 0
        %2774 = vmatprep.subr.bf16.mxu0 0
        %2775 = vmatpush2.bf16.msra.mxu0 0
        %2776 = vmatprep.subr.bf16.mxu0 0
        %2777 = vmatpush2.bf16.msra.mxu0 0
        %2778 = vmatprep.subr.bf16.mxu0 0
        %2779 = vmatpush2.bf16.msra.mxu0 0
        %2780 = vmatprep.subr.bf16.mxu0 0
        %2781 = vmatpush2.bf16.msra.mxu0 0
        %2782 = vmatprep.subr.bf16.mxu0 0
        %2783 = vmatpush2.bf16.msra.mxu0 0
        %2784 = vmatprep.mubr.bf16.mxu0 0
        %2785 = vmatmul.mubr.bf16.gmra.mxu0 %v2750
        %v2786 = vpop.f32.mrf.mxu0
        %v2787 = vadd.f32 0.0, %v2786
        %v2788 = vpop.f32.mrf.mxu0
        %v2789 = vpop.f32.mrf.mxu0
        %v2790 = vadd.f32 0.0, %v2789
        %v2791 = vpop.f32.mrf.mxu0
        %2792 = vdwg.mxu0
        %v2797 = vunpack.c.l.b16 %v2673
        %v2798 = vunpack.c.l.b16 %v2674
        %v2799 = vunpack.c.l.b16 %v2675
        %v2800 = vunpack.c.l.b16 %v2676
        %v2801 = vpack.c.b16 %v2798, %v2797
        %v2802 = vpack.c.b16 %v2800, %v2799
        %v2806 = vsel %vm1997, %v2663, 0
        %2808 = vmatprep.subr.bf16.mxu0 0
        %2809 = vmatpush1.bf16.msra.mxu0 0
        %2810 = vmatprep.subr.bf16.mxu0 0
        %2811 = vmatpush1.bf16.msra.mxu0 0
        %2812 = vmatprep.subr.bf16.mxu0 0
        %2813 = vmatpush1.bf16.msra.mxu0 0
        %2814 = vmatprep.subr.bf16.mxu0 0
        %2815 = vmatpush1.bf16.msra.mxu0 0
        %2816 = vmatprep.subr.bf16.mxu0 0
        %2817 = vmatpush1.bf16.msra.mxu0 0
        %2818 = vmatprep.subr.bf16.mxu0 0
        %2819 = vmatpush1.bf16.msra.mxu0 0
        %2820 = vmatprep.subr.bf16.mxu0 0
        %2821 = vmatpush1.bf16.msra.mxu0 %v2802
        %2822 = vmatprep.subr.bf16.mxu0 0
        %2823 = vmatpush1.bf16.msra.mxu0 %v2801
        %2824 = vmatprep.subr.bf16.mxu0 0
        %2825 = vmatpush2.bf16.msra.mxu0 0
        %2826 = vmatprep.subr.bf16.mxu0 0
        %2827 = vmatpush2.bf16.msra.mxu0 0
        %2828 = vmatprep.subr.bf16.mxu0 0
        %2829 = vmatpush2.bf16.msra.mxu0 0
        %2830 = vmatprep.subr.bf16.mxu0 0
        %2831 = vmatpush2.bf16.msra.mxu0 0
        %2832 = vmatprep.subr.bf16.mxu0 0
        %2833 = vmatpush2.bf16.msra.mxu0 0
        %2834 = vmatprep.subr.bf16.mxu0 0
        %2835 = vmatpush2.bf16.msra.mxu0 0
        %2836 = vmatprep.subr.bf16.mxu0 0
        %2837 = vmatpush2.bf16.msra.mxu0 0
        %2838 = vmatprep.subr.bf16.mxu0 0
        %2839 = vmatpush2.bf16.msra.mxu0 0
        %2840 = vmatprep.mubr.bf16.mxu0 0
        %2841 = vmatmul.mubr.bf16.gmra.mxu0 %v2806
        %v2842 = vpop.f32.mrf.mxu0
        %v2843 = vadd.f32 0.0, %v2842
        %v2844 = vpop.f32.mrf.mxu0
        %v2845 = vpop.f32.mrf.mxu0
        %v2846 = vadd.f32 0.0, %v2845
        %v2847 = vpop.f32.mrf.mxu0
        %2848 = vdwg.mxu0
        %v2853 = vunpack.c.l.b16 %v2677
        %v2854 = vunpack.c.l.b16 %v2678
        %v2855 = vunpack.c.l.b16 %v2679
        %v2856 = vunpack.c.l.b16 %v2680
        %v2857 = vpack.c.b16 %v2854, %v2853
        %v2858 = vpack.c.b16 %v2856, %v2855
        %v2862 = vsel %vm1997, %v2664, 0
        %2864 = vmatprep.subr.bf16.mxu0 0
        %2865 = vmatpush1.bf16.msra.mxu0 0
        %2866 = vmatprep.subr.bf16.mxu0 0
        %2867 = vmatpush1.bf16.msra.mxu0 0
        %2868 = vmatprep.subr.bf16.mxu0 0
        %2869 = vmatpush1.bf16.msra.mxu0 0
        %2870 = vmatprep.subr.bf16.mxu0 0
        %2871 = vmatpush1.bf16.msra.mxu0 0
        %2872 = vmatprep.subr.bf16.mxu0 0
        %2873 = vmatpush1.bf16.msra.mxu0 0
        %2874 = vmatprep.subr.bf16.mxu0 0
        %2875 = vmatpush1.bf16.msra.mxu0 0
        %2876 = vmatprep.subr.bf16.mxu0 0
        %2877 = vmatpush1.bf16.msra.mxu0 %v2858
        %2878 = vmatprep.subr.bf16.mxu0 0
        %2879 = vmatpush1.bf16.msra.mxu0 %v2857
        %2880 = vmatprep.subr.bf16.mxu0 0
        %2881 = vmatpush2.bf16.msra.mxu0 0
        %2882 = vmatprep.subr.bf16.mxu0 0
        %2883 = vmatpush2.bf16.msra.mxu0 0
        %2884 = vmatprep.subr.bf16.mxu0 0
        %2885 = vmatpush2.bf16.msra.mxu0 0
        %2886 = vmatprep.subr.bf16.mxu0 0
        %2887 = vmatpush2.bf16.msra.mxu0 0
        %2888 = vmatprep.subr.bf16.mxu0 0
        %2889 = vmatpush2.bf16.msra.mxu0 0
        %2890 = vmatprep.subr.bf16.mxu0 0
        %2891 = vmatpush2.bf16.msra.mxu0 0
        %2892 = vmatprep.subr.bf16.mxu0 0
        %2893 = vmatpush2.bf16.msra.mxu0 0
        %2894 = vmatprep.subr.bf16.mxu0 0
        %2895 = vmatpush2.bf16.msra.mxu0 0
        %2896 = vmatprep.mubr.bf16.mxu0 0
        %2897 = vmatmul.mubr.bf16.gmra.mxu0 %v2862
        %v2898 = vpop.f32.mrf.mxu0
        %v2899 = vadd.f32 0.0, %v2898
        %v2900 = vpop.f32.mrf.mxu0
        %v2901 = vpop.f32.mrf.mxu0
        %v2902 = vadd.f32 0.0, %v2901
        %v2903 = vpop.f32.mrf.mxu0
        %2904 = vdwg.mxu0
        %v2905 = vpack.c.bf16 %v2734, %v2731
        %v2906 = vpack.c.bf16 %v2790, %v2787
        %v2907 = vpack.c.bf16 %v2846, %v2843
        %v2908 = vpack.c.bf16 %v2902, %v2899
        %v2911 = vpack.i.b16 %v2906, %v2905
        %v2913 = vshrl.u32 %v2905, 16
        %v2914 = vshrl.u32 %v2906, 16
        %v2915 = vpack.i.b16 %v2914, %v2913
        %v2919 = vpack.i.b16 %v2908, %v2907
        %v2921 = vshrl.u32 %v2907, 16
        %v2922 = vshrl.u32 %v2908, 16
        %v2923 = vpack.i.b16 %v2922, %v2921
        %v2925 = vcombine.high %v2911, %v2067
        %v2927 = vunpack.c.l.s4 1983009808
        %v2928 = vunpack.c.0.s8 %v2927
        %v2929 = vlaneseq
        %v2930 = vshrl.u32 %v2929, 7
        %v2931 = vsub.s32 %v2928, %v2930
        %v2932 = vrot.slane %v2911, %v2931
        %v2934 = vunpack.c.l.s4 1983009808
        %v2935 = vunpack.c.0.s8 %v2934
        %v2936 = vlaneseq
        %v2937 = vshrl.u32 %v2936, 7
        %v2938 = vsub.s32 %v2935, %v2937
        %v2939 = vrot.slane %v2925, %v2938
        %v2940 = vcombine.high %v2919, %v2067
        %v2942 = vunpack.c.l.s4 1983009808
        %v2943 = vunpack.c.0.s8 %v2942
        %v2944 = vlaneseq
        %v2945 = vshrl.u32 %v2944, 7
        %v2946 = vsub.s32 %v2943, %v2945
        %v2947 = vrot.slane %v2919, %v2946
        %v2949 = vunpack.c.l.s4 1983009808
        %v2950 = vunpack.c.0.s8 %v2949
        %v2951 = vlaneseq
        %v2952 = vshrl.u32 %v2951, 7
        %v2953 = vsub.s32 %v2950, %v2952
        %v2954 = vrot.slane %v2940, %v2953
        %v2955 = vcombine.low %v2932, %v2947
        %v2956 = vcombine.high %v2932, %v2947
        %v2958 = vunpack.c.l.s4 1934713408
        %v2959 = vunpack.c.0.s8 %v2958
        %v2960 = vlaneseq
        %v2961 = vshrl.u32 %v2960, 7
        %v2962 = vsub.s32 %v2959, %v2961
        %v2963 = vrot.slane %v2955, %v2962
        %v2965 = vunpack.c.l.s4 1934713408
        %v2966 = vunpack.c.0.s8 %v2965
        %v2967 = vlaneseq
        %v2968 = vshrl.u32 %v2967, 7
        %v2969 = vsub.s32 %v2966, %v2968
        %v2970 = vrot.slane %v2956, %v2969
        %v2971 = vcombine.low %v2939, %v2954
        %v2972 = vcombine.high %v2939, %v2954
        %v2974 = vunpack.c.l.s4 1934713408
        %v2975 = vunpack.c.0.s8 %v2974
        %v2976 = vlaneseq
        %v2977 = vshrl.u32 %v2976, 7
        %v2978 = vsub.s32 %v2975, %v2977
        %v2979 = vrot.slane %v2971, %v2978
        %v2981 = vunpack.c.l.s4 1934713408
        %v2982 = vunpack.c.0.s8 %v2981
        %v2983 = vlaneseq
        %v2984 = vshrl.u32 %v2983, 7
        %v2985 = vsub.s32 %v2982, %v2984
        %v2986 = vrot.slane %v2972, %v2985
        %v2987 = vcombine.high %v2963, 0
        %v2988 = vcombine.high %v2970, 0
        %v2989 = vcombine.high %v2979, 0
        %v2990 = vcombine.high %v2986, 0
        %v2991 = vcombine.high %v2915, %v2070
        %v2993 = vunpack.c.l.s4 1983009808
        %v2994 = vunpack.c.0.s8 %v2993
        %v2995 = vlaneseq
        %v2996 = vshrl.u32 %v2995, 7
        %v2997 = vsub.s32 %v2994, %v2996
        %v2998 = vrot.slane %v2915, %v2997
        %v3000 = vunpack.c.l.s4 1983009808
        %v3001 = vunpack.c.0.s8 %v3000
        %v3002 = vlaneseq
        %v3003 = vshrl.u32 %v3002, 7
        %v3004 = vsub.s32 %v3001, %v3003
        %v3005 = vrot.slane %v2991, %v3004
        %v3006 = vcombine.high %v2923, %v2070
        %v3008 = vunpack.c.l.s4 1983009808
        %v3009 = vunpack.c.0.s8 %v3008
        %v3010 = vlaneseq
        %v3011 = vshrl.u32 %v3010, 7
        %v3012 = vsub.s32 %v3009, %v3011
        %v3013 = vrot.slane %v2923, %v3012
        %v3015 = vunpack.c.l.s4 1983009808
        %v3016 = vunpack.c.0.s8 %v3015
        %v3017 = vlaneseq
        %v3018 = vshrl.u32 %v3017, 7
        %v3019 = vsub.s32 %v3016, %v3018
        %v3020 = vrot.slane %v3006, %v3019
        %v3021 = vcombine.low %v2998, %v3013
        %v3022 = vcombine.high %v2998, %v3013
        %v3024 = vunpack.c.l.s4 1934713408
        %v3025 = vunpack.c.0.s8 %v3024
        %v3026 = vlaneseq
        %v3027 = vshrl.u32 %v3026, 7
        %v3028 = vsub.s32 %v3025, %v3027
        %v3029 = vrot.slane %v3021, %v3028
        %v3031 = vunpack.c.l.s4 1934713408
        %v3032 = vunpack.c.0.s8 %v3031
        %v3033 = vlaneseq
        %v3034 = vshrl.u32 %v3033, 7
        %v3035 = vsub.s32 %v3032, %v3034
        %v3036 = vrot.slane %v3022, %v3035
        %v3037 = vcombine.low %v3005, %v3020
        %v3038 = vcombine.high %v3005, %v3020
        %v3040 = vunpack.c.l.s4 1934713408
        %v3041 = vunpack.c.0.s8 %v3040
        %v3042 = vlaneseq
        %v3043 = vshrl.u32 %v3042, 7
        %v3044 = vsub.s32 %v3041, %v3043
        %v3045 = vrot.slane %v3037, %v3044
        %v3047 = vunpack.c.l.s4 1934713408
        %v3048 = vunpack.c.0.s8 %v3047
        %v3049 = vlaneseq
        %v3050 = vshrl.u32 %v3049, 7
        %v3051 = vsub.s32 %v3048, %v3050
        %v3052 = vrot.slane %v3038, %v3051
        %v3053 = vcombine.high %v3029, 0
        %v3054 = vcombine.high %v3036, 0
        %v3055 = vcombine.high %v3045, 0
        %v3056 = vcombine.high %v3052, 0
        %v3057 = vcombine.low %v2963, %v2970
        %v3059 = vunpack.c.l.s4 1983009808
        %v3060 = vunpack.c.0.s8 %v3059
        %v3061 = vlaneseq
        %v3062 = vshrl.u32 %v3061, 7
        %v3063 = vsub.s32 %v3060, %v3062
        %v3064 = vrot.slane %v3057, %v3063
        %v3065 = vcombine.low %v2987, %v2988
        %v3067 = vunpack.c.l.s4 1983009808
        %v3068 = vunpack.c.0.s8 %v3067
        %v3069 = vlaneseq
        %v3070 = vshrl.u32 %v3069, 7
        %v3071 = vsub.s32 %v3068, %v3070
        %v3072 = vrot.slane %v3065, %v3071
        %v3073 = vcombine.low %v2979, %v2986
        %v3075 = vunpack.c.l.s4 1983009808
        %v3076 = vunpack.c.0.s8 %v3075
        %v3077 = vlaneseq
        %v3078 = vshrl.u32 %v3077, 7
        %v3079 = vsub.s32 %v3076, %v3078
        %v3080 = vrot.slane %v3073, %v3079
        %v3081 = vcombine.low %v2989, %v2990
        %v3083 = vunpack.c.l.s4 1983009808
        %v3084 = vunpack.c.0.s8 %v3083
        %v3085 = vlaneseq
        %v3086 = vshrl.u32 %v3085, 7
        %v3087 = vsub.s32 %v3084, %v3086
        %v3088 = vrot.slane %v3081, %v3087
        %v3089 = vcombine.low %v3064, %v3072
        %v3091 = vunpack.c.l.s4 1934713408
        %v3092 = vunpack.c.0.s8 %v3091
        %v3093 = vlaneseq
        %v3094 = vshrl.u32 %v3093, 7
        %v3095 = vsub.s32 %v3092, %v3094
        %v3096 = vrot.slane %v3089, %v3095
        %v3097 = vcombine.low %v3080, %v3088
        %v3099 = vunpack.c.l.s4 1934713408
        %v3100 = vunpack.c.0.s8 %v3099
        %v3101 = vlaneseq
        %v3102 = vshrl.u32 %v3101, 7
        %v3103 = vsub.s32 %v3100, %v3102
        %v3104 = vrot.slane %v3097, %v3103
        %v3105 = vcombine.low %v3096, %v3104
        %v3106 = vcombine.high %v3096, %v3104
        %v3107 = vcombine.low %v3029, %v3036
        %v3109 = vunpack.c.l.s4 1983009808
        %v3110 = vunpack.c.0.s8 %v3109
        %v3111 = vlaneseq
        %v3112 = vshrl.u32 %v3111, 7
        %v3113 = vsub.s32 %v3110, %v3112
        %v3114 = vrot.slane %v3107, %v3113
        %v3115 = vcombine.low %v3053, %v3054
        %v3117 = vunpack.c.l.s4 1983009808
        %v3118 = vunpack.c.0.s8 %v3117
        %v3119 = vlaneseq
        %v3120 = vshrl.u32 %v3119, 7
        %v3121 = vsub.s32 %v3118, %v3120
        %v3122 = vrot.slane %v3115, %v3121
        %v3123 = vcombine.low %v3045, %v3052
        %v3125 = vunpack.c.l.s4 1983009808
        %v3126 = vunpack.c.0.s8 %v3125
        %v3127 = vlaneseq
        %v3128 = vshrl.u32 %v3127, 7
        %v3129 = vsub.s32 %v3126, %v3128
        %v3130 = vrot.slane %v3123, %v3129
        %v3131 = vcombine.low %v3055, %v3056
        %v3133 = vunpack.c.l.s4 1983009808
        %v3134 = vunpack.c.0.s8 %v3133
        %v3135 = vlaneseq
        %v3136 = vshrl.u32 %v3135, 7
        %v3137 = vsub.s32 %v3134, %v3136
        %v3138 = vrot.slane %v3131, %v3137
        %v3139 = vcombine.low %v3114, %v3122
        %v3141 = vunpack.c.l.s4 1934713408
        %v3142 = vunpack.c.0.s8 %v3141
        %v3143 = vlaneseq
        %v3144 = vshrl.u32 %v3143, 7
        %v3145 = vsub.s32 %v3142, %v3144
        %v3146 = vrot.slane %v3139, %v3145
        %v3147 = vcombine.low %v3130, %v3138
        %v3149 = vunpack.c.l.s4 1934713408
        %v3150 = vunpack.c.0.s8 %v3149
        %v3151 = vlaneseq
        %v3152 = vshrl.u32 %v3151, 7
        %v3153 = vsub.s32 %v3150, %v3152
        %v3154 = vrot.slane %v3147, %v3153
        %v3155 = vcombine.low %v3146, %v3154
        %v3156 = vcombine.high %v3146, %v3154
        %v3159 = vpack.i.b16 %v3155, %v3105
        %v3160 = vshrl.u32 %v3105, 16
        %v3161 = vshrl.u32 %v3155, 16
        %v3162 = vpack.i.b16 %v3161, %v3160
        %v3165 = vpack.i.b16 %v3156, %v3106
        %v3166 = vshrl.u32 %v3106, 16
        %v3167 = vshrl.u32 %v3156, 16
        %v3168 = vpack.i.b16 %v3167, %v3166
        %3169 = vrot.lane.b32.xlu0 %v3162, 8
        %v3170 = vpop.permute.xlu0 %3169
        %3171 = vrot.lane.b32.xlu0 %v3165, 16
        %v3172 = vpop.permute.xlu0 %3171
        %3173 = vrot.lane.b32.xlu0 %v3168, 24
        %v3174 = vpop.permute.xlu0 %3173
        %v3177 = vsel %vm2342, %v3159, %v3170
        %vm3178 = vcmask 130048
        %v3180 = vsel %vm3178, %v3177, %v3172
        %vm3181 = vcmask 195584
        %v3183 = vsel %vm3181, %v3180, %v3174
        %v3184 = vld [vmem:[%s9] sm:$0xf]
        %v3185 = vld [vmem:[%s9 + $0x4] sm:$0xf]
        %v3186 = vld [vmem:[%s9 + $0x8] sm:$0xf]
        %v3187 = vld [vmem:[%s9 + $0xc] sm:$0xf]
        %v3188 = vld [vmem:[%s10] sm:$0x1]
        %v3190 = vlaneseq
        %v3191 = vshrl.u32 %v3190, 7
        %v3192 = vsub.s32 0, %v3191
        %v3193 = vrot.slane %v3188, %v3192
        %v3199 = vunpack.c.l.b16 %v3184
        %v3200 = vunpack.c.l.b16 %v3185
        %v3201 = vunpack.c.l.b16 %v3186
        %v3202 = vunpack.c.l.b16 %v3187
        %v3203 = vpack.c.b16 %v3200, %v3199
        %v3204 = vpack.c.b16 %v3202, %v3201
        %v3207 = vsel %vm1997, %v3183, 0
        %3209 = vmatprep.subr.bf16.mxu0 0
        %3210 = vmatpush1.bf16.msra.mxu0 0
        %3211 = vmatprep.subr.bf16.mxu0 0
        %3212 = vmatpush1.bf16.msra.mxu0 0
        %3213 = vmatprep.subr.bf16.mxu0 0
        %3214 = vmatpush1.bf16.msra.mxu0 0
        %3215 = vmatprep.subr.bf16.mxu0 0
        %3216 = vmatpush1.bf16.msra.mxu0 0
        %3217 = vmatprep.subr.bf16.mxu0 0
        %3218 = vmatpush1.bf16.msra.mxu0 0
        %3219 = vmatprep.subr.bf16.mxu0 0
        %3220 = vmatpush1.bf16.msra.mxu0 0
        %3221 = vmatprep.subr.bf16.mxu0 0
        %3222 = vmatpush1.bf16.msra.mxu0 %v3204
        %3223 = vmatprep.subr.bf16.mxu0 0
        %3224 = vmatpush1.bf16.msra.mxu0 %v3203
        %3225 = vmatprep.subr.bf16.mxu0 0
        %3226 = vmatpush2.bf16.msra.mxu0 0
        %3227 = vmatprep.subr.bf16.mxu0 0
        %3228 = vmatpush2.bf16.msra.mxu0 0
        %3229 = vmatprep.subr.bf16.mxu0 0
        %3230 = vmatpush2.bf16.msra.mxu0 0
        %3231 = vmatprep.subr.bf16.mxu0 0
        %3232 = vmatpush2.bf16.msra.mxu0 0
        %3233 = vmatprep.subr.bf16.mxu0 0
        %3234 = vmatpush2.bf16.msra.mxu0 0
        %3235 = vmatprep.subr.bf16.mxu0 0
        %3236 = vmatpush2.bf16.msra.mxu0 0
        %3237 = vmatprep.subr.bf16.mxu0 0
        %3238 = vmatpush2.bf16.msra.mxu0 0
        %3239 = vmatprep.subr.bf16.mxu0 0
        %3240 = vmatpush2.bf16.msra.mxu0 0
        %3241 = vmatprep.mubr.bf16.mxu0 0
        %3242 = vmatmul.mubr.bf16.gmra.mxu0 %v3207
        %v3243 = vpop.f32.mrf.mxu0
        %v3244 = vadd.f32 %v3193, %v3243
        %v3245 = vpop.f32.mrf.mxu0
        %v3246 = vpop.f32.mrf.mxu0
        %v3247 = vadd.f32 %v3193, %v3246
        %v3248 = vpop.f32.mrf.mxu0
        %3249 = vdwg.mxu0
        %v3250 = vadd.f32 %v1971, %v3244
        %v3251 = vadd.f32 %v1972, %v3247
        %v3252 = vpack.c.bf16 %v3251, %v3250
        %v3253 = vld [vmem:[%s11] sm:$0xf]
        %v3254 = vld [vmem:[%s11 + $0x4] sm:$0xf]
        %v3255 = vld [vmem:[%s11 + $0x8] sm:$0xf]
        %v3256 = vld [vmem:[%s11 + $0xc] sm:$0xf]
        %v3257 = vld [vmem:[%s12] sm:$0x1]
        %v3259 = vlaneseq
        %v3260 = vshrl.u32 %v3259, 7
        %v3261 = vsub.s32 0, %v3260
        %v3262 = vrot.slane %v3257, %v3261
        %v3268 = vunpack.c.l.b16 %v3253
        %v3269 = vunpack.c.l.b16 %v3254
        %v3270 = vunpack.c.l.b16 %v3255
        %v3271 = vunpack.c.l.b16 %v3256
        %v3272 = vpack.c.b16 %v3269, %v3268
        %v3273 = vpack.c.b16 %v3271, %v3270
        %v3277 = vsel %vm1997, %v3252, 0
        %3279 = vmatprep.subr.bf16.mxu0 0
        %3280 = vmatpush1.bf16.msra.mxu0 0
        %3281 = vmatprep.subr.bf16.mxu0 0
        %3282 = vmatpush1.bf16.msra.mxu0 0
        %3283 = vmatprep.subr.bf16.mxu0 0
        %3284 = vmatpush1.bf16.msra.mxu0 0
        %3285 = vmatprep.subr.bf16.mxu0 0
        %3286 = vmatpush1.bf16.msra.mxu0 0
        %3287 = vmatprep.subr.bf16.mxu0 0
        %3288 = vmatpush1.bf16.msra.mxu0 0
        %3289 = vmatprep.subr.bf16.mxu0 0
        %3290 = vmatpush1.bf16.msra.mxu0 0
        %3291 = vmatprep.subr.bf16.mxu0 0
        %3292 = vmatpush1.bf16.msra.mxu0 %v3273
        %3293 = vmatprep.subr.bf16.mxu0 0
        %3294 = vmatpush1.bf16.msra.mxu0 %v3272
        %3295 = vmatprep.subr.bf16.mxu0 0
        %3296 = vmatpush2.bf16.msra.mxu0 0
        %3297 = vmatprep.subr.bf16.mxu0 0
        %3298 = vmatpush2.bf16.msra.mxu0 0
        %3299 = vmatprep.subr.bf16.mxu0 0
        %3300 = vmatpush2.bf16.msra.mxu0 0
        %3301 = vmatprep.subr.bf16.mxu0 0
        %3302 = vmatpush2.bf16.msra.mxu0 0
        %3303 = vmatprep.subr.bf16.mxu0 0
        %3304 = vmatpush2.bf16.msra.mxu0 0
        %3305 = vmatprep.subr.bf16.mxu0 0
        %3306 = vmatpush2.bf16.msra.mxu0 0
        %3307 = vmatprep.subr.bf16.mxu0 0
        %3308 = vmatpush2.bf16.msra.mxu0 0
        %3309 = vmatprep.subr.bf16.mxu0 0
        %3310 = vmatpush2.bf16.msra.mxu0 0
        %3311 = vmatprep.mubr.bf16.mxu0 0
        %3312 = vmatmul.mubr.bf16.gmra.mxu0 %v3277
        %v3313 = vpop.f32.mrf.mxu0
        %v3314 = vadd.f32 %v3262, %v3313
        %v3315 = vpop.f32.mrf.mxu0
        %v3316 = vpop.f32.mrf.mxu0
        %v3317 = vadd.f32 %v3262, %v3316
        %v3318 = vpop.f32.mrf.mxu0
        %3319 = vdwg.mxu0
        %v3320 = vmax.f32 %v3314, 0.0
        %v3321 = vmax.f32 %v3317, 0.0
        %v3322 = vpack.c.bf16 %v3321, %v3320
        %v3323 = vld [vmem:[%s13] sm:$0xf]
        %v3324 = vld [vmem:[%s13 + $0x4] sm:$0xf]
        %v3325 = vld [vmem:[%s13 + $0x8] sm:$0xf]
        %v3326 = vld [vmem:[%s13 + $0xc] sm:$0xf]
        %v3327 = vld [vmem:[%s14] sm:$0x1]
        %v3329 = vlaneseq
        %v3330 = vshrl.u32 %v3329, 7
        %v3331 = vsub.s32 0, %v3330
        %v3332 = vrot.slane %v3327, %v3331
        %v3338 = vunpack.c.l.b16 %v3323
        %v3339 = vunpack.c.l.b16 %v3324
        %v3340 = vunpack.c.l.b16 %v3325
        %v3341 = vunpack.c.l.b16 %v3326
        %v3342 = vpack.c.b16 %v3339, %v3338
        %v3343 = vpack.c.b16 %v3341, %v3340
        %v3347 = vsel %vm1997, %v3322, 0
        %3349 = vmatprep.subr.bf16.mxu0 0
        %3350 = vmatpush1.bf16.msra.mxu0 0
        %3351 = vmatprep.subr.bf16.mxu0 0
        %3352 = vmatpush1.bf16.msra.mxu0 0
        %3353 = vmatprep.subr.bf16.mxu0 0
        %3354 = vmatpush1.bf16.msra.mxu0 0
        %3355 = vmatprep.subr.bf16.mxu0 0
        %3356 = vmatpush1.bf16.msra.mxu0 0
        %3357 = vmatprep.subr.bf16.mxu0 0
        %3358 = vmatpush1.bf16.msra.mxu0 0
        %3359 = vmatprep.subr.bf16.mxu0 0
        %3360 = vmatpush1.bf16.msra.mxu0 0
        %3361 = vmatprep.subr.bf16.mxu0 0
        %3362 = vmatpush1.bf16.msra.mxu0 %v3343
        %3363 = vmatprep.subr.bf16.mxu0 0
        %3364 = vmatpush1.bf16.msra.mxu0 %v3342
        %3365 = vmatprep.subr.bf16.mxu0 0
        %3366 = vmatpush2.bf16.msra.mxu0 0
        %3367 = vmatprep.subr.bf16.mxu0 0
        %3368 = vmatpush2.bf16.msra.mxu0 0
        %3369 = vmatprep.subr.bf16.mxu0 0
        %3370 = vmatpush2.bf16.msra.mxu0 0
        %3371 = vmatprep.subr.bf16.mxu0 0
        %3372 = vmatpush2.bf16.msra.mxu0 0
        %3373 = vmatprep.subr.bf16.mxu0 0
        %3374 = vmatpush2.bf16.msra.mxu0 0
        %3375 = vmatprep.subr.bf16.mxu0 0
        %3376 = vmatpush2.bf16.msra.mxu0 0
        %3377 = vmatprep.subr.bf16.mxu0 0
        %3378 = vmatpush2.bf16.msra.mxu0 0
        %3379 = vmatprep.subr.bf16.mxu0 0
        %3380 = vmatpush2.bf16.msra.mxu0 0
        %3381 = vmatprep.mubr.bf16.mxu0 0
        %3382 = vmatmul.mubr.bf16.gmra.mxu0 %v3347
        %v3383 = vpop.f32.mrf.mxu0
        %v3384 = vadd.f32 %v3332, %v3383
        %v3385 = vpop.f32.mrf.mxu0
        %v3386 = vpop.f32.mrf.mxu0
        %v3387 = vadd.f32 %v3332, %v3386
        %v3388 = vpop.f32.mrf.mxu0
        %3389 = vdwg.mxu0
        %v3390 = vadd.f32 %v3250, %v3384
        %v3391 = vadd.f32 %v3251, %v3387
        %3392 = vst.msk [vmem:[%s501] sm:$0xff] %vm1997, %v3390
        %3393 = vst.msk [vmem:[%s501 + $0x8] sm:$0xff] %vm1997, %v3391
        %s3394 = sand.u32 %s371, 1
        %s3395 = scalar_lea.sflag [#allocation6], %s3394
        %s3396 = sand.u32 %s371, 1
        %s3397 = smul.addr %s3396, 16
        %s3398 = scalar_lea.vmem [#allocation5], %s3397
        // Predicated region
        $region85: #{transformer_encoder.3} parent=79 // pred_check
          %p3399 = pneg %p381
        $region86: #{transformer_encoder.3} parent=79 // pred_check_branch
          %3401 = sbr.rel (%p3399) target = $region88
        $region87: #{transformer_encoder.3} parent=79 // pred_region
          %s3402 = smul.u32 2, %s34
          %s3404 = ssub.s32 256, 256
          %3405 = vsyncadd %s3395, %s3404
          %s3406 = smul.addr %s33, 4
          %s3407 = sadd.s32 %s3402, %s3406
          %s3408 = smul.addr %s3407, 128
          %s3409 = scalar_lea.hbm %s15, %s3408
          %s3410 = sshll.u32 %s3398, 4
          %s3411 = int_to_ptr.vmem [resolvable:$true] %s3410
          %3416 = dma.vmem_to_hbm [thread:$0]  %s3411, 256, %s3409, %s3395, 128, 128, 8
        $region88: #{transformer_encoder.3} parent=79 // pred_fallthru
          _
      $region80: #{transformer_encoder.3} parent=5 // pred_fallthru
        _
      %p3417 = scmp.le.s32.totalorder 2, %s24
      // Predicated region
      $region89: #{transformer_encoder.3} parent=5 // pred_check
        %p3418 = pneg %p3417
      $region90: #{transformer_encoder.3} parent=5 // pred_check_branch
        %3420 = sbr.rel (%p3418) target = $region92
      $region91: #{transformer_encoder.3} parent=5 // pred_region
        %s3421 = ssub.s32 %s24, 2
        // Predicated region
        $region93: #{transformer_encoder.3} parent=91 // pred_check
          %p3422 = pneg %p387
        $region94: #{transformer_encoder.3} parent=91 // pred_check_branch
          %3424 = sbr.rel (%p3422) target = $region96
        $region95: #{transformer_encoder.3} parent=91 // pred_region
          %s3425 = sand.u32 %s372, 1
          %s3426 = scalar_lea.sflag [#allocation6], %s3425
          %s3427 = sand.u32 %s372, 1
          %s3428 = smul.addr %s3427, 16
          %s3429 = scalar_lea.vmem [#allocation5], %s3428
          %3430 = dma.done %s3426, 256
        $region96: #{transformer_encoder.3} parent=91 // pred_fallthru
          _
      $region92: #{transformer_encoder.3} parent=5 // pred_fallthru
        _
    $region6: #{transformer_encoder.3} parent=1 // loop_footer
      %s28 = sadd.s32 1, %s24
    $region7: #{transformer_encoder.3} parent=1 // loop_footer_branch
      %23 = sbr.rel target = $region3
    $region8: #{transformer_encoder.3} parent=1 // loop_exit
      _
    %3431 = vsyncpa [#allocation6], 1
    %s3432 = scalar_lea.sflag [#allocation6], 1
    %3433 = vsyncpa %s3432, 1

</llo_original>
